<compile_context>
chip_gen: v7x
topology: tpu7x:2x2x1
jax: 0.10.0
libtpu: 0.0.40
codegen_flags: <defaults>
</compile_context>

<pallas_src>
import jax
import jax.numpy as jnp
from jax.experimental import pallas as pl
from jax.experimental.pallas import tpu as pltpu

H = W = 40
P = H * W          # 1600 spatial positions (lane axis inside the kernel)
C1 = 32            # conv1 output channels
C2 = 64            # conv2 output channels
NTAP = 9           # 3x3 taps of conv2


# ---------------------------------------------------------------------------
# Fused Pallas kernel: conv1 + conv2 + fc, all operands resident in VMEM.
# Layout: channel-major, positions p = h*40 + w live on the lane axis.
# ---------------------------------------------------------------------------
def _dqn_fused_kernel(p5_ref, w1s_ref, b1_ref, tapmask_ref, w2s_ref, b2_ref,
                      wfc_ref, bfc_ref, o_ref):
    f32 = jnp.float32

    # --- conv1, evaluated at all 9 conv2 tap offsets (one MXU matmul) -------
    # p5:  [25, P]    5x5 patches of the zero-padded input (column p = h*40+w)
    # w1s: [288, 25]  conv1 kernel embedded at each of the 9 shifts
    # z[t*32+c1, p] = relu(conv1)[c1] at position (h,w) + tap-t offset
    z = jnp.dot(w1s_ref[...], p5_ref[...],
                preferred_element_type=f32) + b1_ref[...]
    z = jnp.maximum(z, 0.0)                                        # [288, P]

    # --- border masking: single fused multiply (no slices, no concat) -------
    # tapmask[t, 0, p] = 1 iff tap t of position p lies inside the 40x40 image
    # (applied AFTER bias+ReLU so conv2's SAME zero padding is reproduced).
    s = (z.reshape(NTAP, C1, P) * tapmask_ref[...]).reshape(NTAP * C1, P)

    # --- conv2: one MXU matmul over the 288-deep contraction ----------------
    y2 = jnp.dot(w2s_ref[...], s, preferred_element_type=f32) + b2_ref[...]
    y2 = jnp.maximum(y2, 0.0)                                      # [64, P]

    # --- fc on the VPU: broadcast multiply + reductions (lane-dense) --------
    # wfc: [A, 64, P] with wfc[a, c, p] == torch fc.weight[a, c*1600 + p]
    prod = wfc_ref[...] * y2[None, :, :]                           # [A, 64, P]
    out = jnp.sum(prod, axis=2)                                    # [A, 64]
    out = jnp.sum(out, axis=1)                                     # [A]
    o_ref[...] = out[None, :] + bfc_ref[...]                       # [1, A]


def _fused_call(p5, pp):
    n_act = pp["bfc"].shape[1]
    return pl.pallas_call(
        _dqn_fused_kernel,
        out_shape=jax.ShapeDtypeStruct((1, n_act), jnp.float32),
        in_specs=[pl.BlockSpec(memory_space=pltpu.MemorySpace.VMEM)] * 8,
        out_specs=pl.BlockSpec(memory_space=pltpu.MemorySpace.VMEM),
        compiler_params=pltpu.CompilerParams(
            vmem_limit_bytes=32 * 1024 * 1024),
        cost_estimate=pl.CostEstimate(
            flops=83_500_000, transcendentals=0, bytes_accessed=2_100_000),
    )(p5, pp["w1s"], pp["b1"], pp["tapmask"], pp["w2s"], pp["b2"],
      pp["wfc"], pp["bfc"])


# ---------------------------------------------------------------------------
# One-time parameter reformatting (hoisted out of the per-call forward).
# ---------------------------------------------------------------------------
def prepare_params(params):
    w1 = params["conv1_w"].astype(jnp.float32)     # [32, 1, 3, 3] OIHW
    w2 = params["conv2_w"].astype(jnp.float32)     # [64, 32, 3, 3] OIHW
    fc_w = params["fc_w"].astype(jnp.float32)      # [A, 64*40*40]
    n_act = fc_w.shape[0]

    # conv1 kernel embedded at each of the 9 conv2 tap shifts inside a 5x5
    # input patch:  w1s[t*32 + c1, py*5 + px] = w1[c1, 0, py - dy, px - dx]
    base = jnp.transpose(w1[:, 0], (1, 2, 0))                    # [3, 3, 32]
    blocks = []
    for dy in range(3):
        for dx in range(3):
            blk = jnp.zeros((5, 5, C1), jnp.float32)
            blk = blk.at[dy:dy + 3, dx:dx + 3, :].set(base)      # [5, 5, 32]
            blocks.append(jnp.transpose(blk.reshape(25, C1)))    # [32, 25]
    w1s = jnp.concatenate(blocks, axis=0)                        # [288, 25]
    b1 = jnp.tile(params["conv1_b"].astype(jnp.float32),
                  NTAP).reshape(NTAP * C1, 1)

    # conv2 weight: w2s[c2, t*32 + c1] = w2[c2, c1, dy, dx],  t = dy*3 + dx
    w2s = jnp.transpose(w2, (0, 2, 3, 1)).reshape(C2, NTAP * C1)  # [64, 288]
    b2 = params["conv2_b"].astype(jnp.float32).reshape(C2, 1)

    # fc weight, lane-dense: wfc[a, c, p] with p = h*40 + w (torch flatten order)
    wfc = fc_w.reshape(n_act, C2, P)                              # [A, 64, 1600]
    bfc = params["fc_b"].astype(jnp.float32).reshape(1, n_act)    # [1, A]

    # Per-tap border-validity masks as one constant [9, 1, P]:
    # tapmask[dy*3+dx, 0, h*40+w] = 1 iff (h+dy-1, w+dx-1) inside the image.
    pid = jnp.arange(P, dtype=jnp.int32)
    hh, ww = pid // W, pid % W
    rows = []
    for dy in range(3):
        for dx in range(3):
            hv = jnp.logical_and(hh + dy - 1 >= 0, hh + dy - 1 <= H - 1)
            wv = jnp.logical_and(ww + dx - 1 >= 0, ww + dx - 1 <= W - 1)
            rows.append(jnp.logical_and(hv, wv).astype(jnp.float32))
    tapmask = jnp.stack(rows, axis=0).reshape(NTAP, 1, P)

    return {"w1s": w1s, "b1": b1, "w2s": w2s, "b2": b2,
            "wfc": wfc, "bfc": bfc, "tapmask": tapmask}


# ---------------------------------------------------------------------------
# Forward pass (PyTorch semantics; torch.flatten() implies batch == 1).
# ---------------------------------------------------------------------------
@jax.jit
def dqn_forward(prepped, x_nchw):
    # x_nchw: [1, 1, 40, 40]
    x = x_nchw.reshape(1, 1, H, W).astype(jnp.float32)
    # 5x5 SAME patches of the input in one HLO op: [1, 25, 40, 40]
    patches = jax.lax.conv_general_dilated_patches(
        x, filter_shape=(5, 5), window_strides=(1, 1),
        padding=((2, 2), (2, 2)),
        dimension_numbers=("NCHW", "OIHW", "NCHW"))
    p5 = patches.reshape(25, P)                                   # [25, 1600]
    out = _fused_call(p5, prepped)                                # [1, A]
    return out[0]                                                 # [n_actions]


# ---------------------------------------------------------------------------
# Synthetic PyTorch-style init + plain-JAX reference for validation.
# ---------------------------------------------------------------------------
def init_params(key, n_actions):
    k1, k2, k3, k4, k5, k6 = jax.random.split(key, 6)

    def u(k, shape, fan_in):
        bound = 1.0 / jnp.sqrt(jnp.float32(fan_in))
        return jax.random.uniform(k, shape, jnp.float32, -bound, bound)

    # fc1 / fc2 from __init__ are unused by forward(); not materialized.
    return {
        "conv1_w": u(k1, (C1, 1, 3, 3), 1 * 9),
        "conv1_b": u(k2, (C1,), 1 * 9),
        "conv2_w": u(k3, (C2, C1, 3, 3), C1 * 9),
        "conv2_b": u(k4, (C2,), C1 * 9),
        "fc_w": u(k5, (n_actions, C2 * H * W), C2 * H * W),
        "fc_b": u(k6, (n_actions,), C2 * H * W),
    }


def dqn_forward_ref(params, x_nchw):
    dn = ("NCHW", "OIHW", "NCHW")
    prec = jax.lax.Precision.HIGHEST
    y = jax.lax.conv_general_dilated(x_nchw, params["conv1_w"], (1, 1), "SAME",
                                     dimension_numbers=dn, precision=prec)
    y = jax.nn.relu(y + params["conv1_b"][None, :, None, None])
    y = jax.lax.conv_general_dilated(y, params["conv2_w"], (1, 1), "SAME",
                                     dimension_numbers=dn, precision=prec)
    y = jax.nn.relu(y + params["conv2_b"][None, :, None, None])
    flat = y.reshape(-1)                    # (c, h, w) order, like torch.flatten
    return jnp.dot(params["fc_w"], flat, precision=prec) + params["fc_b"]


if __name__ == "__main__":
    key = jax.random.PRNGKey(0)
    kp, kx = jax.random.split(key)
    n_actions = 4

    params = init_params(kp, n_actions)
    prepped = prepare_params(params)        # one-time weight reformatting
    x = jax.random.normal(kx, (1, 1, H, W), jnp.float32)

    out = dqn_forward(prepped, x)
    jax.block_until_ready(out)

    ref = dqn_forward_ref(params, x)
    assert out.shape == (n_actions,)
    assert jnp.allclose(out, ref, rtol=2e-3, atol=2e-3), (out, ref)
    print("KERNEL_OK")
</pallas_src>

<mosaic_0001>
module attributes {stable_mosaic.version = 11 : i64} {
  func.func @_dqn_fused_kernel(%arg0: memref<25x1600xf32, #tpu.memory_space<vmem>>, %arg1: memref<288x25xf32, #tpu.memory_space<vmem>>, %arg2: memref<288x1xf32, #tpu.memory_space<vmem>>, %arg3: memref<9x1x1600xf32, #tpu.memory_space<vmem>>, %arg4: memref<64x288xf32, #tpu.memory_space<vmem>>, %arg5: memref<64x1xf32, #tpu.memory_space<vmem>>, %arg6: memref<4x64x1600xf32, #tpu.memory_space<vmem>>, %arg7: memref<1x4xf32, #tpu.memory_space<vmem>>, %arg8: memref<1x4xf32, #tpu.memory_space<vmem>>) attributes {dimension_semantics = [], scalar_prefetch = 0 : i64, scratch_operands = 0 : i64, tpu.core_type = #tpu.core_type<tc>} {
    %c0 = arith.constant 0 : index
    %c0_0 = arith.constant 0 : index
    %0 = vector.load %arg1[%c0, %c0_0] : memref<288x25xf32, #tpu.memory_space<vmem>>, vector<288x25xf32>
    %c0_1 = arith.constant 0 : index
    %c0_2 = arith.constant 0 : index
    %1 = vector.load %arg0[%c0_1, %c0_2] : memref<25x1600xf32, #tpu.memory_space<vmem>>, vector<25x1600xf32>
    %cst = arith.constant dense<0.000000e+00> : vector<288x1600xf32>
    %2 = tpu.matmul %0, %1, %cst {dimension_numbers = #tpu.dot_dimension_numbers<[1], [0], [0], [1], [0, 0, 1, 1], [], []>} : vector<288x25xf32>, vector<25x1600xf32>, vector<288x1600xf32> -> vector<288x1600xf32>
    %c0_3 = arith.constant 0 : index
    %c0_4 = arith.constant 0 : index
    %3 = vector.load %arg2[%c0_3, %c0_4] : memref<288x1xf32, #tpu.memory_space<vmem>>, vector<288x1xf32>
    %4 = vector.broadcast %3 : vector<288x1xf32> to vector<288x1600xf32>
    %5 = arith.addf %2, %4 : vector<288x1600xf32>
    %cst_5 = arith.constant 0.000000e+00 : f32
    %6 = vector.broadcast %cst_5 : f32 to vector<288x1600xf32>
    %7 = arith.maximumf %5, %6 : vector<288x1600xf32>
    %8 = vector.shape_cast %7 : vector<288x1600xf32> to vector<9x32x1600xf32>
    %c0_6 = arith.constant 0 : index
    %c0_7 = arith.constant 0 : index
    %c0_8 = arith.constant 0 : index
    %9 = vector.load %arg3[%c0_6, %c0_7, %c0_8] : memref<9x1x1600xf32, #tpu.memory_space<vmem>>, vector<9x1x1600xf32>
    %10 = vector.broadcast %9 : vector<9x1x1600xf32> to vector<9x32x1600xf32>
    %11 = arith.mulf %8, %10 : vector<9x32x1600xf32>
    %12 = vector.shape_cast %11 : vector<9x32x1600xf32> to vector<288x1600xf32>
    %c0_9 = arith.constant 0 : index
    %c0_10 = arith.constant 0 : index
    %13 = vector.load %arg4[%c0_9, %c0_10] : memref<64x288xf32, #tpu.memory_space<vmem>>, vector<64x288xf32>
    %cst_11 = arith.constant dense<0.000000e+00> : vector<64x1600xf32>
    %14 = tpu.matmul %13, %12, %cst_11 {dimension_numbers = #tpu.dot_dimension_numbers<[1], [0], [0], [1], [0, 0, 1, 1], [], []>} : vector<64x288xf32>, vector<288x1600xf32>, vector<64x1600xf32> -> vector<64x1600xf32>
    %c0_12 = arith.constant 0 : index
    %c0_13 = arith.constant 0 : index
    %15 = vector.load %arg5[%c0_12, %c0_13] : memref<64x1xf32, #tpu.memory_space<vmem>>, vector<64x1xf32>
    %16 = vector.broadcast %15 : vector<64x1xf32> to vector<64x1600xf32>
    %17 = arith.addf %14, %16 : vector<64x1600xf32>
    %cst_14 = arith.constant 0.000000e+00 : f32
    %18 = vector.broadcast %cst_14 : f32 to vector<64x1600xf32>
    %19 = arith.maximumf %17, %18 : vector<64x1600xf32>
    %c0_15 = arith.constant 0 : index
    %c0_16 = arith.constant 0 : index
    %c0_17 = arith.constant 0 : index
    %20 = vector.load %arg6[%c0_15, %c0_16, %c0_17] : memref<4x64x1600xf32, #tpu.memory_space<vmem>>, vector<4x64x1600xf32>
    %21 = vector.shape_cast %19 : vector<64x1600xf32> to vector<1x64x1600xf32>
    %22 = vector.broadcast %21 : vector<1x64x1600xf32> to vector<4x64x1600xf32>
    %23 = arith.mulf %20, %22 : vector<4x64x1600xf32>
    %cst_18 = arith.constant dense<0.000000e+00> : vector<4x64xf32>
    %24 = vector.multi_reduction <add>, %23, %cst_18 [2] : vector<4x64x1600xf32> to vector<4x64xf32>
    %cst_19 = arith.constant dense<0.000000e+00> : vector<4xf32>
    %25 = vector.multi_reduction <add>, %24, %cst_19 [1] : vector<4x64xf32> to vector<4xf32>
    %26 = vector.shape_cast %25 : vector<4xf32> to vector<1x4xf32>
    %c0_20 = arith.constant 0 : index
    %c0_21 = arith.constant 0 : index
    %27 = vector.load %arg7[%c0_20, %c0_21] : memref<1x4xf32, #tpu.memory_space<vmem>>, vector<1x4xf32>
    %28 = arith.addf %26, %27 : vector<1x4xf32>
    %c0_22 = arith.constant 0 : index
    %c0_23 = arith.constant 0 : index
    %29 = vector.load %arg8[%c0_22, %c0_23] : memref<1x4xf32, #tpu.memory_space<vmem>>, vector<1x4xf32>
    tpu.vector_store %arg8[%c0_22, %c0_23], %28 {strides = array<i32>} : memref<1x4xf32, #tpu.memory_space<vmem>>, vector<1x4xf32>,
    return
  }
}

</mosaic_0001>

<llo_original>
// kernel: dqn_forward.1
$region0: #{dqn_forward.1}
  #allocation0 [shape = 'u32[]', space=smem, size = 0x4, offset = 0x4, fixed_abs, tag = 'smem constant byte address 0x4 - core index']
  #allocation1 [shape = 'u32[144,128]{1,0:T(1,128)}', space=vmem, size = 0x12000, scoped, tag = 'internal scratch']
  %s0 = inlined_call_operand.vmem [shape: f32[25,1600], index: 0, kind: input, shape index: {}]
  %s1 = inlined_call_operand.vmem [shape: f32[288,25], index: 1, kind: input, shape index: {}]
  %s2 = inlined_call_operand.vmem [shape: f32[288,1], index: 2, kind: input, shape index: {}]
  %s3 = inlined_call_operand.vmem [shape: f32[9,1,1600], index: 3, kind: input, shape index: {}]
  %s4 = inlined_call_operand.vmem [shape: f32[64,288], index: 4, kind: input, shape index: {}]
  %s5 = inlined_call_operand.vmem [shape: f32[64,1], index: 5, kind: input, shape index: {}]
  %s6 = inlined_call_operand.vmem [shape: f32[4,64,1600], index: 6, kind: input, shape index: {}]
  %s7 = inlined_call_operand.vmem [shape: f32[1,4], index: 7, kind: input, shape index: {}]
  %s8 = inlined_call_operand.hbm [shape: f32[1,4], index: 8, kind: output, shape index: {}]
  %s9 = sld [smem:[#allocation0]]
  $region42: #{dqn_forward.1} parent=0
    _
  %s11 = ssub.s32 1, %s9
  %s12 = scalar_select 0, %s11, %s9
  $region1: #{dqn_forward.1} parent=0
    #allocation2 [shape = 'u8[512]{0}', space=vmem, size = 0x400, scoped, tag = 'output window, operand 0, single buffered']
    #allocation3 [shape = 's32[1]{0}', space=sflag, size = 0x4, scoped, tag = 'scoped memory for dqn_forward.1']
    %13 = vsyncpa [#allocation3], 0
    // Predicated region
    $region2: #{dqn_forward.1} parent=1 // pred_check
      _
    $region3: #{dqn_forward.1} parent=1 // pred_check_branch
      %15 = sbr.rel (0) target = $region5
    $region4: #{dqn_forward.1} parent=1 // pred_region
      _
    $region5: #{dqn_forward.1} parent=1 // pred_fallthru
      _
    // Predicated region
    $region6: #{dqn_forward.1} parent=1 // pred_check
      _
    $region7: #{dqn_forward.1} parent=1 // pred_check_branch
      %17 = sbr.rel (0) target = $region9
    $region8: #{dqn_forward.1} parent=1 // pred_region
      _
    $region9: #{dqn_forward.1} parent=1 // pred_fallthru
      _
    // Predicated region
    $region10: #{dqn_forward.1} parent=1 // pred_check
      _
    $region11: #{dqn_forward.1} parent=1 // pred_check_branch
      %19 = sbr.rel (0) target = $region13
    $region12: #{dqn_forward.1} parent=1 // pred_region
      _
    $region13: #{dqn_forward.1} parent=1 // pred_fallthru
      _
    // Predicated region
    $region14: #{dqn_forward.1} parent=1 // pred_check
      _
    $region15: #{dqn_forward.1} parent=1 // pred_check_branch
      %21 = sbr.rel (0) target = $region17
    $region16: #{dqn_forward.1} parent=1 // pred_region
      _
    $region17: #{dqn_forward.1} parent=1 // pred_fallthru
      _
    // Predicated region
    $region18: #{dqn_forward.1} parent=1 // pred_check
      _
    $region19: #{dqn_forward.1} parent=1 // pred_check_branch
      %23 = sbr.rel (0) target = $region21
    $region20: #{dqn_forward.1} parent=1 // pred_region
      _
    $region21: #{dqn_forward.1} parent=1 // pred_fallthru
      _
    // Predicated region
    $region22: #{dqn_forward.1} parent=1 // pred_check
      _
    $region23: #{dqn_forward.1} parent=1 // pred_check_branch
      %25 = sbr.rel (0) target = $region25
    $region24: #{dqn_forward.1} parent=1 // pred_region
      _
    $region25: #{dqn_forward.1} parent=1 // pred_fallthru
      _
    // Predicated region
    $region26: #{dqn_forward.1} parent=1 // pred_check
      _
    $region27: #{dqn_forward.1} parent=1 // pred_check_branch
      %27 = sbr.rel (0) target = $region29
    $region28: #{dqn_forward.1} parent=1 // pred_region
      _
    $region29: #{dqn_forward.1} parent=1 // pred_fallthru
      _
    // Predicated region
    $region30: #{dqn_forward.1} parent=1 // pred_check
      _
    $region31: #{dqn_forward.1} parent=1 // pred_check_branch
      %29 = sbr.rel (0) target = $region33
    $region32: #{dqn_forward.1} parent=1 // pred_region
      _
    $region33: #{dqn_forward.1} parent=1 // pred_fallthru
      _
    %v30 = vld [vmem:[%s1] sm:$0xff]
    %v31 = vld [vmem:[%s1 + $0x8] sm:$0xff]
    %v32 = vld [vmem:[%s1 + $0x10] sm:$0xff]
    %v33 = vld [vmem:[%s1 + $0x18] sm:$0xff]
    %v34 = vld [vmem:[%s1 + $0x20] sm:$0xff]
    %v35 = vld [vmem:[%s1 + $0x28] sm:$0xff]
    %v36 = vld [vmem:[%s1 + $0x30] sm:$0xff]
    %v37 = vld [vmem:[%s1 + $0x38] sm:$0xff]
    %v38 = vld [vmem:[%s1 + $0x40] sm:$0xff]
    %v39 = vld [vmem:[%s1 + $0x48] sm:$0xff]
    %v40 = vld [vmem:[%s1 + $0x50] sm:$0xff]
    %v41 = vld [vmem:[%s1 + $0x58] sm:$0xff]
    %v42 = vld [vmem:[%s1 + $0x60] sm:$0xff]
    %v43 = vld [vmem:[%s1 + $0x68] sm:$0xff]
    %v44 = vld [vmem:[%s1 + $0x70] sm:$0xff]
    %v45 = vld [vmem:[%s1 + $0x78] sm:$0xff]
    %v46 = vld [vmem:[%s1 + $0x80] sm:$0xff]
    %v47 = vld [vmem:[%s1 + $0x88] sm:$0xff]
    %v48 = vld [vmem:[%s1 + $0x90] sm:$0xff]
    %v49 = vld [vmem:[%s1 + $0x98] sm:$0xff]
    %v50 = vld [vmem:[%s1 + $0xa0] sm:$0xff]
    %v51 = vld [vmem:[%s1 + $0xa8] sm:$0xff]
    %v52 = vld [vmem:[%s1 + $0xb0] sm:$0xff]
    %v53 = vld [vmem:[%s1 + $0xb8] sm:$0xff]
    %v54 = vld [vmem:[%s1 + $0xc0] sm:$0xff]
    %v55 = vld [vmem:[%s1 + $0xc8] sm:$0xff]
    %v56 = vld [vmem:[%s1 + $0xd0] sm:$0xff]
    %v57 = vld [vmem:[%s1 + $0xd8] sm:$0xff]
    %v58 = vld [vmem:[%s1 + $0xe0] sm:$0xff]
    %v59 = vld [vmem:[%s1 + $0xe8] sm:$0xff]
    %v60 = vld [vmem:[%s1 + $0xf0] sm:$0xff]
    %v61 = vld [vmem:[%s1 + $0xf8] sm:$0xff]
    %v62 = vld [vmem:[%s1 + $0x100] sm:$0xff]
    %v63 = vld [vmem:[%s1 + $0x108] sm:$0xff]
    %v64 = vld [vmem:[%s1 + $0x110] sm:$0xff]
    %v65 = vld [vmem:[%s1 + $0x118] sm:$0xff]
    %v66 = vld [vmem:[%s0] sm:$0xff]
    %v67 = vld [vmem:[%s0 + $0x8] sm:$0xff]
    %v68 = vld [vmem:[%s0 + $0x10] sm:$0xff]
    %v69 = vld [vmem:[%s0 + $0x18] sm:$0xff]
    %v70 = vld [vmem:[%s0 + $0x20] sm:$0xff]
    %v71 = vld [vmem:[%s0 + $0x28] sm:$0xff]
    %v72 = vld [vmem:[%s0 + $0x30] sm:$0xff]
    %v73 = vld [vmem:[%s0 + $0x38] sm:$0xff]
    %v74 = vld [vmem:[%s0 + $0x40] sm:$0xff]
    %v75 = vld [vmem:[%s0 + $0x48] sm:$0xff]
    %v76 = vld [vmem:[%s0 + $0x50] sm:$0xff]
    %v77 = vld [vmem:[%s0 + $0x58] sm:$0xff]
    %v78 = vld [vmem:[%s0 + $0x60] sm:$0xff]
    %v79 = vld [vmem:[%s0 + $0x68] sm:$0xff]
    %v80 = vld [vmem:[%s0 + $0x70] sm:$0xff]
    %v81 = vld [vmem:[%s0 + $0x78] sm:$0xff]
    %v82 = vld [vmem:[%s0 + $0x80] sm:$0xff]
    %v83 = vld [vmem:[%s0 + $0x88] sm:$0xff]
    %v84 = vld [vmem:[%s0 + $0x90] sm:$0xff]
    %v85 = vld [vmem:[%s0 + $0x98] sm:$0xff]
    %v86 = vld [vmem:[%s0 + $0xa0] sm:$0xff]
    %v87 = vld [vmem:[%s0 + $0xa8] sm:$0xff]
    %v88 = vld [vmem:[%s0 + $0xb0] sm:$0xff]
    %v89 = vld [vmem:[%s0 + $0xb8] sm:$0xff]
    %v90 = vld [vmem:[%s0 + $0xc0] sm:$0xff]
    %v91 = vld [vmem:[%s0 + $0xc8] sm:$0xff]
    %v92 = vld [vmem:[%s0 + $0xd0] sm:$0xff]
    %v93 = vld [vmem:[%s0 + $0xd8] sm:$0xff]
    %v94 = vld [vmem:[%s0 + $0xe0] sm:$0xff]
    %v95 = vld [vmem:[%s0 + $0xe8] sm:$0xff]
    %v96 = vld [vmem:[%s0 + $0xf0] sm:$0xff]
    %v97 = vld [vmem:[%s0 + $0xf8] sm:$0xff]
    %v98 = vld [vmem:[%s0 + $0x100] sm:$0xff]
    %v99 = vld [vmem:[%s0 + $0x108] sm:$0xff]
    %v100 = vld [vmem:[%s0 + $0x110] sm:$0xff]
    %v101 = vld [vmem:[%s0 + $0x118] sm:$0xff]
    %v102 = vld [vmem:[%s0 + $0x120] sm:$0xff]
    %v103 = vld [vmem:[%s0 + $0x128] sm:$0xff]
    %v104 = vld [vmem:[%s0 + $0x130] sm:$0xff]
    %v105 = vld [vmem:[%s0 + $0x138] sm:$0x1]
    %v106 = vld [vmem:[%s0 + $0x140] sm:$0x1]
    %v107 = vld [vmem:[%s0 + $0x148] sm:$0x1]
    %v108 = vld [vmem:[%s0 + $0x150] sm:$0x1]
    %v109 = vld [vmem:[%s0 + $0x158] sm:$0x1]
    %v110 = vld [vmem:[%s0 + $0x160] sm:$0x1]
    %v111 = vld [vmem:[%s0 + $0x168] sm:$0x1]
    %v112 = vld [vmem:[%s0 + $0x170] sm:$0x1]
    %v113 = vld [vmem:[%s0 + $0x178] sm:$0x1]
    %v114 = vld [vmem:[%s0 + $0x180] sm:$0x1]
    %v115 = vld [vmem:[%s0 + $0x188] sm:$0x1]
    %v116 = vld [vmem:[%s0 + $0x190] sm:$0x1]
    %v117 = vld [vmem:[%s0 + $0x198] sm:$0x1]
    %v118 = vld [vmem:[%s2] sm:$0xff]
    %v119 = vld [vmem:[%s2 + $0x8] sm:$0xff]
    %v120 = vld [vmem:[%s2 + $0x10] sm:$0xff]
    %v121 = vld [vmem:[%s2 + $0x18] sm:$0xff]
    %v122 = vld [vmem:[%s2 + $0x20] sm:$0xff]
    %v123 = vld [vmem:[%s2 + $0x28] sm:$0xff]
    %v124 = vld [vmem:[%s2 + $0x30] sm:$0xff]
    %v125 = vld [vmem:[%s2 + $0x38] sm:$0xff]
    %v126 = vld [vmem:[%s2 + $0x40] sm:$0xff]
    %v127 = vld [vmem:[%s2 + $0x48] sm:$0xff]
    %v128 = vld [vmem:[%s2 + $0x50] sm:$0xff]
    %v129 = vld [vmem:[%s2 + $0x58] sm:$0xff]
    %v130 = vld [vmem:[%s2 + $0x60] sm:$0xff]
    %v131 = vld [vmem:[%s2 + $0x68] sm:$0xff]
    %v132 = vld [vmem:[%s2 + $0x70] sm:$0xff]
    %v133 = vld [vmem:[%s2 + $0x78] sm:$0xff]
    %v134 = vld [vmem:[%s2 + $0x80] sm:$0xff]
    %v135 = vld [vmem:[%s2 + $0x88] sm:$0xff]
    %v136 = vld [vmem:[%s2 + $0x90] sm:$0xff]
    %v137 = vld [vmem:[%s2 + $0x98] sm:$0xff]
    %v138 = vld [vmem:[%s2 + $0xa0] sm:$0xff]
    %v139 = vld [vmem:[%s2 + $0xa8] sm:$0xff]
    %v140 = vld [vmem:[%s2 + $0xb0] sm:$0xff]
    %v141 = vld [vmem:[%s2 + $0xb8] sm:$0xff]
    %v142 = vld [vmem:[%s2 + $0xc0] sm:$0xff]
    %v143 = vld [vmem:[%s2 + $0xc8] sm:$0xff]
    %v144 = vld [vmem:[%s2 + $0xd0] sm:$0xff]
    %v145 = vld [vmem:[%s2 + $0xd8] sm:$0xff]
    %v146 = vld [vmem:[%s2 + $0xe0] sm:$0xff]
    %v147 = vld [vmem:[%s2 + $0xe8] sm:$0xff]
    %v148 = vld [vmem:[%s2 + $0xf0] sm:$0xff]
    %v149 = vld [vmem:[%s2 + $0xf8] sm:$0xff]
    %v150 = vld [vmem:[%s2 + $0x100] sm:$0xff]
    %v151 = vld [vmem:[%s2 + $0x108] sm:$0xff]
    %v152 = vld [vmem:[%s2 + $0x110] sm:$0xff]
    %v153 = vld [vmem:[%s2 + $0x118] sm:$0xff]
    %155 = vset.pattern.permute.xlu0 0
    %156 = vperm.xlu0 %155, %v118
    %v157 = vpop.permute.xlu0 %156
    %160 = vset.pattern.permute.xlu0 0
    %161 = vperm.xlu0 %160, %v119
    %v162 = vpop.permute.xlu0 %161
    %165 = vset.pattern.permute.xlu0 0
    %166 = vperm.xlu0 %165, %v120
    %v167 = vpop.permute.xlu0 %166
    %170 = vset.pattern.permute.xlu0 0
    %171 = vperm.xlu0 %170, %v121
    %v172 = vpop.permute.xlu0 %171
    %175 = vset.pattern.permute.xlu0 0
    %176 = vperm.xlu0 %175, %v122
    %v177 = vpop.permute.xlu0 %176
    %180 = vset.pattern.permute.xlu0 0
    %181 = vperm.xlu0 %180, %v123
    %v182 = vpop.permute.xlu0 %181
    %185 = vset.pattern.permute.xlu0 0
    %186 = vperm.xlu0 %185, %v124
    %v187 = vpop.permute.xlu0 %186
    %190 = vset.pattern.permute.xlu0 0
    %191 = vperm.xlu0 %190, %v125
    %v192 = vpop.permute.xlu0 %191
    %195 = vset.pattern.permute.xlu0 0
    %196 = vperm.xlu0 %195, %v126
    %v197 = vpop.permute.xlu0 %196
    %200 = vset.pattern.permute.xlu0 0
    %201 = vperm.xlu0 %200, %v127
    %v202 = vpop.permute.xlu0 %201
    %205 = vset.pattern.permute.xlu0 0
    %206 = vperm.xlu0 %205, %v128
    %v207 = vpop.permute.xlu0 %206
    %210 = vset.pattern.permute.xlu0 0
    %211 = vperm.xlu0 %210, %v129
    %v212 = vpop.permute.xlu0 %211
    %215 = vset.pattern.permute.xlu0 0
    %216 = vperm.xlu0 %215, %v130
    %v217 = vpop.permute.xlu0 %216
    %220 = vset.pattern.permute.xlu0 0
    %221 = vperm.xlu0 %220, %v131
    %v222 = vpop.permute.xlu0 %221
    %225 = vset.pattern.permute.xlu0 0
    %226 = vperm.xlu0 %225, %v132
    %v227 = vpop.permute.xlu0 %226
    %230 = vset.pattern.permute.xlu0 0
    %231 = vperm.xlu0 %230, %v133
    %v232 = vpop.permute.xlu0 %231
    %235 = vset.pattern.permute.xlu0 0
    %236 = vperm.xlu0 %235, %v134
    %v237 = vpop.permute.xlu0 %236
    %240 = vset.pattern.permute.xlu0 0
    %241 = vperm.xlu0 %240, %v135
    %v242 = vpop.permute.xlu0 %241
    %245 = vset.pattern.permute.xlu0 0
    %246 = vperm.xlu0 %245, %v136
    %v247 = vpop.permute.xlu0 %246
    %250 = vset.pattern.permute.xlu0 0
    %251 = vperm.xlu0 %250, %v137
    %v252 = vpop.permute.xlu0 %251
    %255 = vset.pattern.permute.xlu0 0
    %256 = vperm.xlu0 %255, %v138
    %v257 = vpop.permute.xlu0 %256
    %260 = vset.pattern.permute.xlu0 0
    %261 = vperm.xlu0 %260, %v139
    %v262 = vpop.permute.xlu0 %261
    %265 = vset.pattern.permute.xlu0 0
    %266 = vperm.xlu0 %265, %v140
    %v267 = vpop.permute.xlu0 %266
    %270 = vset.pattern.permute.xlu0 0
    %271 = vperm.xlu0 %270, %v141
    %v272 = vpop.permute.xlu0 %271
    %275 = vset.pattern.permute.xlu0 0
    %276 = vperm.xlu0 %275, %v142
    %v277 = vpop.permute.xlu0 %276
    %280 = vset.pattern.permute.xlu0 0
    %281 = vperm.xlu0 %280, %v143
    %v282 = vpop.permute.xlu0 %281
    %285 = vset.pattern.permute.xlu0 0
    %286 = vperm.xlu0 %285, %v144
    %v287 = vpop.permute.xlu0 %286
    %290 = vset.pattern.permute.xlu0 0
    %291 = vperm.xlu0 %290, %v145
    %v292 = vpop.permute.xlu0 %291
    %295 = vset.pattern.permute.xlu0 0
    %296 = vperm.xlu0 %295, %v146
    %v297 = vpop.permute.xlu0 %296
    %300 = vset.pattern.permute.xlu0 0
    %301 = vperm.xlu0 %300, %v147
    %v302 = vpop.permute.xlu0 %301
    %305 = vset.pattern.permute.xlu0 0
    %306 = vperm.xlu0 %305, %v148
    %v307 = vpop.permute.xlu0 %306
    %310 = vset.pattern.permute.xlu0 0
    %311 = vperm.xlu0 %310, %v149
    %v312 = vpop.permute.xlu0 %311
    %315 = vset.pattern.permute.xlu0 0
    %316 = vperm.xlu0 %315, %v150
    %v317 = vpop.permute.xlu0 %316
    %320 = vset.pattern.permute.xlu0 0
    %321 = vperm.xlu0 %320, %v151
    %v322 = vpop.permute.xlu0 %321
    %325 = vset.pattern.permute.xlu0 0
    %326 = vperm.xlu0 %325, %v152
    %v327 = vpop.permute.xlu0 %326
    %330 = vset.pattern.permute.xlu0 0
    %331 = vperm.xlu0 %330, %v153
    %v332 = vpop.permute.xlu0 %331
    %vm334 = vcmask 203776
    %v336 = vsel %vm334, %v30, 0
    %v339 = vsel %vm334, %v31, 0
    %v342 = vsel %vm334, %v32, 0
    %v345 = vsel %vm334, %v33, 0
    %v348 = vsel %vm334, %v34, 0
    %v351 = vsel %vm334, %v35, 0
    %v354 = vsel %vm334, %v36, 0
    %v357 = vsel %vm334, %v37, 0
    %v360 = vsel %vm334, %v38, 0
    %v363 = vsel %vm334, %v39, 0
    %v366 = vsel %vm334, %v40, 0
    %v369 = vsel %vm334, %v41, 0
    %v372 = vsel %vm334, %v42, 0
    %v375 = vsel %vm334, %v43, 0
    %v378 = vsel %vm334, %v44, 0
    %v381 = vsel %vm334, %v45, 0
    %v384 = vsel %vm334, %v46, 0
    %v387 = vsel %vm334, %v47, 0
    %v390 = vsel %vm334, %v48, 0
    %v393 = vsel %vm334, %v49, 0
    %v396 = vsel %vm334, %v50, 0
    %v399 = vsel %vm334, %v51, 0
    %v402 = vsel %vm334, %v52, 0
    %v405 = vsel %vm334, %v53, 0
    %v408 = vsel %vm334, %v54, 0
    %v411 = vsel %vm334, %v55, 0
    %v414 = vsel %vm334, %v56, 0
    %v417 = vsel %vm334, %v57, 0
    %v420 = vsel %vm334, %v58, 0
    %v423 = vsel %vm334, %v59, 0
    %v426 = vsel %vm334, %v60, 0
    %v429 = vsel %vm334, %v61, 0
    %v432 = vsel %vm334, %v62, 0
    %v435 = vsel %vm334, %v63, 0
    %v438 = vsel %vm334, %v64, 0
    %v441 = vsel %vm334, %v65, 0
    %vm443 = vcmask 1040384
    %v445 = vsel %vm443, %v105, 0
    %v448 = vsel %vm443, %v106, 0
    %v451 = vsel %vm443, %v107, 0
    %v454 = vsel %vm443, %v108, 0
    %v457 = vsel %vm443, %v109, 0
    %v460 = vsel %vm443, %v110, 0
    %v463 = vsel %vm443, %v111, 0
    %v466 = vsel %vm443, %v112, 0
    %v469 = vsel %vm443, %v113, 0
    %v472 = vsel %vm443, %v114, 0
    %v475 = vsel %vm443, %v115, 0
    %v478 = vsel %vm443, %v116, 0
    %v481 = vsel %vm443, %v117, 0
    %483 = vmatprep.subr.mxu0 %v67
    %484 = vmatpush1.msra.mxu0 %v66
    %485 = vmatprep.subr.mxu0 %v80
    %486 = vmatpush1.msra.mxu0 %v79
    %487 = vmatprep.subr.mxu0 %v93
    %488 = vmatpush1.msra.mxu0 %v92
    %489 = vmatprep.subr.mxu0 %v448
    %490 = vmatpush1.msra.mxu0 %v445
    %491 = vmatprep.subr.mxu0 0.0
    %492 = vmatpush1.msra.mxu0 0.0
    %493 = vmatprep.subr.mxu0 0.0
    %494 = vmatpush1.msra.mxu0 0.0
    %495 = vmatprep.subr.mxu0 0.0
    %496 = vmatpush1.msra.mxu0 0.0
    %497 = vmatprep.subr.mxu0 0.0
    %498 = vmatpush1.msra.mxu0 0.0
    %499 = vmatprep.subr.mxu0 0.0
    %500 = vmatpush1.msra.mxu0 0.0
    %501 = vmatprep.subr.mxu0 0.0
    %502 = vmatpush1.msra.mxu0 0.0
    %503 = vmatprep.subr.mxu0 0.0
    %504 = vmatpush1.msra.mxu0 0.0
    %505 = vmatprep.subr.mxu0 0.0
    %506 = vmatpush1.msra.mxu0 0.0
    %507 = vmatprep.subr.mxu0 0.0
    %508 = vmatpush1.msra.mxu0 0.0
    %509 = vmatprep.subr.mxu0 0.0
    %510 = vmatpush1.msra.mxu0 0.0
    %511 = vmatprep.subr.mxu0 0.0
    %512 = vmatpush1.msra.mxu0 0.0
    %513 = vmatprep.subr.mxu0 0.0
    %514 = vmatpush1.msra.mxu0 0.0
    %515 = vmatprep.subr.mxu0 0.0
    %516 = vmatpush1.msra.mxu0 0.0
    %517 = vmatprep.subr.mxu0 0.0
    %518 = vmatpush1.msra.mxu0 0.0
    %519 = vmatprep.subr.mxu0 0.0
    %520 = vmatpush1.msra.mxu0 0.0
    %521 = vmatprep.subr.mxu0 0.0
    %522 = vmatpush1.msra.mxu0 0.0
    %523 = vmatprep.subr.mxu0 0.0
    %524 = vmatpush1.msra.mxu0 0.0
    %525 = vmatprep.subr.mxu0 0.0
    %526 = vmatpush1.msra.mxu0 0.0
    %527 = vmatprep.subr.mxu0 0.0
    %528 = vmatpush1.msra.mxu0 0.0
    %529 = vmatprep.subr.mxu0 0.0
    %530 = vmatpush1.msra.mxu0 0.0
    %531 = vmatprep.subr.mxu0 0.0
    %532 = vmatpush1.msra.mxu0 0.0
    %533 = vmatprep.subr.mxu0 0.0
    %534 = vmatpush1.msra.mxu0 0.0
    %535 = vmatprep.subr.mxu0 0.0
    %536 = vmatpush1.msra.mxu0 0.0
    %537 = vmatprep.subr.mxu0 0.0
    %538 = vmatpush1.msra.mxu0 0.0
    %539 = vmatprep.subr.mxu0 0.0
    %540 = vmatpush1.msra.mxu0 0.0
    %541 = vmatprep.subr.mxu0 0.0
    %542 = vmatpush1.msra.mxu0 0.0
    %543 = vmatprep.subr.mxu0 0.0
    %544 = vmatpush1.msra.mxu0 0.0
    %545 = vmatprep.subr.mxu0 0.0
    %546 = vmatpush1.msra.mxu0 0.0
    %547 = vmatprep.mubr.f32.mxu0 0.0
    %548 = vmatmul.mubr.f32.gmra.mrb[0].mxu0 %v336
    %v549 = vpop.f32.mrb[0].mxu0
    %v550 = vadd.f32 %v157, %v549
    %v551 = vpop.f32.mrb[0].mxu0
    %v552 = vadd.f32 %v157, %v551
    %553 = vmatprep.mubr.f32.mxu0 0.0
    %554 = vmatmul.mubr.f32.gmra.mrb[0].mxu0 %v339
    %v555 = vpop.f32.mrb[0].mxu0
    %v556 = vadd.f32 %v162, %v555
    %v557 = vpop.f32.mrb[0].mxu0
    %v558 = vadd.f32 %v162, %v557
    %559 = vmatprep.mubr.f32.mxu0 0.0
    %560 = vmatmul.mubr.f32.gmra.mrb[0].mxu0 %v342
    %v561 = vpop.f32.mrb[0].mxu0
    %v562 = vadd.f32 %v167, %v561
    %v563 = vpop.f32.mrb[0].mxu0
    %v564 = vadd.f32 %v167, %v563
    %565 = vmatprep.mubr.f32.mxu0 0.0
    %566 = vmatmul.mubr.f32.gmra.mrb[0].mxu0 %v345
    %v567 = vpop.f32.mrb[0].mxu0
    %v568 = vadd.f32 %v172, %v567
    %v569 = vpop.f32.mrb[0].mxu0
    %v570 = vadd.f32 %v172, %v569
    %571 = vmatprep.mubr.f32.mxu0 0.0
    %572 = vmatmul.mubr.f32.gmra.mrb[0].mxu0 %v348
    %v573 = vpop.f32.mrb[0].mxu0
    %v574 = vadd.f32 %v177, %v573
    %v575 = vpop.f32.mrb[0].mxu0
    %v576 = vadd.f32 %v177, %v575
    %577 = vmatprep.mubr.f32.mxu0 0.0
    %578 = vmatmul.mubr.f32.gmra.mrb[0].mxu0 %v351
    %v579 = vpop.f32.mrb[0].mxu0
    %v580 = vadd.f32 %v182, %v579
    %v581 = vpop.f32.mrb[0].mxu0
    %v582 = vadd.f32 %v182, %v581
    %583 = vmatprep.mubr.f32.mxu0 0.0
    %584 = vmatmul.mubr.f32.gmra.mrb[0].mxu0 %v354
    %v585 = vpop.f32.mrb[0].mxu0
    %v586 = vadd.f32 %v187, %v585
    %v587 = vpop.f32.mrb[0].mxu0
    %v588 = vadd.f32 %v187, %v587
    %589 = vmatprep.mubr.f32.mxu0 0.0
    %590 = vmatmul.mubr.f32.gmra.mrb[0].mxu0 %v357
    %v591 = vpop.f32.mrb[0].mxu0
    %v592 = vadd.f32 %v192, %v591
    %v593 = vpop.f32.mrb[0].mxu0
    %v594 = vadd.f32 %v192, %v593
    %595 = vmatprep.mubr.f32.mxu0 0.0
    %596 = vmatmul.mubr.f32.gmra.mrb[0].mxu0 %v360
    %v597 = vpop.f32.mrb[0].mxu0
    %v598 = vadd.f32 %v197, %v597
    %v599 = vpop.f32.mrb[0].mxu0
    %v600 = vadd.f32 %v197, %v599
    %601 = vmatprep.mubr.f32.mxu0 0.0
    %602 = vmatmul.mubr.f32.gmra.mrb[0].mxu0 %v363
    %v603 = vpop.f32.mrb[0].mxu0
    %v604 = vadd.f32 %v202, %v603
    %v605 = vpop.f32.mrb[0].mxu0
    %v606 = vadd.f32 %v202, %v605
    %607 = vmatprep.mubr.f32.mxu0 0.0
    %608 = vmatmul.mubr.f32.gmra.mrb[0].mxu0 %v366
    %v609 = vpop.f32.mrb[0].mxu0
    %v610 = vadd.f32 %v207, %v609
    %v611 = vpop.f32.mrb[0].mxu0
    %v612 = vadd.f32 %v207, %v611
    %613 = vmatprep.mubr.f32.mxu0 0.0
    %614 = vmatmul.mubr.f32.gmra.mrb[0].mxu0 %v369
    %v615 = vpop.f32.mrb[0].mxu0
    %v616 = vadd.f32 %v212, %v615
    %v617 = vpop.f32.mrb[0].mxu0
    %v618 = vadd.f32 %v212, %v617
    %619 = vmatprep.mubr.f32.mxu0 0.0
    %620 = vmatmul.mubr.f32.gmra.mrb[0].mxu0 %v372
    %v621 = vpop.f32.mrb[0].mxu0
    %v622 = vadd.f32 %v217, %v621
    %v623 = vpop.f32.mrb[0].mxu0
    %v624 = vadd.f32 %v217, %v623
    %625 = vmatprep.mubr.f32.mxu0 0.0
    %626 = vmatmul.mubr.f32.gmra.mrb[0].mxu0 %v375
    %v627 = vpop.f32.mrb[0].mxu0
    %v628 = vadd.f32 %v222, %v627
    %v629 = vpop.f32.mrb[0].mxu0
    %v630 = vadd.f32 %v222, %v629
    %631 = vmatprep.mubr.f32.mxu0 0.0
    %632 = vmatmul.mubr.f32.gmra.mrb[0].mxu0 %v378
    %v633 = vpop.f32.mrb[0].mxu0
    %v634 = vadd.f32 %v227, %v633
    %v635 = vpop.f32.mrb[0].mxu0
    %v636 = vadd.f32 %v227, %v635
    %637 = vmatprep.mubr.f32.mxu0 0.0
    %638 = vmatmul.mubr.f32.gmra.mrb[0].mxu0 %v381
    %v639 = vpop.f32.mrb[0].mxu0
    %v640 = vadd.f32 %v232, %v639
    %v641 = vpop.f32.mrb[0].mxu0
    %v642 = vadd.f32 %v232, %v641
    %643 = vmatprep.mubr.f32.mxu0 0.0
    %644 = vmatmul.mubr.f32.gmra.mrb[0].mxu0 %v384
    %v645 = vpop.f32.mrb[0].mxu0
    %v646 = vadd.f32 %v237, %v645
    %v647 = vpop.f32.mrb[0].mxu0
    %v648 = vadd.f32 %v237, %v647
    %649 = vmatprep.mubr.f32.mxu0 0.0
    %650 = vmatmul.mubr.f32.gmra.mrb[0].mxu0 %v387
    %v651 = vpop.f32.mrb[0].mxu0
    %v652 = vadd.f32 %v242, %v651
    %v653 = vpop.f32.mrb[0].mxu0
    %v654 = vadd.f32 %v242, %v653
    %655 = vmatprep.mubr.f32.mxu0 0.0
    %656 = vmatmul.mubr.f32.gmra.mrb[0].mxu0 %v390
    %v657 = vpop.f32.mrb[0].mxu0
    %v658 = vadd.f32 %v247, %v657
    %v659 = vpop.f32.mrb[0].mxu0
    %v660 = vadd.f32 %v247, %v659
    %661 = vmatprep.mubr.f32.mxu0 0.0
    %662 = vmatmul.mubr.f32.gmra.mrb[0].mxu0 %v393
    %v663 = vpop.f32.mrb[0].mxu0
    %v664 = vadd.f32 %v252, %v663
    %v665 = vpop.f32.mrb[0].mxu0
    %v666 = vadd.f32 %v252, %v665
    %667 = vmatprep.mubr.f32.mxu0 0.0
    %668 = vmatmul.mubr.f32.gmra.mrb[0].mxu0 %v396
    %v669 = vpop.f32.mrb[0].mxu0
    %v670 = vadd.f32 %v257, %v669
    %v671 = vpop.f32.mrb[0].mxu0
    %v672 = vadd.f32 %v257, %v671
    %673 = vmatprep.mubr.f32.mxu0 0.0
    %674 = vmatmul.mubr.f32.gmra.mrb[0].mxu0 %v399
    %v675 = vpop.f32.mrb[0].mxu0
    %v676 = vadd.f32 %v262, %v675
    %v677 = vpop.f32.mrb[0].mxu0
    %v678 = vadd.f32 %v262, %v677
    %679 = vmatprep.mubr.f32.mxu0 0.0
    %680 = vmatmul.mubr.f32.gmra.mrb[0].mxu0 %v402
    %v681 = vpop.f32.mrb[0].mxu0
    %v682 = vadd.f32 %v267, %v681
    %v683 = vpop.f32.mrb[0].mxu0
    %v684 = vadd.f32 %v267, %v683
    %685 = vmatprep.mubr.f32.mxu0 0.0
    %686 = vmatmul.mubr.f32.gmra.mrb[0].mxu0 %v405
    %v687 = vpop.f32.mrb[0].mxu0
    %v688 = vadd.f32 %v272, %v687
    %v689 = vpop.f32.mrb[0].mxu0
    %v690 = vadd.f32 %v272, %v689
    %691 = vmatprep.mubr.f32.mxu0 0.0
    %692 = vmatmul.mubr.f32.gmra.mrb[0].mxu0 %v408
    %v693 = vpop.f32.mrb[0].mxu0
    %v694 = vadd.f32 %v277, %v693
    %v695 = vpop.f32.mrb[0].mxu0
    %v696 = vadd.f32 %v277, %v695
    %697 = vmatprep.mubr.f32.mxu0 0.0
    %698 = vmatmul.mubr.f32.gmra.mrb[0].mxu0 %v411
    %v699 = vpop.f32.mrb[0].mxu0
    %v700 = vadd.f32 %v282, %v699
    %v701 = vpop.f32.mrb[0].mxu0
    %v702 = vadd.f32 %v282, %v701
    %703 = vmatprep.mubr.f32.mxu0 0.0
    %704 = vmatmul.mubr.f32.gmra.mrb[0].mxu0 %v414
    %v705 = vpop.f32.mrb[0].mxu0
    %v706 = vadd.f32 %v287, %v705
    %v707 = vpop.f32.mrb[0].mxu0
    %v708 = vadd.f32 %v287, %v707
    %709 = vmatprep.mubr.f32.mxu0 0.0
    %710 = vmatmul.mubr.f32.gmra.mrb[0].mxu0 %v417
    %v711 = vpop.f32.mrb[0].mxu0
    %v712 = vadd.f32 %v292, %v711
    %v713 = vpop.f32.mrb[0].mxu0
    %v714 = vadd.f32 %v292, %v713
    %715 = vmatprep.mubr.f32.mxu0 0.0
    %716 = vmatmul.mubr.f32.gmra.mrb[0].mxu0 %v420
    %v717 = vpop.f32.mrb[0].mxu0
    %v718 = vadd.f32 %v297, %v717
    %v719 = vpop.f32.mrb[0].mxu0
    %v720 = vadd.f32 %v297, %v719
    %721 = vmatprep.mubr.f32.mxu0 0.0
    %722 = vmatmul.mubr.f32.gmra.mrb[0].mxu0 %v423
    %v723 = vpop.f32.mrb[0].mxu0
    %v724 = vadd.f32 %v302, %v723
    %v725 = vpop.f32.mrb[0].mxu0
    %v726 = vadd.f32 %v302, %v725
    %727 = vmatprep.mubr.f32.mxu0 0.0
    %728 = vmatmul.mubr.f32.gmra.mrb[0].mxu0 %v426
    %v729 = vpop.f32.mrb[0].mxu0
    %v730 = vadd.f32 %v307, %v729
    %v731 = vpop.f32.mrb[0].mxu0
    %v732 = vadd.f32 %v307, %v731
    %733 = vmatprep.mubr.f32.mxu0 0.0
    %734 = vmatmul.mubr.f32.gmra.mrb[0].mxu0 %v429
    %v735 = vpop.f32.mrb[0].mxu0
    %v736 = vadd.f32 %v312, %v735
    %v737 = vpop.f32.mrb[0].mxu0
    %v738 = vadd.f32 %v312, %v737
    %739 = vmatprep.mubr.f32.mxu0 0.0
    %740 = vmatmul.mubr.f32.gmra.mrb[0].mxu0 %v432
    %v741 = vpop.f32.mrb[0].mxu0
    %v742 = vadd.f32 %v317, %v741
    %v743 = vpop.f32.mrb[0].mxu0
    %v744 = vadd.f32 %v317, %v743
    %745 = vmatprep.mubr.f32.mxu0 0.0
    %746 = vmatmul.mubr.f32.gmra.mrb[0].mxu0 %v435
    %v747 = vpop.f32.mrb[0].mxu0
    %v748 = vadd.f32 %v322, %v747
    %v749 = vpop.f32.mrb[0].mxu0
    %v750 = vadd.f32 %v322, %v749
    %751 = vmatprep.mubr.f32.mxu0 0.0
    %752 = vmatmul.mubr.f32.gmra.mrb[0].mxu0 %v438
    %v753 = vpop.f32.mrb[0].mxu0
    %v754 = vadd.f32 %v327, %v753
    %v755 = vpop.f32.mrb[0].mxu0
    %v756 = vadd.f32 %v327, %v755
    %757 = vmatprep.mubr.f32.mxu0 0.0
    %758 = vmatmul.mubr.f32.gmra.mrb[0].mxu0 %v441
    %v759 = vpop.f32.mrb[0].mxu0
    %v760 = vadd.f32 %v332, %v759
    %v761 = vpop.f32.mrb[0].mxu0
    %v762 = vadd.f32 %v332, %v761
    %763 = vdwg.mxu0
    %764 = vmatprep.subr.mxu0 %v69
    %765 = vmatpush1.msra.mxu0 %v68
    %766 = vmatprep.subr.mxu0 %v82
    %767 = vmatpush1.msra.mxu0 %v81
    %768 = vmatprep.subr.mxu0 %v95
    %769 = vmatpush1.msra.mxu0 %v94
    %770 = vmatprep.subr.mxu0 %v454
    %771 = vmatpush1.msra.mxu0 %v451
    %772 = vmatprep.subr.mxu0 0.0
    %773 = vmatpush1.msra.mxu0 0.0
    %774 = vmatprep.subr.mxu0 0.0
    %775 = vmatpush1.msra.mxu0 0.0
    %776 = vmatprep.subr.mxu0 0.0
    %777 = vmatpush1.msra.mxu0 0.0
    %778 = vmatprep.subr.mxu0 0.0
    %779 = vmatpush1.msra.mxu0 0.0
    %780 = vmatprep.subr.mxu0 0.0
    %781 = vmatpush1.msra.mxu0 0.0
    %782 = vmatprep.subr.mxu0 0.0
    %783 = vmatpush1.msra.mxu0 0.0
    %784 = vmatprep.subr.mxu0 0.0
    %785 = vmatpush1.msra.mxu0 0.0
    %786 = vmatprep.subr.mxu0 0.0
    %787 = vmatpush1.msra.mxu0 0.0
    %788 = vmatprep.subr.mxu0 0.0
    %789 = vmatpush1.msra.mxu0 0.0
    %790 = vmatprep.subr.mxu0 0.0
    %791 = vmatpush1.msra.mxu0 0.0
    %792 = vmatprep.subr.mxu0 0.0
    %793 = vmatpush1.msra.mxu0 0.0
    %794 = vmatprep.subr.mxu0 0.0
    %795 = vmatpush1.msra.mxu0 0.0
    %796 = vmatprep.subr.mxu0 0.0
    %797 = vmatpush1.msra.mxu0 0.0
    %798 = vmatprep.subr.mxu0 0.0
    %799 = vmatpush1.msra.mxu0 0.0
    %800 = vmatprep.subr.mxu0 0.0
    %801 = vmatpush1.msra.mxu0 0.0
    %802 = vmatprep.subr.mxu0 0.0
    %803 = vmatpush1.msra.mxu0 0.0
    %804 = vmatprep.subr.mxu0 0.0
    %805 = vmatpush1.msra.mxu0 0.0
    %806 = vmatprep.subr.mxu0 0.0
    %807 = vmatpush1.msra.mxu0 0.0
    %808 = vmatprep.subr.mxu0 0.0
    %809 = vmatpush1.msra.mxu0 0.0
    %810 = vmatprep.subr.mxu0 0.0
    %811 = vmatpush1.msra.mxu0 0.0
    %812 = vmatprep.subr.mxu0 0.0
    %813 = vmatpush1.msra.mxu0 0.0
    %814 = vmatprep.subr.mxu0 0.0
    %815 = vmatpush1.msra.mxu0 0.0
    %816 = vmatprep.subr.mxu0 0.0
    %817 = vmatpush1.msra.mxu0 0.0
    %818 = vmatprep.subr.mxu0 0.0
    %819 = vmatpush1.msra.mxu0 0.0
    %820 = vmatprep.subr.mxu0 0.0
    %821 = vmatpush1.msra.mxu0 0.0
    %822 = vmatprep.subr.mxu0 0.0
    %823 = vmatpush1.msra.mxu0 0.0
    %824 = vmatprep.subr.mxu0 0.0
    %825 = vmatpush1.msra.mxu0 0.0
    %826 = vmatprep.subr.mxu0 0.0
    %827 = vmatpush1.msra.mxu0 0.0
    %828 = vmatprep.mubr.f32.mxu0 0.0
    %829 = vmatmul.mubr.f32.gmra.mrb[0].mxu0 %v336
    %v830 = vpop.f32.mrb[0].mxu0
    %v831 = vadd.f32 %v157, %v830
    %v832 = vpop.f32.mrb[0].mxu0
    %v833 = vadd.f32 %v157, %v832
    %834 = vmatprep.mubr.f32.mxu0 0.0
    %835 = vmatmul.mubr.f32.gmra.mrb[0].mxu0 %v339
    %v836 = vpop.f32.mrb[0].mxu0
    %v837 = vadd.f32 %v162, %v836
    %v838 = vpop.f32.mrb[0].mxu0
    %v839 = vadd.f32 %v162, %v838
    %840 = vmatprep.mubr.f32.mxu0 0.0
    %841 = vmatmul.mubr.f32.gmra.mrb[0].mxu0 %v342
    %v842 = vpop.f32.mrb[0].mxu0
    %v843 = vadd.f32 %v167, %v842
    %v844 = vpop.f32.mrb[0].mxu0
    %v845 = vadd.f32 %v167, %v844
    %846 = vmatprep.mubr.f32.mxu0 0.0
    %847 = vmatmul.mubr.f32.gmra.mrb[0].mxu0 %v345
    %v848 = vpop.f32.mrb[0].mxu0
    %v849 = vadd.f32 %v172, %v848
    %v850 = vpop.f32.mrb[0].mxu0
    %v851 = vadd.f32 %v172, %v850
    %852 = vmatprep.mubr.f32.mxu0 0.0
    %853 = vmatmul.mubr.f32.gmra.mrb[0].mxu0 %v348
    %v854 = vpop.f32.mrb[0].mxu0
    %v855 = vadd.f32 %v177, %v854
    %v856 = vpop.f32.mrb[0].mxu0
    %v857 = vadd.f32 %v177, %v856
    %858 = vmatprep.mubr.f32.mxu0 0.0
    %859 = vmatmul.mubr.f32.gmra.mrb[0].mxu0 %v351
    %v860 = vpop.f32.mrb[0].mxu0
    %v861 = vadd.f32 %v182, %v860
    %v862 = vpop.f32.mrb[0].mxu0
    %v863 = vadd.f32 %v182, %v862
    %864 = vmatprep.mubr.f32.mxu0 0.0
    %865 = vmatmul.mubr.f32.gmra.mrb[0].mxu0 %v354
    %v866 = vpop.f32.mrb[0].mxu0
    %v867 = vadd.f32 %v187, %v866
    %v868 = vpop.f32.mrb[0].mxu0
    %v869 = vadd.f32 %v187, %v868
    %870 = vmatprep.mubr.f32.mxu0 0.0
    %871 = vmatmul.mubr.f32.gmra.mrb[0].mxu0 %v357
    %v872 = vpop.f32.mrb[0].mxu0
    %v873 = vadd.f32 %v192, %v872
    %v874 = vpop.f32.mrb[0].mxu0
    %v875 = vadd.f32 %v192, %v874
    %876 = vmatprep.mubr.f32.mxu0 0.0
    %877 = vmatmul.mubr.f32.gmra.mrb[0].mxu0 %v360
    %v878 = vpop.f32.mrb[0].mxu0
    %v879 = vadd.f32 %v197, %v878
    %v880 = vpop.f32.mrb[0].mxu0
    %v881 = vadd.f32 %v197, %v880
    %882 = vmatprep.mubr.f32.mxu0 0.0
    %883 = vmatmul.mubr.f32.gmra.mrb[0].mxu0 %v363
    %v884 = vpop.f32.mrb[0].mxu0
    %v885 = vadd.f32 %v202, %v884
    %v886 = vpop.f32.mrb[0].mxu0
    %v887 = vadd.f32 %v202, %v886
    %888 = vmatprep.mubr.f32.mxu0 0.0
    %889 = vmatmul.mubr.f32.gmra.mrb[0].mxu0 %v366
    %v890 = vpop.f32.mrb[0].mxu0
    %v891 = vadd.f32 %v207, %v890
    %v892 = vpop.f32.mrb[0].mxu0
    %v893 = vadd.f32 %v207, %v892
    %894 = vmatprep.mubr.f32.mxu0 0.0
    %895 = vmatmul.mubr.f32.gmra.mrb[0].mxu0 %v369
    %v896 = vpop.f32.mrb[0].mxu0
    %v897 = vadd.f32 %v212, %v896
    %v898 = vpop.f32.mrb[0].mxu0
    %v899 = vadd.f32 %v212, %v898
    %900 = vmatprep.mubr.f32.mxu0 0.0
    %901 = vmatmul.mubr.f32.gmra.mrb[0].mxu0 %v372
    %v902 = vpop.f32.mrb[0].mxu0
    %v903 = vadd.f32 %v217, %v902
    %v904 = vpop.f32.mrb[0].mxu0
    %v905 = vadd.f32 %v217, %v904
    %906 = vmatprep.mubr.f32.mxu0 0.0
    %907 = vmatmul.mubr.f32.gmra.mrb[0].mxu0 %v375
    %v908 = vpop.f32.mrb[0].mxu0
    %v909 = vadd.f32 %v222, %v908
    %v910 = vpop.f32.mrb[0].mxu0
    %v911 = vadd.f32 %v222, %v910
    %912 = vmatprep.mubr.f32.mxu0 0.0
    %913 = vmatmul.mubr.f32.gmra.mrb[0].mxu0 %v378
    %v914 = vpop.f32.mrb[0].mxu0
    %v915 = vadd.f32 %v227, %v914
    %v916 = vpop.f32.mrb[0].mxu0
    %v917 = vadd.f32 %v227, %v916
    %918 = vmatprep.mubr.f32.mxu0 0.0
    %919 = vmatmul.mubr.f32.gmra.mrb[0].mxu0 %v381
    %v920 = vpop.f32.mrb[0].mxu0
    %v921 = vadd.f32 %v232, %v920
    %v922 = vpop.f32.mrb[0].mxu0
    %v923 = vadd.f32 %v232, %v922
    %924 = vmatprep.mubr.f32.mxu0 0.0
    %925 = vmatmul.mubr.f32.gmra.mrb[0].mxu0 %v384
    %v926 = vpop.f32.mrb[0].mxu0
    %v927 = vadd.f32 %v237, %v926
    %v928 = vpop.f32.mrb[0].mxu0
    %v929 = vadd.f32 %v237, %v928
    %930 = vmatprep.mubr.f32.mxu0 0.0
    %931 = vmatmul.mubr.f32.gmra.mrb[0].mxu0 %v387
    %v932 = vpop.f32.mrb[0].mxu0
    %v933 = vadd.f32 %v242, %v932
    %v934 = vpop.f32.mrb[0].mxu0
    %v935 = vadd.f32 %v242, %v934
    %936 = vmatprep.mubr.f32.mxu0 0.0
    %937 = vmatmul.mubr.f32.gmra.mrb[0].mxu0 %v390
    %v938 = vpop.f32.mrb[0].mxu0
    %v939 = vadd.f32 %v247, %v938
    %v940 = vpop.f32.mrb[0].mxu0
    %v941 = vadd.f32 %v247, %v940
    %942 = vmatprep.mubr.f32.mxu0 0.0
    %943 = vmatmul.mubr.f32.gmra.mrb[0].mxu0 %v393
    %v944 = vpop.f32.mrb[0].mxu0
    %v945 = vadd.f32 %v252, %v944
    %v946 = vpop.f32.mrb[0].mxu0
    %v947 = vadd.f32 %v252, %v946
    %948 = vmatprep.mubr.f32.mxu0 0.0
    %949 = vmatmul.mubr.f32.gmra.mrb[0].mxu0 %v396
    %v950 = vpop.f32.mrb[0].mxu0
    %v951 = vadd.f32 %v257, %v950
    %v952 = vpop.f32.mrb[0].mxu0
    %v953 = vadd.f32 %v257, %v952
    %954 = vmatprep.mubr.f32.mxu0 0.0
    %955 = vmatmul.mubr.f32.gmra.mrb[0].mxu0 %v399
    %v956 = vpop.f32.mrb[0].mxu0
    %v957 = vadd.f32 %v262, %v956
    %v958 = vpop.f32.mrb[0].mxu0
    %v959 = vadd.f32 %v262, %v958
    %960 = vmatprep.mubr.f32.mxu0 0.0
    %961 = vmatmul.mubr.f32.gmra.mrb[0].mxu0 %v402
    %v962 = vpop.f32.mrb[0].mxu0
    %v963 = vadd.f32 %v267, %v962
    %v964 = vpop.f32.mrb[0].mxu0
    %v965 = vadd.f32 %v267, %v964
    %966 = vmatprep.mubr.f32.mxu0 0.0
    %967 = vmatmul.mubr.f32.gmra.mrb[0].mxu0 %v405
    %v968 = vpop.f32.mrb[0].mxu0
    %v969 = vadd.f32 %v272, %v968
    %v970 = vpop.f32.mrb[0].mxu0
    %v971 = vadd.f32 %v272, %v970
    %972 = vmatprep.mubr.f32.mxu0 0.0
    %973 = vmatmul.mubr.f32.gmra.mrb[0].mxu0 %v408
    %v974 = vpop.f32.mrb[0].mxu0
    %v975 = vadd.f32 %v277, %v974
    %v976 = vpop.f32.mrb[0].mxu0
    %v977 = vadd.f32 %v277, %v976
    %978 = vmatprep.mubr.f32.mxu0 0.0
    %979 = vmatmul.mubr.f32.gmra.mrb[0].mxu0 %v411
    %v980 = vpop.f32.mrb[0].mxu0
    %v981 = vadd.f32 %v282, %v980
    %v982 = vpop.f32.mrb[0].mxu0
    %v983 = vadd.f32 %v282, %v982
    %984 = vmatprep.mubr.f32.mxu0 0.0
    %985 = vmatmul.mubr.f32.gmra.mrb[0].mxu0 %v414
    %v986 = vpop.f32.mrb[0].mxu0
    %v987 = vadd.f32 %v287, %v986
    %v988 = vpop.f32.mrb[0].mxu0
    %v989 = vadd.f32 %v287, %v988
    %990 = vmatprep.mubr.f32.mxu0 0.0
    %991 = vmatmul.mubr.f32.gmra.mrb[0].mxu0 %v417
    %v992 = vpop.f32.mrb[0].mxu0
    %v993 = vadd.f32 %v292, %v992
    %v994 = vpop.f32.mrb[0].mxu0
    %v995 = vadd.f32 %v292, %v994
    %996 = vmatprep.mubr.f32.mxu0 0.0
    %997 = vmatmul.mubr.f32.gmra.mrb[0].mxu0 %v420
    %v998 = vpop.f32.mrb[0].mxu0
    %v999 = vadd.f32 %v297, %v998
    %v1000 = vpop.f32.mrb[0].mxu0
    %v1001 = vadd.f32 %v297, %v1000
    %1002 = vmatprep.mubr.f32.mxu0 0.0
    %1003 = vmatmul.mubr.f32.gmra.mrb[0].mxu0 %v423
    %v1004 = vpop.f32.mrb[0].mxu0
    %v1005 = vadd.f32 %v302, %v1004
    %v1006 = vpop.f32.mrb[0].mxu0
    %v1007 = vadd.f32 %v302, %v1006
    %1008 = vmatprep.mubr.f32.mxu0 0.0
    %1009 = vmatmul.mubr.f32.gmra.mrb[0].mxu0 %v426
    %v1010 = vpop.f32.mrb[0].mxu0
    %v1011 = vadd.f32 %v307, %v1010
    %v1012 = vpop.f32.mrb[0].mxu0
    %v1013 = vadd.f32 %v307, %v1012
    %1014 = vmatprep.mubr.f32.mxu0 0.0
    %1015 = vmatmul.mubr.f32.gmra.mrb[0].mxu0 %v429
    %v1016 = vpop.f32.mrb[0].mxu0
    %v1017 = vadd.f32 %v312, %v1016
    %v1018 = vpop.f32.mrb[0].mxu0
    %v1019 = vadd.f32 %v312, %v1018
    %1020 = vmatprep.mubr.f32.mxu0 0.0
    %1021 = vmatmul.mubr.f32.gmra.mrb[0].mxu0 %v432
    %v1022 = vpop.f32.mrb[0].mxu0
    %v1023 = vadd.f32 %v317, %v1022
    %v1024 = vpop.f32.mrb[0].mxu0
    %v1025 = vadd.f32 %v317, %v1024
    %1026 = vmatprep.mubr.f32.mxu0 0.0
    %1027 = vmatmul.mubr.f32.gmra.mrb[0].mxu0 %v435
    %v1028 = vpop.f32.mrb[0].mxu0
    %v1029 = vadd.f32 %v322, %v1028
    %v1030 = vpop.f32.mrb[0].mxu0
    %v1031 = vadd.f32 %v322, %v1030
    %1032 = vmatprep.mubr.f32.mxu0 0.0
    %1033 = vmatmul.mubr.f32.gmra.mrb[0].mxu0 %v438
    %v1034 = vpop.f32.mrb[0].mxu0
    %v1035 = vadd.f32 %v327, %v1034
    %v1036 = vpop.f32.mrb[0].mxu0
    %v1037 = vadd.f32 %v327, %v1036
    %1038 = vmatprep.mubr.f32.mxu0 0.0
    %1039 = vmatmul.mubr.f32.gmra.mrb[0].mxu0 %v441
    %v1040 = vpop.f32.mrb[0].mxu0
    %v1041 = vadd.f32 %v332, %v1040
    %v1042 = vpop.f32.mrb[0].mxu0
    %v1043 = vadd.f32 %v332, %v1042
    %1044 = vdwg.mxu0
    %1045 = vmatprep.subr.mxu0 %v71
    %1046 = vmatpush1.msra.mxu0 %v70
    %1047 = vmatprep.subr.mxu0 %v84
    %1048 = vmatpush1.msra.mxu0 %v83
    %1049 = vmatprep.subr.mxu0 %v97
    %1050 = vmatpush1.msra.mxu0 %v96
    %1051 = vmatprep.subr.mxu0 %v460
    %1052 = vmatpush1.msra.mxu0 %v457
    %1053 = vmatprep.subr.mxu0 0.0
    %1054 = vmatpush1.msra.mxu0 0.0
    %1055 = vmatprep.subr.mxu0 0.0
    %1056 = vmatpush1.msra.mxu0 0.0
    %1057 = vmatprep.subr.mxu0 0.0
    %1058 = vmatpush1.msra.mxu0 0.0
    %1059 = vmatprep.subr.mxu0 0.0
    %1060 = vmatpush1.msra.mxu0 0.0
    %1061 = vmatprep.subr.mxu0 0.0
    %1062 = vmatpush1.msra.mxu0 0.0
    %1063 = vmatprep.subr.mxu0 0.0
    %1064 = vmatpush1.msra.mxu0 0.0
    %1065 = vmatprep.subr.mxu0 0.0
    %1066 = vmatpush1.msra.mxu0 0.0
    %1067 = vmatprep.subr.mxu0 0.0
    %1068 = vmatpush1.msra.mxu0 0.0
    %1069 = vmatprep.subr.mxu0 0.0
    %1070 = vmatpush1.msra.mxu0 0.0
    %1071 = vmatprep.subr.mxu0 0.0
    %1072 = vmatpush1.msra.mxu0 0.0
    %1073 = vmatprep.subr.mxu0 0.0
    %1074 = vmatpush1.msra.mxu0 0.0
    %1075 = vmatprep.subr.mxu0 0.0
    %1076 = vmatpush1.msra.mxu0 0.0
    %1077 = vmatprep.subr.mxu0 0.0
    %1078 = vmatpush1.msra.mxu0 0.0
    %1079 = vmatprep.subr.mxu0 0.0
    %1080 = vmatpush1.msra.mxu0 0.0
    %1081 = vmatprep.subr.mxu0 0.0
    %1082 = vmatpush1.msra.mxu0 0.0
    %1083 = vmatprep.subr.mxu0 0.0
    %1084 = vmatpush1.msra.mxu0 0.0
    %1085 = vmatprep.subr.mxu0 0.0
    %1086 = vmatpush1.msra.mxu0 0.0
    %1087 = vmatprep.subr.mxu0 0.0
    %1088 = vmatpush1.msra.mxu0 0.0
    %1089 = vmatprep.subr.mxu0 0.0
    %1090 = vmatpush1.msra.mxu0 0.0
    %1091 = vmatprep.subr.mxu0 0.0
    %1092 = vmatpush1.msra.mxu0 0.0
    %1093 = vmatprep.subr.mxu0 0.0
    %1094 = vmatpush1.msra.mxu0 0.0
    %1095 = vmatprep.subr.mxu0 0.0
    %1096 = vmatpush1.msra.mxu0 0.0
    %1097 = vmatprep.subr.mxu0 0.0
    %1098 = vmatpush1.msra.mxu0 0.0
    %1099 = vmatprep.subr.mxu0 0.0
    %1100 = vmatpush1.msra.mxu0 0.0
    %1101 = vmatprep.subr.mxu0 0.0
    %1102 = vmatpush1.msra.mxu0 0.0
    %1103 = vmatprep.subr.mxu0 0.0
    %1104 = vmatpush1.msra.mxu0 0.0
    %1105 = vmatprep.subr.mxu0 0.0
    %1106 = vmatpush1.msra.mxu0 0.0
    %1107 = vmatprep.subr.mxu0 0.0
    %1108 = vmatpush1.msra.mxu0 0.0
    %1109 = vmatprep.mubr.f32.mxu0 0.0
    %1110 = vmatmul.mubr.f32.gmra.mrb[0].mxu0 %v336
    %v1111 = vpop.f32.mrb[0].mxu0
    %v1112 = vadd.f32 %v157, %v1111
    %v1113 = vpop.f32.mrb[0].mxu0
    %v1114 = vadd.f32 %v157, %v1113
    %1115 = vmatprep.mubr.f32.mxu0 0.0
    %1116 = vmatmul.mubr.f32.gmra.mrb[0].mxu0 %v339
    %v1117 = vpop.f32.mrb[0].mxu0
    %v1118 = vadd.f32 %v162, %v1117
    %v1119 = vpop.f32.mrb[0].mxu0
    %v1120 = vadd.f32 %v162, %v1119
    %1121 = vmatprep.mubr.f32.mxu0 0.0
    %1122 = vmatmul.mubr.f32.gmra.mrb[0].mxu0 %v342
    %v1123 = vpop.f32.mrb[0].mxu0
    %v1124 = vadd.f32 %v167, %v1123
    %v1125 = vpop.f32.mrb[0].mxu0
    %v1126 = vadd.f32 %v167, %v1125
    %1127 = vmatprep.mubr.f32.mxu0 0.0
    %1128 = vmatmul.mubr.f32.gmra.mrb[0].mxu0 %v345
    %v1129 = vpop.f32.mrb[0].mxu0
    %v1130 = vadd.f32 %v172, %v1129
    %v1131 = vpop.f32.mrb[0].mxu0
    %v1132 = vadd.f32 %v172, %v1131
    %1133 = vmatprep.mubr.f32.mxu0 0.0
    %1134 = vmatmul.mubr.f32.gmra.mrb[0].mxu0 %v348
    %v1135 = vpop.f32.mrb[0].mxu0
    %v1136 = vadd.f32 %v177, %v1135
    %v1137 = vpop.f32.mrb[0].mxu0
    %v1138 = vadd.f32 %v177, %v1137
    %1139 = vmatprep.mubr.f32.mxu0 0.0
    %1140 = vmatmul.mubr.f32.gmra.mrb[0].mxu0 %v351
    %v1141 = vpop.f32.mrb[0].mxu0
    %v1142 = vadd.f32 %v182, %v1141
    %v1143 = vpop.f32.mrb[0].mxu0
    %v1144 = vadd.f32 %v182, %v1143
    %1145 = vmatprep.mubr.f32.mxu0 0.0
    %1146 = vmatmul.mubr.f32.gmra.mrb[0].mxu0 %v354
    %v1147 = vpop.f32.mrb[0].mxu0
    %v1148 = vadd.f32 %v187, %v1147
    %v1149 = vpop.f32.mrb[0].mxu0
    %v1150 = vadd.f32 %v187, %v1149
    %1151 = vmatprep.mubr.f32.mxu0 0.0
    %1152 = vmatmul.mubr.f32.gmra.mrb[0].mxu0 %v357
    %v1153 = vpop.f32.mrb[0].mxu0
    %v1154 = vadd.f32 %v192, %v1153
    %v1155 = vpop.f32.mrb[0].mxu0
    %v1156 = vadd.f32 %v192, %v1155
    %1157 = vmatprep.mubr.f32.mxu0 0.0
    %1158 = vmatmul.mubr.f32.gmra.mrb[0].mxu0 %v360
    %v1159 = vpop.f32.mrb[0].mxu0
    %v1160 = vadd.f32 %v197, %v1159
    %v1161 = vpop.f32.mrb[0].mxu0
    %v1162 = vadd.f32 %v197, %v1161
    %1163 = vmatprep.mubr.f32.mxu0 0.0
    %1164 = vmatmul.mubr.f32.gmra.mrb[0].mxu0 %v363
    %v1165 = vpop.f32.mrb[0].mxu0
    %v1166 = vadd.f32 %v202, %v1165
    %v1167 = vpop.f32.mrb[0].mxu0
    %v1168 = vadd.f32 %v202, %v1167
    %1169 = vmatprep.mubr.f32.mxu0 0.0
    %1170 = vmatmul.mubr.f32.gmra.mrb[0].mxu0 %v366
    %v1171 = vpop.f32.mrb[0].mxu0
    %v1172 = vadd.f32 %v207, %v1171
    %v1173 = vpop.f32.mrb[0].mxu0
    %v1174 = vadd.f32 %v207, %v1173
    %1175 = vmatprep.mubr.f32.mxu0 0.0
    %1176 = vmatmul.mubr.f32.gmra.mrb[0].mxu0 %v369
    %v1177 = vpop.f32.mrb[0].mxu0
    %v1178 = vadd.f32 %v212, %v1177
    %v1179 = vpop.f32.mrb[0].mxu0
    %v1180 = vadd.f32 %v212, %v1179
    %1181 = vmatprep.mubr.f32.mxu0 0.0
    %1182 = vmatmul.mubr.f32.gmra.mrb[0].mxu0 %v372
    %v1183 = vpop.f32.mrb[0].mxu0
    %v1184 = vadd.f32 %v217, %v1183
    %v1185 = vpop.f32.mrb[0].mxu0
    %v1186 = vadd.f32 %v217, %v1185
    %1187 = vmatprep.mubr.f32.mxu0 0.0
    %1188 = vmatmul.mubr.f32.gmra.mrb[0].mxu0 %v375
    %v1189 = vpop.f32.mrb[0].mxu0
    %v1190 = vadd.f32 %v222, %v1189
    %v1191 = vpop.f32.mrb[0].mxu0
    %v1192 = vadd.f32 %v222, %v1191
    %1193 = vmatprep.mubr.f32.mxu0 0.0
    %1194 = vmatmul.mubr.f32.gmra.mrb[0].mxu0 %v378
    %v1195 = vpop.f32.mrb[0].mxu0
    %v1196 = vadd.f32 %v227, %v1195
    %v1197 = vpop.f32.mrb[0].mxu0
    %v1198 = vadd.f32 %v227, %v1197
    %1199 = vmatprep.mubr.f32.mxu0 0.0
    %1200 = vmatmul.mubr.f32.gmra.mrb[0].mxu0 %v381
    %v1201 = vpop.f32.mrb[0].mxu0
    %v1202 = vadd.f32 %v232, %v1201
    %v1203 = vpop.f32.mrb[0].mxu0
    %v1204 = vadd.f32 %v232, %v1203
    %1205 = vmatprep.mubr.f32.mxu0 0.0
    %1206 = vmatmul.mubr.f32.gmra.mrb[0].mxu0 %v384
    %v1207 = vpop.f32.mrb[0].mxu0
    %v1208 = vadd.f32 %v237, %v1207
    %v1209 = vpop.f32.mrb[0].mxu0
    %v1210 = vadd.f32 %v237, %v1209
    %1211 = vmatprep.mubr.f32.mxu0 0.0
    %1212 = vmatmul.mubr.f32.gmra.mrb[0].mxu0 %v387
    %v1213 = vpop.f32.mrb[0].mxu0
    %v1214 = vadd.f32 %v242, %v1213
    %v1215 = vpop.f32.mrb[0].mxu0
    %v1216 = vadd.f32 %v242, %v1215
    %1217 = vmatprep.mubr.f32.mxu0 0.0
    %1218 = vmatmul.mubr.f32.gmra.mrb[0].mxu0 %v390
    %v1219 = vpop.f32.mrb[0].mxu0
    %v1220 = vadd.f32 %v247, %v1219
    %v1221 = vpop.f32.mrb[0].mxu0
    %v1222 = vadd.f32 %v247, %v1221
    %1223 = vmatprep.mubr.f32.mxu0 0.0
    %1224 = vmatmul.mubr.f32.gmra.mrb[0].mxu0 %v393
    %v1225 = vpop.f32.mrb[0].mxu0
    %v1226 = vadd.f32 %v252, %v1225
    %v1227 = vpop.f32.mrb[0].mxu0
    %v1228 = vadd.f32 %v252, %v1227
    %1229 = vmatprep.mubr.f32.mxu0 0.0
    %1230 = vmatmul.mubr.f32.gmra.mrb[0].mxu0 %v396
    %v1231 = vpop.f32.mrb[0].mxu0
    %v1232 = vadd.f32 %v257, %v1231
    %v1233 = vpop.f32.mrb[0].mxu0
    %v1234 = vadd.f32 %v257, %v1233
    %1235 = vmatprep.mubr.f32.mxu0 0.0
    %1236 = vmatmul.mubr.f32.gmra.mrb[0].mxu0 %v399
    %v1237 = vpop.f32.mrb[0].mxu0
    %v1238 = vadd.f32 %v262, %v1237
    %v1239 = vpop.f32.mrb[0].mxu0
    %v1240 = vadd.f32 %v262, %v1239
    %1241 = vmatprep.mubr.f32.mxu0 0.0
    %1242 = vmatmul.mubr.f32.gmra.mrb[0].mxu0 %v402
    %v1243 = vpop.f32.mrb[0].mxu0
    %v1244 = vadd.f32 %v267, %v1243
    %v1245 = vpop.f32.mrb[0].mxu0
    %v1246 = vadd.f32 %v267, %v1245
    %1247 = vmatprep.mubr.f32.mxu0 0.0
    %1248 = vmatmul.mubr.f32.gmra.mrb[0].mxu0 %v405
    %v1249 = vpop.f32.mrb[0].mxu0
    %v1250 = vadd.f32 %v272, %v1249
    %v1251 = vpop.f32.mrb[0].mxu0
    %v1252 = vadd.f32 %v272, %v1251
    %1253 = vmatprep.mubr.f32.mxu0 0.0
    %1254 = vmatmul.mubr.f32.gmra.mrb[0].mxu0 %v408
    %v1255 = vpop.f32.mrb[0].mxu0
    %v1256 = vadd.f32 %v277, %v1255
    %v1257 = vpop.f32.mrb[0].mxu0
    %v1258 = vadd.f32 %v277, %v1257
    %1259 = vmatprep.mubr.f32.mxu0 0.0
    %1260 = vmatmul.mubr.f32.gmra.mrb[0].mxu0 %v411
    %v1261 = vpop.f32.mrb[0].mxu0
    %v1262 = vadd.f32 %v282, %v1261
    %v1263 = vpop.f32.mrb[0].mxu0
    %v1264 = vadd.f32 %v282, %v1263
    %1265 = vmatprep.mubr.f32.mxu0 0.0
    %1266 = vmatmul.mubr.f32.gmra.mrb[0].mxu0 %v414
    %v1267 = vpop.f32.mrb[0].mxu0
    %v1268 = vadd.f32 %v287, %v1267
    %v1269 = vpop.f32.mrb[0].mxu0
    %v1270 = vadd.f32 %v287, %v1269
    %1271 = vmatprep.mubr.f32.mxu0 0.0
    %1272 = vmatmul.mubr.f32.gmra.mrb[0].mxu0 %v417
    %v1273 = vpop.f32.mrb[0].mxu0
    %v1274 = vadd.f32 %v292, %v1273
    %v1275 = vpop.f32.mrb[0].mxu0
    %v1276 = vadd.f32 %v292, %v1275
    %1277 = vmatprep.mubr.f32.mxu0 0.0
    %1278 = vmatmul.mubr.f32.gmra.mrb[0].mxu0 %v420
    %v1279 = vpop.f32.mrb[0].mxu0
    %v1280 = vadd.f32 %v297, %v1279
    %v1281 = vpop.f32.mrb[0].mxu0
    %v1282 = vadd.f32 %v297, %v1281
    %1283 = vmatprep.mubr.f32.mxu0 0.0
    %1284 = vmatmul.mubr.f32.gmra.mrb[0].mxu0 %v423
    %v1285 = vpop.f32.mrb[0].mxu0
    %v1286 = vadd.f32 %v302, %v1285
    %v1287 = vpop.f32.mrb[0].mxu0
    %v1288 = vadd.f32 %v302, %v1287
    %1289 = vmatprep.mubr.f32.mxu0 0.0
    %1290 = vmatmul.mubr.f32.gmra.mrb[0].mxu0 %v426
    %v1291 = vpop.f32.mrb[0].mxu0
    %v1292 = vadd.f32 %v307, %v1291
    %v1293 = vpop.f32.mrb[0].mxu0
    %v1294 = vadd.f32 %v307, %v1293
    %1295 = vmatprep.mubr.f32.mxu0 0.0
    %1296 = vmatmul.mubr.f32.gmra.mrb[0].mxu0 %v429
    %v1297 = vpop.f32.mrb[0].mxu0
    %v1298 = vadd.f32 %v312, %v1297
    %v1299 = vpop.f32.mrb[0].mxu0
    %v1300 = vadd.f32 %v312, %v1299
    %1301 = vmatprep.mubr.f32.mxu0 0.0
    %1302 = vmatmul.mubr.f32.gmra.mrb[0].mxu0 %v432
    %v1303 = vpop.f32.mrb[0].mxu0
    %v1304 = vadd.f32 %v317, %v1303
    %v1305 = vpop.f32.mrb[0].mxu0
    %v1306 = vadd.f32 %v317, %v1305
    %1307 = vmatprep.mubr.f32.mxu0 0.0
    %1308 = vmatmul.mubr.f32.gmra.mrb[0].mxu0 %v435
    %v1309 = vpop.f32.mrb[0].mxu0
    %v1310 = vadd.f32 %v322, %v1309
    %v1311 = vpop.f32.mrb[0].mxu0
    %v1312 = vadd.f32 %v322, %v1311
    %1313 = vmatprep.mubr.f32.mxu0 0.0
    %1314 = vmatmul.mubr.f32.gmra.mrb[0].mxu0 %v438
    %v1315 = vpop.f32.mrb[0].mxu0
    %v1316 = vadd.f32 %v327, %v1315
    %v1317 = vpop.f32.mrb[0].mxu0
    %v1318 = vadd.f32 %v327, %v1317
    %1319 = vmatprep.mubr.f32.mxu0 0.0
    %1320 = vmatmul.mubr.f32.gmra.mrb[0].mxu0 %v441
    %v1321 = vpop.f32.mrb[0].mxu0
    %v1322 = vadd.f32 %v332, %v1321
    %v1323 = vpop.f32.mrb[0].mxu0
    %v1324 = vadd.f32 %v332, %v1323
    %1325 = vdwg.mxu0
    %1326 = vmatprep.subr.mxu0 %v73
    %1327 = vmatpush1.msra.mxu0 %v72
    %1328 = vmatprep.subr.mxu0 %v86
    %1329 = vmatpush1.msra.mxu0 %v85
    %1330 = vmatprep.subr.mxu0 %v99
    %1331 = vmatpush1.msra.mxu0 %v98
    %1332 = vmatprep.subr.mxu0 %v466
    %1333 = vmatpush1.msra.mxu0 %v463
    %1334 = vmatprep.subr.mxu0 0.0
    %1335 = vmatpush1.msra.mxu0 0.0
    %1336 = vmatprep.subr.mxu0 0.0
    %1337 = vmatpush1.msra.mxu0 0.0
    %1338 = vmatprep.subr.mxu0 0.0
    %1339 = vmatpush1.msra.mxu0 0.0
    %1340 = vmatprep.subr.mxu0 0.0
    %1341 = vmatpush1.msra.mxu0 0.0
    %1342 = vmatprep.subr.mxu0 0.0
    %1343 = vmatpush1.msra.mxu0 0.0
    %1344 = vmatprep.subr.mxu0 0.0
    %1345 = vmatpush1.msra.mxu0 0.0
    %1346 = vmatprep.subr.mxu0 0.0
    %1347 = vmatpush1.msra.mxu0 0.0
    %1348 = vmatprep.subr.mxu0 0.0
    %1349 = vmatpush1.msra.mxu0 0.0
    %1350 = vmatprep.subr.mxu0 0.0
    %1351 = vmatpush1.msra.mxu0 0.0
    %1352 = vmatprep.subr.mxu0 0.0
    %1353 = vmatpush1.msra.mxu0 0.0
    %1354 = vmatprep.subr.mxu0 0.0
    %1355 = vmatpush1.msra.mxu0 0.0
    %1356 = vmatprep.subr.mxu0 0.0
    %1357 = vmatpush1.msra.mxu0 0.0
    %1358 = vmatprep.subr.mxu0 0.0
    %1359 = vmatpush1.msra.mxu0 0.0
    %1360 = vmatprep.subr.mxu0 0.0
    %1361 = vmatpush1.msra.mxu0 0.0
    %1362 = vmatprep.subr.mxu0 0.0
    %1363 = vmatpush1.msra.mxu0 0.0
    %1364 = vmatprep.subr.mxu0 0.0
    %1365 = vmatpush1.msra.mxu0 0.0
    %1366 = vmatprep.subr.mxu0 0.0
    %1367 = vmatpush1.msra.mxu0 0.0
    %1368 = vmatprep.subr.mxu0 0.0
    %1369 = vmatpush1.msra.mxu0 0.0
    %1370 = vmatprep.subr.mxu0 0.0
    %1371 = vmatpush1.msra.mxu0 0.0
    %1372 = vmatprep.subr.mxu0 0.0
    %1373 = vmatpush1.msra.mxu0 0.0
    %1374 = vmatprep.subr.mxu0 0.0
    %1375 = vmatpush1.msra.mxu0 0.0
    %1376 = vmatprep.subr.mxu0 0.0
    %1377 = vmatpush1.msra.mxu0 0.0
    %1378 = vmatprep.subr.mxu0 0.0
    %1379 = vmatpush1.msra.mxu0 0.0
    %1380 = vmatprep.subr.mxu0 0.0
    %1381 = vmatpush1.msra.mxu0 0.0
    %1382 = vmatprep.subr.mxu0 0.0
    %1383 = vmatpush1.msra.mxu0 0.0
    %1384 = vmatprep.subr.mxu0 0.0
    %1385 = vmatpush1.msra.mxu0 0.0
    %1386 = vmatprep.subr.mxu0 0.0
    %1387 = vmatpush1.msra.mxu0 0.0
    %1388 = vmatprep.subr.mxu0 0.0
    %1389 = vmatpush1.msra.mxu0 0.0
    %1390 = vmatprep.mubr.f32.mxu0 0.0
    %1391 = vmatmul.mubr.f32.gmra.mrb[0].mxu0 %v336
    %v1392 = vpop.f32.mrb[0].mxu0
    %v1393 = vadd.f32 %v157, %v1392
    %v1394 = vpop.f32.mrb[0].mxu0
    %v1395 = vadd.f32 %v157, %v1394
    %1396 = vmatprep.mubr.f32.mxu0 0.0
    %1397 = vmatmul.mubr.f32.gmra.mrb[0].mxu0 %v339
    %v1398 = vpop.f32.mrb[0].mxu0
    %v1399 = vadd.f32 %v162, %v1398
    %v1400 = vpop.f32.mrb[0].mxu0
    %v1401 = vadd.f32 %v162, %v1400
    %1402 = vmatprep.mubr.f32.mxu0 0.0
    %1403 = vmatmul.mubr.f32.gmra.mrb[0].mxu0 %v342
    %v1404 = vpop.f32.mrb[0].mxu0
    %v1405 = vadd.f32 %v167, %v1404
    %v1406 = vpop.f32.mrb[0].mxu0
    %v1407 = vadd.f32 %v167, %v1406
    %1408 = vmatprep.mubr.f32.mxu0 0.0
    %1409 = vmatmul.mubr.f32.gmra.mrb[0].mxu0 %v345
    %v1410 = vpop.f32.mrb[0].mxu0
    %v1411 = vadd.f32 %v172, %v1410
    %v1412 = vpop.f32.mrb[0].mxu0
    %v1413 = vadd.f32 %v172, %v1412
    %1414 = vmatprep.mubr.f32.mxu0 0.0
    %1415 = vmatmul.mubr.f32.gmra.mrb[0].mxu0 %v348
    %v1416 = vpop.f32.mrb[0].mxu0
    %v1417 = vadd.f32 %v177, %v1416
    %v1418 = vpop.f32.mrb[0].mxu0
    %v1419 = vadd.f32 %v177, %v1418
    %1420 = vmatprep.mubr.f32.mxu0 0.0
    %1421 = vmatmul.mubr.f32.gmra.mrb[0].mxu0 %v351
    %v1422 = vpop.f32.mrb[0].mxu0
    %v1423 = vadd.f32 %v182, %v1422
    %v1424 = vpop.f32.mrb[0].mxu0
    %v1425 = vadd.f32 %v182, %v1424
    %1426 = vmatprep.mubr.f32.mxu0 0.0
    %1427 = vmatmul.mubr.f32.gmra.mrb[0].mxu0 %v354
    %v1428 = vpop.f32.mrb[0].mxu0
    %v1429 = vadd.f32 %v187, %v1428
    %v1430 = vpop.f32.mrb[0].mxu0
    %v1431 = vadd.f32 %v187, %v1430
    %1432 = vmatprep.mubr.f32.mxu0 0.0
    %1433 = vmatmul.mubr.f32.gmra.mrb[0].mxu0 %v357
    %v1434 = vpop.f32.mrb[0].mxu0
    %v1435 = vadd.f32 %v192, %v1434
    %v1436 = vpop.f32.mrb[0].mxu0
    %v1437 = vadd.f32 %v192, %v1436
    %1438 = vmatprep.mubr.f32.mxu0 0.0
    %1439 = vmatmul.mubr.f32.gmra.mrb[0].mxu0 %v360
    %v1440 = vpop.f32.mrb[0].mxu0
    %v1441 = vadd.f32 %v197, %v1440
    %v1442 = vpop.f32.mrb[0].mxu0
    %v1443 = vadd.f32 %v197, %v1442
    %1444 = vmatprep.mubr.f32.mxu0 0.0
    %1445 = vmatmul.mubr.f32.gmra.mrb[0].mxu0 %v363
    %v1446 = vpop.f32.mrb[0].mxu0
    %v1447 = vadd.f32 %v202, %v1446
    %v1448 = vpop.f32.mrb[0].mxu0
    %v1449 = vadd.f32 %v202, %v1448
    %1450 = vmatprep.mubr.f32.mxu0 0.0
    %1451 = vmatmul.mubr.f32.gmra.mrb[0].mxu0 %v366
    %v1452 = vpop.f32.mrb[0].mxu0
    %v1453 = vadd.f32 %v207, %v1452
    %v1454 = vpop.f32.mrb[0].mxu0
    %v1455 = vadd.f32 %v207, %v1454
    %1456 = vmatprep.mubr.f32.mxu0 0.0
    %1457 = vmatmul.mubr.f32.gmra.mrb[0].mxu0 %v369
    %v1458 = vpop.f32.mrb[0].mxu0
    %v1459 = vadd.f32 %v212, %v1458
    %v1460 = vpop.f32.mrb[0].mxu0
    %v1461 = vadd.f32 %v212, %v1460
    %1462 = vmatprep.mubr.f32.mxu0 0.0
    %1463 = vmatmul.mubr.f32.gmra.mrb[0].mxu0 %v372
    %v1464 = vpop.f32.mrb[0].mxu0
    %v1465 = vadd.f32 %v217, %v1464
    %v1466 = vpop.f32.mrb[0].mxu0
    %v1467 = vadd.f32 %v217, %v1466
    %1468 = vmatprep.mubr.f32.mxu0 0.0
    %1469 = vmatmul.mubr.f32.gmra.mrb[0].mxu0 %v375
    %v1470 = vpop.f32.mrb[0].mxu0
    %v1471 = vadd.f32 %v222, %v1470
    %v1472 = vpop.f32.mrb[0].mxu0
    %v1473 = vadd.f32 %v222, %v1472
    %1474 = vmatprep.mubr.f32.mxu0 0.0
    %1475 = vmatmul.mubr.f32.gmra.mrb[0].mxu0 %v378
    %v1476 = vpop.f32.mrb[0].mxu0
    %v1477 = vadd.f32 %v227, %v1476
    %v1478 = vpop.f32.mrb[0].mxu0
    %v1479 = vadd.f32 %v227, %v1478
    %1480 = vmatprep.mubr.f32.mxu0 0.0
    %1481 = vmatmul.mubr.f32.gmra.mrb[0].mxu0 %v381
    %v1482 = vpop.f32.mrb[0].mxu0
    %v1483 = vadd.f32 %v232, %v1482
    %v1484 = vpop.f32.mrb[0].mxu0
    %v1485 = vadd.f32 %v232, %v1484
    %1486 = vmatprep.mubr.f32.mxu0 0.0
    %1487 = vmatmul.mubr.f32.gmra.mrb[0].mxu0 %v384
    %v1488 = vpop.f32.mrb[0].mxu0
    %v1489 = vadd.f32 %v237, %v1488
    %v1490 = vpop.f32.mrb[0].mxu0
    %v1491 = vadd.f32 %v237, %v1490
    %1492 = vmatprep.mubr.f32.mxu0 0.0
    %1493 = vmatmul.mubr.f32.gmra.mrb[0].mxu0 %v387
    %v1494 = vpop.f32.mrb[0].mxu0
    %v1495 = vadd.f32 %v242, %v1494
    %v1496 = vpop.f32.mrb[0].mxu0
    %v1497 = vadd.f32 %v242, %v1496
    %1498 = vmatprep.mubr.f32.mxu0 0.0
    %1499 = vmatmul.mubr.f32.gmra.mrb[0].mxu0 %v390
    %v1500 = vpop.f32.mrb[0].mxu0
    %v1501 = vadd.f32 %v247, %v1500
    %v1502 = vpop.f32.mrb[0].mxu0
    %v1503 = vadd.f32 %v247, %v1502
    %1504 = vmatprep.mubr.f32.mxu0 0.0
    %1505 = vmatmul.mubr.f32.gmra.mrb[0].mxu0 %v393
    %v1506 = vpop.f32.mrb[0].mxu0
    %v1507 = vadd.f32 %v252, %v1506
    %v1508 = vpop.f32.mrb[0].mxu0
    %v1509 = vadd.f32 %v252, %v1508
    %1510 = vmatprep.mubr.f32.mxu0 0.0
    %1511 = vmatmul.mubr.f32.gmra.mrb[0].mxu0 %v396
    %v1512 = vpop.f32.mrb[0].mxu0
    %v1513 = vadd.f32 %v257, %v1512
    %v1514 = vpop.f32.mrb[0].mxu0
    %v1515 = vadd.f32 %v257, %v1514
    %1516 = vmatprep.mubr.f32.mxu0 0.0
    %1517 = vmatmul.mubr.f32.gmra.mrb[0].mxu0 %v399
    %v1518 = vpop.f32.mrb[0].mxu0
    %v1519 = vadd.f32 %v262, %v1518
    %v1520 = vpop.f32.mrb[0].mxu0
    %v1521 = vadd.f32 %v262, %v1520
    %1522 = vmatprep.mubr.f32.mxu0 0.0
    %1523 = vmatmul.mubr.f32.gmra.mrb[0].mxu0 %v402
    %v1524 = vpop.f32.mrb[0].mxu0
    %v1525 = vadd.f32 %v267, %v1524
    %v1526 = vpop.f32.mrb[0].mxu0
    %v1527 = vadd.f32 %v267, %v1526
    %1528 = vmatprep.mubr.f32.mxu0 0.0
    %1529 = vmatmul.mubr.f32.gmra.mrb[0].mxu0 %v405
    %v1530 = vpop.f32.mrb[0].mxu0
    %v1531 = vadd.f32 %v272, %v1530
    %v1532 = vpop.f32.mrb[0].mxu0
    %v1533 = vadd.f32 %v272, %v1532
    %1534 = vmatprep.mubr.f32.mxu0 0.0
    %1535 = vmatmul.mubr.f32.gmra.mrb[0].mxu0 %v408
    %v1536 = vpop.f32.mrb[0].mxu0
    %v1537 = vadd.f32 %v277, %v1536
    %v1538 = vpop.f32.mrb[0].mxu0
    %v1539 = vadd.f32 %v277, %v1538
    %1540 = vmatprep.mubr.f32.mxu0 0.0
    %1541 = vmatmul.mubr.f32.gmra.mrb[0].mxu0 %v411
    %v1542 = vpop.f32.mrb[0].mxu0
    %v1543 = vadd.f32 %v282, %v1542
    %v1544 = vpop.f32.mrb[0].mxu0
    %v1545 = vadd.f32 %v282, %v1544
    %1546 = vmatprep.mubr.f32.mxu0 0.0
    %1547 = vmatmul.mubr.f32.gmra.mrb[0].mxu0 %v414
    %v1548 = vpop.f32.mrb[0].mxu0
    %v1549 = vadd.f32 %v287, %v1548
    %v1550 = vpop.f32.mrb[0].mxu0
    %v1551 = vadd.f32 %v287, %v1550
    %1552 = vmatprep.mubr.f32.mxu0 0.0
    %1553 = vmatmul.mubr.f32.gmra.mrb[0].mxu0 %v417
    %v1554 = vpop.f32.mrb[0].mxu0
    %v1555 = vadd.f32 %v292, %v1554
    %v1556 = vpop.f32.mrb[0].mxu0
    %v1557 = vadd.f32 %v292, %v1556
    %1558 = vmatprep.mubr.f32.mxu0 0.0
    %1559 = vmatmul.mubr.f32.gmra.mrb[0].mxu0 %v420
    %v1560 = vpop.f32.mrb[0].mxu0
    %v1561 = vadd.f32 %v297, %v1560
    %v1562 = vpop.f32.mrb[0].mxu0
    %v1563 = vadd.f32 %v297, %v1562
    %1564 = vmatprep.mubr.f32.mxu0 0.0
    %1565 = vmatmul.mubr.f32.gmra.mrb[0].mxu0 %v423
    %v1566 = vpop.f32.mrb[0].mxu0
    %v1567 = vadd.f32 %v302, %v1566
    %v1568 = vpop.f32.mrb[0].mxu0
    %v1569 = vadd.f32 %v302, %v1568
    %1570 = vmatprep.mubr.f32.mxu0 0.0
    %1571 = vmatmul.mubr.f32.gmra.mrb[0].mxu0 %v426
    %v1572 = vpop.f32.mrb[0].mxu0
    %v1573 = vadd.f32 %v307, %v1572
    %v1574 = vpop.f32.mrb[0].mxu0
    %v1575 = vadd.f32 %v307, %v1574
    %1576 = vmatprep.mubr.f32.mxu0 0.0
    %1577 = vmatmul.mubr.f32.gmra.mrb[0].mxu0 %v429
    %v1578 = vpop.f32.mrb[0].mxu0
    %v1579 = vadd.f32 %v312, %v1578
    %v1580 = vpop.f32.mrb[0].mxu0
    %v1581 = vadd.f32 %v312, %v1580
    %1582 = vmatprep.mubr.f32.mxu0 0.0
    %1583 = vmatmul.mubr.f32.gmra.mrb[0].mxu0 %v432
    %v1584 = vpop.f32.mrb[0].mxu0
    %v1585 = vadd.f32 %v317, %v1584
    %v1586 = vpop.f32.mrb[0].mxu0
    %v1587 = vadd.f32 %v317, %v1586
    %1588 = vmatprep.mubr.f32.mxu0 0.0
    %1589 = vmatmul.mubr.f32.gmra.mrb[0].mxu0 %v435
    %v1590 = vpop.f32.mrb[0].mxu0
    %v1591 = vadd.f32 %v322, %v1590
    %v1592 = vpop.f32.mrb[0].mxu0
    %v1593 = vadd.f32 %v322, %v1592
    %1594 = vmatprep.mubr.f32.mxu0 0.0
    %1595 = vmatmul.mubr.f32.gmra.mrb[0].mxu0 %v438
    %v1596 = vpop.f32.mrb[0].mxu0
    %v1597 = vadd.f32 %v327, %v1596
    %v1598 = vpop.f32.mrb[0].mxu0
    %v1599 = vadd.f32 %v327, %v1598
    %1600 = vmatprep.mubr.f32.mxu0 0.0
    %1601 = vmatmul.mubr.f32.gmra.mrb[0].mxu0 %v441
    %v1602 = vpop.f32.mrb[0].mxu0
    %v1603 = vadd.f32 %v332, %v1602
    %v1604 = vpop.f32.mrb[0].mxu0
    %v1605 = vadd.f32 %v332, %v1604
    %1606 = vdwg.mxu0
    %1607 = vmatprep.subr.mxu0 %v75
    %1608 = vmatpush1.msra.mxu0 %v74
    %1609 = vmatprep.subr.mxu0 %v88
    %1610 = vmatpush1.msra.mxu0 %v87
    %1611 = vmatprep.subr.mxu0 %v101
    %1612 = vmatpush1.msra.mxu0 %v100
    %1613 = vmatprep.subr.mxu0 %v472
    %1614 = vmatpush1.msra.mxu0 %v469
    %1615 = vmatprep.subr.mxu0 0.0
    %1616 = vmatpush1.msra.mxu0 0.0
    %1617 = vmatprep.subr.mxu0 0.0
    %1618 = vmatpush1.msra.mxu0 0.0
    %1619 = vmatprep.subr.mxu0 0.0
    %1620 = vmatpush1.msra.mxu0 0.0
    %1621 = vmatprep.subr.mxu0 0.0
    %1622 = vmatpush1.msra.mxu0 0.0
    %1623 = vmatprep.subr.mxu0 0.0
    %1624 = vmatpush1.msra.mxu0 0.0
    %1625 = vmatprep.subr.mxu0 0.0
    %1626 = vmatpush1.msra.mxu0 0.0
    %1627 = vmatprep.subr.mxu0 0.0
    %1628 = vmatpush1.msra.mxu0 0.0
    %1629 = vmatprep.subr.mxu0 0.0
    %1630 = vmatpush1.msra.mxu0 0.0
    %1631 = vmatprep.subr.mxu0 0.0
    %1632 = vmatpush1.msra.mxu0 0.0
    %1633 = vmatprep.subr.mxu0 0.0
    %1634 = vmatpush1.msra.mxu0 0.0
    %1635 = vmatprep.subr.mxu0 0.0
    %1636 = vmatpush1.msra.mxu0 0.0
    %1637 = vmatprep.subr.mxu0 0.0
    %1638 = vmatpush1.msra.mxu0 0.0
    %1639 = vmatprep.subr.mxu0 0.0
    %1640 = vmatpush1.msra.mxu0 0.0
    %1641 = vmatprep.subr.mxu0 0.0
    %1642 = vmatpush1.msra.mxu0 0.0
    %1643 = vmatprep.subr.mxu0 0.0
    %1644 = vmatpush1.msra.mxu0 0.0
    %1645 = vmatprep.subr.mxu0 0.0
    %1646 = vmatpush1.msra.mxu0 0.0
    %1647 = vmatprep.subr.mxu0 0.0
    %1648 = vmatpush1.msra.mxu0 0.0
    %1649 = vmatprep.subr.mxu0 0.0
    %1650 = vmatpush1.msra.mxu0 0.0
    %1651 = vmatprep.subr.mxu0 0.0
    %1652 = vmatpush1.msra.mxu0 0.0
    %1653 = vmatprep.subr.mxu0 0.0
    %1654 = vmatpush1.msra.mxu0 0.0
    %1655 = vmatprep.subr.mxu0 0.0
    %1656 = vmatpush1.msra.mxu0 0.0
    %1657 = vmatprep.subr.mxu0 0.0
    %1658 = vmatpush1.msra.mxu0 0.0
    %1659 = vmatprep.subr.mxu0 0.0
    %1660 = vmatpush1.msra.mxu0 0.0
    %1661 = vmatprep.subr.mxu0 0.0
    %1662 = vmatpush1.msra.mxu0 0.0
    %1663 = vmatprep.subr.mxu0 0.0
    %1664 = vmatpush1.msra.mxu0 0.0
    %1665 = vmatprep.subr.mxu0 0.0
    %1666 = vmatpush1.msra.mxu0 0.0
    %1667 = vmatprep.subr.mxu0 0.0
    %1668 = vmatpush1.msra.mxu0 0.0
    %1669 = vmatprep.subr.mxu0 0.0
    %1670 = vmatpush1.msra.mxu0 0.0
    %1671 = vmatprep.mubr.f32.mxu0 0.0
    %1672 = vmatmul.mubr.f32.gmra.mrb[0].mxu0 %v336
    %v1673 = vpop.f32.mrb[0].mxu0
    %v1674 = vadd.f32 %v157, %v1673
    %v1675 = vpop.f32.mrb[0].mxu0
    %v1676 = vadd.f32 %v157, %v1675
    %1677 = vmatprep.mubr.f32.mxu0 0.0
    %1678 = vmatmul.mubr.f32.gmra.mrb[0].mxu0 %v339
    %v1679 = vpop.f32.mrb[0].mxu0
    %v1680 = vadd.f32 %v162, %v1679
    %v1681 = vpop.f32.mrb[0].mxu0
    %v1682 = vadd.f32 %v162, %v1681
    %1683 = vmatprep.mubr.f32.mxu0 0.0
    %1684 = vmatmul.mubr.f32.gmra.mrb[0].mxu0 %v342
    %v1685 = vpop.f32.mrb[0].mxu0
    %v1686 = vadd.f32 %v167, %v1685
    %v1687 = vpop.f32.mrb[0].mxu0
    %v1688 = vadd.f32 %v167, %v1687
    %1689 = vmatprep.mubr.f32.mxu0 0.0
    %1690 = vmatmul.mubr.f32.gmra.mrb[0].mxu0 %v345
    %v1691 = vpop.f32.mrb[0].mxu0
    %v1692 = vadd.f32 %v172, %v1691
    %v1693 = vpop.f32.mrb[0].mxu0
    %v1694 = vadd.f32 %v172, %v1693
    %1695 = vmatprep.mubr.f32.mxu0 0.0
    %1696 = vmatmul.mubr.f32.gmra.mrb[0].mxu0 %v348
    %v1697 = vpop.f32.mrb[0].mxu0
    %v1698 = vadd.f32 %v177, %v1697
    %v1699 = vpop.f32.mrb[0].mxu0
    %v1700 = vadd.f32 %v177, %v1699
    %1701 = vmatprep.mubr.f32.mxu0 0.0
    %1702 = vmatmul.mubr.f32.gmra.mrb[0].mxu0 %v351
    %v1703 = vpop.f32.mrb[0].mxu0
    %v1704 = vadd.f32 %v182, %v1703
    %v1705 = vpop.f32.mrb[0].mxu0
    %v1706 = vadd.f32 %v182, %v1705
    %1707 = vmatprep.mubr.f32.mxu0 0.0
    %1708 = vmatmul.mubr.f32.gmra.mrb[0].mxu0 %v354
    %v1709 = vpop.f32.mrb[0].mxu0
    %v1710 = vadd.f32 %v187, %v1709
    %v1711 = vpop.f32.mrb[0].mxu0
    %v1712 = vadd.f32 %v187, %v1711
    %1713 = vmatprep.mubr.f32.mxu0 0.0
    %1714 = vmatmul.mubr.f32.gmra.mrb[0].mxu0 %v357
    %v1715 = vpop.f32.mrb[0].mxu0
    %v1716 = vadd.f32 %v192, %v1715
    %v1717 = vpop.f32.mrb[0].mxu0
    %v1718 = vadd.f32 %v192, %v1717
    %1719 = vmatprep.mubr.f32.mxu0 0.0
    %1720 = vmatmul.mubr.f32.gmra.mrb[0].mxu0 %v360
    %v1721 = vpop.f32.mrb[0].mxu0
    %v1722 = vadd.f32 %v197, %v1721
    %v1723 = vpop.f32.mrb[0].mxu0
    %v1724 = vadd.f32 %v197, %v1723
    %1725 = vmatprep.mubr.f32.mxu0 0.0
    %1726 = vmatmul.mubr.f32.gmra.mrb[0].mxu0 %v363
    %v1727 = vpop.f32.mrb[0].mxu0
    %v1728 = vadd.f32 %v202, %v1727
    %v1729 = vpop.f32.mrb[0].mxu0
    %v1730 = vadd.f32 %v202, %v1729
    %1731 = vmatprep.mubr.f32.mxu0 0.0
    %1732 = vmatmul.mubr.f32.gmra.mrb[0].mxu0 %v366
    %v1733 = vpop.f32.mrb[0].mxu0
    %v1734 = vadd.f32 %v207, %v1733
    %v1735 = vpop.f32.mrb[0].mxu0
    %v1736 = vadd.f32 %v207, %v1735
    %1737 = vmatprep.mubr.f32.mxu0 0.0
    %1738 = vmatmul.mubr.f32.gmra.mrb[0].mxu0 %v369
    %v1739 = vpop.f32.mrb[0].mxu0
    %v1740 = vadd.f32 %v212, %v1739
    %v1741 = vpop.f32.mrb[0].mxu0
    %v1742 = vadd.f32 %v212, %v1741
    %1743 = vmatprep.mubr.f32.mxu0 0.0
    %1744 = vmatmul.mubr.f32.gmra.mrb[0].mxu0 %v372
    %v1745 = vpop.f32.mrb[0].mxu0
    %v1746 = vadd.f32 %v217, %v1745
    %v1747 = vpop.f32.mrb[0].mxu0
    %v1748 = vadd.f32 %v217, %v1747
    %1749 = vmatprep.mubr.f32.mxu0 0.0
    %1750 = vmatmul.mubr.f32.gmra.mrb[0].mxu0 %v375
    %v1751 = vpop.f32.mrb[0].mxu0
    %v1752 = vadd.f32 %v222, %v1751
    %v1753 = vpop.f32.mrb[0].mxu0
    %v1754 = vadd.f32 %v222, %v1753
    %1755 = vmatprep.mubr.f32.mxu0 0.0
    %1756 = vmatmul.mubr.f32.gmra.mrb[0].mxu0 %v378
    %v1757 = vpop.f32.mrb[0].mxu0
    %v1758 = vadd.f32 %v227, %v1757
    %v1759 = vpop.f32.mrb[0].mxu0
    %v1760 = vadd.f32 %v227, %v1759
    %1761 = vmatprep.mubr.f32.mxu0 0.0
    %1762 = vmatmul.mubr.f32.gmra.mrb[0].mxu0 %v381
    %v1763 = vpop.f32.mrb[0].mxu0
    %v1764 = vadd.f32 %v232, %v1763
    %v1765 = vpop.f32.mrb[0].mxu0
    %v1766 = vadd.f32 %v232, %v1765
    %1767 = vmatprep.mubr.f32.mxu0 0.0
    %1768 = vmatmul.mubr.f32.gmra.mrb[0].mxu0 %v384
    %v1769 = vpop.f32.mrb[0].mxu0
    %v1770 = vadd.f32 %v237, %v1769
    %v1771 = vpop.f32.mrb[0].mxu0
    %v1772 = vadd.f32 %v237, %v1771
    %1773 = vmatprep.mubr.f32.mxu0 0.0
    %1774 = vmatmul.mubr.f32.gmra.mrb[0].mxu0 %v387
    %v1775 = vpop.f32.mrb[0].mxu0
    %v1776 = vadd.f32 %v242, %v1775
    %v1777 = vpop.f32.mrb[0].mxu0
    %v1778 = vadd.f32 %v242, %v1777
    %1779 = vmatprep.mubr.f32.mxu0 0.0
    %1780 = vmatmul.mubr.f32.gmra.mrb[0].mxu0 %v390
    %v1781 = vpop.f32.mrb[0].mxu0
    %v1782 = vadd.f32 %v247, %v1781
    %v1783 = vpop.f32.mrb[0].mxu0
    %v1784 = vadd.f32 %v247, %v1783
    %1785 = vmatprep.mubr.f32.mxu0 0.0
    %1786 = vmatmul.mubr.f32.gmra.mrb[0].mxu0 %v393
    %v1787 = vpop.f32.mrb[0].mxu0
    %v1788 = vadd.f32 %v252, %v1787
    %v1789 = vpop.f32.mrb[0].mxu0
    %v1790 = vadd.f32 %v252, %v1789
    %1791 = vmatprep.mubr.f32.mxu0 0.0
    %1792 = vmatmul.mubr.f32.gmra.mrb[0].mxu0 %v396
    %v1793 = vpop.f32.mrb[0].mxu0
    %v1794 = vadd.f32 %v257, %v1793
    %v1795 = vpop.f32.mrb[0].mxu0
    %v1796 = vadd.f32 %v257, %v1795
    %1797 = vmatprep.mubr.f32.mxu0 0.0
    %1798 = vmatmul.mubr.f32.gmra.mrb[0].mxu0 %v399
    %v1799 = vpop.f32.mrb[0].mxu0
    %v1800 = vadd.f32 %v262, %v1799
    %v1801 = vpop.f32.mrb[0].mxu0
    %v1802 = vadd.f32 %v262, %v1801
    %1803 = vmatprep.mubr.f32.mxu0 0.0
    %1804 = vmatmul.mubr.f32.gmra.mrb[0].mxu0 %v402
    %v1805 = vpop.f32.mrb[0].mxu0
    %v1806 = vadd.f32 %v267, %v1805
    %v1807 = vpop.f32.mrb[0].mxu0
    %v1808 = vadd.f32 %v267, %v1807
    %1809 = vmatprep.mubr.f32.mxu0 0.0
    %1810 = vmatmul.mubr.f32.gmra.mrb[0].mxu0 %v405
    %v1811 = vpop.f32.mrb[0].mxu0
    %v1812 = vadd.f32 %v272, %v1811
    %v1813 = vpop.f32.mrb[0].mxu0
    %v1814 = vadd.f32 %v272, %v1813
    %1815 = vmatprep.mubr.f32.mxu0 0.0
    %1816 = vmatmul.mubr.f32.gmra.mrb[0].mxu0 %v408
    %v1817 = vpop.f32.mrb[0].mxu0
    %v1818 = vadd.f32 %v277, %v1817
    %v1819 = vpop.f32.mrb[0].mxu0
    %v1820 = vadd.f32 %v277, %v1819
    %1821 = vmatprep.mubr.f32.mxu0 0.0
    %1822 = vmatmul.mubr.f32.gmra.mrb[0].mxu0 %v411
    %v1823 = vpop.f32.mrb[0].mxu0
    %v1824 = vadd.f32 %v282, %v1823
    %v1825 = vpop.f32.mrb[0].mxu0
    %v1826 = vadd.f32 %v282, %v1825
    %1827 = vmatprep.mubr.f32.mxu0 0.0
    %1828 = vmatmul.mubr.f32.gmra.mrb[0].mxu0 %v414
    %v1829 = vpop.f32.mrb[0].mxu0
    %v1830 = vadd.f32 %v287, %v1829
    %v1831 = vpop.f32.mrb[0].mxu0
    %v1832 = vadd.f32 %v287, %v1831
    %1833 = vmatprep.mubr.f32.mxu0 0.0
    %1834 = vmatmul.mubr.f32.gmra.mrb[0].mxu0 %v417
    %v1835 = vpop.f32.mrb[0].mxu0
    %v1836 = vadd.f32 %v292, %v1835
    %v1837 = vpop.f32.mrb[0].mxu0
    %v1838 = vadd.f32 %v292, %v1837
    %1839 = vmatprep.mubr.f32.mxu0 0.0
    %1840 = vmatmul.mubr.f32.gmra.mrb[0].mxu0 %v420
    %v1841 = vpop.f32.mrb[0].mxu0
    %v1842 = vadd.f32 %v297, %v1841
    %v1843 = vpop.f32.mrb[0].mxu0
    %v1844 = vadd.f32 %v297, %v1843
    %1845 = vmatprep.mubr.f32.mxu0 0.0
    %1846 = vmatmul.mubr.f32.gmra.mrb[0].mxu0 %v423
    %v1847 = vpop.f32.mrb[0].mxu0
    %v1848 = vadd.f32 %v302, %v1847
    %v1849 = vpop.f32.mrb[0].mxu0
    %v1850 = vadd.f32 %v302, %v1849
    %1851 = vmatprep.mubr.f32.mxu0 0.0
    %1852 = vmatmul.mubr.f32.gmra.mrb[0].mxu0 %v426
    %v1853 = vpop.f32.mrb[0].mxu0
    %v1854 = vadd.f32 %v307, %v1853
    %v1855 = vpop.f32.mrb[0].mxu0
    %v1856 = vadd.f32 %v307, %v1855
    %1857 = vmatprep.mubr.f32.mxu0 0.0
    %1858 = vmatmul.mubr.f32.gmra.mrb[0].mxu0 %v429
    %v1859 = vpop.f32.mrb[0].mxu0
    %v1860 = vadd.f32 %v312, %v1859
    %v1861 = vpop.f32.mrb[0].mxu0
    %v1862 = vadd.f32 %v312, %v1861
    %1863 = vmatprep.mubr.f32.mxu0 0.0
    %1864 = vmatmul.mubr.f32.gmra.mrb[0].mxu0 %v432
    %v1865 = vpop.f32.mrb[0].mxu0
    %v1866 = vadd.f32 %v317, %v1865
    %v1867 = vpop.f32.mrb[0].mxu0
    %v1868 = vadd.f32 %v317, %v1867
    %1869 = vmatprep.mubr.f32.mxu0 0.0
    %1870 = vmatmul.mubr.f32.gmra.mrb[0].mxu0 %v435
    %v1871 = vpop.f32.mrb[0].mxu0
    %v1872 = vadd.f32 %v322, %v1871
    %v1873 = vpop.f32.mrb[0].mxu0
    %v1874 = vadd.f32 %v322, %v1873
    %1875 = vmatprep.mubr.f32.mxu0 0.0
    %1876 = vmatmul.mubr.f32.gmra.mrb[0].mxu0 %v438
    %v1877 = vpop.f32.mrb[0].mxu0
    %v1878 = vadd.f32 %v327, %v1877
    %v1879 = vpop.f32.mrb[0].mxu0
    %v1880 = vadd.f32 %v327, %v1879
    %1881 = vmatprep.mubr.f32.mxu0 0.0
    %1882 = vmatmul.mubr.f32.gmra.mrb[0].mxu0 %v441
    %v1883 = vpop.f32.mrb[0].mxu0
    %v1884 = vadd.f32 %v332, %v1883
    %v1885 = vpop.f32.mrb[0].mxu0
    %v1886 = vadd.f32 %v332, %v1885
    %1887 = vdwg.mxu0
    %1888 = vmatprep.subr.mxu0 %v77
    %1889 = vmatpush1.msra.mxu0 %v76
    %1890 = vmatprep.subr.mxu0 %v90
    %1891 = vmatpush1.msra.mxu0 %v89
    %1892 = vmatprep.subr.mxu0 %v103
    %1893 = vmatpush1.msra.mxu0 %v102
    %1894 = vmatprep.subr.mxu0 %v478
    %1895 = vmatpush1.msra.mxu0 %v475
    %1896 = vmatprep.subr.mxu0 0.0
    %1897 = vmatpush1.msra.mxu0 0.0
    %1898 = vmatprep.subr.mxu0 0.0
    %1899 = vmatpush1.msra.mxu0 0.0
    %1900 = vmatprep.subr.mxu0 0.0
    %1901 = vmatpush1.msra.mxu0 0.0
    %1902 = vmatprep.subr.mxu0 0.0
    %1903 = vmatpush1.msra.mxu0 0.0
    %1904 = vmatprep.subr.mxu0 0.0
    %1905 = vmatpush1.msra.mxu0 0.0
    %1906 = vmatprep.subr.mxu0 0.0
    %1907 = vmatpush1.msra.mxu0 0.0
    %1908 = vmatprep.subr.mxu0 0.0
    %1909 = vmatpush1.msra.mxu0 0.0
    %1910 = vmatprep.subr.mxu0 0.0
    %1911 = vmatpush1.msra.mxu0 0.0
    %1912 = vmatprep.subr.mxu0 0.0
    %1913 = vmatpush1.msra.mxu0 0.0
    %1914 = vmatprep.subr.mxu0 0.0
    %1915 = vmatpush1.msra.mxu0 0.0
    %1916 = vmatprep.subr.mxu0 0.0
    %1917 = vmatpush1.msra.mxu0 0.0
    %1918 = vmatprep.subr.mxu0 0.0
    %1919 = vmatpush1.msra.mxu0 0.0
    %1920 = vmatprep.subr.mxu0 0.0
    %1921 = vmatpush1.msra.mxu0 0.0
    %1922 = vmatprep.subr.mxu0 0.0
    %1923 = vmatpush1.msra.mxu0 0.0
    %1924 = vmatprep.subr.mxu0 0.0
    %1925 = vmatpush1.msra.mxu0 0.0
    %1926 = vmatprep.subr.mxu0 0.0
    %1927 = vmatpush1.msra.mxu0 0.0
    %1928 = vmatprep.subr.mxu0 0.0
    %1929 = vmatpush1.msra.mxu0 0.0
    %1930 = vmatprep.subr.mxu0 0.0
    %1931 = vmatpush1.msra.mxu0 0.0
    %1932 = vmatprep.subr.mxu0 0.0
    %1933 = vmatpush1.msra.mxu0 0.0
    %1934 = vmatprep.subr.mxu0 0.0
    %1935 = vmatpush1.msra.mxu0 0.0
    %1936 = vmatprep.subr.mxu0 0.0
    %1937 = vmatpush1.msra.mxu0 0.0
    %1938 = vmatprep.subr.mxu0 0.0
    %1939 = vmatpush1.msra.mxu0 0.0
    %1940 = vmatprep.subr.mxu0 0.0
    %1941 = vmatpush1.msra.mxu0 0.0
    %1942 = vmatprep.subr.mxu0 0.0
    %1943 = vmatpush1.msra.mxu0 0.0
    %1944 = vmatprep.subr.mxu0 0.0
    %1945 = vmatpush1.msra.mxu0 0.0
    %1946 = vmatprep.subr.mxu0 0.0
    %1947 = vmatpush1.msra.mxu0 0.0
    %1948 = vmatprep.subr.mxu0 0.0
    %1949 = vmatpush1.msra.mxu0 0.0
    %1950 = vmatprep.subr.mxu0 0.0
    %1951 = vmatpush1.msra.mxu0 0.0
    %1952 = vmatprep.mubr.f32.mxu0 0.0
    %1953 = vmatmul.mubr.f32.gmra.mrb[0].mxu0 %v336
    %v1954 = vpop.f32.mrb[0].mxu0
    %v1955 = vadd.f32 %v157, %v1954
    %v1956 = vpop.f32.mrb[0].mxu0
    %v1957 = vadd.f32 %v157, %v1956
    %1958 = vmatprep.mubr.f32.mxu0 0.0
    %1959 = vmatmul.mubr.f32.gmra.mrb[0].mxu0 %v339
    %v1960 = vpop.f32.mrb[0].mxu0
    %v1961 = vadd.f32 %v162, %v1960
    %v1962 = vpop.f32.mrb[0].mxu0
    %v1963 = vadd.f32 %v162, %v1962
    %1964 = vmatprep.mubr.f32.mxu0 0.0
    %1965 = vmatmul.mubr.f32.gmra.mrb[0].mxu0 %v342
    %v1966 = vpop.f32.mrb[0].mxu0
    %v1967 = vadd.f32 %v167, %v1966
    %v1968 = vpop.f32.mrb[0].mxu0
    %v1969 = vadd.f32 %v167, %v1968
    %1970 = vmatprep.mubr.f32.mxu0 0.0
    %1971 = vmatmul.mubr.f32.gmra.mrb[0].mxu0 %v345
    %v1972 = vpop.f32.mrb[0].mxu0
    %v1973 = vadd.f32 %v172, %v1972
    %v1974 = vpop.f32.mrb[0].mxu0
    %v1975 = vadd.f32 %v172, %v1974
    %1976 = vmatprep.mubr.f32.mxu0 0.0
    %1977 = vmatmul.mubr.f32.gmra.mrb[0].mxu0 %v348
    %v1978 = vpop.f32.mrb[0].mxu0
    %v1979 = vadd.f32 %v177, %v1978
    %v1980 = vpop.f32.mrb[0].mxu0
    %v1981 = vadd.f32 %v177, %v1980
    %1982 = vmatprep.mubr.f32.mxu0 0.0
    %1983 = vmatmul.mubr.f32.gmra.mrb[0].mxu0 %v351
    %v1984 = vpop.f32.mrb[0].mxu0
    %v1985 = vadd.f32 %v182, %v1984
    %v1986 = vpop.f32.mrb[0].mxu0
    %v1987 = vadd.f32 %v182, %v1986
    %1988 = vmatprep.mubr.f32.mxu0 0.0
    %1989 = vmatmul.mubr.f32.gmra.mrb[0].mxu0 %v354
    %v1990 = vpop.f32.mrb[0].mxu0
    %v1991 = vadd.f32 %v187, %v1990
    %v1992 = vpop.f32.mrb[0].mxu0
    %v1993 = vadd.f32 %v187, %v1992
    %1994 = vmatprep.mubr.f32.mxu0 0.0
    %1995 = vmatmul.mubr.f32.gmra.mrb[0].mxu0 %v357
    %v1996 = vpop.f32.mrb[0].mxu0
    %v1997 = vadd.f32 %v192, %v1996
    %v1998 = vpop.f32.mrb[0].mxu0
    %v1999 = vadd.f32 %v192, %v1998
    %2000 = vmatprep.mubr.f32.mxu0 0.0
    %2001 = vmatmul.mubr.f32.gmra.mrb[0].mxu0 %v360
    %v2002 = vpop.f32.mrb[0].mxu0
    %v2003 = vadd.f32 %v197, %v2002
    %v2004 = vpop.f32.mrb[0].mxu0
    %v2005 = vadd.f32 %v197, %v2004
    %2006 = vmatprep.mubr.f32.mxu0 0.0
    %2007 = vmatmul.mubr.f32.gmra.mrb[0].mxu0 %v363
    %v2008 = vpop.f32.mrb[0].mxu0
    %v2009 = vadd.f32 %v202, %v2008
    %v2010 = vpop.f32.mrb[0].mxu0
    %v2011 = vadd.f32 %v202, %v2010
    %2012 = vmatprep.mubr.f32.mxu0 0.0
    %2013 = vmatmul.mubr.f32.gmra.mrb[0].mxu0 %v366
    %v2014 = vpop.f32.mrb[0].mxu0
    %v2015 = vadd.f32 %v207, %v2014
    %v2016 = vpop.f32.mrb[0].mxu0
    %v2017 = vadd.f32 %v207, %v2016
    %2018 = vmatprep.mubr.f32.mxu0 0.0
    %2019 = vmatmul.mubr.f32.gmra.mrb[0].mxu0 %v369
    %v2020 = vpop.f32.mrb[0].mxu0
    %v2021 = vadd.f32 %v212, %v2020
    %v2022 = vpop.f32.mrb[0].mxu0
    %v2023 = vadd.f32 %v212, %v2022
    %2024 = vmatprep.mubr.f32.mxu0 0.0
    %2025 = vmatmul.mubr.f32.gmra.mrb[0].mxu0 %v372
    %v2026 = vpop.f32.mrb[0].mxu0
    %v2027 = vadd.f32 %v217, %v2026
    %v2028 = vpop.f32.mrb[0].mxu0
    %v2029 = vadd.f32 %v217, %v2028
    %2030 = vmatprep.mubr.f32.mxu0 0.0
    %2031 = vmatmul.mubr.f32.gmra.mrb[0].mxu0 %v375
    %v2032 = vpop.f32.mrb[0].mxu0
    %v2033 = vadd.f32 %v222, %v2032
    %v2034 = vpop.f32.mrb[0].mxu0
    %v2035 = vadd.f32 %v222, %v2034
    %2036 = vmatprep.mubr.f32.mxu0 0.0
    %2037 = vmatmul.mubr.f32.gmra.mrb[0].mxu0 %v378
    %v2038 = vpop.f32.mrb[0].mxu0
    %v2039 = vadd.f32 %v227, %v2038
    %v2040 = vpop.f32.mrb[0].mxu0
    %v2041 = vadd.f32 %v227, %v2040
    %2042 = vmatprep.mubr.f32.mxu0 0.0
    %2043 = vmatmul.mubr.f32.gmra.mrb[0].mxu0 %v381
    %v2044 = vpop.f32.mrb[0].mxu0
    %v2045 = vadd.f32 %v232, %v2044
    %v2046 = vpop.f32.mrb[0].mxu0
    %v2047 = vadd.f32 %v232, %v2046
    %2048 = vmatprep.mubr.f32.mxu0 0.0
    %2049 = vmatmul.mubr.f32.gmra.mrb[0].mxu0 %v384
    %v2050 = vpop.f32.mrb[0].mxu0
    %v2051 = vadd.f32 %v237, %v2050
    %v2052 = vpop.f32.mrb[0].mxu0
    %v2053 = vadd.f32 %v237, %v2052
    %2054 = vmatprep.mubr.f32.mxu0 0.0
    %2055 = vmatmul.mubr.f32.gmra.mrb[0].mxu0 %v387
    %v2056 = vpop.f32.mrb[0].mxu0
    %v2057 = vadd.f32 %v242, %v2056
    %v2058 = vpop.f32.mrb[0].mxu0
    %v2059 = vadd.f32 %v242, %v2058
    %2060 = vmatprep.mubr.f32.mxu0 0.0
    %2061 = vmatmul.mubr.f32.gmra.mrb[0].mxu0 %v390
    %v2062 = vpop.f32.mrb[0].mxu0
    %v2063 = vadd.f32 %v247, %v2062
    %v2064 = vpop.f32.mrb[0].mxu0
    %v2065 = vadd.f32 %v247, %v2064
    %2066 = vmatprep.mubr.f32.mxu0 0.0
    %2067 = vmatmul.mubr.f32.gmra.mrb[0].mxu0 %v393
    %v2068 = vpop.f32.mrb[0].mxu0
    %v2069 = vadd.f32 %v252, %v2068
    %v2070 = vpop.f32.mrb[0].mxu0
    %v2071 = vadd.f32 %v252, %v2070
    %2072 = vmatprep.mubr.f32.mxu0 0.0
    %2073 = vmatmul.mubr.f32.gmra.mrb[0].mxu0 %v396
    %v2074 = vpop.f32.mrb[0].mxu0
    %v2075 = vadd.f32 %v257, %v2074
    %v2076 = vpop.f32.mrb[0].mxu0
    %v2077 = vadd.f32 %v257, %v2076
    %2078 = vmatprep.mubr.f32.mxu0 0.0
    %2079 = vmatmul.mubr.f32.gmra.mrb[0].mxu0 %v399
    %v2080 = vpop.f32.mrb[0].mxu0
    %v2081 = vadd.f32 %v262, %v2080
    %v2082 = vpop.f32.mrb[0].mxu0
    %v2083 = vadd.f32 %v262, %v2082
    %2084 = vmatprep.mubr.f32.mxu0 0.0
    %2085 = vmatmul.mubr.f32.gmra.mrb[0].mxu0 %v402
    %v2086 = vpop.f32.mrb[0].mxu0
    %v2087 = vadd.f32 %v267, %v2086
    %v2088 = vpop.f32.mrb[0].mxu0
    %v2089 = vadd.f32 %v267, %v2088
    %2090 = vmatprep.mubr.f32.mxu0 0.0
    %2091 = vmatmul.mubr.f32.gmra.mrb[0].mxu0 %v405
    %v2092 = vpop.f32.mrb[0].mxu0
    %v2093 = vadd.f32 %v272, %v2092
    %v2094 = vpop.f32.mrb[0].mxu0
    %v2095 = vadd.f32 %v272, %v2094
    %2096 = vmatprep.mubr.f32.mxu0 0.0
    %2097 = vmatmul.mubr.f32.gmra.mrb[0].mxu0 %v408
    %v2098 = vpop.f32.mrb[0].mxu0
    %v2099 = vadd.f32 %v277, %v2098
    %v2100 = vpop.f32.mrb[0].mxu0
    %v2101 = vadd.f32 %v277, %v2100
    %2102 = vmatprep.mubr.f32.mxu0 0.0
    %2103 = vmatmul.mubr.f32.gmra.mrb[0].mxu0 %v411
    %v2104 = vpop.f32.mrb[0].mxu0
    %v2105 = vadd.f32 %v282, %v2104
    %v2106 = vpop.f32.mrb[0].mxu0
    %v2107 = vadd.f32 %v282, %v2106
    %2108 = vmatprep.mubr.f32.mxu0 0.0
    %2109 = vmatmul.mubr.f32.gmra.mrb[0].mxu0 %v414
    %v2110 = vpop.f32.mrb[0].mxu0
    %v2111 = vadd.f32 %v287, %v2110
    %v2112 = vpop.f32.mrb[0].mxu0
    %v2113 = vadd.f32 %v287, %v2112
    %2114 = vmatprep.mubr.f32.mxu0 0.0
    %2115 = vmatmul.mubr.f32.gmra.mrb[0].mxu0 %v417
    %v2116 = vpop.f32.mrb[0].mxu0
    %v2117 = vadd.f32 %v292, %v2116
    %v2118 = vpop.f32.mrb[0].mxu0
    %v2119 = vadd.f32 %v292, %v2118
    %2120 = vmatprep.mubr.f32.mxu0 0.0
    %2121 = vmatmul.mubr.f32.gmra.mrb[0].mxu0 %v420
    %v2122 = vpop.f32.mrb[0].mxu0
    %v2123 = vadd.f32 %v297, %v2122
    %v2124 = vpop.f32.mrb[0].mxu0
    %v2125 = vadd.f32 %v297, %v2124
    %2126 = vmatprep.mubr.f32.mxu0 0.0
    %2127 = vmatmul.mubr.f32.gmra.mrb[0].mxu0 %v423
    %v2128 = vpop.f32.mrb[0].mxu0
    %v2129 = vadd.f32 %v302, %v2128
    %v2130 = vpop.f32.mrb[0].mxu0
    %v2131 = vadd.f32 %v302, %v2130
    %2132 = vmatprep.mubr.f32.mxu0 0.0
    %2133 = vmatmul.mubr.f32.gmra.mrb[0].mxu0 %v426
    %v2134 = vpop.f32.mrb[0].mxu0
    %v2135 = vadd.f32 %v307, %v2134
    %v2136 = vpop.f32.mrb[0].mxu0
    %v2137 = vadd.f32 %v307, %v2136
    %2138 = vmatprep.mubr.f32.mxu0 0.0
    %2139 = vmatmul.mubr.f32.gmra.mrb[0].mxu0 %v429
    %v2140 = vpop.f32.mrb[0].mxu0
    %v2141 = vadd.f32 %v312, %v2140
    %v2142 = vpop.f32.mrb[0].mxu0
    %v2143 = vadd.f32 %v312, %v2142
    %2144 = vmatprep.mubr.f32.mxu0 0.0
    %2145 = vmatmul.mubr.f32.gmra.mrb[0].mxu0 %v432
    %v2146 = vpop.f32.mrb[0].mxu0
    %v2147 = vadd.f32 %v317, %v2146
    %v2148 = vpop.f32.mrb[0].mxu0
    %v2149 = vadd.f32 %v317, %v2148
    %2150 = vmatprep.mubr.f32.mxu0 0.0
    %2151 = vmatmul.mubr.f32.gmra.mrb[0].mxu0 %v435
    %v2152 = vpop.f32.mrb[0].mxu0
    %v2153 = vadd.f32 %v322, %v2152
    %v2154 = vpop.f32.mrb[0].mxu0
    %v2155 = vadd.f32 %v322, %v2154
    %2156 = vmatprep.mubr.f32.mxu0 0.0
    %2157 = vmatmul.mubr.f32.gmra.mrb[0].mxu0 %v438
    %v2158 = vpop.f32.mrb[0].mxu0
    %v2159 = vadd.f32 %v327, %v2158
    %v2160 = vpop.f32.mrb[0].mxu0
    %v2161 = vadd.f32 %v327, %v2160
    %2162 = vmatprep.mubr.f32.mxu0 0.0
    %2163 = vmatmul.mubr.f32.gmra.mrb[0].mxu0 %v441
    %v2164 = vpop.f32.mrb[0].mxu0
    %v2165 = vadd.f32 %v332, %v2164
    %v2166 = vpop.f32.mrb[0].mxu0
    %v2167 = vadd.f32 %v332, %v2166
    %2168 = vdwg.mxu0
    %2169 = vmatprep.subr.mxu0 0.0
    %2170 = vmatpush1.msra.mxu0 %v78
    %2171 = vmatprep.subr.mxu0 0.0
    %2172 = vmatpush1.msra.mxu0 %v91
    %2173 = vmatprep.subr.mxu0 0.0
    %2174 = vmatpush1.msra.mxu0 %v104
    %2175 = vmatprep.subr.mxu0 0.0
    %2176 = vmatpush1.msra.mxu0 %v481
    %2177 = vmatprep.subr.mxu0 0.0
    %2178 = vmatpush1.msra.mxu0 0.0
    %2179 = vmatprep.subr.mxu0 0.0
    %2180 = vmatpush1.msra.mxu0 0.0
    %2181 = vmatprep.subr.mxu0 0.0
    %2182 = vmatpush1.msra.mxu0 0.0
    %2183 = vmatprep.subr.mxu0 0.0
    %2184 = vmatpush1.msra.mxu0 0.0
    %2185 = vmatprep.subr.mxu0 0.0
    %2186 = vmatpush1.msra.mxu0 0.0
    %2187 = vmatprep.subr.mxu0 0.0
    %2188 = vmatpush1.msra.mxu0 0.0
    %2189 = vmatprep.subr.mxu0 0.0
    %2190 = vmatpush1.msra.mxu0 0.0
    %2191 = vmatprep.subr.mxu0 0.0
    %2192 = vmatpush1.msra.mxu0 0.0
    %2193 = vmatprep.subr.mxu0 0.0
    %2194 = vmatpush1.msra.mxu0 0.0
    %2195 = vmatprep.subr.mxu0 0.0
    %2196 = vmatpush1.msra.mxu0 0.0
    %2197 = vmatprep.subr.mxu0 0.0
    %2198 = vmatpush1.msra.mxu0 0.0
    %2199 = vmatprep.subr.mxu0 0.0
    %2200 = vmatpush1.msra.mxu0 0.0
    %2201 = vmatprep.subr.mxu0 0.0
    %2202 = vmatpush1.msra.mxu0 0.0
    %2203 = vmatprep.subr.mxu0 0.0
    %2204 = vmatpush1.msra.mxu0 0.0
    %2205 = vmatprep.subr.mxu0 0.0
    %2206 = vmatpush1.msra.mxu0 0.0
    %2207 = vmatprep.subr.mxu0 0.0
    %2208 = vmatpush1.msra.mxu0 0.0
    %2209 = vmatprep.subr.mxu0 0.0
    %2210 = vmatpush1.msra.mxu0 0.0
    %2211 = vmatprep.subr.mxu0 0.0
    %2212 = vmatpush1.msra.mxu0 0.0
    %2213 = vmatprep.subr.mxu0 0.0
    %2214 = vmatpush1.msra.mxu0 0.0
    %2215 = vmatprep.subr.mxu0 0.0
    %2216 = vmatpush1.msra.mxu0 0.0
    %2217 = vmatprep.subr.mxu0 0.0
    %2218 = vmatpush1.msra.mxu0 0.0
    %2219 = vmatprep.subr.mxu0 0.0
    %2220 = vmatpush1.msra.mxu0 0.0
    %2221 = vmatprep.subr.mxu0 0.0
    %2222 = vmatpush1.msra.mxu0 0.0
    %2223 = vmatprep.subr.mxu0 0.0
    %2224 = vmatpush1.msra.mxu0 0.0
    %2225 = vmatprep.subr.mxu0 0.0
    %2226 = vmatpush1.msra.mxu0 0.0
    %2227 = vmatprep.subr.mxu0 0.0
    %2228 = vmatpush1.msra.mxu0 0.0
    %2229 = vmatprep.subr.mxu0 0.0
    %2230 = vmatpush1.msra.mxu0 0.0
    %2231 = vmatprep.subr.mxu0 0.0
    %2232 = vmatpush1.msra.mxu0 0.0
    %2233 = vmatprep.mubr.f32.mxu0 0.0
    %2234 = vmatmul.mubr.f32.gmra.mrb[0].mxu0 %v336
    %v2235 = vpop.f32.mrb[0].mxu0
    %v2236 = vadd.f32 %v157, %v2235
    %v2237 = vpop.f32.mrb[0].mxu0
    %2238 = vmatprep.mubr.f32.mxu0 0.0
    %2239 = vmatmul.mubr.f32.gmra.mrb[0].mxu0 %v339
    %v2240 = vpop.f32.mrb[0].mxu0
    %v2241 = vadd.f32 %v162, %v2240
    %v2242 = vpop.f32.mrb[0].mxu0
    %2243 = vmatprep.mubr.f32.mxu0 0.0
    %2244 = vmatmul.mubr.f32.gmra.mrb[0].mxu0 %v342
    %v2245 = vpop.f32.mrb[0].mxu0
    %v2246 = vadd.f32 %v167, %v2245
    %v2247 = vpop.f32.mrb[0].mxu0
    %2248 = vmatprep.mubr.f32.mxu0 0.0
    %2249 = vmatmul.mubr.f32.gmra.mrb[0].mxu0 %v345
    %v2250 = vpop.f32.mrb[0].mxu0
    %v2251 = vadd.f32 %v172, %v2250
    %v2252 = vpop.f32.mrb[0].mxu0
    %2253 = vmatprep.mubr.f32.mxu0 0.0
    %2254 = vmatmul.mubr.f32.gmra.mrb[0].mxu0 %v348
    %v2255 = vpop.f32.mrb[0].mxu0
    %v2256 = vadd.f32 %v177, %v2255
    %v2257 = vpop.f32.mrb[0].mxu0
    %2258 = vmatprep.mubr.f32.mxu0 0.0
    %2259 = vmatmul.mubr.f32.gmra.mrb[0].mxu0 %v351
    %v2260 = vpop.f32.mrb[0].mxu0
    %v2261 = vadd.f32 %v182, %v2260
    %v2262 = vpop.f32.mrb[0].mxu0
    %2263 = vmatprep.mubr.f32.mxu0 0.0
    %2264 = vmatmul.mubr.f32.gmra.mrb[0].mxu0 %v354
    %v2265 = vpop.f32.mrb[0].mxu0
    %v2266 = vadd.f32 %v187, %v2265
    %v2267 = vpop.f32.mrb[0].mxu0
    %2268 = vmatprep.mubr.f32.mxu0 0.0
    %2269 = vmatmul.mubr.f32.gmra.mrb[0].mxu0 %v357
    %v2270 = vpop.f32.mrb[0].mxu0
    %v2271 = vadd.f32 %v192, %v2270
    %v2272 = vpop.f32.mrb[0].mxu0
    %2273 = vmatprep.mubr.f32.mxu0 0.0
    %2274 = vmatmul.mubr.f32.gmra.mrb[0].mxu0 %v360
    %v2275 = vpop.f32.mrb[0].mxu0
    %v2276 = vadd.f32 %v197, %v2275
    %v2277 = vpop.f32.mrb[0].mxu0
    %2278 = vmatprep.mubr.f32.mxu0 0.0
    %2279 = vmatmul.mubr.f32.gmra.mrb[0].mxu0 %v363
    %v2280 = vpop.f32.mrb[0].mxu0
    %v2281 = vadd.f32 %v202, %v2280
    %v2282 = vpop.f32.mrb[0].mxu0
    %2283 = vmatprep.mubr.f32.mxu0 0.0
    %2284 = vmatmul.mubr.f32.gmra.mrb[0].mxu0 %v366
    %v2285 = vpop.f32.mrb[0].mxu0
    %v2286 = vadd.f32 %v207, %v2285
    %v2287 = vpop.f32.mrb[0].mxu0
    %2288 = vmatprep.mubr.f32.mxu0 0.0
    %2289 = vmatmul.mubr.f32.gmra.mrb[0].mxu0 %v369
    %v2290 = vpop.f32.mrb[0].mxu0
    %v2291 = vadd.f32 %v212, %v2290
    %v2292 = vpop.f32.mrb[0].mxu0
    %2293 = vmatprep.mubr.f32.mxu0 0.0
    %2294 = vmatmul.mubr.f32.gmra.mrb[0].mxu0 %v372
    %v2295 = vpop.f32.mrb[0].mxu0
    %v2296 = vadd.f32 %v217, %v2295
    %v2297 = vpop.f32.mrb[0].mxu0
    %2298 = vmatprep.mubr.f32.mxu0 0.0
    %2299 = vmatmul.mubr.f32.gmra.mrb[0].mxu0 %v375
    %v2300 = vpop.f32.mrb[0].mxu0
    %v2301 = vadd.f32 %v222, %v2300
    %v2302 = vpop.f32.mrb[0].mxu0
    %2303 = vmatprep.mubr.f32.mxu0 0.0
    %2304 = vmatmul.mubr.f32.gmra.mrb[0].mxu0 %v378
    %v2305 = vpop.f32.mrb[0].mxu0
    %v2306 = vadd.f32 %v227, %v2305
    %v2307 = vpop.f32.mrb[0].mxu0
    %2308 = vmatprep.mubr.f32.mxu0 0.0
    %2309 = vmatmul.mubr.f32.gmra.mrb[0].mxu0 %v381
    %v2310 = vpop.f32.mrb[0].mxu0
    %v2311 = vadd.f32 %v232, %v2310
    %v2312 = vpop.f32.mrb[0].mxu0
    %2313 = vmatprep.mubr.f32.mxu0 0.0
    %2314 = vmatmul.mubr.f32.gmra.mrb[0].mxu0 %v384
    %v2315 = vpop.f32.mrb[0].mxu0
    %v2316 = vadd.f32 %v237, %v2315
    %v2317 = vpop.f32.mrb[0].mxu0
    %2318 = vmatprep.mubr.f32.mxu0 0.0
    %2319 = vmatmul.mubr.f32.gmra.mrb[0].mxu0 %v387
    %v2320 = vpop.f32.mrb[0].mxu0
    %v2321 = vadd.f32 %v242, %v2320
    %v2322 = vpop.f32.mrb[0].mxu0
    %2323 = vmatprep.mubr.f32.mxu0 0.0
    %2324 = vmatmul.mubr.f32.gmra.mrb[0].mxu0 %v390
    %v2325 = vpop.f32.mrb[0].mxu0
    %v2326 = vadd.f32 %v247, %v2325
    %v2327 = vpop.f32.mrb[0].mxu0
    %2328 = vmatprep.mubr.f32.mxu0 0.0
    %2329 = vmatmul.mubr.f32.gmra.mrb[0].mxu0 %v393
    %v2330 = vpop.f32.mrb[0].mxu0
    %v2331 = vadd.f32 %v252, %v2330
    %v2332 = vpop.f32.mrb[0].mxu0
    %2333 = vmatprep.mubr.f32.mxu0 0.0
    %2334 = vmatmul.mubr.f32.gmra.mrb[0].mxu0 %v396
    %v2335 = vpop.f32.mrb[0].mxu0
    %v2336 = vadd.f32 %v257, %v2335
    %v2337 = vpop.f32.mrb[0].mxu0
    %2338 = vmatprep.mubr.f32.mxu0 0.0
    %2339 = vmatmul.mubr.f32.gmra.mrb[0].mxu0 %v399
    %v2340 = vpop.f32.mrb[0].mxu0
    %v2341 = vadd.f32 %v262, %v2340
    %v2342 = vpop.f32.mrb[0].mxu0
    %2343 = vmatprep.mubr.f32.mxu0 0.0
    %2344 = vmatmul.mubr.f32.gmra.mrb[0].mxu0 %v402
    %v2345 = vpop.f32.mrb[0].mxu0
    %v2346 = vadd.f32 %v267, %v2345
    %v2347 = vpop.f32.mrb[0].mxu0
    %2348 = vmatprep.mubr.f32.mxu0 0.0
    %2349 = vmatmul.mubr.f32.gmra.mrb[0].mxu0 %v405
    %v2350 = vpop.f32.mrb[0].mxu0
    %v2351 = vadd.f32 %v272, %v2350
    %v2352 = vpop.f32.mrb[0].mxu0
    %2353 = vmatprep.mubr.f32.mxu0 0.0
    %2354 = vmatmul.mubr.f32.gmra.mrb[0].mxu0 %v408
    %v2355 = vpop.f32.mrb[0].mxu0
    %v2356 = vadd.f32 %v277, %v2355
    %v2357 = vpop.f32.mrb[0].mxu0
    %2358 = vmatprep.mubr.f32.mxu0 0.0
    %2359 = vmatmul.mubr.f32.gmra.mrb[0].mxu0 %v411
    %v2360 = vpop.f32.mrb[0].mxu0
    %v2361 = vadd.f32 %v282, %v2360
    %v2362 = vpop.f32.mrb[0].mxu0
    %2363 = vmatprep.mubr.f32.mxu0 0.0
    %2364 = vmatmul.mubr.f32.gmra.mrb[0].mxu0 %v414
    %v2365 = vpop.f32.mrb[0].mxu0
    %v2366 = vadd.f32 %v287, %v2365
    %v2367 = vpop.f32.mrb[0].mxu0
    %2368 = vmatprep.mubr.f32.mxu0 0.0
    %2369 = vmatmul.mubr.f32.gmra.mrb[0].mxu0 %v417
    %v2370 = vpop.f32.mrb[0].mxu0
    %v2371 = vadd.f32 %v292, %v2370
    %v2372 = vpop.f32.mrb[0].mxu0
    %2373 = vmatprep.mubr.f32.mxu0 0.0
    %2374 = vmatmul.mubr.f32.gmra.mrb[0].mxu0 %v420
    %v2375 = vpop.f32.mrb[0].mxu0
    %v2376 = vadd.f32 %v297, %v2375
    %v2377 = vpop.f32.mrb[0].mxu0
    %2378 = vmatprep.mubr.f32.mxu0 0.0
    %2379 = vmatmul.mubr.f32.gmra.mrb[0].mxu0 %v423
    %v2380 = vpop.f32.mrb[0].mxu0
    %v2381 = vadd.f32 %v302, %v2380
    %v2382 = vpop.f32.mrb[0].mxu0
    %2383 = vmatprep.mubr.f32.mxu0 0.0
    %2384 = vmatmul.mubr.f32.gmra.mrb[0].mxu0 %v426
    %v2385 = vpop.f32.mrb[0].mxu0
    %v2386 = vadd.f32 %v307, %v2385
    %v2387 = vpop.f32.mrb[0].mxu0
    %2388 = vmatprep.mubr.f32.mxu0 0.0
    %2389 = vmatmul.mubr.f32.gmra.mrb[0].mxu0 %v429
    %v2390 = vpop.f32.mrb[0].mxu0
    %v2391 = vadd.f32 %v312, %v2390
    %v2392 = vpop.f32.mrb[0].mxu0
    %2393 = vmatprep.mubr.f32.mxu0 0.0
    %2394 = vmatmul.mubr.f32.gmra.mrb[0].mxu0 %v432
    %v2395 = vpop.f32.mrb[0].mxu0
    %v2396 = vadd.f32 %v317, %v2395
    %v2397 = vpop.f32.mrb[0].mxu0
    %2398 = vmatprep.mubr.f32.mxu0 0.0
    %2399 = vmatmul.mubr.f32.gmra.mrb[0].mxu0 %v435
    %v2400 = vpop.f32.mrb[0].mxu0
    %v2401 = vadd.f32 %v322, %v2400
    %v2402 = vpop.f32.mrb[0].mxu0
    %2403 = vmatprep.mubr.f32.mxu0 0.0
    %2404 = vmatmul.mubr.f32.gmra.mrb[0].mxu0 %v438
    %v2405 = vpop.f32.mrb[0].mxu0
    %v2406 = vadd.f32 %v327, %v2405
    %v2407 = vpop.f32.mrb[0].mxu0
    %2408 = vmatprep.mubr.f32.mxu0 0.0
    %2409 = vmatmul.mubr.f32.gmra.mrb[0].mxu0 %v441
    %v2410 = vpop.f32.mrb[0].mxu0
    %v2411 = vadd.f32 %v332, %v2410
    %v2412 = vpop.f32.mrb[0].mxu0
    %2413 = vdwg.mxu0
    %v2414 = vmax.f32 %v550, 0.0
    %v2415 = vmax.f32 %v552, 0.0
    %v2416 = vmax.f32 %v831, 0.0
    %v2417 = vmax.f32 %v833, 0.0
    %v2418 = vmax.f32 %v1112, 0.0
    %v2419 = vmax.f32 %v1114, 0.0
    %v2420 = vmax.f32 %v1393, 0.0
    %v2421 = vmax.f32 %v1395, 0.0
    %v2422 = vmax.f32 %v1674, 0.0
    %v2423 = vmax.f32 %v1676, 0.0
    %v2424 = vmax.f32 %v1955, 0.0
    %v2425 = vmax.f32 %v1957, 0.0
    %v2426 = vmax.f32 %v2236, 0.0
    %v2427 = vmax.f32 %v556, 0.0
    %v2428 = vmax.f32 %v558, 0.0
    %v2429 = vmax.f32 %v837, 0.0
    %v2430 = vmax.f32 %v839, 0.0
    %v2431 = vmax.f32 %v1118, 0.0
    %v2432 = vmax.f32 %v1120, 0.0
    %v2433 = vmax.f32 %v1399, 0.0
    %v2434 = vmax.f32 %v1401, 0.0
    %v2435 = vmax.f32 %v1680, 0.0
    %v2436 = vmax.f32 %v1682, 0.0
    %v2437 = vmax.f32 %v1961, 0.0
    %v2438 = vmax.f32 %v1963, 0.0
    %v2439 = vmax.f32 %v2241, 0.0
    %v2440 = vmax.f32 %v562, 0.0
    %v2441 = vmax.f32 %v564, 0.0
    %v2442 = vmax.f32 %v843, 0.0
    %v2443 = vmax.f32 %v845, 0.0
    %v2444 = vmax.f32 %v1124, 0.0
    %v2445 = vmax.f32 %v1126, 0.0
    %v2446 = vmax.f32 %v1405, 0.0
    %v2447 = vmax.f32 %v1407, 0.0
    %v2448 = vmax.f32 %v1686, 0.0
    %v2449 = vmax.f32 %v1688, 0.0
    %v2450 = vmax.f32 %v1967, 0.0
    %v2451 = vmax.f32 %v1969, 0.0
    %v2452 = vmax.f32 %v2246, 0.0
    %v2453 = vmax.f32 %v568, 0.0
    %v2454 = vmax.f32 %v570, 0.0
    %v2455 = vmax.f32 %v849, 0.0
    %v2456 = vmax.f32 %v851, 0.0
    %v2457 = vmax.f32 %v1130, 0.0
    %v2458 = vmax.f32 %v1132, 0.0
    %v2459 = vmax.f32 %v1411, 0.0
    %v2460 = vmax.f32 %v1413, 0.0
    %v2461 = vmax.f32 %v1692, 0.0
    %v2462 = vmax.f32 %v1694, 0.0
    %v2463 = vmax.f32 %v1973, 0.0
    %v2464 = vmax.f32 %v1975, 0.0
    %v2465 = vmax.f32 %v2251, 0.0
    %v2466 = vmax.f32 %v574, 0.0
    %v2467 = vmax.f32 %v576, 0.0
    %v2468 = vmax.f32 %v855, 0.0
    %v2469 = vmax.f32 %v857, 0.0
    %v2470 = vmax.f32 %v1136, 0.0
    %v2471 = vmax.f32 %v1138, 0.0
    %v2472 = vmax.f32 %v1417, 0.0
    %v2473 = vmax.f32 %v1419, 0.0
    %v2474 = vmax.f32 %v1698, 0.0
    %v2475 = vmax.f32 %v1700, 0.0
    %v2476 = vmax.f32 %v1979, 0.0
    %v2477 = vmax.f32 %v1981, 0.0
    %v2478 = vmax.f32 %v2256, 0.0
    %v2479 = vmax.f32 %v580, 0.0
    %v2480 = vmax.f32 %v582, 0.0
    %v2481 = vmax.f32 %v861, 0.0
    %v2482 = vmax.f32 %v863, 0.0
    %v2483 = vmax.f32 %v1142, 0.0
    %v2484 = vmax.f32 %v1144, 0.0
    %v2485 = vmax.f32 %v1423, 0.0
    %v2486 = vmax.f32 %v1425, 0.0
    %v2487 = vmax.f32 %v1704, 0.0
    %v2488 = vmax.f32 %v1706, 0.0
    %v2489 = vmax.f32 %v1985, 0.0
    %v2490 = vmax.f32 %v1987, 0.0
    %v2491 = vmax.f32 %v2261, 0.0
    %v2492 = vmax.f32 %v586, 0.0
    %v2493 = vmax.f32 %v588, 0.0
    %v2494 = vmax.f32 %v867, 0.0
    %v2495 = vmax.f32 %v869, 0.0
    %v2496 = vmax.f32 %v1148, 0.0
    %v2497 = vmax.f32 %v1150, 0.0
    %v2498 = vmax.f32 %v1429, 0.0
    %v2499 = vmax.f32 %v1431, 0.0
    %v2500 = vmax.f32 %v1710, 0.0
    %v2501 = vmax.f32 %v1712, 0.0
    %v2502 = vmax.f32 %v1991, 0.0
    %v2503 = vmax.f32 %v1993, 0.0
    %v2504 = vmax.f32 %v2266, 0.0
    %v2505 = vmax.f32 %v592, 0.0
    %v2506 = vmax.f32 %v594, 0.0
    %v2507 = vmax.f32 %v873, 0.0
    %v2508 = vmax.f32 %v875, 0.0
    %v2509 = vmax.f32 %v1154, 0.0
    %v2510 = vmax.f32 %v1156, 0.0
    %v2511 = vmax.f32 %v1435, 0.0
    %v2512 = vmax.f32 %v1437, 0.0
    %v2513 = vmax.f32 %v1716, 0.0
    %v2514 = vmax.f32 %v1718, 0.0
    %v2515 = vmax.f32 %v1997, 0.0
    %v2516 = vmax.f32 %v1999, 0.0
    %v2517 = vmax.f32 %v2271, 0.0
    %v2518 = vmax.f32 %v598, 0.0
    %v2519 = vmax.f32 %v600, 0.0
    %v2520 = vmax.f32 %v879, 0.0
    %v2521 = vmax.f32 %v881, 0.0
    %v2522 = vmax.f32 %v1160, 0.0
    %v2523 = vmax.f32 %v1162, 0.0
    %v2524 = vmax.f32 %v1441, 0.0
    %v2525 = vmax.f32 %v1443, 0.0
    %v2526 = vmax.f32 %v1722, 0.0
    %v2527 = vmax.f32 %v1724, 0.0
    %v2528 = vmax.f32 %v2003, 0.0
    %v2529 = vmax.f32 %v2005, 0.0
    %v2530 = vmax.f32 %v2276, 0.0
    %v2531 = vmax.f32 %v604, 0.0
    %v2532 = vmax.f32 %v606, 0.0
    %v2533 = vmax.f32 %v885, 0.0
    %v2534 = vmax.f32 %v887, 0.0
    %v2535 = vmax.f32 %v1166, 0.0
    %v2536 = vmax.f32 %v1168, 0.0
    %v2537 = vmax.f32 %v1447, 0.0
    %v2538 = vmax.f32 %v1449, 0.0
    %v2539 = vmax.f32 %v1728, 0.0
    %v2540 = vmax.f32 %v1730, 0.0
    %v2541 = vmax.f32 %v2009, 0.0
    %v2542 = vmax.f32 %v2011, 0.0
    %v2543 = vmax.f32 %v2281, 0.0
    %v2544 = vmax.f32 %v610, 0.0
    %v2545 = vmax.f32 %v612, 0.0
    %v2546 = vmax.f32 %v891, 0.0
    %v2547 = vmax.f32 %v893, 0.0
    %v2548 = vmax.f32 %v1172, 0.0
    %v2549 = vmax.f32 %v1174, 0.0
    %v2550 = vmax.f32 %v1453, 0.0
    %v2551 = vmax.f32 %v1455, 0.0
    %v2552 = vmax.f32 %v1734, 0.0
    %v2553 = vmax.f32 %v1736, 0.0
    %v2554 = vmax.f32 %v2015, 0.0
    %v2555 = vmax.f32 %v2017, 0.0
    %v2556 = vmax.f32 %v2286, 0.0
    %v2557 = vmax.f32 %v616, 0.0
    %v2558 = vmax.f32 %v618, 0.0
    %v2559 = vmax.f32 %v897, 0.0
    %v2560 = vmax.f32 %v899, 0.0
    %v2561 = vmax.f32 %v1178, 0.0
    %v2562 = vmax.f32 %v1180, 0.0
    %v2563 = vmax.f32 %v1459, 0.0
    %v2564 = vmax.f32 %v1461, 0.0
    %v2565 = vmax.f32 %v1740, 0.0
    %v2566 = vmax.f32 %v1742, 0.0
    %v2567 = vmax.f32 %v2021, 0.0
    %v2568 = vmax.f32 %v2023, 0.0
    %v2569 = vmax.f32 %v2291, 0.0
    %v2570 = vmax.f32 %v622, 0.0
    %v2571 = vmax.f32 %v624, 0.0
    %v2572 = vmax.f32 %v903, 0.0
    %v2573 = vmax.f32 %v905, 0.0
    %v2574 = vmax.f32 %v1184, 0.0
    %v2575 = vmax.f32 %v1186, 0.0
    %v2576 = vmax.f32 %v1465, 0.0
    %v2577 = vmax.f32 %v1467, 0.0
    %v2578 = vmax.f32 %v1746, 0.0
    %v2579 = vmax.f32 %v1748, 0.0
    %v2580 = vmax.f32 %v2027, 0.0
    %v2581 = vmax.f32 %v2029, 0.0
    %v2582 = vmax.f32 %v2296, 0.0
    %v2583 = vmax.f32 %v628, 0.0
    %v2584 = vmax.f32 %v630, 0.0
    %v2585 = vmax.f32 %v909, 0.0
    %v2586 = vmax.f32 %v911, 0.0
    %v2587 = vmax.f32 %v1190, 0.0
    %v2588 = vmax.f32 %v1192, 0.0
    %v2589 = vmax.f32 %v1471, 0.0
    %v2590 = vmax.f32 %v1473, 0.0
    %v2591 = vmax.f32 %v1752, 0.0
    %v2592 = vmax.f32 %v1754, 0.0
    %v2593 = vmax.f32 %v2033, 0.0
    %v2594 = vmax.f32 %v2035, 0.0
    %v2595 = vmax.f32 %v2301, 0.0
    %v2596 = vmax.f32 %v634, 0.0
    %v2597 = vmax.f32 %v636, 0.0
    %v2598 = vmax.f32 %v915, 0.0
    %v2599 = vmax.f32 %v917, 0.0
    %v2600 = vmax.f32 %v1196, 0.0
    %v2601 = vmax.f32 %v1198, 0.0
    %v2602 = vmax.f32 %v1477, 0.0
    %v2603 = vmax.f32 %v1479, 0.0
    %v2604 = vmax.f32 %v1758, 0.0
    %v2605 = vmax.f32 %v1760, 0.0
    %v2606 = vmax.f32 %v2039, 0.0
    %v2607 = vmax.f32 %v2041, 0.0
    %v2608 = vmax.f32 %v2306, 0.0
    %v2609 = vmax.f32 %v640, 0.0
    %v2610 = vmax.f32 %v642, 0.0
    %v2611 = vmax.f32 %v921, 0.0
    %v2612 = vmax.f32 %v923, 0.0
    %v2613 = vmax.f32 %v1202, 0.0
    %v2614 = vmax.f32 %v1204, 0.0
    %v2615 = vmax.f32 %v1483, 0.0
    %v2616 = vmax.f32 %v1485, 0.0
    %v2617 = vmax.f32 %v1764, 0.0
    %v2618 = vmax.f32 %v1766, 0.0
    %v2619 = vmax.f32 %v2045, 0.0
    %v2620 = vmax.f32 %v2047, 0.0
    %v2621 = vmax.f32 %v2311, 0.0
    %v2622 = vmax.f32 %v646, 0.0
    %v2623 = vmax.f32 %v648, 0.0
    %v2624 = vmax.f32 %v927, 0.0
    %v2625 = vmax.f32 %v929, 0.0
    %v2626 = vmax.f32 %v1208, 0.0
    %v2627 = vmax.f32 %v1210, 0.0
    %v2628 = vmax.f32 %v1489, 0.0
    %v2629 = vmax.f32 %v1491, 0.0
    %v2630 = vmax.f32 %v1770, 0.0
    %v2631 = vmax.f32 %v1772, 0.0
    %v2632 = vmax.f32 %v2051, 0.0
    %v2633 = vmax.f32 %v2053, 0.0
    %v2634 = vmax.f32 %v2316, 0.0
    %v2635 = vmax.f32 %v652, 0.0
    %v2636 = vmax.f32 %v654, 0.0
    %v2637 = vmax.f32 %v933, 0.0
    %v2638 = vmax.f32 %v935, 0.0
    %v2639 = vmax.f32 %v1214, 0.0
    %v2640 = vmax.f32 %v1216, 0.0
    %v2641 = vmax.f32 %v1495, 0.0
    %v2642 = vmax.f32 %v1497, 0.0
    %v2643 = vmax.f32 %v1776, 0.0
    %v2644 = vmax.f32 %v1778, 0.0
    %v2645 = vmax.f32 %v2057, 0.0
    %v2646 = vmax.f32 %v2059, 0.0
    %v2647 = vmax.f32 %v2321, 0.0
    %v2648 = vmax.f32 %v658, 0.0
    %v2649 = vmax.f32 %v660, 0.0
    %v2650 = vmax.f32 %v939, 0.0
    %v2651 = vmax.f32 %v941, 0.0
    %v2652 = vmax.f32 %v1220, 0.0
    %v2653 = vmax.f32 %v1222, 0.0
    %v2654 = vmax.f32 %v1501, 0.0
    %v2655 = vmax.f32 %v1503, 0.0
    %v2656 = vmax.f32 %v1782, 0.0
    %v2657 = vmax.f32 %v1784, 0.0
    %v2658 = vmax.f32 %v2063, 0.0
    %v2659 = vmax.f32 %v2065, 0.0
    %v2660 = vmax.f32 %v2326, 0.0
    %v2661 = vmax.f32 %v664, 0.0
    %v2662 = vmax.f32 %v666, 0.0
    %v2663 = vmax.f32 %v945, 0.0
    %v2664 = vmax.f32 %v947, 0.0
    %v2665 = vmax.f32 %v1226, 0.0
    %v2666 = vmax.f32 %v1228, 0.0
    %v2667 = vmax.f32 %v1507, 0.0
    %v2668 = vmax.f32 %v1509, 0.0
    %v2669 = vmax.f32 %v1788, 0.0
    %v2670 = vmax.f32 %v1790, 0.0
    %v2671 = vmax.f32 %v2069, 0.0
    %v2672 = vmax.f32 %v2071, 0.0
    %v2673 = vmax.f32 %v2331, 0.0
    %v2674 = vmax.f32 %v670, 0.0
    %v2675 = vmax.f32 %v672, 0.0
    %v2676 = vmax.f32 %v951, 0.0
    %v2677 = vmax.f32 %v953, 0.0
    %v2678 = vmax.f32 %v1232, 0.0
    %v2679 = vmax.f32 %v1234, 0.0
    %v2680 = vmax.f32 %v1513, 0.0
    %v2681 = vmax.f32 %v1515, 0.0
    %v2682 = vmax.f32 %v1794, 0.0
    %v2683 = vmax.f32 %v1796, 0.0
    %v2684 = vmax.f32 %v2075, 0.0
    %v2685 = vmax.f32 %v2077, 0.0
    %v2686 = vmax.f32 %v2336, 0.0
    %v2687 = vmax.f32 %v676, 0.0
    %v2688 = vmax.f32 %v678, 0.0
    %v2689 = vmax.f32 %v957, 0.0
    %v2690 = vmax.f32 %v959, 0.0
    %v2691 = vmax.f32 %v1238, 0.0
    %v2692 = vmax.f32 %v1240, 0.0
    %v2693 = vmax.f32 %v1519, 0.0
    %v2694 = vmax.f32 %v1521, 0.0
    %v2695 = vmax.f32 %v1800, 0.0
    %v2696 = vmax.f32 %v1802, 0.0
    %v2697 = vmax.f32 %v2081, 0.0
    %v2698 = vmax.f32 %v2083, 0.0
    %v2699 = vmax.f32 %v2341, 0.0
    %v2700 = vmax.f32 %v682, 0.0
    %v2701 = vmax.f32 %v684, 0.0
    %v2702 = vmax.f32 %v963, 0.0
    %v2703 = vmax.f32 %v965, 0.0
    %v2704 = vmax.f32 %v1244, 0.0
    %v2705 = vmax.f32 %v1246, 0.0
    %v2706 = vmax.f32 %v1525, 0.0
    %v2707 = vmax.f32 %v1527, 0.0
    %v2708 = vmax.f32 %v1806, 0.0
    %v2709 = vmax.f32 %v1808, 0.0
    %v2710 = vmax.f32 %v2087, 0.0
    %v2711 = vmax.f32 %v2089, 0.0
    %v2712 = vmax.f32 %v2346, 0.0
    %v2713 = vmax.f32 %v688, 0.0
    %v2714 = vmax.f32 %v690, 0.0
    %v2715 = vmax.f32 %v969, 0.0
    %v2716 = vmax.f32 %v971, 0.0
    %v2717 = vmax.f32 %v1250, 0.0
    %v2718 = vmax.f32 %v1252, 0.0
    %v2719 = vmax.f32 %v1531, 0.0
    %v2720 = vmax.f32 %v1533, 0.0
    %v2721 = vmax.f32 %v1812, 0.0
    %v2722 = vmax.f32 %v1814, 0.0
    %v2723 = vmax.f32 %v2093, 0.0
    %v2724 = vmax.f32 %v2095, 0.0
    %v2725 = vmax.f32 %v2351, 0.0
    %v2726 = vmax.f32 %v694, 0.0
    %v2727 = vmax.f32 %v696, 0.0
    %v2728 = vmax.f32 %v975, 0.0
    %v2729 = vmax.f32 %v977, 0.0
    %v2730 = vmax.f32 %v1256, 0.0
    %v2731 = vmax.f32 %v1258, 0.0
    %v2732 = vmax.f32 %v1537, 0.0
    %v2733 = vmax.f32 %v1539, 0.0
    %v2734 = vmax.f32 %v1818, 0.0
    %v2735 = vmax.f32 %v1820, 0.0
    %v2736 = vmax.f32 %v2099, 0.0
    %v2737 = vmax.f32 %v2101, 0.0
    %v2738 = vmax.f32 %v2356, 0.0
    %v2739 = vmax.f32 %v700, 0.0
    %v2740 = vmax.f32 %v702, 0.0
    %v2741 = vmax.f32 %v981, 0.0
    %v2742 = vmax.f32 %v983, 0.0
    %v2743 = vmax.f32 %v1262, 0.0
    %v2744 = vmax.f32 %v1264, 0.0
    %v2745 = vmax.f32 %v1543, 0.0
    %v2746 = vmax.f32 %v1545, 0.0
    %v2747 = vmax.f32 %v1824, 0.0
    %v2748 = vmax.f32 %v1826, 0.0
    %v2749 = vmax.f32 %v2105, 0.0
    %v2750 = vmax.f32 %v2107, 0.0
    %v2751 = vmax.f32 %v2361, 0.0
    %v2752 = vmax.f32 %v706, 0.0
    %v2753 = vmax.f32 %v708, 0.0
    %v2754 = vmax.f32 %v987, 0.0
    %v2755 = vmax.f32 %v989, 0.0
    %v2756 = vmax.f32 %v1268, 0.0
    %v2757 = vmax.f32 %v1270, 0.0
    %v2758 = vmax.f32 %v1549, 0.0
    %v2759 = vmax.f32 %v1551, 0.0
    %v2760 = vmax.f32 %v1830, 0.0
    %v2761 = vmax.f32 %v1832, 0.0
    %v2762 = vmax.f32 %v2111, 0.0
    %v2763 = vmax.f32 %v2113, 0.0
    %v2764 = vmax.f32 %v2366, 0.0
    %v2765 = vmax.f32 %v712, 0.0
    %v2766 = vmax.f32 %v714, 0.0
    %v2767 = vmax.f32 %v993, 0.0
    %v2768 = vmax.f32 %v995, 0.0
    %v2769 = vmax.f32 %v1274, 0.0
    %v2770 = vmax.f32 %v1276, 0.0
    %v2771 = vmax.f32 %v1555, 0.0
    %v2772 = vmax.f32 %v1557, 0.0
    %v2773 = vmax.f32 %v1836, 0.0
    %v2774 = vmax.f32 %v1838, 0.0
    %v2775 = vmax.f32 %v2117, 0.0
    %v2776 = vmax.f32 %v2119, 0.0
    %v2777 = vmax.f32 %v2371, 0.0
    %v2778 = vmax.f32 %v718, 0.0
    %v2779 = vmax.f32 %v720, 0.0
    %v2780 = vmax.f32 %v999, 0.0
    %v2781 = vmax.f32 %v1001, 0.0
    %v2782 = vmax.f32 %v1280, 0.0
    %v2783 = vmax.f32 %v1282, 0.0
    %v2784 = vmax.f32 %v1561, 0.0
    %v2785 = vmax.f32 %v1563, 0.0
    %v2786 = vmax.f32 %v1842, 0.0
    %v2787 = vmax.f32 %v1844, 0.0
    %v2788 = vmax.f32 %v2123, 0.0
    %v2789 = vmax.f32 %v2125, 0.0
    %v2790 = vmax.f32 %v2376, 0.0
    %v2791 = vmax.f32 %v724, 0.0
    %v2792 = vmax.f32 %v726, 0.0
    %v2793 = vmax.f32 %v1005, 0.0
    %v2794 = vmax.f32 %v1007, 0.0
    %v2795 = vmax.f32 %v1286, 0.0
    %v2796 = vmax.f32 %v1288, 0.0
    %v2797 = vmax.f32 %v1567, 0.0
    %v2798 = vmax.f32 %v1569, 0.0
    %v2799 = vmax.f32 %v1848, 0.0
    %v2800 = vmax.f32 %v1850, 0.0
    %v2801 = vmax.f32 %v2129, 0.0
    %v2802 = vmax.f32 %v2131, 0.0
    %v2803 = vmax.f32 %v2381, 0.0
    %v2804 = vmax.f32 %v730, 0.0
    %v2805 = vmax.f32 %v732, 0.0
    %v2806 = vmax.f32 %v1011, 0.0
    %v2807 = vmax.f32 %v1013, 0.0
    %v2808 = vmax.f32 %v1292, 0.0
    %v2809 = vmax.f32 %v1294, 0.0
    %v2810 = vmax.f32 %v1573, 0.0
    %v2811 = vmax.f32 %v1575, 0.0
    %v2812 = vmax.f32 %v1854, 0.0
    %v2813 = vmax.f32 %v1856, 0.0
    %v2814 = vmax.f32 %v2135, 0.0
    %v2815 = vmax.f32 %v2137, 0.0
    %v2816 = vmax.f32 %v2386, 0.0
    %v2817 = vmax.f32 %v736, 0.0
    %v2818 = vmax.f32 %v738, 0.0
    %v2819 = vmax.f32 %v1017, 0.0
    %v2820 = vmax.f32 %v1019, 0.0
    %v2821 = vmax.f32 %v1298, 0.0
    %v2822 = vmax.f32 %v1300, 0.0
    %v2823 = vmax.f32 %v1579, 0.0
    %v2824 = vmax.f32 %v1581, 0.0
    %v2825 = vmax.f32 %v1860, 0.0
    %v2826 = vmax.f32 %v1862, 0.0
    %v2827 = vmax.f32 %v2141, 0.0
    %v2828 = vmax.f32 %v2143, 0.0
    %v2829 = vmax.f32 %v2391, 0.0
    %v2830 = vmax.f32 %v742, 0.0
    %v2831 = vmax.f32 %v744, 0.0
    %v2832 = vmax.f32 %v1023, 0.0
    %v2833 = vmax.f32 %v1025, 0.0
    %v2834 = vmax.f32 %v1304, 0.0
    %v2835 = vmax.f32 %v1306, 0.0
    %v2836 = vmax.f32 %v1585, 0.0
    %v2837 = vmax.f32 %v1587, 0.0
    %v2838 = vmax.f32 %v1866, 0.0
    %v2839 = vmax.f32 %v1868, 0.0
    %v2840 = vmax.f32 %v2147, 0.0
    %v2841 = vmax.f32 %v2149, 0.0
    %v2842 = vmax.f32 %v2396, 0.0
    %v2843 = vmax.f32 %v748, 0.0
    %v2844 = vmax.f32 %v750, 0.0
    %v2845 = vmax.f32 %v1029, 0.0
    %v2846 = vmax.f32 %v1031, 0.0
    %v2847 = vmax.f32 %v1310, 0.0
    %v2848 = vmax.f32 %v1312, 0.0
    %v2849 = vmax.f32 %v1591, 0.0
    %v2850 = vmax.f32 %v1593, 0.0
    %v2851 = vmax.f32 %v1872, 0.0
    %v2852 = vmax.f32 %v1874, 0.0
    %v2853 = vmax.f32 %v2153, 0.0
    %v2854 = vmax.f32 %v2155, 0.0
    %v2855 = vmax.f32 %v2401, 0.0
    %v2856 = vmax.f32 %v754, 0.0
    %v2857 = vmax.f32 %v756, 0.0
    %v2858 = vmax.f32 %v1035, 0.0
    %v2859 = vmax.f32 %v1037, 0.0
    %v2860 = vmax.f32 %v1316, 0.0
    %v2861 = vmax.f32 %v1318, 0.0
    %v2862 = vmax.f32 %v1597, 0.0
    %v2863 = vmax.f32 %v1599, 0.0
    %v2864 = vmax.f32 %v1878, 0.0
    %v2865 = vmax.f32 %v1880, 0.0
    %v2866 = vmax.f32 %v2159, 0.0
    %v2867 = vmax.f32 %v2161, 0.0
    %v2868 = vmax.f32 %v2406, 0.0
    %v2869 = vmax.f32 %v760, 0.0
    %v2870 = vmax.f32 %v762, 0.0
    %v2871 = vmax.f32 %v1041, 0.0
    %v2872 = vmax.f32 %v1043, 0.0
    %v2873 = vmax.f32 %v1322, 0.0
    %v2874 = vmax.f32 %v1324, 0.0
    %v2875 = vmax.f32 %v1603, 0.0
    %v2876 = vmax.f32 %v1605, 0.0
    %v2877 = vmax.f32 %v1884, 0.0
    %v2878 = vmax.f32 %v1886, 0.0
    %v2879 = vmax.f32 %v2165, 0.0
    %v2880 = vmax.f32 %v2167, 0.0
    %v2881 = vmax.f32 %v2411, 0.0
    %v2882 = vld [vmem:[%s3] sm:$0xff]
    %v2883 = vld [vmem:[%s3 + $0x8] sm:$0x1f]
    %v2884 = vld [vmem:[%s3 + $0xd] sm:$0xff]
    %v2885 = vld [vmem:[%s3 + $0x15] sm:$0x1f]
    %v2886 = vld [vmem:[%s3 + $0x1a] sm:$0xff]
    %v2887 = vld [vmem:[%s3 + $0x22] sm:$0x1f]
    %v2888 = vld [vmem:[%s3 + $0x27] sm:$0xff]
    %v2889 = vld [vmem:[%s3 + $0x2f] sm:$0x1f]
    %v2890 = vld [vmem:[%s3 + $0x34] sm:$0xff]
    %v2891 = vld [vmem:[%s3 + $0x3c] sm:$0x1f]
    %v2892 = vld [vmem:[%s3 + $0x41] sm:$0xff]
    %v2893 = vld [vmem:[%s3 + $0x49] sm:$0x1f]
    %v2894 = vld [vmem:[%s3 + $0x4e] sm:$0xff]
    %v2895 = vld [vmem:[%s3 + $0x56] sm:$0x1f]
    %v2896 = vld [vmem:[%s3 + $0x5b] sm:$0xff]
    %v2897 = vld [vmem:[%s3 + $0x63] sm:$0x1f]
    %v2898 = vld [vmem:[%s3 + $0x68] sm:$0xff]
    %v2899 = vld [vmem:[%s3 + $0x70] sm:$0x1f]
    %v2918 = vlaneseq
    %v2919 = vshrl.u32 %v2918, 7
    %v2920 = vsub.s32 0, %v2919
    %v2921 = vrot.slane %v2882, %v2920
    %v2922 = vlaneseq
    %v2923 = vshrl.u32 %v2922, 7
    %v2924 = vsub.s32 1, %v2923
    %v2925 = vrot.slane %v2882, %v2924
    %v2926 = vlaneseq
    %v2927 = vshrl.u32 %v2926, 7
    %v2928 = vsub.s32 2, %v2927
    %v2929 = vrot.slane %v2882, %v2928
    %v2930 = vlaneseq
    %v2931 = vshrl.u32 %v2930, 7
    %v2932 = vsub.s32 3, %v2931
    %v2933 = vrot.slane %v2882, %v2932
    %v2934 = vlaneseq
    %v2935 = vshrl.u32 %v2934, 7
    %v2936 = vsub.s32 4, %v2935
    %v2937 = vrot.slane %v2882, %v2936
    %v2938 = vlaneseq
    %v2939 = vshrl.u32 %v2938, 7
    %v2940 = vsub.s32 5, %v2939
    %v2941 = vrot.slane %v2882, %v2940
    %v2942 = vlaneseq
    %v2943 = vshrl.u32 %v2942, 7
    %v2944 = vsub.s32 6, %v2943
    %v2945 = vrot.slane %v2882, %v2944
    %v2946 = vlaneseq
    %v2947 = vshrl.u32 %v2946, 7
    %v2948 = vsub.s32 7, %v2947
    %v2949 = vrot.slane %v2882, %v2948
    %v2950 = vlaneseq
    %v2951 = vshrl.u32 %v2950, 7
    %v2952 = vsub.s32 0, %v2951
    %v2953 = vrot.slane %v2883, %v2952
    %v2954 = vlaneseq
    %v2955 = vshrl.u32 %v2954, 7
    %v2956 = vsub.s32 1, %v2955
    %v2957 = vrot.slane %v2883, %v2956
    %v2958 = vlaneseq
    %v2959 = vshrl.u32 %v2958, 7
    %v2960 = vsub.s32 2, %v2959
    %v2961 = vrot.slane %v2883, %v2960
    %v2962 = vlaneseq
    %v2963 = vshrl.u32 %v2962, 7
    %v2964 = vsub.s32 3, %v2963
    %v2965 = vrot.slane %v2883, %v2964
    %v2966 = vlaneseq
    %v2967 = vshrl.u32 %v2966, 7
    %v2968 = vsub.s32 4, %v2967
    %v2969 = vrot.slane %v2883, %v2968
    %v2970 = vlaneseq
    %v2971 = vshrl.u32 %v2970, 7
    %v2972 = vsub.s32 0, %v2971
    %v2973 = vrot.slane %v2884, %v2972
    %v2974 = vlaneseq
    %v2975 = vshrl.u32 %v2974, 7
    %v2976 = vsub.s32 1, %v2975
    %v2977 = vrot.slane %v2884, %v2976
    %v2978 = vlaneseq
    %v2979 = vshrl.u32 %v2978, 7
    %v2980 = vsub.s32 2, %v2979
    %v2981 = vrot.slane %v2884, %v2980
    %v2982 = vlaneseq
    %v2983 = vshrl.u32 %v2982, 7
    %v2984 = vsub.s32 3, %v2983
    %v2985 = vrot.slane %v2884, %v2984
    %v2986 = vlaneseq
    %v2987 = vshrl.u32 %v2986, 7
    %v2988 = vsub.s32 4, %v2987
    %v2989 = vrot.slane %v2884, %v2988
    %v2990 = vlaneseq
    %v2991 = vshrl.u32 %v2990, 7
    %v2992 = vsub.s32 5, %v2991
    %v2993 = vrot.slane %v2884, %v2992
    %v2994 = vlaneseq
    %v2995 = vshrl.u32 %v2994, 7
    %v2996 = vsub.s32 6, %v2995
    %v2997 = vrot.slane %v2884, %v2996
    %v2998 = vlaneseq
    %v2999 = vshrl.u32 %v2998, 7
    %v3000 = vsub.s32 7, %v2999
    %v3001 = vrot.slane %v2884, %v3000
    %v3002 = vlaneseq
    %v3003 = vshrl.u32 %v3002, 7
    %v3004 = vsub.s32 0, %v3003
    %v3005 = vrot.slane %v2885, %v3004
    %v3006 = vlaneseq
    %v3007 = vshrl.u32 %v3006, 7
    %v3008 = vsub.s32 1, %v3007
    %v3009 = vrot.slane %v2885, %v3008
    %v3010 = vlaneseq
    %v3011 = vshrl.u32 %v3010, 7
    %v3012 = vsub.s32 2, %v3011
    %v3013 = vrot.slane %v2885, %v3012
    %v3014 = vlaneseq
    %v3015 = vshrl.u32 %v3014, 7
    %v3016 = vsub.s32 3, %v3015
    %v3017 = vrot.slane %v2885, %v3016
    %v3018 = vlaneseq
    %v3019 = vshrl.u32 %v3018, 7
    %v3020 = vsub.s32 4, %v3019
    %v3021 = vrot.slane %v2885, %v3020
    %v3022 = vlaneseq
    %v3023 = vshrl.u32 %v3022, 7
    %v3024 = vsub.s32 0, %v3023
    %v3025 = vrot.slane %v2886, %v3024
    %v3026 = vlaneseq
    %v3027 = vshrl.u32 %v3026, 7
    %v3028 = vsub.s32 1, %v3027
    %v3029 = vrot.slane %v2886, %v3028
    %v3030 = vlaneseq
    %v3031 = vshrl.u32 %v3030, 7
    %v3032 = vsub.s32 2, %v3031
    %v3033 = vrot.slane %v2886, %v3032
    %v3034 = vlaneseq
    %v3035 = vshrl.u32 %v3034, 7
    %v3036 = vsub.s32 3, %v3035
    %v3037 = vrot.slane %v2886, %v3036
    %v3038 = vlaneseq
    %v3039 = vshrl.u32 %v3038, 7
    %v3040 = vsub.s32 4, %v3039
    %v3041 = vrot.slane %v2886, %v3040
    %v3042 = vlaneseq
    %v3043 = vshrl.u32 %v3042, 7
    %v3044 = vsub.s32 5, %v3043
    %v3045 = vrot.slane %v2886, %v3044
    %v3046 = vlaneseq
    %v3047 = vshrl.u32 %v3046, 7
    %v3048 = vsub.s32 6, %v3047
    %v3049 = vrot.slane %v2886, %v3048
    %v3050 = vlaneseq
    %v3051 = vshrl.u32 %v3050, 7
    %v3052 = vsub.s32 7, %v3051
    %v3053 = vrot.slane %v2886, %v3052
    %v3054 = vlaneseq
    %v3055 = vshrl.u32 %v3054, 7
    %v3056 = vsub.s32 0, %v3055
    %v3057 = vrot.slane %v2887, %v3056
    %v3058 = vlaneseq
    %v3059 = vshrl.u32 %v3058, 7
    %v3060 = vsub.s32 1, %v3059
    %v3061 = vrot.slane %v2887, %v3060
    %v3062 = vlaneseq
    %v3063 = vshrl.u32 %v3062, 7
    %v3064 = vsub.s32 2, %v3063
    %v3065 = vrot.slane %v2887, %v3064
    %v3066 = vlaneseq
    %v3067 = vshrl.u32 %v3066, 7
    %v3068 = vsub.s32 3, %v3067
    %v3069 = vrot.slane %v2887, %v3068
    %v3070 = vlaneseq
    %v3071 = vshrl.u32 %v3070, 7
    %v3072 = vsub.s32 4, %v3071
    %v3073 = vrot.slane %v2887, %v3072
    %v3074 = vlaneseq
    %v3075 = vshrl.u32 %v3074, 7
    %v3076 = vsub.s32 0, %v3075
    %v3077 = vrot.slane %v2888, %v3076
    %v3078 = vlaneseq
    %v3079 = vshrl.u32 %v3078, 7
    %v3080 = vsub.s32 1, %v3079
    %v3081 = vrot.slane %v2888, %v3080
    %v3082 = vlaneseq
    %v3083 = vshrl.u32 %v3082, 7
    %v3084 = vsub.s32 2, %v3083
    %v3085 = vrot.slane %v2888, %v3084
    %v3086 = vlaneseq
    %v3087 = vshrl.u32 %v3086, 7
    %v3088 = vsub.s32 3, %v3087
    %v3089 = vrot.slane %v2888, %v3088
    %v3090 = vlaneseq
    %v3091 = vshrl.u32 %v3090, 7
    %v3092 = vsub.s32 4, %v3091
    %v3093 = vrot.slane %v2888, %v3092
    %v3094 = vlaneseq
    %v3095 = vshrl.u32 %v3094, 7
    %v3096 = vsub.s32 5, %v3095
    %v3097 = vrot.slane %v2888, %v3096
    %v3098 = vlaneseq
    %v3099 = vshrl.u32 %v3098, 7
    %v3100 = vsub.s32 6, %v3099
    %v3101 = vrot.slane %v2888, %v3100
    %v3102 = vlaneseq
    %v3103 = vshrl.u32 %v3102, 7
    %v3104 = vsub.s32 7, %v3103
    %v3105 = vrot.slane %v2888, %v3104
    %v3106 = vlaneseq
    %v3107 = vshrl.u32 %v3106, 7
    %v3108 = vsub.s32 0, %v3107
    %v3109 = vrot.slane %v2889, %v3108
    %v3110 = vlaneseq
    %v3111 = vshrl.u32 %v3110, 7
    %v3112 = vsub.s32 1, %v3111
    %v3113 = vrot.slane %v2889, %v3112
    %v3114 = vlaneseq
    %v3115 = vshrl.u32 %v3114, 7
    %v3116 = vsub.s32 2, %v3115
    %v3117 = vrot.slane %v2889, %v3116
    %v3118 = vlaneseq
    %v3119 = vshrl.u32 %v3118, 7
    %v3120 = vsub.s32 3, %v3119
    %v3121 = vrot.slane %v2889, %v3120
    %v3122 = vlaneseq
    %v3123 = vshrl.u32 %v3122, 7
    %v3124 = vsub.s32 4, %v3123
    %v3125 = vrot.slane %v2889, %v3124
    %v3126 = vlaneseq
    %v3127 = vshrl.u32 %v3126, 7
    %v3128 = vsub.s32 0, %v3127
    %v3129 = vrot.slane %v2890, %v3128
    %v3130 = vlaneseq
    %v3131 = vshrl.u32 %v3130, 7
    %v3132 = vsub.s32 1, %v3131
    %v3133 = vrot.slane %v2890, %v3132
    %v3134 = vlaneseq
    %v3135 = vshrl.u32 %v3134, 7
    %v3136 = vsub.s32 2, %v3135
    %v3137 = vrot.slane %v2890, %v3136
    %v3138 = vlaneseq
    %v3139 = vshrl.u32 %v3138, 7
    %v3140 = vsub.s32 3, %v3139
    %v3141 = vrot.slane %v2890, %v3140
    %v3142 = vlaneseq
    %v3143 = vshrl.u32 %v3142, 7
    %v3144 = vsub.s32 4, %v3143
    %v3145 = vrot.slane %v2890, %v3144
    %v3146 = vlaneseq
    %v3147 = vshrl.u32 %v3146, 7
    %v3148 = vsub.s32 5, %v3147
    %v3149 = vrot.slane %v2890, %v3148
    %v3150 = vlaneseq
    %v3151 = vshrl.u32 %v3150, 7
    %v3152 = vsub.s32 6, %v3151
    %v3153 = vrot.slane %v2890, %v3152
    %v3154 = vlaneseq
    %v3155 = vshrl.u32 %v3154, 7
    %v3156 = vsub.s32 7, %v3155
    %v3157 = vrot.slane %v2890, %v3156
    %v3158 = vlaneseq
    %v3159 = vshrl.u32 %v3158, 7
    %v3160 = vsub.s32 0, %v3159
    %v3161 = vrot.slane %v2891, %v3160
    %v3162 = vlaneseq
    %v3163 = vshrl.u32 %v3162, 7
    %v3164 = vsub.s32 1, %v3163
    %v3165 = vrot.slane %v2891, %v3164
    %v3166 = vlaneseq
    %v3167 = vshrl.u32 %v3166, 7
    %v3168 = vsub.s32 2, %v3167
    %v3169 = vrot.slane %v2891, %v3168
    %v3170 = vlaneseq
    %v3171 = vshrl.u32 %v3170, 7
    %v3172 = vsub.s32 3, %v3171
    %v3173 = vrot.slane %v2891, %v3172
    %v3174 = vlaneseq
    %v3175 = vshrl.u32 %v3174, 7
    %v3176 = vsub.s32 4, %v3175
    %v3177 = vrot.slane %v2891, %v3176
    %v3178 = vlaneseq
    %v3179 = vshrl.u32 %v3178, 7
    %v3180 = vsub.s32 0, %v3179
    %v3181 = vrot.slane %v2892, %v3180
    %v3182 = vlaneseq
    %v3183 = vshrl.u32 %v3182, 7
    %v3184 = vsub.s32 1, %v3183
    %v3185 = vrot.slane %v2892, %v3184
    %v3186 = vlaneseq
    %v3187 = vshrl.u32 %v3186, 7
    %v3188 = vsub.s32 2, %v3187
    %v3189 = vrot.slane %v2892, %v3188
    %v3190 = vlaneseq
    %v3191 = vshrl.u32 %v3190, 7
    %v3192 = vsub.s32 3, %v3191
    %v3193 = vrot.slane %v2892, %v3192
    %v3194 = vlaneseq
    %v3195 = vshrl.u32 %v3194, 7
    %v3196 = vsub.s32 4, %v3195
    %v3197 = vrot.slane %v2892, %v3196
    %v3198 = vlaneseq
    %v3199 = vshrl.u32 %v3198, 7
    %v3200 = vsub.s32 5, %v3199
    %v3201 = vrot.slane %v2892, %v3200
    %v3202 = vlaneseq
    %v3203 = vshrl.u32 %v3202, 7
    %v3204 = vsub.s32 6, %v3203
    %v3205 = vrot.slane %v2892, %v3204
    %v3206 = vlaneseq
    %v3207 = vshrl.u32 %v3206, 7
    %v3208 = vsub.s32 7, %v3207
    %v3209 = vrot.slane %v2892, %v3208
    %v3210 = vlaneseq
    %v3211 = vshrl.u32 %v3210, 7
    %v3212 = vsub.s32 0, %v3211
    %v3213 = vrot.slane %v2893, %v3212
    %v3214 = vlaneseq
    %v3215 = vshrl.u32 %v3214, 7
    %v3216 = vsub.s32 1, %v3215
    %v3217 = vrot.slane %v2893, %v3216
    %v3218 = vlaneseq
    %v3219 = vshrl.u32 %v3218, 7
    %v3220 = vsub.s32 2, %v3219
    %v3221 = vrot.slane %v2893, %v3220
    %v3222 = vlaneseq
    %v3223 = vshrl.u32 %v3222, 7
    %v3224 = vsub.s32 3, %v3223
    %v3225 = vrot.slane %v2893, %v3224
    %v3226 = vlaneseq
    %v3227 = vshrl.u32 %v3226, 7
    %v3228 = vsub.s32 4, %v3227
    %v3229 = vrot.slane %v2893, %v3228
    %v3230 = vlaneseq
    %v3231 = vshrl.u32 %v3230, 7
    %v3232 = vsub.s32 0, %v3231
    %v3233 = vrot.slane %v2894, %v3232
    %v3234 = vlaneseq
    %v3235 = vshrl.u32 %v3234, 7
    %v3236 = vsub.s32 1, %v3235
    %v3237 = vrot.slane %v2894, %v3236
    %v3238 = vlaneseq
    %v3239 = vshrl.u32 %v3238, 7
    %v3240 = vsub.s32 2, %v3239
    %v3241 = vrot.slane %v2894, %v3240
    %v3242 = vlaneseq
    %v3243 = vshrl.u32 %v3242, 7
    %v3244 = vsub.s32 3, %v3243
    %v3245 = vrot.slane %v2894, %v3244
    %v3246 = vlaneseq
    %v3247 = vshrl.u32 %v3246, 7
    %v3248 = vsub.s32 4, %v3247
    %v3249 = vrot.slane %v2894, %v3248
    %v3250 = vlaneseq
    %v3251 = vshrl.u32 %v3250, 7
    %v3252 = vsub.s32 5, %v3251
    %v3253 = vrot.slane %v2894, %v3252
    %v3254 = vlaneseq
    %v3255 = vshrl.u32 %v3254, 7
    %v3256 = vsub.s32 6, %v3255
    %v3257 = vrot.slane %v2894, %v3256
    %v3258 = vlaneseq
    %v3259 = vshrl.u32 %v3258, 7
    %v3260 = vsub.s32 7, %v3259
    %v3261 = vrot.slane %v2894, %v3260
    %v3262 = vlaneseq
    %v3263 = vshrl.u32 %v3262, 7
    %v3264 = vsub.s32 0, %v3263
    %v3265 = vrot.slane %v2895, %v3264
    %v3266 = vlaneseq
    %v3267 = vshrl.u32 %v3266, 7
    %v3268 = vsub.s32 1, %v3267
    %v3269 = vrot.slane %v2895, %v3268
    %v3270 = vlaneseq
    %v3271 = vshrl.u32 %v3270, 7
    %v3272 = vsub.s32 2, %v3271
    %v3273 = vrot.slane %v2895, %v3272
    %v3274 = vlaneseq
    %v3275 = vshrl.u32 %v3274, 7
    %v3276 = vsub.s32 3, %v3275
    %v3277 = vrot.slane %v2895, %v3276
    %v3278 = vlaneseq
    %v3279 = vshrl.u32 %v3278, 7
    %v3280 = vsub.s32 4, %v3279
    %v3281 = vrot.slane %v2895, %v3280
    %v3282 = vlaneseq
    %v3283 = vshrl.u32 %v3282, 7
    %v3284 = vsub.s32 0, %v3283
    %v3285 = vrot.slane %v2896, %v3284
    %v3286 = vlaneseq
    %v3287 = vshrl.u32 %v3286, 7
    %v3288 = vsub.s32 1, %v3287
    %v3289 = vrot.slane %v2896, %v3288
    %v3290 = vlaneseq
    %v3291 = vshrl.u32 %v3290, 7
    %v3292 = vsub.s32 2, %v3291
    %v3293 = vrot.slane %v2896, %v3292
    %v3294 = vlaneseq
    %v3295 = vshrl.u32 %v3294, 7
    %v3296 = vsub.s32 3, %v3295
    %v3297 = vrot.slane %v2896, %v3296
    %v3298 = vlaneseq
    %v3299 = vshrl.u32 %v3298, 7
    %v3300 = vsub.s32 4, %v3299
    %v3301 = vrot.slane %v2896, %v3300
    %v3302 = vlaneseq
    %v3303 = vshrl.u32 %v3302, 7
    %v3304 = vsub.s32 5, %v3303
    %v3305 = vrot.slane %v2896, %v3304
    %v3306 = vlaneseq
    %v3307 = vshrl.u32 %v3306, 7
    %v3308 = vsub.s32 6, %v3307
    %v3309 = vrot.slane %v2896, %v3308
    %v3310 = vlaneseq
    %v3311 = vshrl.u32 %v3310, 7
    %v3312 = vsub.s32 7, %v3311
    %v3313 = vrot.slane %v2896, %v3312
    %v3314 = vlaneseq
    %v3315 = vshrl.u32 %v3314, 7
    %v3316 = vsub.s32 0, %v3315
    %v3317 = vrot.slane %v2897, %v3316
    %v3318 = vlaneseq
    %v3319 = vshrl.u32 %v3318, 7
    %v3320 = vsub.s32 1, %v3319
    %v3321 = vrot.slane %v2897, %v3320
    %v3322 = vlaneseq
    %v3323 = vshrl.u32 %v3322, 7
    %v3324 = vsub.s32 2, %v3323
    %v3325 = vrot.slane %v2897, %v3324
    %v3326 = vlaneseq
    %v3327 = vshrl.u32 %v3326, 7
    %v3328 = vsub.s32 3, %v3327
    %v3329 = vrot.slane %v2897, %v3328
    %v3330 = vlaneseq
    %v3331 = vshrl.u32 %v3330, 7
    %v3332 = vsub.s32 4, %v3331
    %v3333 = vrot.slane %v2897, %v3332
    %v3334 = vlaneseq
    %v3335 = vshrl.u32 %v3334, 7
    %v3336 = vsub.s32 0, %v3335
    %v3337 = vrot.slane %v2898, %v3336
    %v3338 = vlaneseq
    %v3339 = vshrl.u32 %v3338, 7
    %v3340 = vsub.s32 1, %v3339
    %v3341 = vrot.slane %v2898, %v3340
    %v3342 = vlaneseq
    %v3343 = vshrl.u32 %v3342, 7
    %v3344 = vsub.s32 2, %v3343
    %v3345 = vrot.slane %v2898, %v3344
    %v3346 = vlaneseq
    %v3347 = vshrl.u32 %v3346, 7
    %v3348 = vsub.s32 3, %v3347
    %v3349 = vrot.slane %v2898, %v3348
    %v3350 = vlaneseq
    %v3351 = vshrl.u32 %v3350, 7
    %v3352 = vsub.s32 4, %v3351
    %v3353 = vrot.slane %v2898, %v3352
    %v3354 = vlaneseq
    %v3355 = vshrl.u32 %v3354, 7
    %v3356 = vsub.s32 5, %v3355
    %v3357 = vrot.slane %v2898, %v3356
    %v3358 = vlaneseq
    %v3359 = vshrl.u32 %v3358, 7
    %v3360 = vsub.s32 6, %v3359
    %v3361 = vrot.slane %v2898, %v3360
    %v3362 = vlaneseq
    %v3363 = vshrl.u32 %v3362, 7
    %v3364 = vsub.s32 7, %v3363
    %v3365 = vrot.slane %v2898, %v3364
    %v3366 = vlaneseq
    %v3367 = vshrl.u32 %v3366, 7
    %v3368 = vsub.s32 0, %v3367
    %v3369 = vrot.slane %v2899, %v3368
    %v3370 = vlaneseq
    %v3371 = vshrl.u32 %v3370, 7
    %v3372 = vsub.s32 1, %v3371
    %v3373 = vrot.slane %v2899, %v3372
    %v3374 = vlaneseq
    %v3375 = vshrl.u32 %v3374, 7
    %v3376 = vsub.s32 2, %v3375
    %v3377 = vrot.slane %v2899, %v3376
    %v3378 = vlaneseq
    %v3379 = vshrl.u32 %v3378, 7
    %v3380 = vsub.s32 3, %v3379
    %v3381 = vrot.slane %v2899, %v3380
    %v3382 = vlaneseq
    %v3383 = vshrl.u32 %v3382, 7
    %v3384 = vsub.s32 4, %v3383
    %v3385 = vrot.slane %v2899, %v3384
    %v3503 = vmul.f32 %v2414, %v2921
    %v3504 = vmul.f32 %v2415, %v2925
    %v3505 = vmul.f32 %v2416, %v2929
    %v3506 = vmul.f32 %v2417, %v2933
    %v3507 = vmul.f32 %v2418, %v2937
    %v3508 = vmul.f32 %v2419, %v2941
    %v3509 = vmul.f32 %v2420, %v2945
    %v3510 = vmul.f32 %v2421, %v2949
    %v3511 = vmul.f32 %v2422, %v2953
    %v3512 = vmul.f32 %v2423, %v2957
    %v3513 = vmul.f32 %v2424, %v2961
    %v3514 = vmul.f32 %v2425, %v2965
    %v3515 = vmul.f32 %v2426, %v2969
    %v3516 = vmul.f32 %v2427, %v2921
    %v3517 = vmul.f32 %v2428, %v2925
    %v3518 = vmul.f32 %v2429, %v2929
    %v3519 = vmul.f32 %v2430, %v2933
    %v3520 = vmul.f32 %v2431, %v2937
    %v3521 = vmul.f32 %v2432, %v2941
    %v3522 = vmul.f32 %v2433, %v2945
    %v3523 = vmul.f32 %v2434, %v2949
    %v3524 = vmul.f32 %v2435, %v2953
    %v3525 = vmul.f32 %v2436, %v2957
    %v3526 = vmul.f32 %v2437, %v2961
    %v3527 = vmul.f32 %v2438, %v2965
    %v3528 = vmul.f32 %v2439, %v2969
    %v3529 = vmul.f32 %v2440, %v2921
    %v3530 = vmul.f32 %v2441, %v2925
    %v3531 = vmul.f32 %v2442, %v2929
    %v3532 = vmul.f32 %v2443, %v2933
    %v3533 = vmul.f32 %v2444, %v2937
    %v3534 = vmul.f32 %v2445, %v2941
    %v3535 = vmul.f32 %v2446, %v2945
    %v3536 = vmul.f32 %v2447, %v2949
    %v3537 = vmul.f32 %v2448, %v2953
    %v3538 = vmul.f32 %v2449, %v2957
    %v3539 = vmul.f32 %v2450, %v2961
    %v3540 = vmul.f32 %v2451, %v2965
    %v3541 = vmul.f32 %v2452, %v2969
    %v3542 = vmul.f32 %v2453, %v2921
    %v3543 = vmul.f32 %v2454, %v2925
    %v3544 = vmul.f32 %v2455, %v2929
    %v3545 = vmul.f32 %v2456, %v2933
    %v3546 = vmul.f32 %v2457, %v2937
    %v3547 = vmul.f32 %v2458, %v2941
    %v3548 = vmul.f32 %v2459, %v2945
    %v3549 = vmul.f32 %v2460, %v2949
    %v3550 = vmul.f32 %v2461, %v2953
    %v3551 = vmul.f32 %v2462, %v2957
    %v3552 = vmul.f32 %v2463, %v2961
    %v3553 = vmul.f32 %v2464, %v2965
    %v3554 = vmul.f32 %v2465, %v2969
    %v3555 = vmul.f32 %v2466, %v2973
    %v3556 = vmul.f32 %v2467, %v2977
    %v3557 = vmul.f32 %v2468, %v2981
    %v3558 = vmul.f32 %v2469, %v2985
    %v3559 = vmul.f32 %v2470, %v2989
    %v3560 = vmul.f32 %v2471, %v2993
    %v3561 = vmul.f32 %v2472, %v2997
    %v3562 = vmul.f32 %v2473, %v3001
    %v3563 = vmul.f32 %v2474, %v3005
    %v3564 = vmul.f32 %v2475, %v3009
    %v3565 = vmul.f32 %v2476, %v3013
    %v3566 = vmul.f32 %v2477, %v3017
    %v3567 = vmul.f32 %v2478, %v3021
    %v3568 = vmul.f32 %v2479, %v2973
    %v3569 = vmul.f32 %v2480, %v2977
    %v3570 = vmul.f32 %v2481, %v2981
    %v3571 = vmul.f32 %v2482, %v2985
    %v3572 = vmul.f32 %v2483, %v2989
    %v3573 = vmul.f32 %v2484, %v2993
    %v3574 = vmul.f32 %v2485, %v2997
    %v3575 = vmul.f32 %v2486, %v3001
    %v3576 = vmul.f32 %v2487, %v3005
    %v3577 = vmul.f32 %v2488, %v3009
    %v3578 = vmul.f32 %v2489, %v3013
    %v3579 = vmul.f32 %v2490, %v3017
    %v3580 = vmul.f32 %v2491, %v3021
    %v3581 = vmul.f32 %v2492, %v2973
    %v3582 = vmul.f32 %v2493, %v2977
    %v3583 = vmul.f32 %v2494, %v2981
    %v3584 = vmul.f32 %v2495, %v2985
    %v3585 = vmul.f32 %v2496, %v2989
    %v3586 = vmul.f32 %v2497, %v2993
    %v3587 = vmul.f32 %v2498, %v2997
    %v3588 = vmul.f32 %v2499, %v3001
    %v3589 = vmul.f32 %v2500, %v3005
    %v3590 = vmul.f32 %v2501, %v3009
    %v3591 = vmul.f32 %v2502, %v3013
    %v3592 = vmul.f32 %v2503, %v3017
    %v3593 = vmul.f32 %v2504, %v3021
    %v3594 = vmul.f32 %v2505, %v2973
    %v3595 = vmul.f32 %v2506, %v2977
    %v3596 = vmul.f32 %v2507, %v2981
    %v3597 = vmul.f32 %v2508, %v2985
    %v3598 = vmul.f32 %v2509, %v2989
    %v3599 = vmul.f32 %v2510, %v2993
    %v3600 = vmul.f32 %v2511, %v2997
    %v3601 = vmul.f32 %v2512, %v3001
    %v3602 = vmul.f32 %v2513, %v3005
    %v3603 = vmul.f32 %v2514, %v3009
    %v3604 = vmul.f32 %v2515, %v3013
    %v3605 = vmul.f32 %v2516, %v3017
    %v3606 = vmul.f32 %v2517, %v3021
    %v3607 = vmul.f32 %v2518, %v3025
    %v3608 = vmul.f32 %v2519, %v3029
    %v3609 = vmul.f32 %v2520, %v3033
    %v3610 = vmul.f32 %v2521, %v3037
    %v3611 = vmul.f32 %v2522, %v3041
    %v3612 = vmul.f32 %v2523, %v3045
    %v3613 = vmul.f32 %v2524, %v3049
    %v3614 = vmul.f32 %v2525, %v3053
    %v3615 = vmul.f32 %v2526, %v3057
    %v3616 = vmul.f32 %v2527, %v3061
    %v3617 = vmul.f32 %v2528, %v3065
    %v3618 = vmul.f32 %v2529, %v3069
    %v3619 = vmul.f32 %v2530, %v3073
    %v3620 = vmul.f32 %v2531, %v3025
    %v3621 = vmul.f32 %v2532, %v3029
    %v3622 = vmul.f32 %v2533, %v3033
    %v3623 = vmul.f32 %v2534, %v3037
    %v3624 = vmul.f32 %v2535, %v3041
    %v3625 = vmul.f32 %v2536, %v3045
    %v3626 = vmul.f32 %v2537, %v3049
    %v3627 = vmul.f32 %v2538, %v3053
    %v3628 = vmul.f32 %v2539, %v3057
    %v3629 = vmul.f32 %v2540, %v3061
    %v3630 = vmul.f32 %v2541, %v3065
    %v3631 = vmul.f32 %v2542, %v3069
    %v3632 = vmul.f32 %v2543, %v3073
    %v3633 = vmul.f32 %v2544, %v3025
    %v3634 = vmul.f32 %v2545, %v3029
    %v3635 = vmul.f32 %v2546, %v3033
    %v3636 = vmul.f32 %v2547, %v3037
    %v3637 = vmul.f32 %v2548, %v3041
    %v3638 = vmul.f32 %v2549, %v3045
    %v3639 = vmul.f32 %v2550, %v3049
    %v3640 = vmul.f32 %v2551, %v3053
    %v3641 = vmul.f32 %v2552, %v3057
    %v3642 = vmul.f32 %v2553, %v3061
    %v3643 = vmul.f32 %v2554, %v3065
    %v3644 = vmul.f32 %v2555, %v3069
    %v3645 = vmul.f32 %v2556, %v3073
    %v3646 = vmul.f32 %v2557, %v3025
    %v3647 = vmul.f32 %v2558, %v3029
    %v3648 = vmul.f32 %v2559, %v3033
    %v3649 = vmul.f32 %v2560, %v3037
    %v3650 = vmul.f32 %v2561, %v3041
    %v3651 = vmul.f32 %v2562, %v3045
    %v3652 = vmul.f32 %v2563, %v3049
    %v3653 = vmul.f32 %v2564, %v3053
    %v3654 = vmul.f32 %v2565, %v3057
    %v3655 = vmul.f32 %v2566, %v3061
    %v3656 = vmul.f32 %v2567, %v3065
    %v3657 = vmul.f32 %v2568, %v3069
    %v3658 = vmul.f32 %v2569, %v3073
    %v3659 = vmul.f32 %v2570, %v3077
    %v3660 = vmul.f32 %v2571, %v3081
    %v3661 = vmul.f32 %v2572, %v3085
    %v3662 = vmul.f32 %v2573, %v3089
    %v3663 = vmul.f32 %v2574, %v3093
    %v3664 = vmul.f32 %v2575, %v3097
    %v3665 = vmul.f32 %v2576, %v3101
    %v3666 = vmul.f32 %v2577, %v3105
    %v3667 = vmul.f32 %v2578, %v3109
    %v3668 = vmul.f32 %v2579, %v3113
    %v3669 = vmul.f32 %v2580, %v3117
    %v3670 = vmul.f32 %v2581, %v3121
    %v3671 = vmul.f32 %v2582, %v3125
    %v3672 = vmul.f32 %v2583, %v3077
    %v3673 = vmul.f32 %v2584, %v3081
    %v3674 = vmul.f32 %v2585, %v3085
    %v3675 = vmul.f32 %v2586, %v3089
    %v3676 = vmul.f32 %v2587, %v3093
    %v3677 = vmul.f32 %v2588, %v3097
    %v3678 = vmul.f32 %v2589, %v3101
    %v3679 = vmul.f32 %v2590, %v3105
    %v3680 = vmul.f32 %v2591, %v3109
    %v3681 = vmul.f32 %v2592, %v3113
    %v3682 = vmul.f32 %v2593, %v3117
    %v3683 = vmul.f32 %v2594, %v3121
    %v3684 = vmul.f32 %v2595, %v3125
    %v3685 = vmul.f32 %v2596, %v3077
    %v3686 = vmul.f32 %v2597, %v3081
    %v3687 = vmul.f32 %v2598, %v3085
    %v3688 = vmul.f32 %v2599, %v3089
    %v3689 = vmul.f32 %v2600, %v3093
    %v3690 = vmul.f32 %v2601, %v3097
    %v3691 = vmul.f32 %v2602, %v3101
    %v3692 = vmul.f32 %v2603, %v3105
    %v3693 = vmul.f32 %v2604, %v3109
    %v3694 = vmul.f32 %v2605, %v3113
    %v3695 = vmul.f32 %v2606, %v3117
    %v3696 = vmul.f32 %v2607, %v3121
    %v3697 = vmul.f32 %v2608, %v3125
    %v3698 = vmul.f32 %v2609, %v3077
    %v3699 = vmul.f32 %v2610, %v3081
    %v3700 = vmul.f32 %v2611, %v3085
    %v3701 = vmul.f32 %v2612, %v3089
    %v3702 = vmul.f32 %v2613, %v3093
    %v3703 = vmul.f32 %v2614, %v3097
    %v3704 = vmul.f32 %v2615, %v3101
    %v3705 = vmul.f32 %v2616, %v3105
    %v3706 = vmul.f32 %v2617, %v3109
    %v3707 = vmul.f32 %v2618, %v3113
    %v3708 = vmul.f32 %v2619, %v3117
    %v3709 = vmul.f32 %v2620, %v3121
    %v3710 = vmul.f32 %v2621, %v3125
    %v3711 = vmul.f32 %v2622, %v3129
    %v3712 = vmul.f32 %v2623, %v3133
    %v3713 = vmul.f32 %v2624, %v3137
    %v3714 = vmul.f32 %v2625, %v3141
    %v3715 = vmul.f32 %v2626, %v3145
    %v3716 = vmul.f32 %v2627, %v3149
    %v3717 = vmul.f32 %v2628, %v3153
    %v3718 = vmul.f32 %v2629, %v3157
    %v3719 = vmul.f32 %v2630, %v3161
    %v3720 = vmul.f32 %v2631, %v3165
    %v3721 = vmul.f32 %v2632, %v3169
    %v3722 = vmul.f32 %v2633, %v3173
    %v3723 = vmul.f32 %v2634, %v3177
    %v3724 = vmul.f32 %v2635, %v3129
    %v3725 = vmul.f32 %v2636, %v3133
    %v3726 = vmul.f32 %v2637, %v3137
    %v3727 = vmul.f32 %v2638, %v3141
    %v3728 = vmul.f32 %v2639, %v3145
    %v3729 = vmul.f32 %v2640, %v3149
    %v3730 = vmul.f32 %v2641, %v3153
    %v3731 = vmul.f32 %v2642, %v3157
    %v3732 = vmul.f32 %v2643, %v3161
    %v3733 = vmul.f32 %v2644, %v3165
    %v3734 = vmul.f32 %v2645, %v3169
    %v3735 = vmul.f32 %v2646, %v3173
    %v3736 = vmul.f32 %v2647, %v3177
    %v3737 = vmul.f32 %v2648, %v3129
    %v3738 = vmul.f32 %v2649, %v3133
    %v3739 = vmul.f32 %v2650, %v3137
    %v3740 = vmul.f32 %v2651, %v3141
    %v3741 = vmul.f32 %v2652, %v3145
    %v3742 = vmul.f32 %v2653, %v3149
    %v3743 = vmul.f32 %v2654, %v3153
    %v3744 = vmul.f32 %v2655, %v3157
    %v3745 = vmul.f32 %v2656, %v3161
    %v3746 = vmul.f32 %v2657, %v3165
    %v3747 = vmul.f32 %v2658, %v3169
    %v3748 = vmul.f32 %v2659, %v3173
    %v3749 = vmul.f32 %v2660, %v3177
    %v3750 = vmul.f32 %v2661, %v3129
    %v3751 = vmul.f32 %v2662, %v3133
    %v3752 = vmul.f32 %v2663, %v3137
    %v3753 = vmul.f32 %v2664, %v3141
    %v3754 = vmul.f32 %v2665, %v3145
    %v3755 = vmul.f32 %v2666, %v3149
    %v3756 = vmul.f32 %v2667, %v3153
    %v3757 = vmul.f32 %v2668, %v3157
    %v3758 = vmul.f32 %v2669, %v3161
    %v3759 = vmul.f32 %v2670, %v3165
    %v3760 = vmul.f32 %v2671, %v3169
    %v3761 = vmul.f32 %v2672, %v3173
    %v3762 = vmul.f32 %v2673, %v3177
    %v3763 = vmul.f32 %v2674, %v3181
    %v3764 = vmul.f32 %v2675, %v3185
    %v3765 = vmul.f32 %v2676, %v3189
    %v3766 = vmul.f32 %v2677, %v3193
    %v3767 = vmul.f32 %v2678, %v3197
    %v3768 = vmul.f32 %v2679, %v3201
    %v3769 = vmul.f32 %v2680, %v3205
    %v3770 = vmul.f32 %v2681, %v3209
    %v3771 = vmul.f32 %v2682, %v3213
    %v3772 = vmul.f32 %v2683, %v3217
    %v3773 = vmul.f32 %v2684, %v3221
    %v3774 = vmul.f32 %v2685, %v3225
    %v3775 = vmul.f32 %v2686, %v3229
    %v3776 = vmul.f32 %v2687, %v3181
    %v3777 = vmul.f32 %v2688, %v3185
    %v3778 = vmul.f32 %v2689, %v3189
    %v3779 = vmul.f32 %v2690, %v3193
    %v3780 = vmul.f32 %v2691, %v3197
    %v3781 = vmul.f32 %v2692, %v3201
    %v3782 = vmul.f32 %v2693, %v3205
    %v3783 = vmul.f32 %v2694, %v3209
    %v3784 = vmul.f32 %v2695, %v3213
    %v3785 = vmul.f32 %v2696, %v3217
    %v3786 = vmul.f32 %v2697, %v3221
    %v3787 = vmul.f32 %v2698, %v3225
    %v3788 = vmul.f32 %v2699, %v3229
    %v3789 = vmul.f32 %v2700, %v3181
    %v3790 = vmul.f32 %v2701, %v3185
    %v3791 = vmul.f32 %v2702, %v3189
    %v3792 = vmul.f32 %v2703, %v3193
    %v3793 = vmul.f32 %v2704, %v3197
    %v3794 = vmul.f32 %v2705, %v3201
    %v3795 = vmul.f32 %v2706, %v3205
    %v3796 = vmul.f32 %v2707, %v3209
    %v3797 = vmul.f32 %v2708, %v3213
    %v3798 = vmul.f32 %v2709, %v3217
    %v3799 = vmul.f32 %v2710, %v3221
    %v3800 = vmul.f32 %v2711, %v3225
    %v3801 = vmul.f32 %v2712, %v3229
    %v3802 = vmul.f32 %v2713, %v3181
    %v3803 = vmul.f32 %v2714, %v3185
    %v3804 = vmul.f32 %v2715, %v3189
    %v3805 = vmul.f32 %v2716, %v3193
    %v3806 = vmul.f32 %v2717, %v3197
    %v3807 = vmul.f32 %v2718, %v3201
    %v3808 = vmul.f32 %v2719, %v3205
    %v3809 = vmul.f32 %v2720, %v3209
    %v3810 = vmul.f32 %v2721, %v3213
    %v3811 = vmul.f32 %v2722, %v3217
    %v3812 = vmul.f32 %v2723, %v3221
    %v3813 = vmul.f32 %v2724, %v3225
    %v3814 = vmul.f32 %v2725, %v3229
    %v3815 = vmul.f32 %v2726, %v3233
    %v3816 = vmul.f32 %v2727, %v3237
    %v3817 = vmul.f32 %v2728, %v3241
    %v3818 = vmul.f32 %v2729, %v3245
    %v3819 = vmul.f32 %v2730, %v3249
    %v3820 = vmul.f32 %v2731, %v3253
    %v3821 = vmul.f32 %v2732, %v3257
    %v3822 = vmul.f32 %v2733, %v3261
    %v3823 = vmul.f32 %v2734, %v3265
    %v3824 = vmul.f32 %v2735, %v3269
    %v3825 = vmul.f32 %v2736, %v3273
    %v3826 = vmul.f32 %v2737, %v3277
    %v3827 = vmul.f32 %v2738, %v3281
    %v3828 = vmul.f32 %v2739, %v3233
    %v3829 = vmul.f32 %v2740, %v3237
    %v3830 = vmul.f32 %v2741, %v3241
    %v3831 = vmul.f32 %v2742, %v3245
    %v3832 = vmul.f32 %v2743, %v3249
    %v3833 = vmul.f32 %v2744, %v3253
    %v3834 = vmul.f32 %v2745, %v3257
    %v3835 = vmul.f32 %v2746, %v3261
    %v3836 = vmul.f32 %v2747, %v3265
    %v3837 = vmul.f32 %v2748, %v3269
    %v3838 = vmul.f32 %v2749, %v3273
    %v3839 = vmul.f32 %v2750, %v3277
    %v3840 = vmul.f32 %v2751, %v3281
    %v3841 = vmul.f32 %v2752, %v3233
    %v3842 = vmul.f32 %v2753, %v3237
    %v3843 = vmul.f32 %v2754, %v3241
    %v3844 = vmul.f32 %v2755, %v3245
    %v3845 = vmul.f32 %v2756, %v3249
    %v3846 = vmul.f32 %v2757, %v3253
    %v3847 = vmul.f32 %v2758, %v3257
    %v3848 = vmul.f32 %v2759, %v3261
    %v3849 = vmul.f32 %v2760, %v3265
    %v3850 = vmul.f32 %v2761, %v3269
    %v3851 = vmul.f32 %v2762, %v3273
    %v3852 = vmul.f32 %v2763, %v3277
    %v3853 = vmul.f32 %v2764, %v3281
    %v3854 = vmul.f32 %v2765, %v3233
    %v3855 = vmul.f32 %v2766, %v3237
    %v3856 = vmul.f32 %v2767, %v3241
    %v3857 = vmul.f32 %v2768, %v3245
    %v3858 = vmul.f32 %v2769, %v3249
    %v3859 = vmul.f32 %v2770, %v3253
    %v3860 = vmul.f32 %v2771, %v3257
    %v3861 = vmul.f32 %v2772, %v3261
    %v3862 = vmul.f32 %v2773, %v3265
    %v3863 = vmul.f32 %v2774, %v3269
    %v3864 = vmul.f32 %v2775, %v3273
    %v3865 = vmul.f32 %v2776, %v3277
    %v3866 = vmul.f32 %v2777, %v3281
    %v3867 = vmul.f32 %v2778, %v3285
    %v3868 = vmul.f32 %v2779, %v3289
    %v3869 = vmul.f32 %v2780, %v3293
    %v3870 = vmul.f32 %v2781, %v3297
    %v3871 = vmul.f32 %v2782, %v3301
    %v3872 = vmul.f32 %v2783, %v3305
    %v3873 = vmul.f32 %v2784, %v3309
    %v3874 = vmul.f32 %v2785, %v3313
    %v3875 = vmul.f32 %v2786, %v3317
    %v3876 = vmul.f32 %v2787, %v3321
    %v3877 = vmul.f32 %v2788, %v3325
    %v3878 = vmul.f32 %v2789, %v3329
    %v3879 = vmul.f32 %v2790, %v3333
    %v3880 = vmul.f32 %v2791, %v3285
    %v3881 = vmul.f32 %v2792, %v3289
    %v3882 = vmul.f32 %v2793, %v3293
    %v3883 = vmul.f32 %v2794, %v3297
    %v3884 = vmul.f32 %v2795, %v3301
    %v3885 = vmul.f32 %v2796, %v3305
    %v3886 = vmul.f32 %v2797, %v3309
    %v3887 = vmul.f32 %v2798, %v3313
    %v3888 = vmul.f32 %v2799, %v3317
    %v3889 = vmul.f32 %v2800, %v3321
    %v3890 = vmul.f32 %v2801, %v3325
    %v3891 = vmul.f32 %v2802, %v3329
    %v3892 = vmul.f32 %v2803, %v3333
    %v3893 = vmul.f32 %v2804, %v3285
    %v3894 = vmul.f32 %v2805, %v3289
    %v3895 = vmul.f32 %v2806, %v3293
    %v3896 = vmul.f32 %v2807, %v3297
    %v3897 = vmul.f32 %v2808, %v3301
    %v3898 = vmul.f32 %v2809, %v3305
    %v3899 = vmul.f32 %v2810, %v3309
    %v3900 = vmul.f32 %v2811, %v3313
    %v3901 = vmul.f32 %v2812, %v3317
    %v3902 = vmul.f32 %v2813, %v3321
    %v3903 = vmul.f32 %v2814, %v3325
    %v3904 = vmul.f32 %v2815, %v3329
    %v3905 = vmul.f32 %v2816, %v3333
    %v3906 = vmul.f32 %v2817, %v3285
    %v3907 = vmul.f32 %v2818, %v3289
    %v3908 = vmul.f32 %v2819, %v3293
    %v3909 = vmul.f32 %v2820, %v3297
    %v3910 = vmul.f32 %v2821, %v3301
    %v3911 = vmul.f32 %v2822, %v3305
    %v3912 = vmul.f32 %v2823, %v3309
    %v3913 = vmul.f32 %v2824, %v3313
    %v3914 = vmul.f32 %v2825, %v3317
    %v3915 = vmul.f32 %v2826, %v3321
    %v3916 = vmul.f32 %v2827, %v3325
    %v3917 = vmul.f32 %v2828, %v3329
    %v3918 = vmul.f32 %v2829, %v3333
    %v3919 = vmul.f32 %v2830, %v3337
    %v3920 = vmul.f32 %v2831, %v3341
    %v3921 = vmul.f32 %v2832, %v3345
    %v3922 = vmul.f32 %v2833, %v3349
    %v3923 = vmul.f32 %v2834, %v3353
    %v3924 = vmul.f32 %v2835, %v3357
    %v3925 = vmul.f32 %v2836, %v3361
    %v3926 = vmul.f32 %v2837, %v3365
    %v3927 = vmul.f32 %v2838, %v3369
    %v3928 = vmul.f32 %v2839, %v3373
    %v3929 = vmul.f32 %v2840, %v3377
    %v3930 = vmul.f32 %v2841, %v3381
    %v3931 = vmul.f32 %v2842, %v3385
    %v3932 = vmul.f32 %v2843, %v3337
    %v3933 = vmul.f32 %v2844, %v3341
    %v3934 = vmul.f32 %v2845, %v3345
    %v3935 = vmul.f32 %v2846, %v3349
    %v3936 = vmul.f32 %v2847, %v3353
    %v3937 = vmul.f32 %v2848, %v3357
    %v3938 = vmul.f32 %v2849, %v3361
    %v3939 = vmul.f32 %v2850, %v3365
    %v3940 = vmul.f32 %v2851, %v3369
    %v3941 = vmul.f32 %v2852, %v3373
    %v3942 = vmul.f32 %v2853, %v3377
    %v3943 = vmul.f32 %v2854, %v3381
    %v3944 = vmul.f32 %v2855, %v3385
    %v3945 = vmul.f32 %v2856, %v3337
    %v3946 = vmul.f32 %v2857, %v3341
    %v3947 = vmul.f32 %v2858, %v3345
    %v3948 = vmul.f32 %v2859, %v3349
    %v3949 = vmul.f32 %v2860, %v3353
    %v3950 = vmul.f32 %v2861, %v3357
    %v3951 = vmul.f32 %v2862, %v3361
    %v3952 = vmul.f32 %v2863, %v3365
    %v3953 = vmul.f32 %v2864, %v3369
    %v3954 = vmul.f32 %v2865, %v3373
    %v3955 = vmul.f32 %v2866, %v3377
    %v3956 = vmul.f32 %v2867, %v3381
    %v3957 = vmul.f32 %v2868, %v3385
    %v3958 = vmul.f32 %v2869, %v3337
    %v3959 = vmul.f32 %v2870, %v3341
    %v3960 = vmul.f32 %v2871, %v3345
    %v3961 = vmul.f32 %v2872, %v3349
    %v3962 = vmul.f32 %v2873, %v3353
    %v3963 = vmul.f32 %v2874, %v3357
    %v3964 = vmul.f32 %v2875, %v3361
    %v3965 = vmul.f32 %v2876, %v3365
    %v3966 = vmul.f32 %v2877, %v3369
    %v3967 = vmul.f32 %v2878, %v3373
    %v3968 = vmul.f32 %v2879, %v3377
    %v3969 = vmul.f32 %v2880, %v3381
    %v3970 = vmul.f32 %v2881, %v3385
    %v3971 = vld [vmem:[%s4] sm:$0xff]
    %v3972 = vld [vmem:[%s4 + $0x8] sm:$0xff]
    %v3973 = vld [vmem:[%s4 + $0x10] sm:$0xff]
    %v3974 = vld [vmem:[%s4 + $0x18] sm:$0xff]
    %v3975 = vld [vmem:[%s4 + $0x20] sm:$0xff]
    %v3976 = vld [vmem:[%s4 + $0x28] sm:$0xff]
    %v3977 = vld [vmem:[%s4 + $0x30] sm:$0xff]
    %v3978 = vld [vmem:[%s4 + $0x38] sm:$0xff]
    %v3979 = vld [vmem:[%s4 + $0x40] sm:$0xff]
    %v3980 = vld [vmem:[%s4 + $0x48] sm:$0xff]
    %v3981 = vld [vmem:[%s4 + $0x50] sm:$0xff]
    %v3982 = vld [vmem:[%s4 + $0x58] sm:$0xff]
    %v3983 = vld [vmem:[%s4 + $0x60] sm:$0xff]
    %v3984 = vld [vmem:[%s4 + $0x68] sm:$0xff]
    %v3985 = vld [vmem:[%s4 + $0x70] sm:$0xff]
    %v3986 = vld [vmem:[%s4 + $0x78] sm:$0xff]
    %v3987 = vld [vmem:[%s4 + $0x80] sm:$0xff]
    %v3988 = vld [vmem:[%s4 + $0x88] sm:$0xff]
    %v3989 = vld [vmem:[%s4 + $0x90] sm:$0xff]
    %v3990 = vld [vmem:[%s4 + $0x98] sm:$0xff]
    %v3991 = vld [vmem:[%s4 + $0xa0] sm:$0xff]
    %v3992 = vld [vmem:[%s4 + $0xa8] sm:$0xff]
    %v3993 = vld [vmem:[%s4 + $0xb0] sm:$0xff]
    %v3994 = vld [vmem:[%s4 + $0xb8] sm:$0xff]
    %v3995 = vld [vmem:[%s5] sm:$0xff]
    %v3996 = vld [vmem:[%s5 + $0x8] sm:$0xff]
    %v3997 = vld [vmem:[%s5 + $0x10] sm:$0xff]
    %v3998 = vld [vmem:[%s5 + $0x18] sm:$0xff]
    %v3999 = vld [vmem:[%s5 + $0x20] sm:$0xff]
    %v4000 = vld [vmem:[%s5 + $0x28] sm:$0xff]
    %v4001 = vld [vmem:[%s5 + $0x30] sm:$0xff]
    %v4002 = vld [vmem:[%s5 + $0x38] sm:$0xff]
    %4004 = vset.pattern.permute.xlu0 0
    %4005 = vperm.xlu0 %4004, %v3995
    %v4006 = vpop.permute.xlu0 %4005
    %4009 = vset.pattern.permute.xlu0 0
    %4010 = vperm.xlu0 %4009, %v3996
    %v4011 = vpop.permute.xlu0 %4010
    %4014 = vset.pattern.permute.xlu0 0
    %4015 = vperm.xlu0 %4014, %v3997
    %v4016 = vpop.permute.xlu0 %4015
    %4019 = vset.pattern.permute.xlu0 0
    %4020 = vperm.xlu0 %4019, %v3998
    %v4021 = vpop.permute.xlu0 %4020
    %4024 = vset.pattern.permute.xlu0 0
    %4025 = vperm.xlu0 %4024, %v3999
    %v4026 = vpop.permute.xlu0 %4025
    %4029 = vset.pattern.permute.xlu0 0
    %4030 = vperm.xlu0 %4029, %v4000
    %v4031 = vpop.permute.xlu0 %4030
    %4034 = vset.pattern.permute.xlu0 0
    %4035 = vperm.xlu0 %4034, %v4001
    %v4036 = vpop.permute.xlu0 %4035
    %4039 = vset.pattern.permute.xlu0 0
    %4040 = vperm.xlu0 %4039, %v4002
    %v4041 = vpop.permute.xlu0 %4040
    %vm4043 = vcmask 261120
    %v4045 = vsel %vm4043, %v3973, 0
    %v4048 = vsel %vm4043, %v3976, 0
    %v4051 = vsel %vm4043, %v3979, 0
    %v4054 = vsel %vm4043, %v3982, 0
    %v4057 = vsel %vm4043, %v3985, 0
    %v4060 = vsel %vm4043, %v3988, 0
    %v4063 = vsel %vm4043, %v3991, 0
    %v4066 = vsel %vm4043, %v3994, 0
    %4068 = vmatprep.subr.mxu0 %v3504
    %4069 = vmatpush1.msra.mxu0 %v3503
    %4070 = vmatprep.subr.mxu0 %v3517
    %4071 = vmatpush1.msra.mxu0 %v3516
    %4072 = vmatprep.subr.mxu0 %v3530
    %4073 = vmatpush1.msra.mxu0 %v3529
    %4074 = vmatprep.subr.mxu0 %v3543
    %4075 = vmatpush1.msra.mxu0 %v3542
    %4076 = vmatprep.subr.mxu0 %v3556
    %4077 = vmatpush1.msra.mxu0 %v3555
    %4078 = vmatprep.subr.mxu0 %v3569
    %4079 = vmatpush1.msra.mxu0 %v3568
    %4080 = vmatprep.subr.mxu0 %v3582
    %4081 = vmatpush1.msra.mxu0 %v3581
    %4082 = vmatprep.subr.mxu0 %v3595
    %4083 = vmatpush1.msra.mxu0 %v3594
    %4084 = vmatprep.subr.mxu0 %v3608
    %4085 = vmatpush1.msra.mxu0 %v3607
    %4086 = vmatprep.subr.mxu0 %v3621
    %4087 = vmatpush1.msra.mxu0 %v3620
    %4088 = vmatprep.subr.mxu0 %v3634
    %4089 = vmatpush1.msra.mxu0 %v3633
    %4090 = vmatprep.subr.mxu0 %v3647
    %4091 = vmatpush1.msra.mxu0 %v3646
    %4092 = vmatprep.subr.mxu0 %v3660
    %4093 = vmatpush1.msra.mxu0 %v3659
    %4094 = vmatprep.subr.mxu0 %v3673
    %4095 = vmatpush1.msra.mxu0 %v3672
    %4096 = vmatprep.subr.mxu0 %v3686
    %4097 = vmatpush1.msra.mxu0 %v3685
    %4098 = vmatprep.subr.mxu0 %v3699
    %4099 = vmatpush1.msra.mxu0 %v3698
    %4100 = vmatprep.subr.mxu0 %v3712
    %4101 = vmatpush1.msra.mxu0 %v3711
    %4102 = vmatprep.subr.mxu0 %v3725
    %4103 = vmatpush1.msra.mxu0 %v3724
    %4104 = vmatprep.subr.mxu0 %v3738
    %4105 = vmatpush1.msra.mxu0 %v3737
    %4106 = vmatprep.subr.mxu0 %v3751
    %4107 = vmatpush1.msra.mxu0 %v3750
    %4108 = vmatprep.subr.mxu0 %v3764
    %4109 = vmatpush1.msra.mxu0 %v3763
    %4110 = vmatprep.subr.mxu0 %v3777
    %4111 = vmatpush1.msra.mxu0 %v3776
    %4112 = vmatprep.subr.mxu0 %v3790
    %4113 = vmatpush1.msra.mxu0 %v3789
    %4114 = vmatprep.subr.mxu0 %v3803
    %4115 = vmatpush1.msra.mxu0 %v3802
    %4116 = vmatprep.subr.mxu0 %v3816
    %4117 = vmatpush1.msra.mxu0 %v3815
    %4118 = vmatprep.subr.mxu0 %v3829
    %4119 = vmatpush1.msra.mxu0 %v3828
    %4120 = vmatprep.subr.mxu0 %v3842
    %4121 = vmatpush1.msra.mxu0 %v3841
    %4122 = vmatprep.subr.mxu0 %v3855
    %4123 = vmatpush1.msra.mxu0 %v3854
    %4124 = vmatprep.subr.mxu0 %v3868
    %4125 = vmatpush1.msra.mxu0 %v3867
    %4126 = vmatprep.subr.mxu0 %v3881
    %4127 = vmatpush1.msra.mxu0 %v3880
    %4128 = vmatprep.subr.mxu0 %v3894
    %4129 = vmatpush1.msra.mxu0 %v3893
    %4130 = vmatprep.subr.mxu0 %v3907
    %4131 = vmatpush1.msra.mxu0 %v3906
    %4132 = vmatprep.mubr.f32.mxu0 %v3972
    %4133 = vmatmul.mubr.f32.gmra.mrb[0].mxu0 %v3971
    %v4134 = vpop.f32.mrb[0].mxu0
    %v4135 = vadd.f32 %v4006, %v4134
    %v4136 = vpop.f32.mrb[0].mxu0
    %v4137 = vadd.f32 %v4006, %v4136
    %4138 = vmatprep.mubr.f32.mxu0 %v3975
    %4139 = vmatmul.mubr.f32.gmra.mrb[0].mxu0 %v3974
    %v4140 = vpop.f32.mrb[0].mxu0
    %v4141 = vadd.f32 %v4011, %v4140
    %v4142 = vpop.f32.mrb[0].mxu0
    %v4143 = vadd.f32 %v4011, %v4142
    %4144 = vmatprep.mubr.f32.mxu0 %v3978
    %4145 = vmatmul.mubr.f32.gmra.mrb[0].mxu0 %v3977
    %v4146 = vpop.f32.mrb[0].mxu0
    %v4147 = vadd.f32 %v4016, %v4146
    %v4148 = vpop.f32.mrb[0].mxu0
    %v4149 = vadd.f32 %v4016, %v4148
    %4150 = vmatprep.mubr.f32.mxu0 %v3981
    %4151 = vmatmul.mubr.f32.gmra.mrb[0].mxu0 %v3980
    %v4152 = vpop.f32.mrb[0].mxu0
    %v4153 = vadd.f32 %v4021, %v4152
    %v4154 = vpop.f32.mrb[0].mxu0
    %v4155 = vadd.f32 %v4021, %v4154
    %4156 = vmatprep.mubr.f32.mxu0 %v3984
    %4157 = vmatmul.mubr.f32.gmra.mrb[0].mxu0 %v3983
    %v4158 = vpop.f32.mrb[0].mxu0
    %v4159 = vadd.f32 %v4026, %v4158
    %v4160 = vpop.f32.mrb[0].mxu0
    %v4161 = vadd.f32 %v4026, %v4160
    %4162 = vmatprep.mubr.f32.mxu0 %v3987
    %4163 = vmatmul.mubr.f32.gmra.mrb[0].mxu0 %v3986
    %v4164 = vpop.f32.mrb[0].mxu0
    %v4165 = vadd.f32 %v4031, %v4164
    %v4166 = vpop.f32.mrb[0].mxu0
    %v4167 = vadd.f32 %v4031, %v4166
    %4168 = vmatprep.mubr.f32.mxu0 %v3990
    %4169 = vmatmul.mubr.f32.gmra.mrb[0].mxu0 %v3989
    %v4170 = vpop.f32.mrb[0].mxu0
    %v4171 = vadd.f32 %v4036, %v4170
    %v4172 = vpop.f32.mrb[0].mxu0
    %v4173 = vadd.f32 %v4036, %v4172
    %4174 = vmatprep.mubr.f32.mxu0 %v3993
    %4175 = vmatmul.mubr.f32.gmra.mrb[0].mxu0 %v3992
    %v4176 = vpop.f32.mrb[0].mxu0
    %v4177 = vadd.f32 %v4041, %v4176
    %v4178 = vpop.f32.mrb[0].mxu0
    %v4179 = vadd.f32 %v4041, %v4178
    %4180 = vdwg.mxu0
    %4181 = vmatprep.subr.mxu0 %v3920
    %4182 = vmatpush1.msra.mxu0 %v3919
    %4183 = vmatprep.subr.mxu0 %v3933
    %4184 = vmatpush1.msra.mxu0 %v3932
    %4185 = vmatprep.subr.mxu0 %v3946
    %4186 = vmatpush1.msra.mxu0 %v3945
    %4187 = vmatprep.subr.mxu0 %v3959
    %4188 = vmatpush1.msra.mxu0 %v3958
    %4189 = vmatprep.subr.mxu0 0.0
    %4190 = vmatpush1.msra.mxu0 0.0
    %4191 = vmatprep.subr.mxu0 0.0
    %4192 = vmatpush1.msra.mxu0 0.0
    %4193 = vmatprep.subr.mxu0 0.0
    %4194 = vmatpush1.msra.mxu0 0.0
    %4195 = vmatprep.subr.mxu0 0.0
    %4196 = vmatpush1.msra.mxu0 0.0
    %4197 = vmatprep.subr.mxu0 0.0
    %4198 = vmatpush1.msra.mxu0 0.0
    %4199 = vmatprep.subr.mxu0 0.0
    %4200 = vmatpush1.msra.mxu0 0.0
    %4201 = vmatprep.subr.mxu0 0.0
    %4202 = vmatpush1.msra.mxu0 0.0
    %4203 = vmatprep.subr.mxu0 0.0
    %4204 = vmatpush1.msra.mxu0 0.0
    %4205 = vmatprep.subr.mxu0 0.0
    %4206 = vmatpush1.msra.mxu0 0.0
    %4207 = vmatprep.subr.mxu0 0.0
    %4208 = vmatpush1.msra.mxu0 0.0
    %4209 = vmatprep.subr.mxu0 0.0
    %4210 = vmatpush1.msra.mxu0 0.0
    %4211 = vmatprep.subr.mxu0 0.0
    %4212 = vmatpush1.msra.mxu0 0.0
    %4213 = vmatprep.subr.mxu0 0.0
    %4214 = vmatpush1.msra.mxu0 0.0
    %4215 = vmatprep.subr.mxu0 0.0
    %4216 = vmatpush1.msra.mxu0 0.0
    %4217 = vmatprep.subr.mxu0 0.0
    %4218 = vmatpush1.msra.mxu0 0.0
    %4219 = vmatprep.subr.mxu0 0.0
    %4220 = vmatpush1.msra.mxu0 0.0
    %4221 = vmatprep.subr.mxu0 0.0
    %4222 = vmatpush1.msra.mxu0 0.0
    %4223 = vmatprep.subr.mxu0 0.0
    %4224 = vmatpush1.msra.mxu0 0.0
    %4225 = vmatprep.subr.mxu0 0.0
    %4226 = vmatpush1.msra.mxu0 0.0
    %4227 = vmatprep.subr.mxu0 0.0
    %4228 = vmatpush1.msra.mxu0 0.0
    %4229 = vmatprep.subr.mxu0 0.0
    %4230 = vmatpush1.msra.mxu0 0.0
    %4231 = vmatprep.subr.mxu0 0.0
    %4232 = vmatpush1.msra.mxu0 0.0
    %4233 = vmatprep.subr.mxu0 0.0
    %4234 = vmatpush1.msra.mxu0 0.0
    %4235 = vmatprep.subr.mxu0 0.0
    %4236 = vmatpush1.msra.mxu0 0.0
    %4237 = vmatprep.subr.mxu0 0.0
    %4238 = vmatpush1.msra.mxu0 0.0
    %4239 = vmatprep.subr.mxu0 0.0
    %4240 = vmatpush1.msra.mxu0 0.0
    %4241 = vmatprep.subr.mxu0 0.0
    %4242 = vmatpush1.msra.mxu0 0.0
    %4243 = vmatprep.subr.mxu0 0.0
    %4244 = vmatpush1.msra.mxu0 0.0
    %4245 = vmatprep.mubr.f32.mxu0 0.0
    %4246 = vmatmul.mubr.f32.gmra.mrb[0].mxu0 %v4045
    %v4247 = vpop.f32.mrb[0].mxu0
    %v4248 = vadd.f32 %v4135, %v4247
    %v4249 = vpop.f32.mrb[0].mxu0
    %v4250 = vadd.f32 %v4137, %v4249
    %4251 = vmatprep.mubr.f32.mxu0 0.0
    %4252 = vmatmul.mubr.f32.gmra.mrb[0].mxu0 %v4048
    %v4253 = vpop.f32.mrb[0].mxu0
    %v4254 = vadd.f32 %v4141, %v4253
    %v4255 = vpop.f32.mrb[0].mxu0
    %v4256 = vadd.f32 %v4143, %v4255
    %4257 = vmatprep.mubr.f32.mxu0 0.0
    %4258 = vmatmul.mubr.f32.gmra.mrb[0].mxu0 %v4051
    %v4259 = vpop.f32.mrb[0].mxu0
    %v4260 = vadd.f32 %v4147, %v4259
    %v4261 = vpop.f32.mrb[0].mxu0
    %v4262 = vadd.f32 %v4149, %v4261
    %4263 = vmatprep.mubr.f32.mxu0 0.0
    %4264 = vmatmul.mubr.f32.gmra.mrb[0].mxu0 %v4054
    %v4265 = vpop.f32.mrb[0].mxu0
    %v4266 = vadd.f32 %v4153, %v4265
    %v4267 = vpop.f32.mrb[0].mxu0
    %v4268 = vadd.f32 %v4155, %v4267
    %4269 = vmatprep.mubr.f32.mxu0 0.0
    %4270 = vmatmul.mubr.f32.gmra.mrb[0].mxu0 %v4057
    %v4271 = vpop.f32.mrb[0].mxu0
    %v4272 = vadd.f32 %v4159, %v4271
    %v4273 = vpop.f32.mrb[0].mxu0
    %v4274 = vadd.f32 %v4161, %v4273
    %4275 = vmatprep.mubr.f32.mxu0 0.0
    %4276 = vmatmul.mubr.f32.gmra.mrb[0].mxu0 %v4060
    %v4277 = vpop.f32.mrb[0].mxu0
    %v4278 = vadd.f32 %v4165, %v4277
    %v4279 = vpop.f32.mrb[0].mxu0
    %v4280 = vadd.f32 %v4167, %v4279
    %4281 = vmatprep.mubr.f32.mxu0 0.0
    %4282 = vmatmul.mubr.f32.gmra.mrb[0].mxu0 %v4063
    %v4283 = vpop.f32.mrb[0].mxu0
    %v4284 = vadd.f32 %v4171, %v4283
    %v4285 = vpop.f32.mrb[0].mxu0
    %v4286 = vadd.f32 %v4173, %v4285
    %4287 = vmatprep.mubr.f32.mxu0 0.0
    %4288 = vmatmul.mubr.f32.gmra.mrb[0].mxu0 %v4066
    %v4289 = vpop.f32.mrb[0].mxu0
    %v4290 = vadd.f32 %v4177, %v4289
    %v4291 = vpop.f32.mrb[0].mxu0
    %v4292 = vadd.f32 %v4179, %v4291
    %4293 = vdwg.mxu0
    %4294 = vmatprep.subr.mxu0 %v3506
    %4295 = vmatpush1.msra.mxu0 %v3505
    %4296 = vmatprep.subr.mxu0 %v3519
    %4297 = vmatpush1.msra.mxu0 %v3518
    %4298 = vmatprep.subr.mxu0 %v3532
    %4299 = vmatpush1.msra.mxu0 %v3531
    %4300 = vmatprep.subr.mxu0 %v3545
    %4301 = vmatpush1.msra.mxu0 %v3544
    %4302 = vmatprep.subr.mxu0 %v3558
    %4303 = vmatpush1.msra.mxu0 %v3557
    %4304 = vmatprep.subr.mxu0 %v3571
    %4305 = vmatpush1.msra.mxu0 %v3570
    %4306 = vmatprep.subr.mxu0 %v3584
    %4307 = vmatpush1.msra.mxu0 %v3583
    %4308 = vmatprep.subr.mxu0 %v3597
    %4309 = vmatpush1.msra.mxu0 %v3596
    %4310 = vmatprep.subr.mxu0 %v3610
    %4311 = vmatpush1.msra.mxu0 %v3609
    %4312 = vmatprep.subr.mxu0 %v3623
    %4313 = vmatpush1.msra.mxu0 %v3622
    %4314 = vmatprep.subr.mxu0 %v3636
    %4315 = vmatpush1.msra.mxu0 %v3635
    %4316 = vmatprep.subr.mxu0 %v3649
    %4317 = vmatpush1.msra.mxu0 %v3648
    %4318 = vmatprep.subr.mxu0 %v3662
    %4319 = vmatpush1.msra.mxu0 %v3661
    %4320 = vmatprep.subr.mxu0 %v3675
    %4321 = vmatpush1.msra.mxu0 %v3674
    %4322 = vmatprep.subr.mxu0 %v3688
    %4323 = vmatpush1.msra.mxu0 %v3687
    %4324 = vmatprep.subr.mxu0 %v3701
    %4325 = vmatpush1.msra.mxu0 %v3700
    %4326 = vmatprep.subr.mxu0 %v3714
    %4327 = vmatpush1.msra.mxu0 %v3713
    %4328 = vmatprep.subr.mxu0 %v3727
    %4329 = vmatpush1.msra.mxu0 %v3726
    %4330 = vmatprep.subr.mxu0 %v3740
    %4331 = vmatpush1.msra.mxu0 %v3739
    %4332 = vmatprep.subr.mxu0 %v3753
    %4333 = vmatpush1.msra.mxu0 %v3752
    %4334 = vmatprep.subr.mxu0 %v3766
    %4335 = vmatpush1.msra.mxu0 %v3765
    %4336 = vmatprep.subr.mxu0 %v3779
    %4337 = vmatpush1.msra.mxu0 %v3778
    %4338 = vmatprep.subr.mxu0 %v3792
    %4339 = vmatpush1.msra.mxu0 %v3791
    %4340 = vmatprep.subr.mxu0 %v3805
    %4341 = vmatpush1.msra.mxu0 %v3804
    %4342 = vmatprep.subr.mxu0 %v3818
    %4343 = vmatpush1.msra.mxu0 %v3817
    %4344 = vmatprep.subr.mxu0 %v3831
    %4345 = vmatpush1.msra.mxu0 %v3830
    %4346 = vmatprep.subr.mxu0 %v3844
    %4347 = vmatpush1.msra.mxu0 %v3843
    %4348 = vmatprep.subr.mxu0 %v3857
    %4349 = vmatpush1.msra.mxu0 %v3856
    %4350 = vmatprep.subr.mxu0 %v3870
    %4351 = vmatpush1.msra.mxu0 %v3869
    %4352 = vmatprep.subr.mxu0 %v3883
    %4353 = vmatpush1.msra.mxu0 %v3882
    %4354 = vmatprep.subr.mxu0 %v3896
    %4355 = vmatpush1.msra.mxu0 %v3895
    %4356 = vmatprep.subr.mxu0 %v3909
    %4357 = vmatpush1.msra.mxu0 %v3908
    %4358 = vmatprep.mubr.f32.mxu0 %v3972
    %4359 = vmatmul.mubr.f32.gmra.mrb[0].mxu0 %v3971
    %v4360 = vpop.f32.mrb[0].mxu0
    %v4361 = vadd.f32 %v4006, %v4360
    %v4362 = vpop.f32.mrb[0].mxu0
    %v4363 = vadd.f32 %v4006, %v4362
    %4364 = vmatprep.mubr.f32.mxu0 %v3975
    %4365 = vmatmul.mubr.f32.gmra.mrb[0].mxu0 %v3974
    %v4366 = vpop.f32.mrb[0].mxu0
    %v4367 = vadd.f32 %v4011, %v4366
    %v4368 = vpop.f32.mrb[0].mxu0
    %v4369 = vadd.f32 %v4011, %v4368
    %4370 = vmatprep.mubr.f32.mxu0 %v3978
    %4371 = vmatmul.mubr.f32.gmra.mrb[0].mxu0 %v3977
    %v4372 = vpop.f32.mrb[0].mxu0
    %v4373 = vadd.f32 %v4016, %v4372
    %v4374 = vpop.f32.mrb[0].mxu0
    %v4375 = vadd.f32 %v4016, %v4374
    %4376 = vmatprep.mubr.f32.mxu0 %v3981
    %4377 = vmatmul.mubr.f32.gmra.mrb[0].mxu0 %v3980
    %v4378 = vpop.f32.mrb[0].mxu0
    %v4379 = vadd.f32 %v4021, %v4378
    %v4380 = vpop.f32.mrb[0].mxu0
    %v4381 = vadd.f32 %v4021, %v4380
    %4382 = vmatprep.mubr.f32.mxu0 %v3984
    %4383 = vmatmul.mubr.f32.gmra.mrb[0].mxu0 %v3983
    %v4384 = vpop.f32.mrb[0].mxu0
    %v4385 = vadd.f32 %v4026, %v4384
    %v4386 = vpop.f32.mrb[0].mxu0
    %v4387 = vadd.f32 %v4026, %v4386
    %4388 = vmatprep.mubr.f32.mxu0 %v3987
    %4389 = vmatmul.mubr.f32.gmra.mrb[0].mxu0 %v3986
    %v4390 = vpop.f32.mrb[0].mxu0
    %v4391 = vadd.f32 %v4031, %v4390
    %v4392 = vpop.f32.mrb[0].mxu0
    %v4393 = vadd.f32 %v4031, %v4392
    %4394 = vmatprep.mubr.f32.mxu0 %v3990
    %4395 = vmatmul.mubr.f32.gmra.mrb[0].mxu0 %v3989
    %v4396 = vpop.f32.mrb[0].mxu0
    %v4397 = vadd.f32 %v4036, %v4396
    %v4398 = vpop.f32.mrb[0].mxu0
    %v4399 = vadd.f32 %v4036, %v4398
    %4400 = vmatprep.mubr.f32.mxu0 %v3993
    %4401 = vmatmul.mubr.f32.gmra.mrb[0].mxu0 %v3992
    %v4402 = vpop.f32.mrb[0].mxu0
    %v4403 = vadd.f32 %v4041, %v4402
    %v4404 = vpop.f32.mrb[0].mxu0
    %v4405 = vadd.f32 %v4041, %v4404
    %4406 = vdwg.mxu0
    %4407 = vmatprep.subr.mxu0 %v3922
    %4408 = vmatpush1.msra.mxu0 %v3921
    %4409 = vmatprep.subr.mxu0 %v3935
    %4410 = vmatpush1.msra.mxu0 %v3934
    %4411 = vmatprep.subr.mxu0 %v3948
    %4412 = vmatpush1.msra.mxu0 %v3947
    %4413 = vmatprep.subr.mxu0 %v3961
    %4414 = vmatpush1.msra.mxu0 %v3960
    %4415 = vmatprep.subr.mxu0 0.0
    %4416 = vmatpush1.msra.mxu0 0.0
    %4417 = vmatprep.subr.mxu0 0.0
    %4418 = vmatpush1.msra.mxu0 0.0
    %4419 = vmatprep.subr.mxu0 0.0
    %4420 = vmatpush1.msra.mxu0 0.0
    %4421 = vmatprep.subr.mxu0 0.0
    %4422 = vmatpush1.msra.mxu0 0.0
    %4423 = vmatprep.subr.mxu0 0.0
    %4424 = vmatpush1.msra.mxu0 0.0
    %4425 = vmatprep.subr.mxu0 0.0
    %4426 = vmatpush1.msra.mxu0 0.0
    %4427 = vmatprep.subr.mxu0 0.0
    %4428 = vmatpush1.msra.mxu0 0.0
    %4429 = vmatprep.subr.mxu0 0.0
    %4430 = vmatpush1.msra.mxu0 0.0
    %4431 = vmatprep.subr.mxu0 0.0
    %4432 = vmatpush1.msra.mxu0 0.0
    %4433 = vmatprep.subr.mxu0 0.0
    %4434 = vmatpush1.msra.mxu0 0.0
    %4435 = vmatprep.subr.mxu0 0.0
    %4436 = vmatpush1.msra.mxu0 0.0
    %4437 = vmatprep.subr.mxu0 0.0
    %4438 = vmatpush1.msra.mxu0 0.0
    %4439 = vmatprep.subr.mxu0 0.0
    %4440 = vmatpush1.msra.mxu0 0.0
    %4441 = vmatprep.subr.mxu0 0.0
    %4442 = vmatpush1.msra.mxu0 0.0
    %4443 = vmatprep.subr.mxu0 0.0
    %4444 = vmatpush1.msra.mxu0 0.0
    %4445 = vmatprep.subr.mxu0 0.0
    %4446 = vmatpush1.msra.mxu0 0.0
    %4447 = vmatprep.subr.mxu0 0.0
    %4448 = vmatpush1.msra.mxu0 0.0
    %4449 = vmatprep.subr.mxu0 0.0
    %4450 = vmatpush1.msra.mxu0 0.0
    %4451 = vmatprep.subr.mxu0 0.0
    %4452 = vmatpush1.msra.mxu0 0.0
    %4453 = vmatprep.subr.mxu0 0.0
    %4454 = vmatpush1.msra.mxu0 0.0
    %4455 = vmatprep.subr.mxu0 0.0
    %4456 = vmatpush1.msra.mxu0 0.0
    %4457 = vmatprep.subr.mxu0 0.0
    %4458 = vmatpush1.msra.mxu0 0.0
    %4459 = vmatprep.subr.mxu0 0.0
    %4460 = vmatpush1.msra.mxu0 0.0
    %4461 = vmatprep.subr.mxu0 0.0
    %4462 = vmatpush1.msra.mxu0 0.0
    %4463 = vmatprep.subr.mxu0 0.0
    %4464 = vmatpush1.msra.mxu0 0.0
    %4465 = vmatprep.subr.mxu0 0.0
    %4466 = vmatpush1.msra.mxu0 0.0
    %4467 = vmatprep.subr.mxu0 0.0
    %4468 = vmatpush1.msra.mxu0 0.0
    %4469 = vmatprep.subr.mxu0 0.0
    %4470 = vmatpush1.msra.mxu0 0.0
    %4471 = vmatprep.mubr.f32.mxu0 0.0
    %4472 = vmatmul.mubr.f32.gmra.mrb[0].mxu0 %v4045
    %v4473 = vpop.f32.mrb[0].mxu0
    %v4474 = vadd.f32 %v4361, %v4473
    %v4475 = vpop.f32.mrb[0].mxu0
    %v4476 = vadd.f32 %v4363, %v4475
    %4477 = vmatprep.mubr.f32.mxu0 0.0
    %4478 = vmatmul.mubr.f32.gmra.mrb[0].mxu0 %v4048
    %v4479 = vpop.f32.mrb[0].mxu0
    %v4480 = vadd.f32 %v4367, %v4479
    %v4481 = vpop.f32.mrb[0].mxu0
    %v4482 = vadd.f32 %v4369, %v4481
    %4483 = vmatprep.mubr.f32.mxu0 0.0
    %4484 = vmatmul.mubr.f32.gmra.mrb[0].mxu0 %v4051
    %v4485 = vpop.f32.mrb[0].mxu0
    %v4486 = vadd.f32 %v4373, %v4485
    %v4487 = vpop.f32.mrb[0].mxu0
    %v4488 = vadd.f32 %v4375, %v4487
    %4489 = vmatprep.mubr.f32.mxu0 0.0
    %4490 = vmatmul.mubr.f32.gmra.mrb[0].mxu0 %v4054
    %v4491 = vpop.f32.mrb[0].mxu0
    %v4492 = vadd.f32 %v4379, %v4491
    %v4493 = vpop.f32.mrb[0].mxu0
    %v4494 = vadd.f32 %v4381, %v4493
    %4495 = vmatprep.mubr.f32.mxu0 0.0
    %4496 = vmatmul.mubr.f32.gmra.mrb[0].mxu0 %v4057
    %v4497 = vpop.f32.mrb[0].mxu0
    %v4498 = vadd.f32 %v4385, %v4497
    %v4499 = vpop.f32.mrb[0].mxu0
    %v4500 = vadd.f32 %v4387, %v4499
    %4501 = vmatprep.mubr.f32.mxu0 0.0
    %4502 = vmatmul.mubr.f32.gmra.mrb[0].mxu0 %v4060
    %v4503 = vpop.f32.mrb[0].mxu0
    %v4504 = vadd.f32 %v4391, %v4503
    %v4505 = vpop.f32.mrb[0].mxu0
    %v4506 = vadd.f32 %v4393, %v4505
    %4507 = vmatprep.mubr.f32.mxu0 0.0
    %4508 = vmatmul.mubr.f32.gmra.mrb[0].mxu0 %v4063
    %v4509 = vpop.f32.mrb[0].mxu0
    %v4510 = vadd.f32 %v4397, %v4509
    %v4511 = vpop.f32.mrb[0].mxu0
    %v4512 = vadd.f32 %v4399, %v4511
    %4513 = vmatprep.mubr.f32.mxu0 0.0
    %4514 = vmatmul.mubr.f32.gmra.mrb[0].mxu0 %v4066
    %v4515 = vpop.f32.mrb[0].mxu0
    %v4516 = vadd.f32 %v4403, %v4515
    %v4517 = vpop.f32.mrb[0].mxu0
    %v4518 = vadd.f32 %v4405, %v4517
    %4519 = vdwg.mxu0
    %4520 = vmatprep.subr.mxu0 %v3508
    %4521 = vmatpush1.msra.mxu0 %v3507
    %4522 = vmatprep.subr.mxu0 %v3521
    %4523 = vmatpush1.msra.mxu0 %v3520
    %4524 = vmatprep.subr.mxu0 %v3534
    %4525 = vmatpush1.msra.mxu0 %v3533
    %4526 = vmatprep.subr.mxu0 %v3547
    %4527 = vmatpush1.msra.mxu0 %v3546
    %4528 = vmatprep.subr.mxu0 %v3560
    %4529 = vmatpush1.msra.mxu0 %v3559
    %4530 = vmatprep.subr.mxu0 %v3573
    %4531 = vmatpush1.msra.mxu0 %v3572
    %4532 = vmatprep.subr.mxu0 %v3586
    %4533 = vmatpush1.msra.mxu0 %v3585
    %4534 = vmatprep.subr.mxu0 %v3599
    %4535 = vmatpush1.msra.mxu0 %v3598
    %4536 = vmatprep.subr.mxu0 %v3612
    %4537 = vmatpush1.msra.mxu0 %v3611
    %4538 = vmatprep.subr.mxu0 %v3625
    %4539 = vmatpush1.msra.mxu0 %v3624
    %4540 = vmatprep.subr.mxu0 %v3638
    %4541 = vmatpush1.msra.mxu0 %v3637
    %4542 = vmatprep.subr.mxu0 %v3651
    %4543 = vmatpush1.msra.mxu0 %v3650
    %4544 = vmatprep.subr.mxu0 %v3664
    %4545 = vmatpush1.msra.mxu0 %v3663
    %4546 = vmatprep.subr.mxu0 %v3677
    %4547 = vmatpush1.msra.mxu0 %v3676
    %4548 = vmatprep.subr.mxu0 %v3690
    %4549 = vmatpush1.msra.mxu0 %v3689
    %4550 = vmatprep.subr.mxu0 %v3703
    %4551 = vmatpush1.msra.mxu0 %v3702
    %4552 = vmatprep.subr.mxu0 %v3716
    %4553 = vmatpush1.msra.mxu0 %v3715
    %4554 = vmatprep.subr.mxu0 %v3729
    %4555 = vmatpush1.msra.mxu0 %v3728
    %4556 = vmatprep.subr.mxu0 %v3742
    %4557 = vmatpush1.msra.mxu0 %v3741
    %4558 = vmatprep.subr.mxu0 %v3755
    %4559 = vmatpush1.msra.mxu0 %v3754
    %4560 = vmatprep.subr.mxu0 %v3768
    %4561 = vmatpush1.msra.mxu0 %v3767
    %4562 = vmatprep.subr.mxu0 %v3781
    %4563 = vmatpush1.msra.mxu0 %v3780
    %4564 = vmatprep.subr.mxu0 %v3794
    %4565 = vmatpush1.msra.mxu0 %v3793
    %4566 = vmatprep.subr.mxu0 %v3807
    %4567 = vmatpush1.msra.mxu0 %v3806
    %4568 = vmatprep.subr.mxu0 %v3820
    %4569 = vmatpush1.msra.mxu0 %v3819
    %4570 = vmatprep.subr.mxu0 %v3833
    %4571 = vmatpush1.msra.mxu0 %v3832
    %4572 = vmatprep.subr.mxu0 %v3846
    %4573 = vmatpush1.msra.mxu0 %v3845
    %4574 = vmatprep.subr.mxu0 %v3859
    %4575 = vmatpush1.msra.mxu0 %v3858
    %4576 = vmatprep.subr.mxu0 %v3872
    %4577 = vmatpush1.msra.mxu0 %v3871
    %4578 = vmatprep.subr.mxu0 %v3885
    %4579 = vmatpush1.msra.mxu0 %v3884
    %4580 = vmatprep.subr.mxu0 %v3898
    %4581 = vmatpush1.msra.mxu0 %v3897
    %4582 = vmatprep.subr.mxu0 %v3911
    %4583 = vmatpush1.msra.mxu0 %v3910
    %4584 = vmatprep.mubr.f32.mxu0 %v3972
    %4585 = vmatmul.mubr.f32.gmra.mrb[0].mxu0 %v3971
    %v4586 = vpop.f32.mrb[0].mxu0
    %v4587 = vadd.f32 %v4006, %v4586
    %v4588 = vpop.f32.mrb[0].mxu0
    %v4589 = vadd.f32 %v4006, %v4588
    %4590 = vmatprep.mubr.f32.mxu0 %v3975
    %4591 = vmatmul.mubr.f32.gmra.mrb[0].mxu0 %v3974
    %v4592 = vpop.f32.mrb[0].mxu0
    %v4593 = vadd.f32 %v4011, %v4592
    %v4594 = vpop.f32.mrb[0].mxu0
    %v4595 = vadd.f32 %v4011, %v4594
    %4596 = vmatprep.mubr.f32.mxu0 %v3978
    %4597 = vmatmul.mubr.f32.gmra.mrb[0].mxu0 %v3977
    %v4598 = vpop.f32.mrb[0].mxu0
    %v4599 = vadd.f32 %v4016, %v4598
    %v4600 = vpop.f32.mrb[0].mxu0
    %v4601 = vadd.f32 %v4016, %v4600
    %4602 = vmatprep.mubr.f32.mxu0 %v3981
    %4603 = vmatmul.mubr.f32.gmra.mrb[0].mxu0 %v3980
    %v4604 = vpop.f32.mrb[0].mxu0
    %v4605 = vadd.f32 %v4021, %v4604
    %v4606 = vpop.f32.mrb[0].mxu0
    %v4607 = vadd.f32 %v4021, %v4606
    %4608 = vmatprep.mubr.f32.mxu0 %v3984
    %4609 = vmatmul.mubr.f32.gmra.mrb[0].mxu0 %v3983
    %v4610 = vpop.f32.mrb[0].mxu0
    %v4611 = vadd.f32 %v4026, %v4610
    %v4612 = vpop.f32.mrb[0].mxu0
    %v4613 = vadd.f32 %v4026, %v4612
    %4614 = vmatprep.mubr.f32.mxu0 %v3987
    %4615 = vmatmul.mubr.f32.gmra.mrb[0].mxu0 %v3986
    %v4616 = vpop.f32.mrb[0].mxu0
    %v4617 = vadd.f32 %v4031, %v4616
    %v4618 = vpop.f32.mrb[0].mxu0
    %v4619 = vadd.f32 %v4031, %v4618
    %4620 = vmatprep.mubr.f32.mxu0 %v3990
    %4621 = vmatmul.mubr.f32.gmra.mrb[0].mxu0 %v3989
    %v4622 = vpop.f32.mrb[0].mxu0
    %v4623 = vadd.f32 %v4036, %v4622
    %v4624 = vpop.f32.mrb[0].mxu0
    %v4625 = vadd.f32 %v4036, %v4624
    %4626 = vmatprep.mubr.f32.mxu0 %v3993
    %4627 = vmatmul.mubr.f32.gmra.mrb[0].mxu0 %v3992
    %v4628 = vpop.f32.mrb[0].mxu0
    %v4629 = vadd.f32 %v4041, %v4628
    %v4630 = vpop.f32.mrb[0].mxu0
    %v4631 = vadd.f32 %v4041, %v4630
    %4632 = vdwg.mxu0
    %4633 = vmatprep.subr.mxu0 %v3924
    %4634 = vmatpush1.msra.mxu0 %v3923
    %4635 = vmatprep.subr.mxu0 %v3937
    %4636 = vmatpush1.msra.mxu0 %v3936
    %4637 = vmatprep.subr.mxu0 %v3950
    %4638 = vmatpush1.msra.mxu0 %v3949
    %4639 = vmatprep.subr.mxu0 %v3963
    %4640 = vmatpush1.msra.mxu0 %v3962
    %4641 = vmatprep.subr.mxu0 0.0
    %4642 = vmatpush1.msra.mxu0 0.0
    %4643 = vmatprep.subr.mxu0 0.0
    %4644 = vmatpush1.msra.mxu0 0.0
    %4645 = vmatprep.subr.mxu0 0.0
    %4646 = vmatpush1.msra.mxu0 0.0
    %4647 = vmatprep.subr.mxu0 0.0
    %4648 = vmatpush1.msra.mxu0 0.0
    %4649 = vmatprep.subr.mxu0 0.0
    %4650 = vmatpush1.msra.mxu0 0.0
    %4651 = vmatprep.subr.mxu0 0.0
    %4652 = vmatpush1.msra.mxu0 0.0
    %4653 = vmatprep.subr.mxu0 0.0
    %4654 = vmatpush1.msra.mxu0 0.0
    %4655 = vmatprep.subr.mxu0 0.0
    %4656 = vmatpush1.msra.mxu0 0.0
    %4657 = vmatprep.subr.mxu0 0.0
    %4658 = vmatpush1.msra.mxu0 0.0
    %4659 = vmatprep.subr.mxu0 0.0
    %4660 = vmatpush1.msra.mxu0 0.0
    %4661 = vmatprep.subr.mxu0 0.0
    %4662 = vmatpush1.msra.mxu0 0.0
    %4663 = vmatprep.subr.mxu0 0.0
    %4664 = vmatpush1.msra.mxu0 0.0
    %4665 = vmatprep.subr.mxu0 0.0
    %4666 = vmatpush1.msra.mxu0 0.0
    %4667 = vmatprep.subr.mxu0 0.0
    %4668 = vmatpush1.msra.mxu0 0.0
    %4669 = vmatprep.subr.mxu0 0.0
    %4670 = vmatpush1.msra.mxu0 0.0
    %4671 = vmatprep.subr.mxu0 0.0
    %4672 = vmatpush1.msra.mxu0 0.0
    %4673 = vmatprep.subr.mxu0 0.0
    %4674 = vmatpush1.msra.mxu0 0.0
    %4675 = vmatprep.subr.mxu0 0.0
    %4676 = vmatpush1.msra.mxu0 0.0
    %4677 = vmatprep.subr.mxu0 0.0
    %4678 = vmatpush1.msra.mxu0 0.0
    %4679 = vmatprep.subr.mxu0 0.0
    %4680 = vmatpush1.msra.mxu0 0.0
    %4681 = vmatprep.subr.mxu0 0.0
    %4682 = vmatpush1.msra.mxu0 0.0
    %4683 = vmatprep.subr.mxu0 0.0
    %4684 = vmatpush1.msra.mxu0 0.0
    %4685 = vmatprep.subr.mxu0 0.0
    %4686 = vmatpush1.msra.mxu0 0.0
    %4687 = vmatprep.subr.mxu0 0.0
    %4688 = vmatpush1.msra.mxu0 0.0
    %4689 = vmatprep.subr.mxu0 0.0
    %4690 = vmatpush1.msra.mxu0 0.0
    %4691 = vmatprep.subr.mxu0 0.0
    %4692 = vmatpush1.msra.mxu0 0.0
    %4693 = vmatprep.subr.mxu0 0.0
    %4694 = vmatpush1.msra.mxu0 0.0
    %4695 = vmatprep.subr.mxu0 0.0
    %4696 = vmatpush1.msra.mxu0 0.0
    %4697 = vmatprep.mubr.f32.mxu0 0.0
    %4698 = vmatmul.mubr.f32.gmra.mrb[0].mxu0 %v4045
    %v4699 = vpop.f32.mrb[0].mxu0
    %v4700 = vadd.f32 %v4587, %v4699
    %v4701 = vpop.f32.mrb[0].mxu0
    %v4702 = vadd.f32 %v4589, %v4701
    %4703 = vmatprep.mubr.f32.mxu0 0.0
    %4704 = vmatmul.mubr.f32.gmra.mrb[0].mxu0 %v4048
    %v4705 = vpop.f32.mrb[0].mxu0
    %v4706 = vadd.f32 %v4593, %v4705
    %v4707 = vpop.f32.mrb[0].mxu0
    %v4708 = vadd.f32 %v4595, %v4707
    %4709 = vmatprep.mubr.f32.mxu0 0.0
    %4710 = vmatmul.mubr.f32.gmra.mrb[0].mxu0 %v4051
    %v4711 = vpop.f32.mrb[0].mxu0
    %v4712 = vadd.f32 %v4599, %v4711
    %v4713 = vpop.f32.mrb[0].mxu0
    %v4714 = vadd.f32 %v4601, %v4713
    %4715 = vmatprep.mubr.f32.mxu0 0.0
    %4716 = vmatmul.mubr.f32.gmra.mrb[0].mxu0 %v4054
    %v4717 = vpop.f32.mrb[0].mxu0
    %v4718 = vadd.f32 %v4605, %v4717
    %v4719 = vpop.f32.mrb[0].mxu0
    %v4720 = vadd.f32 %v4607, %v4719
    %4721 = vmatprep.mubr.f32.mxu0 0.0
    %4722 = vmatmul.mubr.f32.gmra.mrb[0].mxu0 %v4057
    %v4723 = vpop.f32.mrb[0].mxu0
    %v4724 = vadd.f32 %v4611, %v4723
    %v4725 = vpop.f32.mrb[0].mxu0
    %v4726 = vadd.f32 %v4613, %v4725
    %4727 = vmatprep.mubr.f32.mxu0 0.0
    %4728 = vmatmul.mubr.f32.gmra.mrb[0].mxu0 %v4060
    %v4729 = vpop.f32.mrb[0].mxu0
    %v4730 = vadd.f32 %v4617, %v4729
    %v4731 = vpop.f32.mrb[0].mxu0
    %v4732 = vadd.f32 %v4619, %v4731
    %4733 = vmatprep.mubr.f32.mxu0 0.0
    %4734 = vmatmul.mubr.f32.gmra.mrb[0].mxu0 %v4063
    %v4735 = vpop.f32.mrb[0].mxu0
    %v4736 = vadd.f32 %v4623, %v4735
    %v4737 = vpop.f32.mrb[0].mxu0
    %v4738 = vadd.f32 %v4625, %v4737
    %4739 = vmatprep.mubr.f32.mxu0 0.0
    %4740 = vmatmul.mubr.f32.gmra.mrb[0].mxu0 %v4066
    %v4741 = vpop.f32.mrb[0].mxu0
    %v4742 = vadd.f32 %v4629, %v4741
    %v4743 = vpop.f32.mrb[0].mxu0
    %v4744 = vadd.f32 %v4631, %v4743
    %4745 = vdwg.mxu0
    %4746 = vmatprep.subr.mxu0 %v3510
    %4747 = vmatpush1.msra.mxu0 %v3509
    %4748 = vmatprep.subr.mxu0 %v3523
    %4749 = vmatpush1.msra.mxu0 %v3522
    %4750 = vmatprep.subr.mxu0 %v3536
    %4751 = vmatpush1.msra.mxu0 %v3535
    %4752 = vmatprep.subr.mxu0 %v3549
    %4753 = vmatpush1.msra.mxu0 %v3548
    %4754 = vmatprep.subr.mxu0 %v3562
    %4755 = vmatpush1.msra.mxu0 %v3561
    %4756 = vmatprep.subr.mxu0 %v3575
    %4757 = vmatpush1.msra.mxu0 %v3574
    %4758 = vmatprep.subr.mxu0 %v3588
    %4759 = vmatpush1.msra.mxu0 %v3587
    %4760 = vmatprep.subr.mxu0 %v3601
    %4761 = vmatpush1.msra.mxu0 %v3600
    %4762 = vmatprep.subr.mxu0 %v3614
    %4763 = vmatpush1.msra.mxu0 %v3613
    %4764 = vmatprep.subr.mxu0 %v3627
    %4765 = vmatpush1.msra.mxu0 %v3626
    %4766 = vmatprep.subr.mxu0 %v3640
    %4767 = vmatpush1.msra.mxu0 %v3639
    %4768 = vmatprep.subr.mxu0 %v3653
    %4769 = vmatpush1.msra.mxu0 %v3652
    %4770 = vmatprep.subr.mxu0 %v3666
    %4771 = vmatpush1.msra.mxu0 %v3665
    %4772 = vmatprep.subr.mxu0 %v3679
    %4773 = vmatpush1.msra.mxu0 %v3678
    %4774 = vmatprep.subr.mxu0 %v3692
    %4775 = vmatpush1.msra.mxu0 %v3691
    %4776 = vmatprep.subr.mxu0 %v3705
    %4777 = vmatpush1.msra.mxu0 %v3704
    %4778 = vmatprep.subr.mxu0 %v3718
    %4779 = vmatpush1.msra.mxu0 %v3717
    %4780 = vmatprep.subr.mxu0 %v3731
    %4781 = vmatpush1.msra.mxu0 %v3730
    %4782 = vmatprep.subr.mxu0 %v3744
    %4783 = vmatpush1.msra.mxu0 %v3743
    %4784 = vmatprep.subr.mxu0 %v3757
    %4785 = vmatpush1.msra.mxu0 %v3756
    %4786 = vmatprep.subr.mxu0 %v3770
    %4787 = vmatpush1.msra.mxu0 %v3769
    %4788 = vmatprep.subr.mxu0 %v3783
    %4789 = vmatpush1.msra.mxu0 %v3782
    %4790 = vmatprep.subr.mxu0 %v3796
    %4791 = vmatpush1.msra.mxu0 %v3795
    %4792 = vmatprep.subr.mxu0 %v3809
    %4793 = vmatpush1.msra.mxu0 %v3808
    %4794 = vmatprep.subr.mxu0 %v3822
    %4795 = vmatpush1.msra.mxu0 %v3821
    %4796 = vmatprep.subr.mxu0 %v3835
    %4797 = vmatpush1.msra.mxu0 %v3834
    %4798 = vmatprep.subr.mxu0 %v3848
    %4799 = vmatpush1.msra.mxu0 %v3847
    %4800 = vmatprep.subr.mxu0 %v3861
    %4801 = vmatpush1.msra.mxu0 %v3860
    %4802 = vmatprep.subr.mxu0 %v3874
    %4803 = vmatpush1.msra.mxu0 %v3873
    %4804 = vmatprep.subr.mxu0 %v3887
    %4805 = vmatpush1.msra.mxu0 %v3886
    %4806 = vmatprep.subr.mxu0 %v3900
    %4807 = vmatpush1.msra.mxu0 %v3899
    %4808 = vmatprep.subr.mxu0 %v3913
    %4809 = vmatpush1.msra.mxu0 %v3912
    %4810 = vmatprep.mubr.f32.mxu0 %v3972
    %4811 = vmatmul.mubr.f32.gmra.mrb[0].mxu0 %v3971
    %v4812 = vpop.f32.mrb[0].mxu0
    %v4813 = vadd.f32 %v4006, %v4812
    %v4814 = vpop.f32.mrb[0].mxu0
    %v4815 = vadd.f32 %v4006, %v4814
    %4816 = vmatprep.mubr.f32.mxu0 %v3975
    %4817 = vmatmul.mubr.f32.gmra.mrb[0].mxu0 %v3974
    %v4818 = vpop.f32.mrb[0].mxu0
    %v4819 = vadd.f32 %v4011, %v4818
    %v4820 = vpop.f32.mrb[0].mxu0
    %v4821 = vadd.f32 %v4011, %v4820
    %4822 = vmatprep.mubr.f32.mxu0 %v3978
    %4823 = vmatmul.mubr.f32.gmra.mrb[0].mxu0 %v3977
    %v4824 = vpop.f32.mrb[0].mxu0
    %v4825 = vadd.f32 %v4016, %v4824
    %v4826 = vpop.f32.mrb[0].mxu0
    %v4827 = vadd.f32 %v4016, %v4826
    %4828 = vmatprep.mubr.f32.mxu0 %v3981
    %4829 = vmatmul.mubr.f32.gmra.mrb[0].mxu0 %v3980
    %v4830 = vpop.f32.mrb[0].mxu0
    %v4831 = vadd.f32 %v4021, %v4830
    %v4832 = vpop.f32.mrb[0].mxu0
    %v4833 = vadd.f32 %v4021, %v4832
    %4834 = vmatprep.mubr.f32.mxu0 %v3984
    %4835 = vmatmul.mubr.f32.gmra.mrb[0].mxu0 %v3983
    %v4836 = vpop.f32.mrb[0].mxu0
    %v4837 = vadd.f32 %v4026, %v4836
    %v4838 = vpop.f32.mrb[0].mxu0
    %v4839 = vadd.f32 %v4026, %v4838
    %4840 = vmatprep.mubr.f32.mxu0 %v3987
    %4841 = vmatmul.mubr.f32.gmra.mrb[0].mxu0 %v3986
    %v4842 = vpop.f32.mrb[0].mxu0
    %v4843 = vadd.f32 %v4031, %v4842
    %v4844 = vpop.f32.mrb[0].mxu0
    %v4845 = vadd.f32 %v4031, %v4844
    %4846 = vmatprep.mubr.f32.mxu0 %v3990
    %4847 = vmatmul.mubr.f32.gmra.mrb[0].mxu0 %v3989
    %v4848 = vpop.f32.mrb[0].mxu0
    %v4849 = vadd.f32 %v4036, %v4848
    %v4850 = vpop.f32.mrb[0].mxu0
    %v4851 = vadd.f32 %v4036, %v4850
    %4852 = vmatprep.mubr.f32.mxu0 %v3993
    %4853 = vmatmul.mubr.f32.gmra.mrb[0].mxu0 %v3992
    %v4854 = vpop.f32.mrb[0].mxu0
    %v4855 = vadd.f32 %v4041, %v4854
    %v4856 = vpop.f32.mrb[0].mxu0
    %v4857 = vadd.f32 %v4041, %v4856
    %4858 = vdwg.mxu0
    %4859 = vmatprep.subr.mxu0 %v3926
    %4860 = vmatpush1.msra.mxu0 %v3925
    %4861 = vmatprep.subr.mxu0 %v3939
    %4862 = vmatpush1.msra.mxu0 %v3938
    %4863 = vmatprep.subr.mxu0 %v3952
    %4864 = vmatpush1.msra.mxu0 %v3951
    %4865 = vmatprep.subr.mxu0 %v3965
    %4866 = vmatpush1.msra.mxu0 %v3964
    %4867 = vmatprep.subr.mxu0 0.0
    %4868 = vmatpush1.msra.mxu0 0.0
    %4869 = vmatprep.subr.mxu0 0.0
    %4870 = vmatpush1.msra.mxu0 0.0
    %4871 = vmatprep.subr.mxu0 0.0
    %4872 = vmatpush1.msra.mxu0 0.0
    %4873 = vmatprep.subr.mxu0 0.0
    %4874 = vmatpush1.msra.mxu0 0.0
    %4875 = vmatprep.subr.mxu0 0.0
    %4876 = vmatpush1.msra.mxu0 0.0
    %4877 = vmatprep.subr.mxu0 0.0
    %4878 = vmatpush1.msra.mxu0 0.0
    %4879 = vmatprep.subr.mxu0 0.0
    %4880 = vmatpush1.msra.mxu0 0.0
    %4881 = vmatprep.subr.mxu0 0.0
    %4882 = vmatpush1.msra.mxu0 0.0
    %4883 = vmatprep.subr.mxu0 0.0
    %4884 = vmatpush1.msra.mxu0 0.0
    %4885 = vmatprep.subr.mxu0 0.0
    %4886 = vmatpush1.msra.mxu0 0.0
    %4887 = vmatprep.subr.mxu0 0.0
    %4888 = vmatpush1.msra.mxu0 0.0
    %4889 = vmatprep.subr.mxu0 0.0
    %4890 = vmatpush1.msra.mxu0 0.0
    %4891 = vmatprep.subr.mxu0 0.0
    %4892 = vmatpush1.msra.mxu0 0.0
    %4893 = vmatprep.subr.mxu0 0.0
    %4894 = vmatpush1.msra.mxu0 0.0
    %4895 = vmatprep.subr.mxu0 0.0
    %4896 = vmatpush1.msra.mxu0 0.0
    %4897 = vmatprep.subr.mxu0 0.0
    %4898 = vmatpush1.msra.mxu0 0.0
    %4899 = vmatprep.subr.mxu0 0.0
    %4900 = vmatpush1.msra.mxu0 0.0
    %4901 = vmatprep.subr.mxu0 0.0
    %4902 = vmatpush1.msra.mxu0 0.0
    %4903 = vmatprep.subr.mxu0 0.0
    %4904 = vmatpush1.msra.mxu0 0.0
    %4905 = vmatprep.subr.mxu0 0.0
    %4906 = vmatpush1.msra.mxu0 0.0
    %4907 = vmatprep.subr.mxu0 0.0
    %4908 = vmatpush1.msra.mxu0 0.0
    %4909 = vmatprep.subr.mxu0 0.0
    %4910 = vmatpush1.msra.mxu0 0.0
    %4911 = vmatprep.subr.mxu0 0.0
    %4912 = vmatpush1.msra.mxu0 0.0
    %4913 = vmatprep.subr.mxu0 0.0
    %4914 = vmatpush1.msra.mxu0 0.0
    %4915 = vmatprep.subr.mxu0 0.0
    %4916 = vmatpush1.msra.mxu0 0.0
    %4917 = vmatprep.subr.mxu0 0.0
    %4918 = vmatpush1.msra.mxu0 0.0
    %4919 = vmatprep.subr.mxu0 0.0
    %4920 = vmatpush1.msra.mxu0 0.0
    %4921 = vmatprep.subr.mxu0 0.0
    %4922 = vmatpush1.msra.mxu0 0.0
    %4923 = vmatprep.mubr.f32.mxu0 0.0
    %4924 = vmatmul.mubr.f32.gmra.mrb[0].mxu0 %v4045
    %v4925 = vpop.f32.mrb[0].mxu0
    %v4926 = vadd.f32 %v4813, %v4925
    %v4927 = vpop.f32.mrb[0].mxu0
    %v4928 = vadd.f32 %v4815, %v4927
    %4929 = vmatprep.mubr.f32.mxu0 0.0
    %4930 = vmatmul.mubr.f32.gmra.mrb[0].mxu0 %v4048
    %v4931 = vpop.f32.mrb[0].mxu0
    %v4932 = vadd.f32 %v4819, %v4931
    %v4933 = vpop.f32.mrb[0].mxu0
    %v4934 = vadd.f32 %v4821, %v4933
    %4935 = vmatprep.mubr.f32.mxu0 0.0
    %4936 = vmatmul.mubr.f32.gmra.mrb[0].mxu0 %v4051
    %v4937 = vpop.f32.mrb[0].mxu0
    %v4938 = vadd.f32 %v4825, %v4937
    %v4939 = vpop.f32.mrb[0].mxu0
    %v4940 = vadd.f32 %v4827, %v4939
    %4941 = vmatprep.mubr.f32.mxu0 0.0
    %4942 = vmatmul.mubr.f32.gmra.mrb[0].mxu0 %v4054
    %v4943 = vpop.f32.mrb[0].mxu0
    %v4944 = vadd.f32 %v4831, %v4943
    %v4945 = vpop.f32.mrb[0].mxu0
    %v4946 = vadd.f32 %v4833, %v4945
    %4947 = vmatprep.mubr.f32.mxu0 0.0
    %4948 = vmatmul.mubr.f32.gmra.mrb[0].mxu0 %v4057
    %v4949 = vpop.f32.mrb[0].mxu0
    %v4950 = vadd.f32 %v4837, %v4949
    %v4951 = vpop.f32.mrb[0].mxu0
    %v4952 = vadd.f32 %v4839, %v4951
    %4953 = vmatprep.mubr.f32.mxu0 0.0
    %4954 = vmatmul.mubr.f32.gmra.mrb[0].mxu0 %v4060
    %v4955 = vpop.f32.mrb[0].mxu0
    %v4956 = vadd.f32 %v4843, %v4955
    %v4957 = vpop.f32.mrb[0].mxu0
    %v4958 = vadd.f32 %v4845, %v4957
    %4959 = vmatprep.mubr.f32.mxu0 0.0
    %4960 = vmatmul.mubr.f32.gmra.mrb[0].mxu0 %v4063
    %v4961 = vpop.f32.mrb[0].mxu0
    %v4962 = vadd.f32 %v4849, %v4961
    %v4963 = vpop.f32.mrb[0].mxu0
    %v4964 = vadd.f32 %v4851, %v4963
    %4965 = vmatprep.mubr.f32.mxu0 0.0
    %4966 = vmatmul.mubr.f32.gmra.mrb[0].mxu0 %v4066
    %v4967 = vpop.f32.mrb[0].mxu0
    %v4968 = vadd.f32 %v4855, %v4967
    %v4969 = vpop.f32.mrb[0].mxu0
    %v4970 = vadd.f32 %v4857, %v4969
    %4971 = vdwg.mxu0
    %4972 = vmatprep.subr.mxu0 %v3512
    %4973 = vmatpush1.msra.mxu0 %v3511
    %4974 = vmatprep.subr.mxu0 %v3525
    %4975 = vmatpush1.msra.mxu0 %v3524
    %4976 = vmatprep.subr.mxu0 %v3538
    %4977 = vmatpush1.msra.mxu0 %v3537
    %4978 = vmatprep.subr.mxu0 %v3551
    %4979 = vmatpush1.msra.mxu0 %v3550
    %4980 = vmatprep.subr.mxu0 %v3564
    %4981 = vmatpush1.msra.mxu0 %v3563
    %4982 = vmatprep.subr.mxu0 %v3577
    %4983 = vmatpush1.msra.mxu0 %v3576
    %4984 = vmatprep.subr.mxu0 %v3590
    %4985 = vmatpush1.msra.mxu0 %v3589
    %4986 = vmatprep.subr.mxu0 %v3603
    %4987 = vmatpush1.msra.mxu0 %v3602
    %4988 = vmatprep.subr.mxu0 %v3616
    %4989 = vmatpush1.msra.mxu0 %v3615
    %4990 = vmatprep.subr.mxu0 %v3629
    %4991 = vmatpush1.msra.mxu0 %v3628
    %4992 = vmatprep.subr.mxu0 %v3642
    %4993 = vmatpush1.msra.mxu0 %v3641
    %4994 = vmatprep.subr.mxu0 %v3655
    %4995 = vmatpush1.msra.mxu0 %v3654
    %4996 = vmatprep.subr.mxu0 %v3668
    %4997 = vmatpush1.msra.mxu0 %v3667
    %4998 = vmatprep.subr.mxu0 %v3681
    %4999 = vmatpush1.msra.mxu0 %v3680
    %5000 = vmatprep.subr.mxu0 %v3694
    %5001 = vmatpush1.msra.mxu0 %v3693
    %5002 = vmatprep.subr.mxu0 %v3707
    %5003 = vmatpush1.msra.mxu0 %v3706
    %5004 = vmatprep.subr.mxu0 %v3720
    %5005 = vmatpush1.msra.mxu0 %v3719
    %5006 = vmatprep.subr.mxu0 %v3733
    %5007 = vmatpush1.msra.mxu0 %v3732
    %5008 = vmatprep.subr.mxu0 %v3746
    %5009 = vmatpush1.msra.mxu0 %v3745
    %5010 = vmatprep.subr.mxu0 %v3759
    %5011 = vmatpush1.msra.mxu0 %v3758
    %5012 = vmatprep.subr.mxu0 %v3772
    %5013 = vmatpush1.msra.mxu0 %v3771
    %5014 = vmatprep.subr.mxu0 %v3785
    %5015 = vmatpush1.msra.mxu0 %v3784
    %5016 = vmatprep.subr.mxu0 %v3798
    %5017 = vmatpush1.msra.mxu0 %v3797
    %5018 = vmatprep.subr.mxu0 %v3811
    %5019 = vmatpush1.msra.mxu0 %v3810
    %5020 = vmatprep.subr.mxu0 %v3824
    %5021 = vmatpush1.msra.mxu0 %v3823
    %5022 = vmatprep.subr.mxu0 %v3837
    %5023 = vmatpush1.msra.mxu0 %v3836
    %5024 = vmatprep.subr.mxu0 %v3850
    %5025 = vmatpush1.msra.mxu0 %v3849
    %5026 = vmatprep.subr.mxu0 %v3863
    %5027 = vmatpush1.msra.mxu0 %v3862
    %5028 = vmatprep.subr.mxu0 %v3876
    %5029 = vmatpush1.msra.mxu0 %v3875
    %5030 = vmatprep.subr.mxu0 %v3889
    %5031 = vmatpush1.msra.mxu0 %v3888
    %5032 = vmatprep.subr.mxu0 %v3902
    %5033 = vmatpush1.msra.mxu0 %v3901
    %5034 = vmatprep.subr.mxu0 %v3915
    %5035 = vmatpush1.msra.mxu0 %v3914
    %5036 = vmatprep.mubr.f32.mxu0 %v3972
    %5037 = vmatmul.mubr.f32.gmra.mrb[0].mxu0 %v3971
    %v5038 = vpop.f32.mrb[0].mxu0
    %v5039 = vadd.f32 %v4006, %v5038
    %v5040 = vpop.f32.mrb[0].mxu0
    %v5041 = vadd.f32 %v4006, %v5040
    %5042 = vmatprep.mubr.f32.mxu0 %v3975
    %5043 = vmatmul.mubr.f32.gmra.mrb[0].mxu0 %v3974
    %v5044 = vpop.f32.mrb[0].mxu0
    %v5045 = vadd.f32 %v4011, %v5044
    %v5046 = vpop.f32.mrb[0].mxu0
    %v5047 = vadd.f32 %v4011, %v5046
    %5048 = vmatprep.mubr.f32.mxu0 %v3978
    %5049 = vmatmul.mubr.f32.gmra.mrb[0].mxu0 %v3977
    %v5050 = vpop.f32.mrb[0].mxu0
    %v5051 = vadd.f32 %v4016, %v5050
    %v5052 = vpop.f32.mrb[0].mxu0
    %v5053 = vadd.f32 %v4016, %v5052
    %5054 = vmatprep.mubr.f32.mxu0 %v3981
    %5055 = vmatmul.mubr.f32.gmra.mrb[0].mxu0 %v3980
    %v5056 = vpop.f32.mrb[0].mxu0
    %v5057 = vadd.f32 %v4021, %v5056
    %v5058 = vpop.f32.mrb[0].mxu0
    %v5059 = vadd.f32 %v4021, %v5058
    %5060 = vmatprep.mubr.f32.mxu0 %v3984
    %5061 = vmatmul.mubr.f32.gmra.mrb[0].mxu0 %v3983
    %v5062 = vpop.f32.mrb[0].mxu0
    %v5063 = vadd.f32 %v4026, %v5062
    %v5064 = vpop.f32.mrb[0].mxu0
    %v5065 = vadd.f32 %v4026, %v5064
    %5066 = vmatprep.mubr.f32.mxu0 %v3987
    %5067 = vmatmul.mubr.f32.gmra.mrb[0].mxu0 %v3986
    %v5068 = vpop.f32.mrb[0].mxu0
    %v5069 = vadd.f32 %v4031, %v5068
    %v5070 = vpop.f32.mrb[0].mxu0
    %v5071 = vadd.f32 %v4031, %v5070
    %5072 = vmatprep.mubr.f32.mxu0 %v3990
    %5073 = vmatmul.mubr.f32.gmra.mrb[0].mxu0 %v3989
    %v5074 = vpop.f32.mrb[0].mxu0
    %v5075 = vadd.f32 %v4036, %v5074
    %v5076 = vpop.f32.mrb[0].mxu0
    %v5077 = vadd.f32 %v4036, %v5076
    %5078 = vmatprep.mubr.f32.mxu0 %v3993
    %5079 = vmatmul.mubr.f32.gmra.mrb[0].mxu0 %v3992
    %v5080 = vpop.f32.mrb[0].mxu0
    %v5081 = vadd.f32 %v4041, %v5080
    %v5082 = vpop.f32.mrb[0].mxu0
    %v5083 = vadd.f32 %v4041, %v5082
    %5084 = vdwg.mxu0
    %5085 = vmatprep.subr.mxu0 %v3928
    %5086 = vmatpush1.msra.mxu0 %v3927
    %5087 = vmatprep.subr.mxu0 %v3941
    %5088 = vmatpush1.msra.mxu0 %v3940
    %5089 = vmatprep.subr.mxu0 %v3954
    %5090 = vmatpush1.msra.mxu0 %v3953
    %5091 = vmatprep.subr.mxu0 %v3967
    %5092 = vmatpush1.msra.mxu0 %v3966
    %5093 = vmatprep.subr.mxu0 0.0
    %5094 = vmatpush1.msra.mxu0 0.0
    %5095 = vmatprep.subr.mxu0 0.0
    %5096 = vmatpush1.msra.mxu0 0.0
    %5097 = vmatprep.subr.mxu0 0.0
    %5098 = vmatpush1.msra.mxu0 0.0
    %5099 = vmatprep.subr.mxu0 0.0
    %5100 = vmatpush1.msra.mxu0 0.0
    %5101 = vmatprep.subr.mxu0 0.0
    %5102 = vmatpush1.msra.mxu0 0.0
    %5103 = vmatprep.subr.mxu0 0.0
    %5104 = vmatpush1.msra.mxu0 0.0
    %5105 = vmatprep.subr.mxu0 0.0
    %5106 = vmatpush1.msra.mxu0 0.0
    %5107 = vmatprep.subr.mxu0 0.0
    %5108 = vmatpush1.msra.mxu0 0.0
    %5109 = vmatprep.subr.mxu0 0.0
    %5110 = vmatpush1.msra.mxu0 0.0
    %5111 = vmatprep.subr.mxu0 0.0
    %5112 = vmatpush1.msra.mxu0 0.0
    %5113 = vmatprep.subr.mxu0 0.0
    %5114 = vmatpush1.msra.mxu0 0.0
    %5115 = vmatprep.subr.mxu0 0.0
    %5116 = vmatpush1.msra.mxu0 0.0
    %5117 = vmatprep.subr.mxu0 0.0
    %5118 = vmatpush1.msra.mxu0 0.0
    %5119 = vmatprep.subr.mxu0 0.0
    %5120 = vmatpush1.msra.mxu0 0.0
    %5121 = vmatprep.subr.mxu0 0.0
    %5122 = vmatpush1.msra.mxu0 0.0
    %5123 = vmatprep.subr.mxu0 0.0
    %5124 = vmatpush1.msra.mxu0 0.0
    %5125 = vmatprep.subr.mxu0 0.0
    %5126 = vmatpush1.msra.mxu0 0.0
    %5127 = vmatprep.subr.mxu0 0.0
    %5128 = vmatpush1.msra.mxu0 0.0
    %5129 = vmatprep.subr.mxu0 0.0
    %5130 = vmatpush1.msra.mxu0 0.0
    %5131 = vmatprep.subr.mxu0 0.0
    %5132 = vmatpush1.msra.mxu0 0.0
    %5133 = vmatprep.subr.mxu0 0.0
    %5134 = vmatpush1.msra.mxu0 0.0
    %5135 = vmatprep.subr.mxu0 0.0
    %5136 = vmatpush1.msra.mxu0 0.0
    %5137 = vmatprep.subr.mxu0 0.0
    %5138 = vmatpush1.msra.mxu0 0.0
    %5139 = vmatprep.subr.mxu0 0.0
    %5140 = vmatpush1.msra.mxu0 0.0
    %5141 = vmatprep.subr.mxu0 0.0
    %5142 = vmatpush1.msra.mxu0 0.0
    %5143 = vmatprep.subr.mxu0 0.0
    %5144 = vmatpush1.msra.mxu0 0.0
    %5145 = vmatprep.subr.mxu0 0.0
    %5146 = vmatpush1.msra.mxu0 0.0
    %5147 = vmatprep.subr.mxu0 0.0
    %5148 = vmatpush1.msra.mxu0 0.0
    %5149 = vmatprep.mubr.f32.mxu0 0.0
    %5150 = vmatmul.mubr.f32.gmra.mrb[0].mxu0 %v4045
    %v5151 = vpop.f32.mrb[0].mxu0
    %v5152 = vadd.f32 %v5039, %v5151
    %v5153 = vpop.f32.mrb[0].mxu0
    %v5154 = vadd.f32 %v5041, %v5153
    %5155 = vmatprep.mubr.f32.mxu0 0.0
    %5156 = vmatmul.mubr.f32.gmra.mrb[0].mxu0 %v4048
    %v5157 = vpop.f32.mrb[0].mxu0
    %v5158 = vadd.f32 %v5045, %v5157
    %v5159 = vpop.f32.mrb[0].mxu0
    %v5160 = vadd.f32 %v5047, %v5159
    %5161 = vmatprep.mubr.f32.mxu0 0.0
    %5162 = vmatmul.mubr.f32.gmra.mrb[0].mxu0 %v4051
    %v5163 = vpop.f32.mrb[0].mxu0
    %v5164 = vadd.f32 %v5051, %v5163
    %v5165 = vpop.f32.mrb[0].mxu0
    %v5166 = vadd.f32 %v5053, %v5165
    %5167 = vmatprep.mubr.f32.mxu0 0.0
    %5168 = vmatmul.mubr.f32.gmra.mrb[0].mxu0 %v4054
    %v5169 = vpop.f32.mrb[0].mxu0
    %v5170 = vadd.f32 %v5057, %v5169
    %v5171 = vpop.f32.mrb[0].mxu0
    %v5172 = vadd.f32 %v5059, %v5171
    %5173 = vmatprep.mubr.f32.mxu0 0.0
    %5174 = vmatmul.mubr.f32.gmra.mrb[0].mxu0 %v4057
    %v5175 = vpop.f32.mrb[0].mxu0
    %v5176 = vadd.f32 %v5063, %v5175
    %v5177 = vpop.f32.mrb[0].mxu0
    %v5178 = vadd.f32 %v5065, %v5177
    %5179 = vmatprep.mubr.f32.mxu0 0.0
    %5180 = vmatmul.mubr.f32.gmra.mrb[0].mxu0 %v4060
    %v5181 = vpop.f32.mrb[0].mxu0
    %v5182 = vadd.f32 %v5069, %v5181
    %v5183 = vpop.f32.mrb[0].mxu0
    %v5184 = vadd.f32 %v5071, %v5183
    %5185 = vmatprep.mubr.f32.mxu0 0.0
    %5186 = vmatmul.mubr.f32.gmra.mrb[0].mxu0 %v4063
    %v5187 = vpop.f32.mrb[0].mxu0
    %v5188 = vadd.f32 %v5075, %v5187
    %v5189 = vpop.f32.mrb[0].mxu0
    %v5190 = vadd.f32 %v5077, %v5189
    %5191 = vmatprep.mubr.f32.mxu0 0.0
    %5192 = vmatmul.mubr.f32.gmra.mrb[0].mxu0 %v4066
    %v5193 = vpop.f32.mrb[0].mxu0
    %v5194 = vadd.f32 %v5081, %v5193
    %v5195 = vpop.f32.mrb[0].mxu0
    %v5196 = vadd.f32 %v5083, %v5195
    %5197 = vdwg.mxu0
    %5198 = vmatprep.subr.mxu0 %v3514
    %5199 = vmatpush1.msra.mxu0 %v3513
    %5200 = vmatprep.subr.mxu0 %v3527
    %5201 = vmatpush1.msra.mxu0 %v3526
    %5202 = vmatprep.subr.mxu0 %v3540
    %5203 = vmatpush1.msra.mxu0 %v3539
    %5204 = vmatprep.subr.mxu0 %v3553
    %5205 = vmatpush1.msra.mxu0 %v3552
    %5206 = vmatprep.subr.mxu0 %v3566
    %5207 = vmatpush1.msra.mxu0 %v3565
    %5208 = vmatprep.subr.mxu0 %v3579
    %5209 = vmatpush1.msra.mxu0 %v3578
    %5210 = vmatprep.subr.mxu0 %v3592
    %5211 = vmatpush1.msra.mxu0 %v3591
    %5212 = vmatprep.subr.mxu0 %v3605
    %5213 = vmatpush1.msra.mxu0 %v3604
    %5214 = vmatprep.subr.mxu0 %v3618
    %5215 = vmatpush1.msra.mxu0 %v3617
    %5216 = vmatprep.subr.mxu0 %v3631
    %5217 = vmatpush1.msra.mxu0 %v3630
    %5218 = vmatprep.subr.mxu0 %v3644
    %5219 = vmatpush1.msra.mxu0 %v3643
    %5220 = vmatprep.subr.mxu0 %v3657
    %5221 = vmatpush1.msra.mxu0 %v3656
    %5222 = vmatprep.subr.mxu0 %v3670
    %5223 = vmatpush1.msra.mxu0 %v3669
    %5224 = vmatprep.subr.mxu0 %v3683
    %5225 = vmatpush1.msra.mxu0 %v3682
    %5226 = vmatprep.subr.mxu0 %v3696
    %5227 = vmatpush1.msra.mxu0 %v3695
    %5228 = vmatprep.subr.mxu0 %v3709
    %5229 = vmatpush1.msra.mxu0 %v3708
    %5230 = vmatprep.subr.mxu0 %v3722
    %5231 = vmatpush1.msra.mxu0 %v3721
    %5232 = vmatprep.subr.mxu0 %v3735
    %5233 = vmatpush1.msra.mxu0 %v3734
    %5234 = vmatprep.subr.mxu0 %v3748
    %5235 = vmatpush1.msra.mxu0 %v3747
    %5236 = vmatprep.subr.mxu0 %v3761
    %5237 = vmatpush1.msra.mxu0 %v3760
    %5238 = vmatprep.subr.mxu0 %v3774
    %5239 = vmatpush1.msra.mxu0 %v3773
    %5240 = vmatprep.subr.mxu0 %v3787
    %5241 = vmatpush1.msra.mxu0 %v3786
    %5242 = vmatprep.subr.mxu0 %v3800
    %5243 = vmatpush1.msra.mxu0 %v3799
    %5244 = vmatprep.subr.mxu0 %v3813
    %5245 = vmatpush1.msra.mxu0 %v3812
    %5246 = vmatprep.subr.mxu0 %v3826
    %5247 = vmatpush1.msra.mxu0 %v3825
    %5248 = vmatprep.subr.mxu0 %v3839
    %5249 = vmatpush1.msra.mxu0 %v3838
    %5250 = vmatprep.subr.mxu0 %v3852
    %5251 = vmatpush1.msra.mxu0 %v3851
    %5252 = vmatprep.subr.mxu0 %v3865
    %5253 = vmatpush1.msra.mxu0 %v3864
    %5254 = vmatprep.subr.mxu0 %v3878
    %5255 = vmatpush1.msra.mxu0 %v3877
    %5256 = vmatprep.subr.mxu0 %v3891
    %5257 = vmatpush1.msra.mxu0 %v3890
    %5258 = vmatprep.subr.mxu0 %v3904
    %5259 = vmatpush1.msra.mxu0 %v3903
    %5260 = vmatprep.subr.mxu0 %v3917
    %5261 = vmatpush1.msra.mxu0 %v3916
    %5262 = vmatprep.mubr.f32.mxu0 %v3972
    %5263 = vmatmul.mubr.f32.gmra.mrb[0].mxu0 %v3971
    %v5264 = vpop.f32.mrb[0].mxu0
    %v5265 = vadd.f32 %v4006, %v5264
    %v5266 = vpop.f32.mrb[0].mxu0
    %v5267 = vadd.f32 %v4006, %v5266
    %5268 = vmatprep.mubr.f32.mxu0 %v3975
    %5269 = vmatmul.mubr.f32.gmra.mrb[0].mxu0 %v3974
    %v5270 = vpop.f32.mrb[0].mxu0
    %v5271 = vadd.f32 %v4011, %v5270
    %v5272 = vpop.f32.mrb[0].mxu0
    %v5273 = vadd.f32 %v4011, %v5272
    %5274 = vmatprep.mubr.f32.mxu0 %v3978
    %5275 = vmatmul.mubr.f32.gmra.mrb[0].mxu0 %v3977
    %v5276 = vpop.f32.mrb[0].mxu0
    %v5277 = vadd.f32 %v4016, %v5276
    %v5278 = vpop.f32.mrb[0].mxu0
    %v5279 = vadd.f32 %v4016, %v5278
    %5280 = vmatprep.mubr.f32.mxu0 %v3981
    %5281 = vmatmul.mubr.f32.gmra.mrb[0].mxu0 %v3980
    %v5282 = vpop.f32.mrb[0].mxu0
    %v5283 = vadd.f32 %v4021, %v5282
    %v5284 = vpop.f32.mrb[0].mxu0
    %v5285 = vadd.f32 %v4021, %v5284
    %5286 = vmatprep.mubr.f32.mxu0 %v3984
    %5287 = vmatmul.mubr.f32.gmra.mrb[0].mxu0 %v3983
    %v5288 = vpop.f32.mrb[0].mxu0
    %v5289 = vadd.f32 %v4026, %v5288
    %v5290 = vpop.f32.mrb[0].mxu0
    %v5291 = vadd.f32 %v4026, %v5290
    %5292 = vmatprep.mubr.f32.mxu0 %v3987
    %5293 = vmatmul.mubr.f32.gmra.mrb[0].mxu0 %v3986
    %v5294 = vpop.f32.mrb[0].mxu0
    %v5295 = vadd.f32 %v4031, %v5294
    %v5296 = vpop.f32.mrb[0].mxu0
    %v5297 = vadd.f32 %v4031, %v5296
    %5298 = vmatprep.mubr.f32.mxu0 %v3990
    %5299 = vmatmul.mubr.f32.gmra.mrb[0].mxu0 %v3989
    %v5300 = vpop.f32.mrb[0].mxu0
    %v5301 = vadd.f32 %v4036, %v5300
    %v5302 = vpop.f32.mrb[0].mxu0
    %v5303 = vadd.f32 %v4036, %v5302
    %5304 = vmatprep.mubr.f32.mxu0 %v3993
    %5305 = vmatmul.mubr.f32.gmra.mrb[0].mxu0 %v3992
    %v5306 = vpop.f32.mrb[0].mxu0
    %v5307 = vadd.f32 %v4041, %v5306
    %v5308 = vpop.f32.mrb[0].mxu0
    %v5309 = vadd.f32 %v4041, %v5308
    %5310 = vdwg.mxu0
    %5311 = vmatprep.subr.mxu0 %v3930
    %5312 = vmatpush1.msra.mxu0 %v3929
    %5313 = vmatprep.subr.mxu0 %v3943
    %5314 = vmatpush1.msra.mxu0 %v3942
    %5315 = vmatprep.subr.mxu0 %v3956
    %5316 = vmatpush1.msra.mxu0 %v3955
    %5317 = vmatprep.subr.mxu0 %v3969
    %5318 = vmatpush1.msra.mxu0 %v3968
    %5319 = vmatprep.subr.mxu0 0.0
    %5320 = vmatpush1.msra.mxu0 0.0
    %5321 = vmatprep.subr.mxu0 0.0
    %5322 = vmatpush1.msra.mxu0 0.0
    %5323 = vmatprep.subr.mxu0 0.0
    %5324 = vmatpush1.msra.mxu0 0.0
    %5325 = vmatprep.subr.mxu0 0.0
    %5326 = vmatpush1.msra.mxu0 0.0
    %5327 = vmatprep.subr.mxu0 0.0
    %5328 = vmatpush1.msra.mxu0 0.0
    %5329 = vmatprep.subr.mxu0 0.0
    %5330 = vmatpush1.msra.mxu0 0.0
    %5331 = vmatprep.subr.mxu0 0.0
    %5332 = vmatpush1.msra.mxu0 0.0
    %5333 = vmatprep.subr.mxu0 0.0
    %5334 = vmatpush1.msra.mxu0 0.0
    %5335 = vmatprep.subr.mxu0 0.0
    %5336 = vmatpush1.msra.mxu0 0.0
    %5337 = vmatprep.subr.mxu0 0.0
    %5338 = vmatpush1.msra.mxu0 0.0
    %5339 = vmatprep.subr.mxu0 0.0
    %5340 = vmatpush1.msra.mxu0 0.0
    %5341 = vmatprep.subr.mxu0 0.0
    %5342 = vmatpush1.msra.mxu0 0.0
    %5343 = vmatprep.subr.mxu0 0.0
    %5344 = vmatpush1.msra.mxu0 0.0
    %5345 = vmatprep.subr.mxu0 0.0
    %5346 = vmatpush1.msra.mxu0 0.0
    %5347 = vmatprep.subr.mxu0 0.0
    %5348 = vmatpush1.msra.mxu0 0.0
    %5349 = vmatprep.subr.mxu0 0.0
    %5350 = vmatpush1.msra.mxu0 0.0
    %5351 = vmatprep.subr.mxu0 0.0
    %5352 = vmatpush1.msra.mxu0 0.0
    %5353 = vmatprep.subr.mxu0 0.0
    %5354 = vmatpush1.msra.mxu0 0.0
    %5355 = vmatprep.subr.mxu0 0.0
    %5356 = vmatpush1.msra.mxu0 0.0
    %5357 = vmatprep.subr.mxu0 0.0
    %5358 = vmatpush1.msra.mxu0 0.0
    %5359 = vmatprep.subr.mxu0 0.0
    %5360 = vmatpush1.msra.mxu0 0.0
    %5361 = vmatprep.subr.mxu0 0.0
    %5362 = vmatpush1.msra.mxu0 0.0
    %5363 = vmatprep.subr.mxu0 0.0
    %5364 = vmatpush1.msra.mxu0 0.0
    %5365 = vmatprep.subr.mxu0 0.0
    %5366 = vmatpush1.msra.mxu0 0.0
    %5367 = vmatprep.subr.mxu0 0.0
    %5368 = vmatpush1.msra.mxu0 0.0
    %5369 = vmatprep.subr.mxu0 0.0
    %5370 = vmatpush1.msra.mxu0 0.0
    %5371 = vmatprep.subr.mxu0 0.0
    %5372 = vmatpush1.msra.mxu0 0.0
    %5373 = vmatprep.subr.mxu0 0.0
    %5374 = vmatpush1.msra.mxu0 0.0
    %5375 = vmatprep.mubr.f32.mxu0 0.0
    %5376 = vmatmul.mubr.f32.gmra.mrb[0].mxu0 %v4045
    %v5377 = vpop.f32.mrb[0].mxu0
    %v5378 = vadd.f32 %v5265, %v5377
    %v5379 = vpop.f32.mrb[0].mxu0
    %v5380 = vadd.f32 %v5267, %v5379
    %5381 = vmatprep.mubr.f32.mxu0 0.0
    %5382 = vmatmul.mubr.f32.gmra.mrb[0].mxu0 %v4048
    %v5383 = vpop.f32.mrb[0].mxu0
    %v5384 = vadd.f32 %v5271, %v5383
    %v5385 = vpop.f32.mrb[0].mxu0
    %v5386 = vadd.f32 %v5273, %v5385
    %5387 = vmatprep.mubr.f32.mxu0 0.0
    %5388 = vmatmul.mubr.f32.gmra.mrb[0].mxu0 %v4051
    %v5389 = vpop.f32.mrb[0].mxu0
    %v5390 = vadd.f32 %v5277, %v5389
    %v5391 = vpop.f32.mrb[0].mxu0
    %v5392 = vadd.f32 %v5279, %v5391
    %5393 = vmatprep.mubr.f32.mxu0 0.0
    %5394 = vmatmul.mubr.f32.gmra.mrb[0].mxu0 %v4054
    %v5395 = vpop.f32.mrb[0].mxu0
    %v5396 = vadd.f32 %v5283, %v5395
    %v5397 = vpop.f32.mrb[0].mxu0
    %v5398 = vadd.f32 %v5285, %v5397
    %5399 = vmatprep.mubr.f32.mxu0 0.0
    %5400 = vmatmul.mubr.f32.gmra.mrb[0].mxu0 %v4057
    %v5401 = vpop.f32.mrb[0].mxu0
    %v5402 = vadd.f32 %v5289, %v5401
    %v5403 = vpop.f32.mrb[0].mxu0
    %v5404 = vadd.f32 %v5291, %v5403
    %5405 = vmatprep.mubr.f32.mxu0 0.0
    %5406 = vmatmul.mubr.f32.gmra.mrb[0].mxu0 %v4060
    %v5407 = vpop.f32.mrb[0].mxu0
    %v5408 = vadd.f32 %v5295, %v5407
    %v5409 = vpop.f32.mrb[0].mxu0
    %v5410 = vadd.f32 %v5297, %v5409
    %5411 = vmatprep.mubr.f32.mxu0 0.0
    %5412 = vmatmul.mubr.f32.gmra.mrb[0].mxu0 %v4063
    %v5413 = vpop.f32.mrb[0].mxu0
    %v5414 = vadd.f32 %v5301, %v5413
    %v5415 = vpop.f32.mrb[0].mxu0
    %v5416 = vadd.f32 %v5303, %v5415
    %5417 = vmatprep.mubr.f32.mxu0 0.0
    %5418 = vmatmul.mubr.f32.gmra.mrb[0].mxu0 %v4066
    %v5419 = vpop.f32.mrb[0].mxu0
    %v5420 = vadd.f32 %v5307, %v5419
    %v5421 = vpop.f32.mrb[0].mxu0
    %v5422 = vadd.f32 %v5309, %v5421
    %5423 = vdwg.mxu0
    %5424 = vmatprep.subr.mxu0 0.0
    %5425 = vmatpush1.msra.mxu0 %v3515
    %5426 = vmatprep.subr.mxu0 0.0
    %5427 = vmatpush1.msra.mxu0 %v3528
    %5428 = vmatprep.subr.mxu0 0.0
    %5429 = vmatpush1.msra.mxu0 %v3541
    %5430 = vmatprep.subr.mxu0 0.0
    %5431 = vmatpush1.msra.mxu0 %v3554
    %5432 = vmatprep.subr.mxu0 0.0
    %5433 = vmatpush1.msra.mxu0 %v3567
    %5434 = vmatprep.subr.mxu0 0.0
    %5435 = vmatpush1.msra.mxu0 %v3580
    %5436 = vmatprep.subr.mxu0 0.0
    %5437 = vmatpush1.msra.mxu0 %v3593
    %5438 = vmatprep.subr.mxu0 0.0
    %5439 = vmatpush1.msra.mxu0 %v3606
    %5440 = vmatprep.subr.mxu0 0.0
    %5441 = vmatpush1.msra.mxu0 %v3619
    %5442 = vmatprep.subr.mxu0 0.0
    %5443 = vmatpush1.msra.mxu0 %v3632
    %5444 = vmatprep.subr.mxu0 0.0
    %5445 = vmatpush1.msra.mxu0 %v3645
    %5446 = vmatprep.subr.mxu0 0.0
    %5447 = vmatpush1.msra.mxu0 %v3658
    %5448 = vmatprep.subr.mxu0 0.0
    %5449 = vmatpush1.msra.mxu0 %v3671
    %5450 = vmatprep.subr.mxu0 0.0
    %5451 = vmatpush1.msra.mxu0 %v3684
    %5452 = vmatprep.subr.mxu0 0.0
    %5453 = vmatpush1.msra.mxu0 %v3697
    %5454 = vmatprep.subr.mxu0 0.0
    %5455 = vmatpush1.msra.mxu0 %v3710
    %5456 = vmatprep.subr.mxu0 0.0
    %5457 = vmatpush1.msra.mxu0 %v3723
    %5458 = vmatprep.subr.mxu0 0.0
    %5459 = vmatpush1.msra.mxu0 %v3736
    %5460 = vmatprep.subr.mxu0 0.0
    %5461 = vmatpush1.msra.mxu0 %v3749
    %5462 = vmatprep.subr.mxu0 0.0
    %5463 = vmatpush1.msra.mxu0 %v3762
    %5464 = vmatprep.subr.mxu0 0.0
    %5465 = vmatpush1.msra.mxu0 %v3775
    %5466 = vmatprep.subr.mxu0 0.0
    %5467 = vmatpush1.msra.mxu0 %v3788
    %5468 = vmatprep.subr.mxu0 0.0
    %5469 = vmatpush1.msra.mxu0 %v3801
    %5470 = vmatprep.subr.mxu0 0.0
    %5471 = vmatpush1.msra.mxu0 %v3814
    %5472 = vmatprep.subr.mxu0 0.0
    %5473 = vmatpush1.msra.mxu0 %v3827
    %5474 = vmatprep.subr.mxu0 0.0
    %5475 = vmatpush1.msra.mxu0 %v3840
    %5476 = vmatprep.subr.mxu0 0.0
    %5477 = vmatpush1.msra.mxu0 %v3853
    %5478 = vmatprep.subr.mxu0 0.0
    %5479 = vmatpush1.msra.mxu0 %v3866
    %5480 = vmatprep.subr.mxu0 0.0
    %5481 = vmatpush1.msra.mxu0 %v3879
    %5482 = vmatprep.subr.mxu0 0.0
    %5483 = vmatpush1.msra.mxu0 %v3892
    %5484 = vmatprep.subr.mxu0 0.0
    %5485 = vmatpush1.msra.mxu0 %v3905
    %5486 = vmatprep.subr.mxu0 0.0
    %5487 = vmatpush1.msra.mxu0 %v3918
    %5488 = vmatprep.mubr.f32.mxu0 %v3972
    %5489 = vmatmul.mubr.f32.gmra.mrb[0].mxu0 %v3971
    %v5490 = vpop.f32.mrb[0].mxu0
    %v5491 = vadd.f32 %v4006, %v5490
    %v5492 = vpop.f32.mrb[0].mxu0
    %5493 = vmatprep.mubr.f32.mxu0 %v3975
    %5494 = vmatmul.mubr.f32.gmra.mrb[0].mxu0 %v3974
    %v5495 = vpop.f32.mrb[0].mxu0
    %v5496 = vadd.f32 %v4011, %v5495
    %v5497 = vpop.f32.mrb[0].mxu0
    %5498 = vmatprep.mubr.f32.mxu0 %v3978
    %5499 = vmatmul.mubr.f32.gmra.mrb[0].mxu0 %v3977
    %v5500 = vpop.f32.mrb[0].mxu0
    %v5501 = vadd.f32 %v4016, %v5500
    %v5502 = vpop.f32.mrb[0].mxu0
    %5503 = vmatprep.mubr.f32.mxu0 %v3981
    %5504 = vmatmul.mubr.f32.gmra.mrb[0].mxu0 %v3980
    %v5505 = vpop.f32.mrb[0].mxu0
    %v5506 = vadd.f32 %v4021, %v5505
    %v5507 = vpop.f32.mrb[0].mxu0
    %5508 = vmatprep.mubr.f32.mxu0 %v3984
    %5509 = vmatmul.mubr.f32.gmra.mrb[0].mxu0 %v3983
    %v5510 = vpop.f32.mrb[0].mxu0
    %v5511 = vadd.f32 %v4026, %v5510
    %v5512 = vpop.f32.mrb[0].mxu0
    %5513 = vmatprep.mubr.f32.mxu0 %v3987
    %5514 = vmatmul.mubr.f32.gmra.mrb[0].mxu0 %v3986
    %v5515 = vpop.f32.mrb[0].mxu0
    %v5516 = vadd.f32 %v4031, %v5515
    %v5517 = vpop.f32.mrb[0].mxu0
    %5518 = vmatprep.mubr.f32.mxu0 %v3990
    %5519 = vmatmul.mubr.f32.gmra.mrb[0].mxu0 %v3989
    %v5520 = vpop.f32.mrb[0].mxu0
    %v5521 = vadd.f32 %v4036, %v5520
    %v5522 = vpop.f32.mrb[0].mxu0
    %5523 = vmatprep.mubr.f32.mxu0 %v3993
    %5524 = vmatmul.mubr.f32.gmra.mrb[0].mxu0 %v3992
    %v5525 = vpop.f32.mrb[0].mxu0
    %v5526 = vadd.f32 %v4041, %v5525
    %v5527 = vpop.f32.mrb[0].mxu0
    %5528 = vdwg.mxu0
    %5529 = vmatprep.subr.mxu0 0.0
    %5530 = vmatpush1.msra.mxu0 %v3931
    %5531 = vmatprep.subr.mxu0 0.0
    %5532 = vmatpush1.msra.mxu0 %v3944
    %5533 = vmatprep.subr.mxu0 0.0
    %5534 = vmatpush1.msra.mxu0 %v3957
    %5535 = vmatprep.subr.mxu0 0.0
    %5536 = vmatpush1.msra.mxu0 %v3970
    %5537 = vmatprep.subr.mxu0 0.0
    %5538 = vmatpush1.msra.mxu0 0.0
    %5539 = vmatprep.subr.mxu0 0.0
    %5540 = vmatpush1.msra.mxu0 0.0
    %5541 = vmatprep.subr.mxu0 0.0
    %5542 = vmatpush1.msra.mxu0 0.0
    %5543 = vmatprep.subr.mxu0 0.0
    %5544 = vmatpush1.msra.mxu0 0.0
    %5545 = vmatprep.subr.mxu0 0.0
    %5546 = vmatpush1.msra.mxu0 0.0
    %5547 = vmatprep.subr.mxu0 0.0
    %5548 = vmatpush1.msra.mxu0 0.0
    %5549 = vmatprep.subr.mxu0 0.0
    %5550 = vmatpush1.msra.mxu0 0.0
    %5551 = vmatprep.subr.mxu0 0.0
    %5552 = vmatpush1.msra.mxu0 0.0
    %5553 = vmatprep.subr.mxu0 0.0
    %5554 = vmatpush1.msra.mxu0 0.0
    %5555 = vmatprep.subr.mxu0 0.0
    %5556 = vmatpush1.msra.mxu0 0.0
    %5557 = vmatprep.subr.mxu0 0.0
    %5558 = vmatpush1.msra.mxu0 0.0
    %5559 = vmatprep.subr.mxu0 0.0
    %5560 = vmatpush1.msra.mxu0 0.0
    %5561 = vmatprep.subr.mxu0 0.0
    %5562 = vmatpush1.msra.mxu0 0.0
    %5563 = vmatprep.subr.mxu0 0.0
    %5564 = vmatpush1.msra.mxu0 0.0
    %5565 = vmatprep.subr.mxu0 0.0
    %5566 = vmatpush1.msra.mxu0 0.0
    %5567 = vmatprep.subr.mxu0 0.0
    %5568 = vmatpush1.msra.mxu0 0.0
    %5569 = vmatprep.subr.mxu0 0.0
    %5570 = vmatpush1.msra.mxu0 0.0
    %5571 = vmatprep.subr.mxu0 0.0
    %5572 = vmatpush1.msra.mxu0 0.0
    %5573 = vmatprep.subr.mxu0 0.0
    %5574 = vmatpush1.msra.mxu0 0.0
    %5575 = vmatprep.subr.mxu0 0.0
    %5576 = vmatpush1.msra.mxu0 0.0
    %5577 = vmatprep.subr.mxu0 0.0
    %5578 = vmatpush1.msra.mxu0 0.0
    %5579 = vmatprep.subr.mxu0 0.0
    %5580 = vmatpush1.msra.mxu0 0.0
    %5581 = vmatprep.subr.mxu0 0.0
    %5582 = vmatpush1.msra.mxu0 0.0
    %5583 = vmatprep.subr.mxu0 0.0
    %5584 = vmatpush1.msra.mxu0 0.0
    %5585 = vmatprep.subr.mxu0 0.0
    %5586 = vmatpush1.msra.mxu0 0.0
    %5587 = vmatprep.subr.mxu0 0.0
    %5588 = vmatpush1.msra.mxu0 0.0
    %5589 = vmatprep.subr.mxu0 0.0
    %5590 = vmatpush1.msra.mxu0 0.0
    %5591 = vmatprep.subr.mxu0 0.0
    %5592 = vmatpush1.msra.mxu0 0.0
    %5593 = vmatprep.mubr.f32.mxu0 0.0
    %5594 = vmatmul.mubr.f32.gmra.mrb[0].mxu0 %v4045
    %v5595 = vpop.f32.mrb[0].mxu0
    %v5596 = vadd.f32 %v5491, %v5595
    %v5597 = vpop.f32.mrb[0].mxu0
    %5598 = vmatprep.mubr.f32.mxu0 0.0
    %5599 = vmatmul.mubr.f32.gmra.mrb[0].mxu0 %v4048
    %v5600 = vpop.f32.mrb[0].mxu0
    %v5601 = vadd.f32 %v5496, %v5600
    %v5602 = vpop.f32.mrb[0].mxu0
    %5603 = vmatprep.mubr.f32.mxu0 0.0
    %5604 = vmatmul.mubr.f32.gmra.mrb[0].mxu0 %v4051
    %v5605 = vpop.f32.mrb[0].mxu0
    %v5606 = vadd.f32 %v5501, %v5605
    %v5607 = vpop.f32.mrb[0].mxu0
    %5608 = vmatprep.mubr.f32.mxu0 0.0
    %5609 = vmatmul.mubr.f32.gmra.mrb[0].mxu0 %v4054
    %v5610 = vpop.f32.mrb[0].mxu0
    %v5611 = vadd.f32 %v5506, %v5610
    %v5612 = vpop.f32.mrb[0].mxu0
    %5613 = vmatprep.mubr.f32.mxu0 0.0
    %5614 = vmatmul.mubr.f32.gmra.mrb[0].mxu0 %v4057
    %v5615 = vpop.f32.mrb[0].mxu0
    %v5616 = vadd.f32 %v5511, %v5615
    %v5617 = vpop.f32.mrb[0].mxu0
    %5618 = vmatprep.mubr.f32.mxu0 0.0
    %5619 = vmatmul.mubr.f32.gmra.mrb[0].mxu0 %v4060
    %v5620 = vpop.f32.mrb[0].mxu0
    %v5621 = vadd.f32 %v5516, %v5620
    %v5622 = vpop.f32.mrb[0].mxu0
    %5623 = vmatprep.mubr.f32.mxu0 0.0
    %5624 = vmatmul.mubr.f32.gmra.mrb[0].mxu0 %v4063
    %v5625 = vpop.f32.mrb[0].mxu0
    %v5626 = vadd.f32 %v5521, %v5625
    %v5627 = vpop.f32.mrb[0].mxu0
    %5628 = vmatprep.mubr.f32.mxu0 0.0
    %5629 = vmatmul.mubr.f32.gmra.mrb[0].mxu0 %v4066
    %v5630 = vpop.f32.mrb[0].mxu0
    %v5631 = vadd.f32 %v5526, %v5630
    %v5632 = vpop.f32.mrb[0].mxu0
    %5633 = vdwg.mxu0
    %v5634 = vmax.f32 %v4248, 0.0
    %v5635 = vmax.f32 %v4250, 0.0
    %v5636 = vmax.f32 %v4474, 0.0
    %v5637 = vmax.f32 %v4476, 0.0
    %v5638 = vmax.f32 %v4700, 0.0
    %v5639 = vmax.f32 %v4702, 0.0
    %v5640 = vmax.f32 %v4926, 0.0
    %v5641 = vmax.f32 %v4928, 0.0
    %v5642 = vmax.f32 %v5152, 0.0
    %v5643 = vmax.f32 %v5154, 0.0
    %v5644 = vmax.f32 %v5378, 0.0
    %v5645 = vmax.f32 %v5380, 0.0
    %v5646 = vmax.f32 %v5596, 0.0
    %v5647 = vmax.f32 %v4254, 0.0
    %v5648 = vmax.f32 %v4256, 0.0
    %v5649 = vmax.f32 %v4480, 0.0
    %v5650 = vmax.f32 %v4482, 0.0
    %v5651 = vmax.f32 %v4706, 0.0
    %v5652 = vmax.f32 %v4708, 0.0
    %v5653 = vmax.f32 %v4932, 0.0
    %v5654 = vmax.f32 %v4934, 0.0
    %v5655 = vmax.f32 %v5158, 0.0
    %v5656 = vmax.f32 %v5160, 0.0
    %v5657 = vmax.f32 %v5384, 0.0
    %v5658 = vmax.f32 %v5386, 0.0
    %v5659 = vmax.f32 %v5601, 0.0
    %v5660 = vmax.f32 %v4260, 0.0
    %v5661 = vmax.f32 %v4262, 0.0
    %v5662 = vmax.f32 %v4486, 0.0
    %v5663 = vmax.f32 %v4488, 0.0
    %v5664 = vmax.f32 %v4712, 0.0
    %v5665 = vmax.f32 %v4714, 0.0
    %v5666 = vmax.f32 %v4938, 0.0
    %v5667 = vmax.f32 %v4940, 0.0
    %v5668 = vmax.f32 %v5164, 0.0
    %v5669 = vmax.f32 %v5166, 0.0
    %v5670 = vmax.f32 %v5390, 0.0
    %v5671 = vmax.f32 %v5392, 0.0
    %v5672 = vmax.f32 %v5606, 0.0
    %v5673 = vmax.f32 %v4266, 0.0
    %v5674 = vmax.f32 %v4268, 0.0
    %v5675 = vmax.f32 %v4492, 0.0
    %v5676 = vmax.f32 %v4494, 0.0
    %v5677 = vmax.f32 %v4718, 0.0
    %v5678 = vmax.f32 %v4720, 0.0
    %v5679 = vmax.f32 %v4944, 0.0
    %v5680 = vmax.f32 %v4946, 0.0
    %v5681 = vmax.f32 %v5170, 0.0
    %v5682 = vmax.f32 %v5172, 0.0
    %v5683 = vmax.f32 %v5396, 0.0
    %v5684 = vmax.f32 %v5398, 0.0
    %v5685 = vmax.f32 %v5611, 0.0
    %v5686 = vmax.f32 %v4272, 0.0
    %v5687 = vmax.f32 %v4274, 0.0
    %v5688 = vmax.f32 %v4498, 0.0
    %v5689 = vmax.f32 %v4500, 0.0
    %v5690 = vmax.f32 %v4724, 0.0
    %v5691 = vmax.f32 %v4726, 0.0
    %v5692 = vmax.f32 %v4950, 0.0
    %v5693 = vmax.f32 %v4952, 0.0
    %v5694 = vmax.f32 %v5176, 0.0
    %v5695 = vmax.f32 %v5178, 0.0
    %v5696 = vmax.f32 %v5402, 0.0
    %v5697 = vmax.f32 %v5404, 0.0
    %v5698 = vmax.f32 %v5616, 0.0
    %v5699 = vmax.f32 %v4278, 0.0
    %v5700 = vmax.f32 %v4280, 0.0
    %v5701 = vmax.f32 %v4504, 0.0
    %v5702 = vmax.f32 %v4506, 0.0
    %v5703 = vmax.f32 %v4730, 0.0
    %v5704 = vmax.f32 %v4732, 0.0
    %v5705 = vmax.f32 %v4956, 0.0
    %v5706 = vmax.f32 %v4958, 0.0
    %v5707 = vmax.f32 %v5182, 0.0
    %v5708 = vmax.f32 %v5184, 0.0
    %v5709 = vmax.f32 %v5408, 0.0
    %v5710 = vmax.f32 %v5410, 0.0
    %v5711 = vmax.f32 %v5621, 0.0
    %v5712 = vmax.f32 %v4284, 0.0
    %v5713 = vmax.f32 %v4286, 0.0
    %v5714 = vmax.f32 %v4510, 0.0
    %v5715 = vmax.f32 %v4512, 0.0
    %v5716 = vmax.f32 %v4736, 0.0
    %v5717 = vmax.f32 %v4738, 0.0
    %v5718 = vmax.f32 %v4962, 0.0
    %v5719 = vmax.f32 %v4964, 0.0
    %v5720 = vmax.f32 %v5188, 0.0
    %v5721 = vmax.f32 %v5190, 0.0
    %v5722 = vmax.f32 %v5414, 0.0
    %v5723 = vmax.f32 %v5416, 0.0
    %v5724 = vmax.f32 %v5626, 0.0
    %v5725 = vmax.f32 %v4290, 0.0
    %v5726 = vmax.f32 %v4292, 0.0
    %v5727 = vmax.f32 %v4516, 0.0
    %v5728 = vmax.f32 %v4518, 0.0
    %v5729 = vmax.f32 %v4742, 0.0
    %v5730 = vmax.f32 %v4744, 0.0
    %v5731 = vmax.f32 %v4968, 0.0
    %v5732 = vmax.f32 %v4970, 0.0
    %v5733 = vmax.f32 %v5194, 0.0
    %v5734 = vmax.f32 %v5196, 0.0
    %v5735 = vmax.f32 %v5420, 0.0
    %v5736 = vmax.f32 %v5422, 0.0
    %v5737 = vmax.f32 %v5631, 0.0
    %v5738 = vld [vmem:[%s6] sm:$0xff]
    %v5739 = vld [vmem:[%s6 + $0x8] sm:$0xff]
    %v5740 = vld [vmem:[%s6 + $0x10] sm:$0xff]
    %v5741 = vld [vmem:[%s6 + $0x18] sm:$0xff]
    %v5742 = vld [vmem:[%s6 + $0x20] sm:$0xff]
    %v5743 = vld [vmem:[%s6 + $0x28] sm:$0xff]
    %v5744 = vld [vmem:[%s6 + $0x30] sm:$0xff]
    %v5745 = vld [vmem:[%s6 + $0x38] sm:$0xff]
    %v5746 = vld [vmem:[%s6 + $0x40] sm:$0xff]
    %v5747 = vld [vmem:[%s6 + $0x48] sm:$0xff]
    %v5748 = vld [vmem:[%s6 + $0x50] sm:$0xff]
    %v5749 = vld [vmem:[%s6 + $0x58] sm:$0xff]
    %v5750 = vld [vmem:[%s6 + $0x60] sm:$0xff]
    %v5751 = vld [vmem:[%s6 + $0x68] sm:$0xff]
    %v5752 = vld [vmem:[%s6 + $0x70] sm:$0xff]
    %v5753 = vld [vmem:[%s6 + $0x78] sm:$0xff]
    %v5754 = vld [vmem:[%s6 + $0x80] sm:$0xff]
    %v5755 = vld [vmem:[%s6 + $0x88] sm:$0xff]
    %v5756 = vld [vmem:[%s6 + $0x90] sm:$0xff]
    %v5757 = vld [vmem:[%s6 + $0x98] sm:$0xff]
    %v5758 = vld [vmem:[%s6 + $0xa0] sm:$0xff]
    %v5759 = vld [vmem:[%s6 + $0xa8] sm:$0xff]
    %v5760 = vld [vmem:[%s6 + $0xb0] sm:$0xff]
    %v5761 = vld [vmem:[%s6 + $0xb8] sm:$0xff]
    %v5762 = vld [vmem:[%s6 + $0xc0] sm:$0xff]
    %v5763 = vld [vmem:[%s6 + $0xc8] sm:$0xff]
    %v5764 = vld [vmem:[%s6 + $0xd0] sm:$0xff]
    %v5765 = vld [vmem:[%s6 + $0xd8] sm:$0xff]
    %v5766 = vld [vmem:[%s6 + $0xe0] sm:$0xff]
    %v5767 = vld [vmem:[%s6 + $0xe8] sm:$0xff]
    %v5768 = vld [vmem:[%s6 + $0xf0] sm:$0xff]
    %v5769 = vld [vmem:[%s6 + $0xf8] sm:$0xff]
    %v5770 = vld [vmem:[%s6 + $0x100] sm:$0xff]
    %v5771 = vld [vmem:[%s6 + $0x108] sm:$0xff]
    %v5772 = vld [vmem:[%s6 + $0x110] sm:$0xff]
    %v5773 = vld [vmem:[%s6 + $0x118] sm:$0xff]
    %v5774 = vld [vmem:[%s6 + $0x120] sm:$0xff]
    %v5775 = vld [vmem:[%s6 + $0x128] sm:$0xff]
    %v5776 = vld [vmem:[%s6 + $0x130] sm:$0xff]
    %v5777 = vld [vmem:[%s6 + $0x138] sm:$0xff]
    %v5778 = vld [vmem:[%s6 + $0x140] sm:$0xff]
    %v5779 = vld [vmem:[%s6 + $0x148] sm:$0xff]
    %v5780 = vld [vmem:[%s6 + $0x150] sm:$0xff]
    %v5781 = vld [vmem:[%s6 + $0x158] sm:$0xff]
    %v5782 = vld [vmem:[%s6 + $0x160] sm:$0xff]
    %v5783 = vld [vmem:[%s6 + $0x168] sm:$0xff]
    %v5784 = vld [vmem:[%s6 + $0x170] sm:$0xff]
    %v5785 = vld [vmem:[%s6 + $0x178] sm:$0xff]
    %v5786 = vld [vmem:[%s6 + $0x180] sm:$0xff]
    %v5787 = vld [vmem:[%s6 + $0x188] sm:$0xff]
    %v5788 = vld [vmem:[%s6 + $0x190] sm:$0xff]
    %v5789 = vld [vmem:[%s6 + $0x198] sm:$0xff]
    %v5790 = vld [vmem:[%s6 + $0x1a0] sm:$0xff]
    %v5791 = vld [vmem:[%s6 + $0x1a8] sm:$0xff]
    %v5792 = vld [vmem:[%s6 + $0x1b0] sm:$0xff]
    %v5793 = vld [vmem:[%s6 + $0x1b8] sm:$0xff]
    %v5794 = vld [vmem:[%s6 + $0x1c0] sm:$0xff]
    %v5795 = vld [vmem:[%s6 + $0x1c8] sm:$0xff]
    %v5796 = vld [vmem:[%s6 + $0x1d0] sm:$0xff]
    %v5797 = vld [vmem:[%s6 + $0x1d8] sm:$0xff]
    %v5798 = vld [vmem:[%s6 + $0x1e0] sm:$0xff]
    %v5799 = vld [vmem:[%s6 + $0x1e8] sm:$0xff]
    %v5800 = vld [vmem:[%s6 + $0x1f0] sm:$0xff]
    %v5801 = vld [vmem:[%s6 + $0x1f8] sm:$0xff]
    %v5802 = vld [vmem:[%s6 + $0x200] sm:$0xff]
    %v5803 = vld [vmem:[%s6 + $0x208] sm:$0xff]
    %v5804 = vld [vmem:[%s6 + $0x210] sm:$0xff]
    %v5805 = vld [vmem:[%s6 + $0x218] sm:$0xff]
    %v5806 = vld [vmem:[%s6 + $0x220] sm:$0xff]
    %v5807 = vld [vmem:[%s6 + $0x228] sm:$0xff]
    %v5808 = vld [vmem:[%s6 + $0x230] sm:$0xff]
    %v5809 = vld [vmem:[%s6 + $0x238] sm:$0xff]
    %v5810 = vld [vmem:[%s6 + $0x240] sm:$0xff]
    %v5811 = vld [vmem:[%s6 + $0x248] sm:$0xff]
    %v5812 = vld [vmem:[%s6 + $0x250] sm:$0xff]
    %v5813 = vld [vmem:[%s6 + $0x258] sm:$0xff]
    %v5814 = vld [vmem:[%s6 + $0x260] sm:$0xff]
    %v5815 = vld [vmem:[%s6 + $0x268] sm:$0xff]
    %v5816 = vld [vmem:[%s6 + $0x270] sm:$0xff]
    %v5817 = vld [vmem:[%s6 + $0x278] sm:$0xff]
    %v5818 = vld [vmem:[%s6 + $0x280] sm:$0xff]
    %v5819 = vld [vmem:[%s6 + $0x288] sm:$0xff]
    %v5820 = vld [vmem:[%s6 + $0x290] sm:$0xff]
    %v5821 = vld [vmem:[%s6 + $0x298] sm:$0xff]
    %v5822 = vld [vmem:[%s6 + $0x2a0] sm:$0xff]
    %v5823 = vld [vmem:[%s6 + $0x2a8] sm:$0xff]
    %v5824 = vld [vmem:[%s6 + $0x2b0] sm:$0xff]
    %v5825 = vld [vmem:[%s6 + $0x2b8] sm:$0xff]
    %v5826 = vld [vmem:[%s6 + $0x2c0] sm:$0xff]
    %v5827 = vld [vmem:[%s6 + $0x2c8] sm:$0xff]
    %v5828 = vld [vmem:[%s6 + $0x2d0] sm:$0xff]
    %v5829 = vld [vmem:[%s6 + $0x2d8] sm:$0xff]
    %v5830 = vld [vmem:[%s6 + $0x2e0] sm:$0xff]
    %v5831 = vld [vmem:[%s6 + $0x2e8] sm:$0xff]
    %v5832 = vld [vmem:[%s6 + $0x2f0] sm:$0xff]
    %v5833 = vld [vmem:[%s6 + $0x2f8] sm:$0xff]
    %v5834 = vld [vmem:[%s6 + $0x300] sm:$0xff]
    %v5835 = vld [vmem:[%s6 + $0x308] sm:$0xff]
    %v5836 = vld [vmem:[%s6 + $0x310] sm:$0xff]
    %v5837 = vld [vmem:[%s6 + $0x318] sm:$0xff]
    %v5838 = vld [vmem:[%s6 + $0x320] sm:$0xff]
    %v5839 = vld [vmem:[%s6 + $0x328] sm:$0xff]
    %v5840 = vld [vmem:[%s6 + $0x330] sm:$0xff]
    %v5841 = vld [vmem:[%s6 + $0x338] sm:$0xff]
    %v5842 = vld [vmem:[%s6 + $0x340] sm:$0xff]
    %v5843 = vld [vmem:[%s6 + $0x348] sm:$0xff]
    %v5844 = vld [vmem:[%s6 + $0x350] sm:$0xff]
    %v5845 = vld [vmem:[%s6 + $0x358] sm:$0xff]
    %v5846 = vld [vmem:[%s6 + $0x360] sm:$0xff]
    %v5847 = vld [vmem:[%s6 + $0x368] sm:$0xff]
    %v5848 = vld [vmem:[%s6 + $0x370] sm:$0xff]
    %v5849 = vld [vmem:[%s6 + $0x378] sm:$0xff]
    %v5850 = vld [vmem:[%s6 + $0x380] sm:$0xff]
    %v5851 = vld [vmem:[%s6 + $0x388] sm:$0xff]
    %v5852 = vld [vmem:[%s6 + $0x390] sm:$0xff]
    %v5853 = vld [vmem:[%s6 + $0x398] sm:$0xff]
    %v5854 = vld [vmem:[%s6 + $0x3a0] sm:$0xff]
    %v5855 = vld [vmem:[%s6 + $0x3a8] sm:$0xff]
    %v5856 = vld [vmem:[%s6 + $0x3b0] sm:$0xff]
    %v5857 = vld [vmem:[%s6 + $0x3b8] sm:$0xff]
    %v5858 = vld [vmem:[%s6 + $0x3c0] sm:$0xff]
    %v5859 = vld [vmem:[%s6 + $0x3c8] sm:$0xff]
    %v5860 = vld [vmem:[%s6 + $0x3d0] sm:$0xff]
    %v5861 = vld [vmem:[%s6 + $0x3d8] sm:$0xff]
    %v5862 = vld [vmem:[%s6 + $0x3e0] sm:$0xff]
    %v5863 = vld [vmem:[%s6 + $0x3e8] sm:$0xff]
    %v5864 = vld [vmem:[%s6 + $0x3f0] sm:$0xff]
    %v5865 = vld [vmem:[%s6 + $0x3f8] sm:$0xff]
    %v5866 = vld [vmem:[%s6 + $0x400] sm:$0xff]
    %v5867 = vld [vmem:[%s6 + $0x408] sm:$0xff]
    %v5868 = vld [vmem:[%s6 + $0x410] sm:$0xff]
    %v5869 = vld [vmem:[%s6 + $0x418] sm:$0xff]
    %v5870 = vld [vmem:[%s6 + $0x420] sm:$0xff]
    %v5871 = vld [vmem:[%s6 + $0x428] sm:$0xff]
    %v5872 = vld [vmem:[%s6 + $0x430] sm:$0xff]
    %v5873 = vld [vmem:[%s6 + $0x438] sm:$0xff]
    %v5874 = vld [vmem:[%s6 + $0x440] sm:$0xff]
    %v5875 = vld [vmem:[%s6 + $0x448] sm:$0xff]
    %v5876 = vld [vmem:[%s6 + $0x450] sm:$0xff]
    %v5877 = vld [vmem:[%s6 + $0x458] sm:$0xff]
    %v5878 = vld [vmem:[%s6 + $0x460] sm:$0xff]
    %v5879 = vld [vmem:[%s6 + $0x468] sm:$0xff]
    %v5880 = vld [vmem:[%s6 + $0x470] sm:$0xff]
    %v5881 = vld [vmem:[%s6 + $0x478] sm:$0xff]
    %v5882 = vld [vmem:[%s6 + $0x480] sm:$0xff]
    %v5883 = vld [vmem:[%s6 + $0x488] sm:$0xff]
    %v5884 = vld [vmem:[%s6 + $0x490] sm:$0xff]
    %v5885 = vld [vmem:[%s6 + $0x498] sm:$0xff]
    %v5886 = vld [vmem:[%s6 + $0x4a0] sm:$0xff]
    %v5887 = vld [vmem:[%s6 + $0x4a8] sm:$0xff]
    %v5888 = vld [vmem:[%s6 + $0x4b0] sm:$0xff]
    %v5889 = vld [vmem:[%s6 + $0x4b8] sm:$0xff]
    %v5890 = vld [vmem:[%s6 + $0x4c0] sm:$0xff]
    %v5891 = vld [vmem:[%s6 + $0x4c8] sm:$0xff]
    %v5892 = vld [vmem:[%s6 + $0x4d0] sm:$0xff]
    %v5893 = vld [vmem:[%s6 + $0x4d8] sm:$0xff]
    %v5894 = vld [vmem:[%s6 + $0x4e0] sm:$0xff]
    %v5895 = vld [vmem:[%s6 + $0x4e8] sm:$0xff]
    %v5896 = vld [vmem:[%s6 + $0x4f0] sm:$0xff]
    %v5897 = vld [vmem:[%s6 + $0x4f8] sm:$0xff]
    %v5898 = vld [vmem:[%s6 + $0x500] sm:$0xff]
    %v5899 = vld [vmem:[%s6 + $0x508] sm:$0xff]
    %v5900 = vld [vmem:[%s6 + $0x510] sm:$0xff]
    %v5901 = vld [vmem:[%s6 + $0x518] sm:$0xff]
    %v5902 = vld [vmem:[%s6 + $0x520] sm:$0xff]
    %v5903 = vld [vmem:[%s6 + $0x528] sm:$0xff]
    %v5904 = vld [vmem:[%s6 + $0x530] sm:$0xff]
    %v5905 = vld [vmem:[%s6 + $0x538] sm:$0xff]
    %v5906 = vld [vmem:[%s6 + $0x540] sm:$0xff]
    %v5907 = vld [vmem:[%s6 + $0x548] sm:$0xff]
    %v5908 = vld [vmem:[%s6 + $0x550] sm:$0xff]
    %v5909 = vld [vmem:[%s6 + $0x558] sm:$0xff]
    %v5910 = vld [vmem:[%s6 + $0x560] sm:$0xff]
    %v5911 = vld [vmem:[%s6 + $0x568] sm:$0xff]
    %v5912 = vld [vmem:[%s6 + $0x570] sm:$0xff]
    %v5913 = vld [vmem:[%s6 + $0x578] sm:$0xff]
    %v5914 = vld [vmem:[%s6 + $0x580] sm:$0xff]
    %v5915 = vld [vmem:[%s6 + $0x588] sm:$0xff]
    %v5916 = vld [vmem:[%s6 + $0x590] sm:$0xff]
    %v5917 = vld [vmem:[%s6 + $0x598] sm:$0xff]
    %v5918 = vld [vmem:[%s6 + $0x5a0] sm:$0xff]
    %v5919 = vld [vmem:[%s6 + $0x5a8] sm:$0xff]
    %v5920 = vld [vmem:[%s6 + $0x5b0] sm:$0xff]
    %v5921 = vld [vmem:[%s6 + $0x5b8] sm:$0xff]
    %v5922 = vld [vmem:[%s6 + $0x5c0] sm:$0xff]
    %v5923 = vld [vmem:[%s6 + $0x5c8] sm:$0xff]
    %v5924 = vld [vmem:[%s6 + $0x5d0] sm:$0xff]
    %v5925 = vld [vmem:[%s6 + $0x5d8] sm:$0xff]
    %v5926 = vld [vmem:[%s6 + $0x5e0] sm:$0xff]
    %v5927 = vld [vmem:[%s6 + $0x5e8] sm:$0xff]
    %v5928 = vld [vmem:[%s6 + $0x5f0] sm:$0xff]
    %v5929 = vld [vmem:[%s6 + $0x5f8] sm:$0xff]
    %v5930 = vld [vmem:[%s6 + $0x600] sm:$0xff]
    %v5931 = vld [vmem:[%s6 + $0x608] sm:$0xff]
    %v5932 = vld [vmem:[%s6 + $0x610] sm:$0xff]
    %v5933 = vld [vmem:[%s6 + $0x618] sm:$0xff]
    %v5934 = vld [vmem:[%s6 + $0x620] sm:$0xff]
    %v5935 = vld [vmem:[%s6 + $0x628] sm:$0xff]
    %v5936 = vld [vmem:[%s6 + $0x630] sm:$0xff]
    %v5937 = vld [vmem:[%s6 + $0x638] sm:$0xff]
    %v5938 = vld [vmem:[%s6 + $0x640] sm:$0xff]
    %v5939 = vld [vmem:[%s6 + $0x648] sm:$0xff]
    %v5940 = vld [vmem:[%s6 + $0x650] sm:$0xff]
    %v5941 = vld [vmem:[%s6 + $0x658] sm:$0xff]
    %v5942 = vld [vmem:[%s6 + $0x660] sm:$0xff]
    %v5943 = vld [vmem:[%s6 + $0x668] sm:$0xff]
    %v5944 = vld [vmem:[%s6 + $0x670] sm:$0xff]
    %v5945 = vld [vmem:[%s6 + $0x678] sm:$0xff]
    %v5946 = vld [vmem:[%s6 + $0x680] sm:$0xff]
    %v5947 = vld [vmem:[%s6 + $0x688] sm:$0xff]
    %v5948 = vld [vmem:[%s6 + $0x690] sm:$0xff]
    %v5949 = vld [vmem:[%s6 + $0x698] sm:$0xff]
    %v5950 = vld [vmem:[%s6 + $0x6a0] sm:$0xff]
    %v5951 = vld [vmem:[%s6 + $0x6a8] sm:$0xff]
    %v5952 = vld [vmem:[%s6 + $0x6b0] sm:$0xff]
    %v5953 = vld [vmem:[%s6 + $0x6b8] sm:$0xff]
    %v5954 = vld [vmem:[%s6 + $0x6c0] sm:$0xff]
    %v5955 = vld [vmem:[%s6 + $0x6c8] sm:$0xff]
    %v5956 = vld [vmem:[%s6 + $0x6d0] sm:$0xff]
    %v5957 = vld [vmem:[%s6 + $0x6d8] sm:$0xff]
    %v5958 = vld [vmem:[%s6 + $0x6e0] sm:$0xff]
    %v5959 = vld [vmem:[%s6 + $0x6e8] sm:$0xff]
    %v5960 = vld [vmem:[%s6 + $0x6f0] sm:$0xff]
    %v5961 = vld [vmem:[%s6 + $0x6f8] sm:$0xff]
    %v5962 = vld [vmem:[%s6 + $0x700] sm:$0xff]
    %v5963 = vld [vmem:[%s6 + $0x708] sm:$0xff]
    %v5964 = vld [vmem:[%s6 + $0x710] sm:$0xff]
    %v5965 = vld [vmem:[%s6 + $0x718] sm:$0xff]
    %v5966 = vld [vmem:[%s6 + $0x720] sm:$0xff]
    %v5967 = vld [vmem:[%s6 + $0x728] sm:$0xff]
    %v5968 = vld [vmem:[%s6 + $0x730] sm:$0xff]
    %v5969 = vld [vmem:[%s6 + $0x738] sm:$0xff]
    %v5970 = vld [vmem:[%s6 + $0x740] sm:$0xff]
    %v5971 = vld [vmem:[%s6 + $0x748] sm:$0xff]
    %v5972 = vld [vmem:[%s6 + $0x750] sm:$0xff]
    %v5973 = vld [vmem:[%s6 + $0x758] sm:$0xff]
    %v5974 = vld [vmem:[%s6 + $0x760] sm:$0xff]
    %v5975 = vld [vmem:[%s6 + $0x768] sm:$0xff]
    %v5976 = vld [vmem:[%s6 + $0x770] sm:$0xff]
    %v5977 = vld [vmem:[%s6 + $0x778] sm:$0xff]
    %v5978 = vld [vmem:[%s6 + $0x780] sm:$0xff]
    %v5979 = vld [vmem:[%s6 + $0x788] sm:$0xff]
    %v5980 = vld [vmem:[%s6 + $0x790] sm:$0xff]
    %v5981 = vld [vmem:[%s6 + $0x798] sm:$0xff]
    %v5982 = vld [vmem:[%s6 + $0x7a0] sm:$0xff]
    %v5983 = vld [vmem:[%s6 + $0x7a8] sm:$0xff]
    %v5984 = vld [vmem:[%s6 + $0x7b0] sm:$0xff]
    %v5985 = vld [vmem:[%s6 + $0x7b8] sm:$0xff]
    %v5986 = vld [vmem:[%s6 + $0x7c0] sm:$0xff]
    %v5987 = vld [vmem:[%s6 + $0x7c8] sm:$0xff]
    %v5988 = vld [vmem:[%s6 + $0x7d0] sm:$0xff]
    %v5989 = vld [vmem:[%s6 + $0x7d8] sm:$0xff]
    %v5990 = vld [vmem:[%s6 + $0x7e0] sm:$0xff]
    %v5991 = vld [vmem:[%s6 + $0x7e8] sm:$0xff]
    %v5992 = vld [vmem:[%s6 + $0x7f0] sm:$0xff]
    %v5993 = vld [vmem:[%s6 + $0x7f8] sm:$0xff]
    %v5994 = vld [vmem:[%s6 + $0x800] sm:$0xff]
    %v5995 = vld [vmem:[%s6 + $0x808] sm:$0xff]
    %v5996 = vld [vmem:[%s6 + $0x810] sm:$0xff]
    %v5997 = vld [vmem:[%s6 + $0x818] sm:$0xff]
    %v5998 = vld [vmem:[%s6 + $0x820] sm:$0xff]
    %v5999 = vld [vmem:[%s6 + $0x828] sm:$0xff]
    %v6000 = vld [vmem:[%s6 + $0x830] sm:$0xff]
    %v6001 = vld [vmem:[%s6 + $0x838] sm:$0xff]
    %v6002 = vld [vmem:[%s6 + $0x840] sm:$0xff]
    %v6003 = vld [vmem:[%s6 + $0x848] sm:$0xff]
    %v6004 = vld [vmem:[%s6 + $0x850] sm:$0xff]
    %v6005 = vld [vmem:[%s6 + $0x858] sm:$0xff]
    %v6006 = vld [vmem:[%s6 + $0x860] sm:$0xff]
    %v6007 = vld [vmem:[%s6 + $0x868] sm:$0xff]
    %v6008 = vld [vmem:[%s6 + $0x870] sm:$0xff]
    %v6009 = vld [vmem:[%s6 + $0x878] sm:$0xff]
    %v6010 = vld [vmem:[%s6 + $0x880] sm:$0xff]
    %v6011 = vld [vmem:[%s6 + $0x888] sm:$0xff]
    %v6012 = vld [vmem:[%s6 + $0x890] sm:$0xff]
    %v6013 = vld [vmem:[%s6 + $0x898] sm:$0xff]
    %v6014 = vld [vmem:[%s6 + $0x8a0] sm:$0xff]
    %v6015 = vld [vmem:[%s6 + $0x8a8] sm:$0xff]
    %v6016 = vld [vmem:[%s6 + $0x8b0] sm:$0xff]
    %v6017 = vld [vmem:[%s6 + $0x8b8] sm:$0xff]
    %v6018 = vld [vmem:[%s6 + $0x8c0] sm:$0xff]
    %v6019 = vld [vmem:[%s6 + $0x8c8] sm:$0xff]
    %v6020 = vld [vmem:[%s6 + $0x8d0] sm:$0xff]
    %v6021 = vld [vmem:[%s6 + $0x8d8] sm:$0xff]
    %v6022 = vld [vmem:[%s6 + $0x8e0] sm:$0xff]
    %v6023 = vld [vmem:[%s6 + $0x8e8] sm:$0xff]
    %v6024 = vld [vmem:[%s6 + $0x8f0] sm:$0xff]
    %v6025 = vld [vmem:[%s6 + $0x8f8] sm:$0xff]
    %v6026 = vld [vmem:[%s6 + $0x900] sm:$0xff]
    %v6027 = vld [vmem:[%s6 + $0x908] sm:$0xff]
    %v6028 = vld [vmem:[%s6 + $0x910] sm:$0xff]
    %v6029 = vld [vmem:[%s6 + $0x918] sm:$0xff]
    %v6030 = vld [vmem:[%s6 + $0x920] sm:$0xff]
    %v6031 = vld [vmem:[%s6 + $0x928] sm:$0xff]
    %v6032 = vld [vmem:[%s6 + $0x930] sm:$0xff]
    %v6033 = vld [vmem:[%s6 + $0x938] sm:$0xff]
    %v6034 = vld [vmem:[%s6 + $0x940] sm:$0xff]
    %v6035 = vld [vmem:[%s6 + $0x948] sm:$0xff]
    %v6036 = vld [vmem:[%s6 + $0x950] sm:$0xff]
    %v6037 = vld [vmem:[%s6 + $0x958] sm:$0xff]
    %v6038 = vld [vmem:[%s6 + $0x960] sm:$0xff]
    %v6039 = vld [vmem:[%s6 + $0x968] sm:$0xff]
    %v6040 = vld [vmem:[%s6 + $0x970] sm:$0xff]
    %v6041 = vld [vmem:[%s6 + $0x978] sm:$0xff]
    %v6042 = vld [vmem:[%s6 + $0x980] sm:$0xff]
    %v6043 = vld [vmem:[%s6 + $0x988] sm:$0xff]
    %v6044 = vld [vmem:[%s6 + $0x990] sm:$0xff]
    %v6045 = vld [vmem:[%s6 + $0x998] sm:$0xff]
    %v6046 = vld [vmem:[%s6 + $0x9a0] sm:$0xff]
    %v6047 = vld [vmem:[%s6 + $0x9a8] sm:$0xff]
    %v6048 = vld [vmem:[%s6 + $0x9b0] sm:$0xff]
    %v6049 = vld [vmem:[%s6 + $0x9b8] sm:$0xff]
    %v6050 = vld [vmem:[%s6 + $0x9c0] sm:$0xff]
    %v6051 = vld [vmem:[%s6 + $0x9c8] sm:$0xff]
    %v6052 = vld [vmem:[%s6 + $0x9d0] sm:$0xff]
    %v6053 = vld [vmem:[%s6 + $0x9d8] sm:$0xff]
    %v6054 = vld [vmem:[%s6 + $0x9e0] sm:$0xff]
    %v6055 = vld [vmem:[%s6 + $0x9e8] sm:$0xff]
    %v6056 = vld [vmem:[%s6 + $0x9f0] sm:$0xff]
    %v6057 = vld [vmem:[%s6 + $0x9f8] sm:$0xff]
    %v6058 = vld [vmem:[%s6 + $0xa00] sm:$0xff]
    %v6059 = vld [vmem:[%s6 + $0xa08] sm:$0xff]
    %v6060 = vld [vmem:[%s6 + $0xa10] sm:$0xff]
    %v6061 = vld [vmem:[%s6 + $0xa18] sm:$0xff]
    %v6062 = vld [vmem:[%s6 + $0xa20] sm:$0xff]
    %v6063 = vld [vmem:[%s6 + $0xa28] sm:$0xff]
    %v6064 = vld [vmem:[%s6 + $0xa30] sm:$0xff]
    %v6065 = vld [vmem:[%s6 + $0xa38] sm:$0xff]
    %v6066 = vld [vmem:[%s6 + $0xa40] sm:$0xff]
    %v6067 = vld [vmem:[%s6 + $0xa48] sm:$0xff]
    %v6068 = vld [vmem:[%s6 + $0xa50] sm:$0xff]
    %v6069 = vld [vmem:[%s6 + $0xa58] sm:$0xff]
    %v6070 = vld [vmem:[%s6 + $0xa60] sm:$0xff]
    %v6071 = vld [vmem:[%s6 + $0xa68] sm:$0xff]
    %v6072 = vld [vmem:[%s6 + $0xa70] sm:$0xff]
    %v6073 = vld [vmem:[%s6 + $0xa78] sm:$0xff]
    %v6074 = vld [vmem:[%s6 + $0xa80] sm:$0xff]
    %v6075 = vld [vmem:[%s6 + $0xa88] sm:$0xff]
    %v6076 = vld [vmem:[%s6 + $0xa90] sm:$0xff]
    %v6077 = vld [vmem:[%s6 + $0xa98] sm:$0xff]
    %v6078 = vld [vmem:[%s6 + $0xaa0] sm:$0xff]
    %v6079 = vld [vmem:[%s6 + $0xaa8] sm:$0xff]
    %v6080 = vld [vmem:[%s6 + $0xab0] sm:$0xff]
    %v6081 = vld [vmem:[%s6 + $0xab8] sm:$0xff]
    %v6082 = vld [vmem:[%s6 + $0xac0] sm:$0xff]
    %v6083 = vld [vmem:[%s6 + $0xac8] sm:$0xff]
    %v6084 = vld [vmem:[%s6 + $0xad0] sm:$0xff]
    %v6085 = vld [vmem:[%s6 + $0xad8] sm:$0xff]
    %v6086 = vld [vmem:[%s6 + $0xae0] sm:$0xff]
    %v6087 = vld [vmem:[%s6 + $0xae8] sm:$0xff]
    %v6088 = vld [vmem:[%s6 + $0xaf0] sm:$0xff]
    %v6089 = vld [vmem:[%s6 + $0xaf8] sm:$0xff]
    %v6090 = vld [vmem:[%s6 + $0xb00] sm:$0xff]
    %v6091 = vld [vmem:[%s6 + $0xb08] sm:$0xff]
    %v6092 = vld [vmem:[%s6 + $0xb10] sm:$0xff]
    %v6093 = vld [vmem:[%s6 + $0xb18] sm:$0xff]
    %v6094 = vld [vmem:[%s6 + $0xb20] sm:$0xff]
    %v6095 = vld [vmem:[%s6 + $0xb28] sm:$0xff]
    %v6096 = vld [vmem:[%s6 + $0xb30] sm:$0xff]
    %v6097 = vld [vmem:[%s6 + $0xb38] sm:$0xff]
    %v6098 = vld [vmem:[%s6 + $0xb40] sm:$0xff]
    %v6099 = vld [vmem:[%s6 + $0xb48] sm:$0xff]
    %v6100 = vld [vmem:[%s6 + $0xb50] sm:$0xff]
    %v6101 = vld [vmem:[%s6 + $0xb58] sm:$0xff]
    %v6102 = vld [vmem:[%s6 + $0xb60] sm:$0xff]
    %v6103 = vld [vmem:[%s6 + $0xb68] sm:$0xff]
    %v6104 = vld [vmem:[%s6 + $0xb70] sm:$0xff]
    %v6105 = vld [vmem:[%s6 + $0xb78] sm:$0xff]
    %v6106 = vld [vmem:[%s6 + $0xb80] sm:$0xff]
    %v6107 = vld [vmem:[%s6 + $0xb88] sm:$0xff]
    %v6108 = vld [vmem:[%s6 + $0xb90] sm:$0xff]
    %v6109 = vld [vmem:[%s6 + $0xb98] sm:$0xff]
    %v6110 = vld [vmem:[%s6 + $0xba0] sm:$0xff]
    %v6111 = vld [vmem:[%s6 + $0xba8] sm:$0xff]
    %v6112 = vld [vmem:[%s6 + $0xbb0] sm:$0xff]
    %v6113 = vld [vmem:[%s6 + $0xbb8] sm:$0xff]
    %v6114 = vld [vmem:[%s6 + $0xbc0] sm:$0xff]
    %v6115 = vld [vmem:[%s6 + $0xbc8] sm:$0xff]
    %v6116 = vld [vmem:[%s6 + $0xbd0] sm:$0xff]
    %v6117 = vld [vmem:[%s6 + $0xbd8] sm:$0xff]
    %v6118 = vld [vmem:[%s6 + $0xbe0] sm:$0xff]
    %v6119 = vld [vmem:[%s6 + $0xbe8] sm:$0xff]
    %v6120 = vld [vmem:[%s6 + $0xbf0] sm:$0xff]
    %v6121 = vld [vmem:[%s6 + $0xbf8] sm:$0xff]
    %v6122 = vld [vmem:[%s6 + $0xc00] sm:$0xff]
    %v6123 = vld [vmem:[%s6 + $0xc08] sm:$0xff]
    %v6124 = vld [vmem:[%s6 + $0xc10] sm:$0xff]
    %v6125 = vld [vmem:[%s6 + $0xc18] sm:$0xff]
    %v6126 = vld [vmem:[%s6 + $0xc20] sm:$0xff]
    %v6127 = vld [vmem:[%s6 + $0xc28] sm:$0xff]
    %v6128 = vld [vmem:[%s6 + $0xc30] sm:$0xff]
    %v6129 = vld [vmem:[%s6 + $0xc38] sm:$0xff]
    %v6130 = vld [vmem:[%s6 + $0xc40] sm:$0xff]
    %v6131 = vld [vmem:[%s6 + $0xc48] sm:$0xff]
    %v6132 = vld [vmem:[%s6 + $0xc50] sm:$0xff]
    %v6133 = vld [vmem:[%s6 + $0xc58] sm:$0xff]
    %v6134 = vld [vmem:[%s6 + $0xc60] sm:$0xff]
    %v6135 = vld [vmem:[%s6 + $0xc68] sm:$0xff]
    %v6136 = vld [vmem:[%s6 + $0xc70] sm:$0xff]
    %v6137 = vld [vmem:[%s6 + $0xc78] sm:$0xff]
    %v6138 = vld [vmem:[%s6 + $0xc80] sm:$0xff]
    %v6139 = vld [vmem:[%s6 + $0xc88] sm:$0xff]
    %v6140 = vld [vmem:[%s6 + $0xc90] sm:$0xff]
    %v6141 = vld [vmem:[%s6 + $0xc98] sm:$0xff]
    %v6142 = vld [vmem:[%s6 + $0xca0] sm:$0xff]
    %v6143 = vld [vmem:[%s6 + $0xca8] sm:$0xff]
    %v6144 = vld [vmem:[%s6 + $0xcb0] sm:$0xff]
    %v6145 = vld [vmem:[%s6 + $0xcb8] sm:$0xff]
    %v6146 = vld [vmem:[%s6 + $0xcc0] sm:$0xff]
    %v6147 = vld [vmem:[%s6 + $0xcc8] sm:$0xff]
    %v6148 = vld [vmem:[%s6 + $0xcd0] sm:$0xff]
    %v6149 = vld [vmem:[%s6 + $0xcd8] sm:$0xff]
    %v6150 = vld [vmem:[%s6 + $0xce0] sm:$0xff]
    %v6151 = vld [vmem:[%s6 + $0xce8] sm:$0xff]
    %v6152 = vld [vmem:[%s6 + $0xcf0] sm:$0xff]
    %v6153 = vld [vmem:[%s6 + $0xcf8] sm:$0xff]
    %v6154 = vmul.f32 %v5738, %v5634
    %v6155 = vmul.f32 %v5739, %v5635
    %v6156 = vmul.f32 %v5740, %v5636
    %v6157 = vmul.f32 %v5741, %v5637
    %v6158 = vmul.f32 %v5742, %v5638
    %v6159 = vmul.f32 %v5743, %v5639
    %v6160 = vmul.f32 %v5744, %v5640
    %v6161 = vmul.f32 %v5745, %v5641
    %v6162 = vmul.f32 %v5746, %v5642
    %v6163 = vmul.f32 %v5747, %v5643
    %v6164 = vmul.f32 %v5748, %v5644
    %v6165 = vmul.f32 %v5749, %v5645
    %v6166 = vmul.f32 %v5750, %v5646
    %v6167 = vmul.f32 %v5751, %v5647
    %v6168 = vmul.f32 %v5752, %v5648
    %v6169 = vmul.f32 %v5753, %v5649
    %v6170 = vmul.f32 %v5754, %v5650
    %v6171 = vmul.f32 %v5755, %v5651
    %v6172 = vmul.f32 %v5756, %v5652
    %v6173 = vmul.f32 %v5757, %v5653
    %v6174 = vmul.f32 %v5758, %v5654
    %v6175 = vmul.f32 %v5759, %v5655
    %v6176 = vmul.f32 %v5760, %v5656
    %v6177 = vmul.f32 %v5761, %v5657
    %v6178 = vmul.f32 %v5762, %v5658
    %v6179 = vmul.f32 %v5763, %v5659
    %v6180 = vmul.f32 %v5764, %v5660
    %v6181 = vmul.f32 %v5765, %v5661
    %v6182 = vmul.f32 %v5766, %v5662
    %v6183 = vmul.f32 %v5767, %v5663
    %v6184 = vmul.f32 %v5768, %v5664
    %v6185 = vmul.f32 %v5769, %v5665
    %v6186 = vmul.f32 %v5770, %v5666
    %v6187 = vmul.f32 %v5771, %v5667
    %v6188 = vmul.f32 %v5772, %v5668
    %v6189 = vmul.f32 %v5773, %v5669
    %v6190 = vmul.f32 %v5774, %v5670
    %v6191 = vmul.f32 %v5775, %v5671
    %v6192 = vmul.f32 %v5776, %v5672
    %v6193 = vmul.f32 %v5777, %v5673
    %v6194 = vmul.f32 %v5778, %v5674
    %v6195 = vmul.f32 %v5779, %v5675
    %v6196 = vmul.f32 %v5780, %v5676
    %v6197 = vmul.f32 %v5781, %v5677
    %v6198 = vmul.f32 %v5782, %v5678
    %v6199 = vmul.f32 %v5783, %v5679
    %v6200 = vmul.f32 %v5784, %v5680
    %v6201 = vmul.f32 %v5785, %v5681
    %v6202 = vmul.f32 %v5786, %v5682
    %v6203 = vmul.f32 %v5787, %v5683
    %v6204 = vmul.f32 %v5788, %v5684
    %v6205 = vmul.f32 %v5789, %v5685
    %v6206 = vmul.f32 %v5790, %v5686
    %v6207 = vmul.f32 %v5791, %v5687
    %v6208 = vmul.f32 %v5792, %v5688
    %v6209 = vmul.f32 %v5793, %v5689
    %v6210 = vmul.f32 %v5794, %v5690
    %v6211 = vmul.f32 %v5795, %v5691
    %v6212 = vmul.f32 %v5796, %v5692
    %v6213 = vmul.f32 %v5797, %v5693
    %v6214 = vmul.f32 %v5798, %v5694
    %v6215 = vmul.f32 %v5799, %v5695
    %v6216 = vmul.f32 %v5800, %v5696
    %v6217 = vmul.f32 %v5801, %v5697
    %v6218 = vmul.f32 %v5802, %v5698
    %v6219 = vmul.f32 %v5803, %v5699
    %v6220 = vmul.f32 %v5804, %v5700
    %v6221 = vmul.f32 %v5805, %v5701
    %v6222 = vmul.f32 %v5806, %v5702
    %v6223 = vmul.f32 %v5807, %v5703
    %v6224 = vmul.f32 %v5808, %v5704
    %v6225 = vmul.f32 %v5809, %v5705
    %v6226 = vmul.f32 %v5810, %v5706
    %v6227 = vmul.f32 %v5811, %v5707
    %v6228 = vmul.f32 %v5812, %v5708
    %v6229 = vmul.f32 %v5813, %v5709
    %v6230 = vmul.f32 %v5814, %v5710
    %v6231 = vmul.f32 %v5815, %v5711
    %v6232 = vmul.f32 %v5816, %v5712
    %v6233 = vmul.f32 %v5817, %v5713
    %v6234 = vmul.f32 %v5818, %v5714
    %v6235 = vmul.f32 %v5819, %v5715
    %v6236 = vmul.f32 %v5820, %v5716
    %v6237 = vmul.f32 %v5821, %v5717
    %v6238 = vmul.f32 %v5822, %v5718
    %v6239 = vmul.f32 %v5823, %v5719
    %v6240 = vmul.f32 %v5824, %v5720
    %v6241 = vmul.f32 %v5825, %v5721
    %v6242 = vmul.f32 %v5826, %v5722
    %v6243 = vmul.f32 %v5827, %v5723
    %v6244 = vmul.f32 %v5828, %v5724
    %v6245 = vmul.f32 %v5829, %v5725
    %v6246 = vmul.f32 %v5830, %v5726
    %v6247 = vmul.f32 %v5831, %v5727
    %v6248 = vmul.f32 %v5832, %v5728
    %v6249 = vmul.f32 %v5833, %v5729
    %v6250 = vmul.f32 %v5834, %v5730
    %v6251 = vmul.f32 %v5835, %v5731
    %v6252 = vmul.f32 %v5836, %v5732
    %v6253 = vmul.f32 %v5837, %v5733
    %v6254 = vmul.f32 %v5838, %v5734
    %v6255 = vmul.f32 %v5839, %v5735
    %v6256 = vmul.f32 %v5840, %v5736
    %v6257 = vmul.f32 %v5841, %v5737
    %v6258 = vmul.f32 %v5842, %v5634
    %v6259 = vmul.f32 %v5843, %v5635
    %v6260 = vmul.f32 %v5844, %v5636
    %v6261 = vmul.f32 %v5845, %v5637
    %v6262 = vmul.f32 %v5846, %v5638
    %v6263 = vmul.f32 %v5847, %v5639
    %v6264 = vmul.f32 %v5848, %v5640
    %v6265 = vmul.f32 %v5849, %v5641
    %v6266 = vmul.f32 %v5850, %v5642
    %v6267 = vmul.f32 %v5851, %v5643
    %v6268 = vmul.f32 %v5852, %v5644
    %v6269 = vmul.f32 %v5853, %v5645
    %v6270 = vmul.f32 %v5854, %v5646
    %v6271 = vmul.f32 %v5855, %v5647
    %v6272 = vmul.f32 %v5856, %v5648
    %v6273 = vmul.f32 %v5857, %v5649
    %v6274 = vmul.f32 %v5858, %v5650
    %v6275 = vmul.f32 %v5859, %v5651
    %v6276 = vmul.f32 %v5860, %v5652
    %v6277 = vmul.f32 %v5861, %v5653
    %v6278 = vmul.f32 %v5862, %v5654
    %v6279 = vmul.f32 %v5863, %v5655
    %v6280 = vmul.f32 %v5864, %v5656
    %v6281 = vmul.f32 %v5865, %v5657
    %v6282 = vmul.f32 %v5866, %v5658
    %v6283 = vmul.f32 %v5867, %v5659
    %v6284 = vmul.f32 %v5868, %v5660
    %v6285 = vmul.f32 %v5869, %v5661
    %v6286 = vmul.f32 %v5870, %v5662
    %v6287 = vmul.f32 %v5871, %v5663
    %v6288 = vmul.f32 %v5872, %v5664
    %v6289 = vmul.f32 %v5873, %v5665
    %v6290 = vmul.f32 %v5874, %v5666
    %v6291 = vmul.f32 %v5875, %v5667
    %v6292 = vmul.f32 %v5876, %v5668
    %v6293 = vmul.f32 %v5877, %v5669
    %v6294 = vmul.f32 %v5878, %v5670
    %v6295 = vmul.f32 %v5879, %v5671
    %v6296 = vmul.f32 %v5880, %v5672
    %v6297 = vmul.f32 %v5881, %v5673
    %v6298 = vmul.f32 %v5882, %v5674
    %v6299 = vmul.f32 %v5883, %v5675
    %v6300 = vmul.f32 %v5884, %v5676
    %v6301 = vmul.f32 %v5885, %v5677
    %v6302 = vmul.f32 %v5886, %v5678
    %v6303 = vmul.f32 %v5887, %v5679
    %v6304 = vmul.f32 %v5888, %v5680
    %v6305 = vmul.f32 %v5889, %v5681
    %v6306 = vmul.f32 %v5890, %v5682
    %v6307 = vmul.f32 %v5891, %v5683
    %v6308 = vmul.f32 %v5892, %v5684
    %v6309 = vmul.f32 %v5893, %v5685
    %v6310 = vmul.f32 %v5894, %v5686
    %v6311 = vmul.f32 %v5895, %v5687
    %v6312 = vmul.f32 %v5896, %v5688
    %v6313 = vmul.f32 %v5897, %v5689
    %v6314 = vmul.f32 %v5898, %v5690
    %v6315 = vmul.f32 %v5899, %v5691
    %v6316 = vmul.f32 %v5900, %v5692
    %v6317 = vmul.f32 %v5901, %v5693
    %v6318 = vmul.f32 %v5902, %v5694
    %v6319 = vmul.f32 %v5903, %v5695
    %v6320 = vmul.f32 %v5904, %v5696
    %v6321 = vmul.f32 %v5905, %v5697
    %v6322 = vmul.f32 %v5906, %v5698
    %v6323 = vmul.f32 %v5907, %v5699
    %v6324 = vmul.f32 %v5908, %v5700
    %v6325 = vmul.f32 %v5909, %v5701
    %v6326 = vmul.f32 %v5910, %v5702
    %v6327 = vmul.f32 %v5911, %v5703
    %v6328 = vmul.f32 %v5912, %v5704
    %v6329 = vmul.f32 %v5913, %v5705
    %v6330 = vmul.f32 %v5914, %v5706
    %v6331 = vmul.f32 %v5915, %v5707
    %v6332 = vmul.f32 %v5916, %v5708
    %v6333 = vmul.f32 %v5917, %v5709
    %v6334 = vmul.f32 %v5918, %v5710
    %v6335 = vmul.f32 %v5919, %v5711
    %v6336 = vmul.f32 %v5920, %v5712
    %v6337 = vmul.f32 %v5921, %v5713
    %v6338 = vmul.f32 %v5922, %v5714
    %v6339 = vmul.f32 %v5923, %v5715
    %v6340 = vmul.f32 %v5924, %v5716
    %v6341 = vmul.f32 %v5925, %v5717
    %v6342 = vmul.f32 %v5926, %v5718
    %v6343 = vmul.f32 %v5927, %v5719
    %v6344 = vmul.f32 %v5928, %v5720
    %v6345 = vmul.f32 %v5929, %v5721
    %v6346 = vmul.f32 %v5930, %v5722
    %v6347 = vmul.f32 %v5931, %v5723
    %v6348 = vmul.f32 %v5932, %v5724
    %v6349 = vmul.f32 %v5933, %v5725
    %v6350 = vmul.f32 %v5934, %v5726
    %v6351 = vmul.f32 %v5935, %v5727
    %v6352 = vmul.f32 %v5936, %v5728
    %v6353 = vmul.f32 %v5937, %v5729
    %v6354 = vmul.f32 %v5938, %v5730
    %v6355 = vmul.f32 %v5939, %v5731
    %v6356 = vmul.f32 %v5940, %v5732
    %v6357 = vmul.f32 %v5941, %v5733
    %v6358 = vmul.f32 %v5942, %v5734
    %v6359 = vmul.f32 %v5943, %v5735
    %v6360 = vmul.f32 %v5944, %v5736
    %v6361 = vmul.f32 %v5945, %v5737
    %v6362 = vmul.f32 %v5946, %v5634
    %v6363 = vmul.f32 %v5947, %v5635
    %v6364 = vmul.f32 %v5948, %v5636
    %v6365 = vmul.f32 %v5949, %v5637
    %v6366 = vmul.f32 %v5950, %v5638
    %v6367 = vmul.f32 %v5951, %v5639
    %v6368 = vmul.f32 %v5952, %v5640
    %v6369 = vmul.f32 %v5953, %v5641
    %v6370 = vmul.f32 %v5954, %v5642
    %v6371 = vmul.f32 %v5955, %v5643
    %v6372 = vmul.f32 %v5956, %v5644
    %v6373 = vmul.f32 %v5957, %v5645
    %v6374 = vmul.f32 %v5958, %v5646
    %v6375 = vmul.f32 %v5959, %v5647
    %v6376 = vmul.f32 %v5960, %v5648
    %v6377 = vmul.f32 %v5961, %v5649
    %v6378 = vmul.f32 %v5962, %v5650
    %v6379 = vmul.f32 %v5963, %v5651
    %v6380 = vmul.f32 %v5964, %v5652
    %v6381 = vmul.f32 %v5965, %v5653
    %v6382 = vmul.f32 %v5966, %v5654
    %v6383 = vmul.f32 %v5967, %v5655
    %v6384 = vmul.f32 %v5968, %v5656
    %v6385 = vmul.f32 %v5969, %v5657
    %v6386 = vmul.f32 %v5970, %v5658
    %v6387 = vmul.f32 %v5971, %v5659
    %v6388 = vmul.f32 %v5972, %v5660
    %v6389 = vmul.f32 %v5973, %v5661
    %v6390 = vmul.f32 %v5974, %v5662
    %v6391 = vmul.f32 %v5975, %v5663
    %v6392 = vmul.f32 %v5976, %v5664
    %v6393 = vmul.f32 %v5977, %v5665
    %v6394 = vmul.f32 %v5978, %v5666
    %v6395 = vmul.f32 %v5979, %v5667
    %v6396 = vmul.f32 %v5980, %v5668
    %v6397 = vmul.f32 %v5981, %v5669
    %v6398 = vmul.f32 %v5982, %v5670
    %v6399 = vmul.f32 %v5983, %v5671
    %v6400 = vmul.f32 %v5984, %v5672
    %v6401 = vmul.f32 %v5985, %v5673
    %v6402 = vmul.f32 %v5986, %v5674
    %v6403 = vmul.f32 %v5987, %v5675
    %v6404 = vmul.f32 %v5988, %v5676
    %v6405 = vmul.f32 %v5989, %v5677
    %v6406 = vmul.f32 %v5990, %v5678
    %v6407 = vmul.f32 %v5991, %v5679
    %v6408 = vmul.f32 %v5992, %v5680
    %v6409 = vmul.f32 %v5993, %v5681
    %v6410 = vmul.f32 %v5994, %v5682
    %v6411 = vmul.f32 %v5995, %v5683
    %v6412 = vmul.f32 %v5996, %v5684
    %v6413 = vmul.f32 %v5997, %v5685
    %v6414 = vmul.f32 %v5998, %v5686
    %v6415 = vmul.f32 %v5999, %v5687
    %v6416 = vmul.f32 %v6000, %v5688
    %v6417 = vmul.f32 %v6001, %v5689
    %v6418 = vmul.f32 %v6002, %v5690
    %v6419 = vmul.f32 %v6003, %v5691
    %v6420 = vmul.f32 %v6004, %v5692
    %v6421 = vmul.f32 %v6005, %v5693
    %v6422 = vmul.f32 %v6006, %v5694
    %v6423 = vmul.f32 %v6007, %v5695
    %v6424 = vmul.f32 %v6008, %v5696
    %v6425 = vmul.f32 %v6009, %v5697
    %v6426 = vmul.f32 %v6010, %v5698
    %v6427 = vmul.f32 %v6011, %v5699
    %v6428 = vmul.f32 %v6012, %v5700
    %v6429 = vmul.f32 %v6013, %v5701
    %v6430 = vmul.f32 %v6014, %v5702
    %v6431 = vmul.f32 %v6015, %v5703
    %v6432 = vmul.f32 %v6016, %v5704
    %v6433 = vmul.f32 %v6017, %v5705
    %v6434 = vmul.f32 %v6018, %v5706
    %v6435 = vmul.f32 %v6019, %v5707
    %v6436 = vmul.f32 %v6020, %v5708
    %v6437 = vmul.f32 %v6021, %v5709
    %v6438 = vmul.f32 %v6022, %v5710
    %v6439 = vmul.f32 %v6023, %v5711
    %v6440 = vmul.f32 %v6024, %v5712
    %v6441 = vmul.f32 %v6025, %v5713
    %v6442 = vmul.f32 %v6026, %v5714
    %v6443 = vmul.f32 %v6027, %v5715
    %v6444 = vmul.f32 %v6028, %v5716
    %v6445 = vmul.f32 %v6029, %v5717
    %v6446 = vmul.f32 %v6030, %v5718
    %v6447 = vmul.f32 %v6031, %v5719
    %v6448 = vmul.f32 %v6032, %v5720
    %v6449 = vmul.f32 %v6033, %v5721
    %v6450 = vmul.f32 %v6034, %v5722
    %v6451 = vmul.f32 %v6035, %v5723
    %v6452 = vmul.f32 %v6036, %v5724
    %v6453 = vmul.f32 %v6037, %v5725
    %v6454 = vmul.f32 %v6038, %v5726
    %v6455 = vmul.f32 %v6039, %v5727
    %v6456 = vmul.f32 %v6040, %v5728
    %v6457 = vmul.f32 %v6041, %v5729
    %v6458 = vmul.f32 %v6042, %v5730
    %v6459 = vmul.f32 %v6043, %v5731
    %v6460 = vmul.f32 %v6044, %v5732
    %v6461 = vmul.f32 %v6045, %v5733
    %v6462 = vmul.f32 %v6046, %v5734
    %v6463 = vmul.f32 %v6047, %v5735
    %v6464 = vmul.f32 %v6048, %v5736
    %v6465 = vmul.f32 %v6049, %v5737
    %v6466 = vmul.f32 %v6050, %v5634
    %v6467 = vmul.f32 %v6051, %v5635
    %v6468 = vmul.f32 %v6052, %v5636
    %v6469 = vmul.f32 %v6053, %v5637
    %v6470 = vmul.f32 %v6054, %v5638
    %v6471 = vmul.f32 %v6055, %v5639
    %v6472 = vmul.f32 %v6056, %v5640
    %v6473 = vmul.f32 %v6057, %v5641
    %v6474 = vmul.f32 %v6058, %v5642
    %v6475 = vmul.f32 %v6059, %v5643
    %v6476 = vmul.f32 %v6060, %v5644
    %v6477 = vmul.f32 %v6061, %v5645
    %v6478 = vmul.f32 %v6062, %v5646
    %v6479 = vmul.f32 %v6063, %v5647
    %v6480 = vmul.f32 %v6064, %v5648
    %v6481 = vmul.f32 %v6065, %v5649
    %v6482 = vmul.f32 %v6066, %v5650
    %v6483 = vmul.f32 %v6067, %v5651
    %v6484 = vmul.f32 %v6068, %v5652
    %v6485 = vmul.f32 %v6069, %v5653
    %v6486 = vmul.f32 %v6070, %v5654
    %v6487 = vmul.f32 %v6071, %v5655
    %v6488 = vmul.f32 %v6072, %v5656
    %v6489 = vmul.f32 %v6073, %v5657
    %v6490 = vmul.f32 %v6074, %v5658
    %v6491 = vmul.f32 %v6075, %v5659
    %v6492 = vmul.f32 %v6076, %v5660
    %v6493 = vmul.f32 %v6077, %v5661
    %v6494 = vmul.f32 %v6078, %v5662
    %v6495 = vmul.f32 %v6079, %v5663
    %v6496 = vmul.f32 %v6080, %v5664
    %v6497 = vmul.f32 %v6081, %v5665
    %v6498 = vmul.f32 %v6082, %v5666
    %v6499 = vmul.f32 %v6083, %v5667
    %v6500 = vmul.f32 %v6084, %v5668
    %v6501 = vmul.f32 %v6085, %v5669
    %v6502 = vmul.f32 %v6086, %v5670
    %v6503 = vmul.f32 %v6087, %v5671
    %v6504 = vmul.f32 %v6088, %v5672
    %v6505 = vmul.f32 %v6089, %v5673
    %v6506 = vmul.f32 %v6090, %v5674
    %v6507 = vmul.f32 %v6091, %v5675
    %v6508 = vmul.f32 %v6092, %v5676
    %v6509 = vmul.f32 %v6093, %v5677
    %v6510 = vmul.f32 %v6094, %v5678
    %v6511 = vmul.f32 %v6095, %v5679
    %v6512 = vmul.f32 %v6096, %v5680
    %v6513 = vmul.f32 %v6097, %v5681
    %v6514 = vmul.f32 %v6098, %v5682
    %v6515 = vmul.f32 %v6099, %v5683
    %v6516 = vmul.f32 %v6100, %v5684
    %v6517 = vmul.f32 %v6101, %v5685
    %v6518 = vmul.f32 %v6102, %v5686
    %v6519 = vmul.f32 %v6103, %v5687
    %v6520 = vmul.f32 %v6104, %v5688
    %v6521 = vmul.f32 %v6105, %v5689
    %v6522 = vmul.f32 %v6106, %v5690
    %v6523 = vmul.f32 %v6107, %v5691
    %v6524 = vmul.f32 %v6108, %v5692
    %v6525 = vmul.f32 %v6109, %v5693
    %v6526 = vmul.f32 %v6110, %v5694
    %v6527 = vmul.f32 %v6111, %v5695
    %v6528 = vmul.f32 %v6112, %v5696
    %v6529 = vmul.f32 %v6113, %v5697
    %v6530 = vmul.f32 %v6114, %v5698
    %v6531 = vmul.f32 %v6115, %v5699
    %v6532 = vmul.f32 %v6116, %v5700
    %v6533 = vmul.f32 %v6117, %v5701
    %v6534 = vmul.f32 %v6118, %v5702
    %v6535 = vmul.f32 %v6119, %v5703
    %v6536 = vmul.f32 %v6120, %v5704
    %v6537 = vmul.f32 %v6121, %v5705
    %v6538 = vmul.f32 %v6122, %v5706
    %v6539 = vmul.f32 %v6123, %v5707
    %v6540 = vmul.f32 %v6124, %v5708
    %v6541 = vmul.f32 %v6125, %v5709
    %v6542 = vmul.f32 %v6126, %v5710
    %v6543 = vmul.f32 %v6127, %v5711
    %v6544 = vmul.f32 %v6128, %v5712
    %v6545 = vmul.f32 %v6129, %v5713
    %v6546 = vmul.f32 %v6130, %v5714
    %v6547 = vmul.f32 %v6131, %v5715
    %v6548 = vmul.f32 %v6132, %v5716
    %v6549 = vmul.f32 %v6133, %v5717
    %v6550 = vmul.f32 %v6134, %v5718
    %v6551 = vmul.f32 %v6135, %v5719
    %v6552 = vmul.f32 %v6136, %v5720
    %v6553 = vmul.f32 %v6137, %v5721
    %v6554 = vmul.f32 %v6138, %v5722
    %v6555 = vmul.f32 %v6139, %v5723
    %v6556 = vmul.f32 %v6140, %v5724
    %v6557 = vmul.f32 %v6141, %v5725
    %v6558 = vmul.f32 %v6142, %v5726
    %v6559 = vmul.f32 %v6143, %v5727
    %v6560 = vmul.f32 %v6144, %v5728
    %v6561 = vmul.f32 %v6145, %v5729
    %v6562 = vmul.f32 %v6146, %v5730
    %v6563 = vmul.f32 %v6147, %v5731
    %v6564 = vmul.f32 %v6148, %v5732
    %v6565 = vmul.f32 %v6149, %v5733
    %v6566 = vmul.f32 %v6150, %v5734
    %v6567 = vmul.f32 %v6151, %v5735
    %v6568 = vmul.f32 %v6152, %v5736
    %v6569 = vmul.f32 %v6153, %v5737
    %v6570 = vadd.f32 %v6154, %v6155
    %v6571 = vadd.f32 %v6570, %v6156
    %v6572 = vadd.f32 %v6571, %v6157
    %v6573 = vadd.f32 %v6572, %v6158
    %v6574 = vadd.f32 %v6573, %v6159
    %v6575 = vadd.f32 %v6574, %v6160
    %v6576 = vadd.f32 %v6575, %v6161
    %v6577 = vadd.f32 %v6576, %v6162
    %v6578 = vadd.f32 %v6577, %v6163
    %v6579 = vadd.f32 %v6578, %v6164
    %v6580 = vadd.f32 %v6579, %v6165
    %vm6581 = vcmask 523264
    %v6582 = vsel %vm6581, %v6166, 0.0
    %v6583 = vadd.f32 %v6580, %v6582
    %6584 = vadd.xlane.f32.xlu0 %v6583
    %v6585 = vpop.xlane.xlu0 %6584
    %v6586 = vadd.f32 %v6167, %v6168
    %v6587 = vadd.f32 %v6586, %v6169
    %v6588 = vadd.f32 %v6587, %v6170
    %v6589 = vadd.f32 %v6588, %v6171
    %v6590 = vadd.f32 %v6589, %v6172
    %v6591 = vadd.f32 %v6590, %v6173
    %v6592 = vadd.f32 %v6591, %v6174
    %v6593 = vadd.f32 %v6592, %v6175
    %v6594 = vadd.f32 %v6593, %v6176
    %v6595 = vadd.f32 %v6594, %v6177
    %v6596 = vadd.f32 %v6595, %v6178
    %v6597 = vsel %vm6581, %v6179, 0.0
    %v6598 = vadd.f32 %v6596, %v6597
    %6599 = vadd.xlane.f32.xlu0 %v6598
    %v6600 = vpop.xlane.xlu0 %6599
    %v6601 = vadd.f32 %v6180, %v6181
    %v6602 = vadd.f32 %v6601, %v6182
    %v6603 = vadd.f32 %v6602, %v6183
    %v6604 = vadd.f32 %v6603, %v6184
    %v6605 = vadd.f32 %v6604, %v6185
    %v6606 = vadd.f32 %v6605, %v6186
    %v6607 = vadd.f32 %v6606, %v6187
    %v6608 = vadd.f32 %v6607, %v6188
    %v6609 = vadd.f32 %v6608, %v6189
    %v6610 = vadd.f32 %v6609, %v6190
    %v6611 = vadd.f32 %v6610, %v6191
    %v6612 = vsel %vm6581, %v6192, 0.0
    %v6613 = vadd.f32 %v6611, %v6612
    %6614 = vadd.xlane.f32.xlu0 %v6613
    %v6615 = vpop.xlane.xlu0 %6614
    %v6616 = vadd.f32 %v6193, %v6194
    %v6617 = vadd.f32 %v6616, %v6195
    %v6618 = vadd.f32 %v6617, %v6196
    %v6619 = vadd.f32 %v6618, %v6197
    %v6620 = vadd.f32 %v6619, %v6198
    %v6621 = vadd.f32 %v6620, %v6199
    %v6622 = vadd.f32 %v6621, %v6200
    %v6623 = vadd.f32 %v6622, %v6201
    %v6624 = vadd.f32 %v6623, %v6202
    %v6625 = vadd.f32 %v6624, %v6203
    %v6626 = vadd.f32 %v6625, %v6204
    %v6627 = vsel %vm6581, %v6205, 0.0
    %v6628 = vadd.f32 %v6626, %v6627
    %6629 = vadd.xlane.f32.xlu0 %v6628
    %v6630 = vpop.xlane.xlu0 %6629
    %v6631 = vadd.f32 %v6206, %v6207
    %v6632 = vadd.f32 %v6631, %v6208
    %v6633 = vadd.f32 %v6632, %v6209
    %v6634 = vadd.f32 %v6633, %v6210
    %v6635 = vadd.f32 %v6634, %v6211
    %v6636 = vadd.f32 %v6635, %v6212
    %v6637 = vadd.f32 %v6636, %v6213
    %v6638 = vadd.f32 %v6637, %v6214
    %v6639 = vadd.f32 %v6638, %v6215
    %v6640 = vadd.f32 %v6639, %v6216
    %v6641 = vadd.f32 %v6640, %v6217
    %v6642 = vsel %vm6581, %v6218, 0.0
    %v6643 = vadd.f32 %v6641, %v6642
    %6644 = vadd.xlane.f32.xlu0 %v6643
    %v6645 = vpop.xlane.xlu0 %6644
    %v6646 = vadd.f32 %v6219, %v6220
    %v6647 = vadd.f32 %v6646, %v6221
    %v6648 = vadd.f32 %v6647, %v6222
    %v6649 = vadd.f32 %v6648, %v6223
    %v6650 = vadd.f32 %v6649, %v6224
    %v6651 = vadd.f32 %v6650, %v6225
    %v6652 = vadd.f32 %v6651, %v6226
    %v6653 = vadd.f32 %v6652, %v6227
    %v6654 = vadd.f32 %v6653, %v6228
    %v6655 = vadd.f32 %v6654, %v6229
    %v6656 = vadd.f32 %v6655, %v6230
    %v6657 = vsel %vm6581, %v6231, 0.0
    %v6658 = vadd.f32 %v6656, %v6657
    %6659 = vadd.xlane.f32.xlu0 %v6658
    %v6660 = vpop.xlane.xlu0 %6659
    %v6661 = vadd.f32 %v6232, %v6233
    %v6662 = vadd.f32 %v6661, %v6234
    %v6663 = vadd.f32 %v6662, %v6235
    %v6664 = vadd.f32 %v6663, %v6236
    %v6665 = vadd.f32 %v6664, %v6237
    %v6666 = vadd.f32 %v6665, %v6238
    %v6667 = vadd.f32 %v6666, %v6239
    %v6668 = vadd.f32 %v6667, %v6240
    %v6669 = vadd.f32 %v6668, %v6241
    %v6670 = vadd.f32 %v6669, %v6242
    %v6671 = vadd.f32 %v6670, %v6243
    %v6672 = vsel %vm6581, %v6244, 0.0
    %v6673 = vadd.f32 %v6671, %v6672
    %6674 = vadd.xlane.f32.xlu0 %v6673
    %v6675 = vpop.xlane.xlu0 %6674
    %v6676 = vadd.f32 %v6245, %v6246
    %v6677 = vadd.f32 %v6676, %v6247
    %v6678 = vadd.f32 %v6677, %v6248
    %v6679 = vadd.f32 %v6678, %v6249
    %v6680 = vadd.f32 %v6679, %v6250
    %v6681 = vadd.f32 %v6680, %v6251
    %v6682 = vadd.f32 %v6681, %v6252
    %v6683 = vadd.f32 %v6682, %v6253
    %v6684 = vadd.f32 %v6683, %v6254
    %v6685 = vadd.f32 %v6684, %v6255
    %v6686 = vadd.f32 %v6685, %v6256
    %v6687 = vsel %vm6581, %v6257, 0.0
    %v6688 = vadd.f32 %v6686, %v6687
    %6689 = vadd.xlane.f32.xlu0 %v6688
    %v6690 = vpop.xlane.xlu0 %6689
    %v6691 = vadd.f32 %v6258, %v6259
    %v6692 = vadd.f32 %v6691, %v6260
    %v6693 = vadd.f32 %v6692, %v6261
    %v6694 = vadd.f32 %v6693, %v6262
    %v6695 = vadd.f32 %v6694, %v6263
    %v6696 = vadd.f32 %v6695, %v6264
    %v6697 = vadd.f32 %v6696, %v6265
    %v6698 = vadd.f32 %v6697, %v6266
    %v6699 = vadd.f32 %v6698, %v6267
    %v6700 = vadd.f32 %v6699, %v6268
    %v6701 = vadd.f32 %v6700, %v6269
    %v6702 = vsel %vm6581, %v6270, 0.0
    %v6703 = vadd.f32 %v6701, %v6702
    %6704 = vadd.xlane.f32.xlu0 %v6703
    %v6705 = vpop.xlane.xlu0 %6704
    %v6706 = vadd.f32 %v6271, %v6272
    %v6707 = vadd.f32 %v6706, %v6273
    %v6708 = vadd.f32 %v6707, %v6274
    %v6709 = vadd.f32 %v6708, %v6275
    %v6710 = vadd.f32 %v6709, %v6276
    %v6711 = vadd.f32 %v6710, %v6277
    %v6712 = vadd.f32 %v6711, %v6278
    %v6713 = vadd.f32 %v6712, %v6279
    %v6714 = vadd.f32 %v6713, %v6280
    %v6715 = vadd.f32 %v6714, %v6281
    %v6716 = vadd.f32 %v6715, %v6282
    %v6717 = vsel %vm6581, %v6283, 0.0
    %v6718 = vadd.f32 %v6716, %v6717
    %6719 = vadd.xlane.f32.xlu0 %v6718
    %v6720 = vpop.xlane.xlu0 %6719
    %v6721 = vadd.f32 %v6284, %v6285
    %v6722 = vadd.f32 %v6721, %v6286
    %v6723 = vadd.f32 %v6722, %v6287
    %v6724 = vadd.f32 %v6723, %v6288
    %v6725 = vadd.f32 %v6724, %v6289
    %v6726 = vadd.f32 %v6725, %v6290
    %v6727 = vadd.f32 %v6726, %v6291
    %v6728 = vadd.f32 %v6727, %v6292
    %v6729 = vadd.f32 %v6728, %v6293
    %v6730 = vadd.f32 %v6729, %v6294
    %v6731 = vadd.f32 %v6730, %v6295
    %v6732 = vsel %vm6581, %v6296, 0.0
    %v6733 = vadd.f32 %v6731, %v6732
    %6734 = vadd.xlane.f32.xlu0 %v6733
    %v6735 = vpop.xlane.xlu0 %6734
    %v6736 = vadd.f32 %v6297, %v6298
    %v6737 = vadd.f32 %v6736, %v6299
    %v6738 = vadd.f32 %v6737, %v6300
    %v6739 = vadd.f32 %v6738, %v6301
    %v6740 = vadd.f32 %v6739, %v6302
    %v6741 = vadd.f32 %v6740, %v6303
    %v6742 = vadd.f32 %v6741, %v6304
    %v6743 = vadd.f32 %v6742, %v6305
    %v6744 = vadd.f32 %v6743, %v6306
    %v6745 = vadd.f32 %v6744, %v6307
    %v6746 = vadd.f32 %v6745, %v6308
    %v6747 = vsel %vm6581, %v6309, 0.0
    %v6748 = vadd.f32 %v6746, %v6747
    %6749 = vadd.xlane.f32.xlu0 %v6748
    %v6750 = vpop.xlane.xlu0 %6749
    %v6751 = vadd.f32 %v6310, %v6311
    %v6752 = vadd.f32 %v6751, %v6312
    %v6753 = vadd.f32 %v6752, %v6313
    %v6754 = vadd.f32 %v6753, %v6314
    %v6755 = vadd.f32 %v6754, %v6315
    %v6756 = vadd.f32 %v6755, %v6316
    %v6757 = vadd.f32 %v6756, %v6317
    %v6758 = vadd.f32 %v6757, %v6318
    %v6759 = vadd.f32 %v6758, %v6319
    %v6760 = vadd.f32 %v6759, %v6320
    %v6761 = vadd.f32 %v6760, %v6321
    %v6762 = vsel %vm6581, %v6322, 0.0
    %v6763 = vadd.f32 %v6761, %v6762
    %6764 = vadd.xlane.f32.xlu0 %v6763
    %v6765 = vpop.xlane.xlu0 %6764
    %v6766 = vadd.f32 %v6323, %v6324
    %v6767 = vadd.f32 %v6766, %v6325
    %v6768 = vadd.f32 %v6767, %v6326
    %v6769 = vadd.f32 %v6768, %v6327
    %v6770 = vadd.f32 %v6769, %v6328
    %v6771 = vadd.f32 %v6770, %v6329
    %v6772 = vadd.f32 %v6771, %v6330
    %v6773 = vadd.f32 %v6772, %v6331
    %v6774 = vadd.f32 %v6773, %v6332
    %v6775 = vadd.f32 %v6774, %v6333
    %v6776 = vadd.f32 %v6775, %v6334
    %v6777 = vsel %vm6581, %v6335, 0.0
    %v6778 = vadd.f32 %v6776, %v6777
    %6779 = vadd.xlane.f32.xlu0 %v6778
    %v6780 = vpop.xlane.xlu0 %6779
    %v6781 = vadd.f32 %v6336, %v6337
    %v6782 = vadd.f32 %v6781, %v6338
    %v6783 = vadd.f32 %v6782, %v6339
    %v6784 = vadd.f32 %v6783, %v6340
    %v6785 = vadd.f32 %v6784, %v6341
    %v6786 = vadd.f32 %v6785, %v6342
    %v6787 = vadd.f32 %v6786, %v6343
    %v6788 = vadd.f32 %v6787, %v6344
    %v6789 = vadd.f32 %v6788, %v6345
    %v6790 = vadd.f32 %v6789, %v6346
    %v6791 = vadd.f32 %v6790, %v6347
    %v6792 = vsel %vm6581, %v6348, 0.0
    %v6793 = vadd.f32 %v6791, %v6792
    %6794 = vadd.xlane.f32.xlu0 %v6793
    %v6795 = vpop.xlane.xlu0 %6794
    %v6796 = vadd.f32 %v6349, %v6350
    %v6797 = vadd.f32 %v6796, %v6351
    %v6798 = vadd.f32 %v6797, %v6352
    %v6799 = vadd.f32 %v6798, %v6353
    %v6800 = vadd.f32 %v6799, %v6354
    %v6801 = vadd.f32 %v6800, %v6355
    %v6802 = vadd.f32 %v6801, %v6356
    %v6803 = vadd.f32 %v6802, %v6357
    %v6804 = vadd.f32 %v6803, %v6358
    %v6805 = vadd.f32 %v6804, %v6359
    %v6806 = vadd.f32 %v6805, %v6360
    %v6807 = vsel %vm6581, %v6361, 0.0
    %v6808 = vadd.f32 %v6806, %v6807
    %6809 = vadd.xlane.f32.xlu0 %v6808
    %v6810 = vpop.xlane.xlu0 %6809
    %v6811 = vadd.f32 %v6362, %v6363
    %v6812 = vadd.f32 %v6811, %v6364
    %v6813 = vadd.f32 %v6812, %v6365
    %v6814 = vadd.f32 %v6813, %v6366
    %v6815 = vadd.f32 %v6814, %v6367
    %v6816 = vadd.f32 %v6815, %v6368
    %v6817 = vadd.f32 %v6816, %v6369
    %v6818 = vadd.f32 %v6817, %v6370
    %v6819 = vadd.f32 %v6818, %v6371
    %v6820 = vadd.f32 %v6819, %v6372
    %v6821 = vadd.f32 %v6820, %v6373
    %v6822 = vsel %vm6581, %v6374, 0.0
    %v6823 = vadd.f32 %v6821, %v6822
    %6824 = vadd.xlane.f32.xlu0 %v6823
    %v6825 = vpop.xlane.xlu0 %6824
    %v6826 = vadd.f32 %v6375, %v6376
    %v6827 = vadd.f32 %v6826, %v6377
    %v6828 = vadd.f32 %v6827, %v6378
    %v6829 = vadd.f32 %v6828, %v6379
    %v6830 = vadd.f32 %v6829, %v6380
    %v6831 = vadd.f32 %v6830, %v6381
    %v6832 = vadd.f32 %v6831, %v6382
    %v6833 = vadd.f32 %v6832, %v6383
    %v6834 = vadd.f32 %v6833, %v6384
    %v6835 = vadd.f32 %v6834, %v6385
    %v6836 = vadd.f32 %v6835, %v6386
    %v6837 = vsel %vm6581, %v6387, 0.0
    %v6838 = vadd.f32 %v6836, %v6837
    %6839 = vadd.xlane.f32.xlu0 %v6838
    %v6840 = vpop.xlane.xlu0 %6839
    %v6841 = vadd.f32 %v6388, %v6389
    %v6842 = vadd.f32 %v6841, %v6390
    %v6843 = vadd.f32 %v6842, %v6391
    %v6844 = vadd.f32 %v6843, %v6392
    %v6845 = vadd.f32 %v6844, %v6393
    %v6846 = vadd.f32 %v6845, %v6394
    %v6847 = vadd.f32 %v6846, %v6395
    %v6848 = vadd.f32 %v6847, %v6396
    %v6849 = vadd.f32 %v6848, %v6397
    %v6850 = vadd.f32 %v6849, %v6398
    %v6851 = vadd.f32 %v6850, %v6399
    %v6852 = vsel %vm6581, %v6400, 0.0
    %v6853 = vadd.f32 %v6851, %v6852
    %6854 = vadd.xlane.f32.xlu0 %v6853
    %v6855 = vpop.xlane.xlu0 %6854
    %v6856 = vadd.f32 %v6401, %v6402
    %v6857 = vadd.f32 %v6856, %v6403
    %v6858 = vadd.f32 %v6857, %v6404
    %v6859 = vadd.f32 %v6858, %v6405
    %v6860 = vadd.f32 %v6859, %v6406
    %v6861 = vadd.f32 %v6860, %v6407
    %v6862 = vadd.f32 %v6861, %v6408
    %v6863 = vadd.f32 %v6862, %v6409
    %v6864 = vadd.f32 %v6863, %v6410
    %v6865 = vadd.f32 %v6864, %v6411
    %v6866 = vadd.f32 %v6865, %v6412
    %v6867 = vsel %vm6581, %v6413, 0.0
    %v6868 = vadd.f32 %v6866, %v6867
    %6869 = vadd.xlane.f32.xlu0 %v6868
    %v6870 = vpop.xlane.xlu0 %6869
    %v6871 = vadd.f32 %v6414, %v6415
    %v6872 = vadd.f32 %v6871, %v6416
    %v6873 = vadd.f32 %v6872, %v6417
    %v6874 = vadd.f32 %v6873, %v6418
    %v6875 = vadd.f32 %v6874, %v6419
    %v6876 = vadd.f32 %v6875, %v6420
    %v6877 = vadd.f32 %v6876, %v6421
    %v6878 = vadd.f32 %v6877, %v6422
    %v6879 = vadd.f32 %v6878, %v6423
    %v6880 = vadd.f32 %v6879, %v6424
    %v6881 = vadd.f32 %v6880, %v6425
    %v6882 = vsel %vm6581, %v6426, 0.0
    %v6883 = vadd.f32 %v6881, %v6882
    %6884 = vadd.xlane.f32.xlu0 %v6883
    %v6885 = vpop.xlane.xlu0 %6884
    %v6886 = vadd.f32 %v6427, %v6428
    %v6887 = vadd.f32 %v6886, %v6429
    %v6888 = vadd.f32 %v6887, %v6430
    %v6889 = vadd.f32 %v6888, %v6431
    %v6890 = vadd.f32 %v6889, %v6432
    %v6891 = vadd.f32 %v6890, %v6433
    %v6892 = vadd.f32 %v6891, %v6434
    %v6893 = vadd.f32 %v6892, %v6435
    %v6894 = vadd.f32 %v6893, %v6436
    %v6895 = vadd.f32 %v6894, %v6437
    %v6896 = vadd.f32 %v6895, %v6438
    %v6897 = vsel %vm6581, %v6439, 0.0
    %v6898 = vadd.f32 %v6896, %v6897
    %6899 = vadd.xlane.f32.xlu0 %v6898
    %v6900 = vpop.xlane.xlu0 %6899
    %v6901 = vadd.f32 %v6440, %v6441
    %v6902 = vadd.f32 %v6901, %v6442
    %v6903 = vadd.f32 %v6902, %v6443
    %v6904 = vadd.f32 %v6903, %v6444
    %v6905 = vadd.f32 %v6904, %v6445
    %v6906 = vadd.f32 %v6905, %v6446
    %v6907 = vadd.f32 %v6906, %v6447
    %v6908 = vadd.f32 %v6907, %v6448
    %v6909 = vadd.f32 %v6908, %v6449
    %v6910 = vadd.f32 %v6909, %v6450
    %v6911 = vadd.f32 %v6910, %v6451
    %v6912 = vsel %vm6581, %v6452, 0.0
    %v6913 = vadd.f32 %v6911, %v6912
    %6914 = vadd.xlane.f32.xlu0 %v6913
    %v6915 = vpop.xlane.xlu0 %6914
    %v6916 = vadd.f32 %v6453, %v6454
    %v6917 = vadd.f32 %v6916, %v6455
    %v6918 = vadd.f32 %v6917, %v6456
    %v6919 = vadd.f32 %v6918, %v6457
    %v6920 = vadd.f32 %v6919, %v6458
    %v6921 = vadd.f32 %v6920, %v6459
    %v6922 = vadd.f32 %v6921, %v6460
    %v6923 = vadd.f32 %v6922, %v6461
    %v6924 = vadd.f32 %v6923, %v6462
    %v6925 = vadd.f32 %v6924, %v6463
    %v6926 = vadd.f32 %v6925, %v6464
    %v6927 = vsel %vm6581, %v6465, 0.0
    %v6928 = vadd.f32 %v6926, %v6927
    %6929 = vadd.xlane.f32.xlu0 %v6928
    %v6930 = vpop.xlane.xlu0 %6929
    %v6931 = vadd.f32 %v6466, %v6467
    %v6932 = vadd.f32 %v6931, %v6468
    %v6933 = vadd.f32 %v6932, %v6469
    %v6934 = vadd.f32 %v6933, %v6470
    %v6935 = vadd.f32 %v6934, %v6471
    %v6936 = vadd.f32 %v6935, %v6472
    %v6937 = vadd.f32 %v6936, %v6473
    %v6938 = vadd.f32 %v6937, %v6474
    %v6939 = vadd.f32 %v6938, %v6475
    %v6940 = vadd.f32 %v6939, %v6476
    %v6941 = vadd.f32 %v6940, %v6477
    %v6942 = vsel %vm6581, %v6478, 0.0
    %v6943 = vadd.f32 %v6941, %v6942
    %6944 = vadd.xlane.f32.xlu0 %v6943
    %v6945 = vpop.xlane.xlu0 %6944
    %v6946 = vadd.f32 %v6479, %v6480
    %v6947 = vadd.f32 %v6946, %v6481
    %v6948 = vadd.f32 %v6947, %v6482
    %v6949 = vadd.f32 %v6948, %v6483
    %v6950 = vadd.f32 %v6949, %v6484
    %v6951 = vadd.f32 %v6950, %v6485
    %v6952 = vadd.f32 %v6951, %v6486
    %v6953 = vadd.f32 %v6952, %v6487
    %v6954 = vadd.f32 %v6953, %v6488
    %v6955 = vadd.f32 %v6954, %v6489
    %v6956 = vadd.f32 %v6955, %v6490
    %v6957 = vsel %vm6581, %v6491, 0.0
    %v6958 = vadd.f32 %v6956, %v6957
    %6959 = vadd.xlane.f32.xlu0 %v6958
    %v6960 = vpop.xlane.xlu0 %6959
    %v6961 = vadd.f32 %v6492, %v6493
    %v6962 = vadd.f32 %v6961, %v6494
    %v6963 = vadd.f32 %v6962, %v6495
    %v6964 = vadd.f32 %v6963, %v6496
    %v6965 = vadd.f32 %v6964, %v6497
    %v6966 = vadd.f32 %v6965, %v6498
    %v6967 = vadd.f32 %v6966, %v6499
    %v6968 = vadd.f32 %v6967, %v6500
    %v6969 = vadd.f32 %v6968, %v6501
    %v6970 = vadd.f32 %v6969, %v6502
    %v6971 = vadd.f32 %v6970, %v6503
    %v6972 = vsel %vm6581, %v6504, 0.0
    %v6973 = vadd.f32 %v6971, %v6972
    %6974 = vadd.xlane.f32.xlu0 %v6973
    %v6975 = vpop.xlane.xlu0 %6974
    %v6976 = vadd.f32 %v6505, %v6506
    %v6977 = vadd.f32 %v6976, %v6507
    %v6978 = vadd.f32 %v6977, %v6508
    %v6979 = vadd.f32 %v6978, %v6509
    %v6980 = vadd.f32 %v6979, %v6510
    %v6981 = vadd.f32 %v6980, %v6511
    %v6982 = vadd.f32 %v6981, %v6512
    %v6983 = vadd.f32 %v6982, %v6513
    %v6984 = vadd.f32 %v6983, %v6514
    %v6985 = vadd.f32 %v6984, %v6515
    %v6986 = vadd.f32 %v6985, %v6516
    %v6987 = vsel %vm6581, %v6517, 0.0
    %v6988 = vadd.f32 %v6986, %v6987
    %6989 = vadd.xlane.f32.xlu0 %v6988
    %v6990 = vpop.xlane.xlu0 %6989
    %v6991 = vadd.f32 %v6518, %v6519
    %v6992 = vadd.f32 %v6991, %v6520
    %v6993 = vadd.f32 %v6992, %v6521
    %v6994 = vadd.f32 %v6993, %v6522
    %v6995 = vadd.f32 %v6994, %v6523
    %v6996 = vadd.f32 %v6995, %v6524
    %v6997 = vadd.f32 %v6996, %v6525
    %v6998 = vadd.f32 %v6997, %v6526
    %v6999 = vadd.f32 %v6998, %v6527
    %v7000 = vadd.f32 %v6999, %v6528
    %v7001 = vadd.f32 %v7000, %v6529
    %v7002 = vsel %vm6581, %v6530, 0.0
    %v7003 = vadd.f32 %v7001, %v7002
    %7004 = vadd.xlane.f32.xlu0 %v7003
    %v7005 = vpop.xlane.xlu0 %7004
    %v7006 = vadd.f32 %v6531, %v6532
    %v7007 = vadd.f32 %v7006, %v6533
    %v7008 = vadd.f32 %v7007, %v6534
    %v7009 = vadd.f32 %v7008, %v6535
    %v7010 = vadd.f32 %v7009, %v6536
    %v7011 = vadd.f32 %v7010, %v6537
    %v7012 = vadd.f32 %v7011, %v6538
    %v7013 = vadd.f32 %v7012, %v6539
    %v7014 = vadd.f32 %v7013, %v6540
    %v7015 = vadd.f32 %v7014, %v6541
    %v7016 = vadd.f32 %v7015, %v6542
    %v7017 = vsel %vm6581, %v6543, 0.0
    %v7018 = vadd.f32 %v7016, %v7017
    %7019 = vadd.xlane.f32.xlu0 %v7018
    %v7020 = vpop.xlane.xlu0 %7019
    %v7021 = vadd.f32 %v6544, %v6545
    %v7022 = vadd.f32 %v7021, %v6546
    %v7023 = vadd.f32 %v7022, %v6547
    %v7024 = vadd.f32 %v7023, %v6548
    %v7025 = vadd.f32 %v7024, %v6549
    %v7026 = vadd.f32 %v7025, %v6550
    %v7027 = vadd.f32 %v7026, %v6551
    %v7028 = vadd.f32 %v7027, %v6552
    %v7029 = vadd.f32 %v7028, %v6553
    %v7030 = vadd.f32 %v7029, %v6554
    %v7031 = vadd.f32 %v7030, %v6555
    %v7032 = vsel %vm6581, %v6556, 0.0
    %v7033 = vadd.f32 %v7031, %v7032
    %7034 = vadd.xlane.f32.xlu0 %v7033
    %v7035 = vpop.xlane.xlu0 %7034
    %v7036 = vadd.f32 %v6557, %v6558
    %v7037 = vadd.f32 %v7036, %v6559
    %v7038 = vadd.f32 %v7037, %v6560
    %v7039 = vadd.f32 %v7038, %v6561
    %v7040 = vadd.f32 %v7039, %v6562
    %v7041 = vadd.f32 %v7040, %v6563
    %v7042 = vadd.f32 %v7041, %v6564
    %v7043 = vadd.f32 %v7042, %v6565
    %v7044 = vadd.f32 %v7043, %v6566
    %v7045 = vadd.f32 %v7044, %v6567
    %v7046 = vadd.f32 %v7045, %v6568
    %v7047 = vsel %vm6581, %v6569, 0.0
    %v7048 = vadd.f32 %v7046, %v7047
    %7049 = vadd.xlane.f32.xlu0 %v7048
    %v7050 = vpop.xlane.xlu0 %7049
    %v7083 = vlaneseq
    %v7084 = vand.u32 %v7083, 127
    %v7085 = vlaneseq
    %v7086 = vshrl.u32 %v7085, 7
    %v7087 = vsub.s32 %v7084, %v7086
    %v7088 = vrot.slane %v6585, %v7087
    %v7089 = vadd.s32 %v7084, 4294967288
    %v7090 = vlaneseq
    %v7091 = vshrl.u32 %v7090, 7
    %v7092 = vsub.s32 %v7089, %v7091
    %v7093 = vrot.slane %v6600, %v7092
    %vm7094 = vcmask 130112
    %v7095 = vsel %vm7094, %v7093, %v7088
    %v7096 = vadd.s32 %v7084, 4294967280
    %v7097 = vlaneseq
    %v7098 = vshrl.u32 %v7097, 7
    %v7099 = vsub.s32 %v7096, %v7098
    %v7100 = vrot.slane %v6615, %v7099
    %vm7101 = vcmask 195712
    %v7102 = vsel %vm7101, %v7100, %v7095
    %v7103 = vadd.s32 %v7084, 4294967272
    %v7104 = vlaneseq
    %v7105 = vshrl.u32 %v7104, 7
    %v7106 = vsub.s32 %v7103, %v7105
    %v7107 = vrot.slane %v6630, %v7106
    %vm7108 = vcmask 261312
    %v7109 = vsel %vm7108, %v7107, %v7102
    %v7110 = vadd.s32 %v7084, 4294967264
    %v7111 = vlaneseq
    %v7112 = vshrl.u32 %v7111, 7
    %v7113 = vsub.s32 %v7110, %v7112
    %v7114 = vrot.slane %v6645, %v7113
    %vm7115 = vcmask 326912
    %v7116 = vsel %vm7115, %v7114, %v7109
    %v7117 = vadd.s32 %v7084, 4294967256
    %v7118 = vlaneseq
    %v7119 = vshrl.u32 %v7118, 7
    %v7120 = vsub.s32 %v7117, %v7119
    %v7121 = vrot.slane %v6660, %v7120
    %vm7122 = vcmask 392512
    %v7123 = vsel %vm7122, %v7121, %v7116
    %v7124 = vadd.s32 %v7084, 4294967248
    %v7125 = vlaneseq
    %v7126 = vshrl.u32 %v7125, 7
    %v7127 = vsub.s32 %v7124, %v7126
    %v7128 = vrot.slane %v6675, %v7127
    %vm7129 = vcmask 458112
    %v7130 = vsel %vm7129, %v7128, %v7123
    %v7131 = vadd.s32 %v7084, 4294967240
    %v7132 = vlaneseq
    %v7133 = vshrl.u32 %v7132, 7
    %v7134 = vsub.s32 %v7131, %v7133
    %v7135 = vrot.slane %v6690, %v7134
    %vm7136 = vcmask 523712
    %v7137 = vsel %vm7136, %v7135, %v7130
    %v7138 = vlaneseq
    %v7139 = vshrl.u32 %v7138, 7
    %v7140 = vsub.s32 %v7084, %v7139
    %v7141 = vrot.slane %v6705, %v7140
    %v7142 = vlaneseq
    %v7143 = vshrl.u32 %v7142, 7
    %v7144 = vsub.s32 %v7089, %v7143
    %v7145 = vrot.slane %v6720, %v7144
    %v7146 = vsel %vm7094, %v7145, %v7141
    %v7147 = vlaneseq
    %v7148 = vshrl.u32 %v7147, 7
    %v7149 = vsub.s32 %v7096, %v7148
    %v7150 = vrot.slane %v6735, %v7149
    %v7151 = vsel %vm7101, %v7150, %v7146
    %v7152 = vlaneseq
    %v7153 = vshrl.u32 %v7152, 7
    %v7154 = vsub.s32 %v7103, %v7153
    %v7155 = vrot.slane %v6750, %v7154
    %v7156 = vsel %vm7108, %v7155, %v7151
    %v7157 = vlaneseq
    %v7158 = vshrl.u32 %v7157, 7
    %v7159 = vsub.s32 %v7110, %v7158
    %v7160 = vrot.slane %v6765, %v7159
    %v7161 = vsel %vm7115, %v7160, %v7156
    %v7162 = vlaneseq
    %v7163 = vshrl.u32 %v7162, 7
    %v7164 = vsub.s32 %v7117, %v7163
    %v7165 = vrot.slane %v6780, %v7164
    %v7166 = vsel %vm7122, %v7165, %v7161
    %v7167 = vlaneseq
    %v7168 = vshrl.u32 %v7167, 7
    %v7169 = vsub.s32 %v7124, %v7168
    %v7170 = vrot.slane %v6795, %v7169
    %v7171 = vsel %vm7129, %v7170, %v7166
    %v7172 = vlaneseq
    %v7173 = vshrl.u32 %v7172, 7
    %v7174 = vsub.s32 %v7131, %v7173
    %v7175 = vrot.slane %v6810, %v7174
    %v7176 = vsel %vm7136, %v7175, %v7171
    %v7177 = vlaneseq
    %v7178 = vshrl.u32 %v7177, 7
    %v7179 = vsub.s32 %v7084, %v7178
    %v7180 = vrot.slane %v6825, %v7179
    %v7181 = vlaneseq
    %v7182 = vshrl.u32 %v7181, 7
    %v7183 = vsub.s32 %v7089, %v7182
    %v7184 = vrot.slane %v6840, %v7183
    %v7185 = vsel %vm7094, %v7184, %v7180
    %v7186 = vlaneseq
    %v7187 = vshrl.u32 %v7186, 7
    %v7188 = vsub.s32 %v7096, %v7187
    %v7189 = vrot.slane %v6855, %v7188
    %v7190 = vsel %vm7101, %v7189, %v7185
    %v7191 = vlaneseq
    %v7192 = vshrl.u32 %v7191, 7
    %v7193 = vsub.s32 %v7103, %v7192
    %v7194 = vrot.slane %v6870, %v7193
    %v7195 = vsel %vm7108, %v7194, %v7190
    %v7196 = vlaneseq
    %v7197 = vshrl.u32 %v7196, 7
    %v7198 = vsub.s32 %v7110, %v7197
    %v7199 = vrot.slane %v6885, %v7198
    %v7200 = vsel %vm7115, %v7199, %v7195
    %v7201 = vlaneseq
    %v7202 = vshrl.u32 %v7201, 7
    %v7203 = vsub.s32 %v7117, %v7202
    %v7204 = vrot.slane %v6900, %v7203
    %v7205 = vsel %vm7122, %v7204, %v7200
    %v7206 = vlaneseq
    %v7207 = vshrl.u32 %v7206, 7
    %v7208 = vsub.s32 %v7124, %v7207
    %v7209 = vrot.slane %v6915, %v7208
    %v7210 = vsel %vm7129, %v7209, %v7205
    %v7211 = vlaneseq
    %v7212 = vshrl.u32 %v7211, 7
    %v7213 = vsub.s32 %v7131, %v7212
    %v7214 = vrot.slane %v6930, %v7213
    %v7215 = vsel %vm7136, %v7214, %v7210
    %v7216 = vlaneseq
    %v7217 = vshrl.u32 %v7216, 7
    %v7218 = vsub.s32 %v7084, %v7217
    %v7219 = vrot.slane %v6945, %v7218
    %v7220 = vlaneseq
    %v7221 = vshrl.u32 %v7220, 7
    %v7222 = vsub.s32 %v7089, %v7221
    %v7223 = vrot.slane %v6960, %v7222
    %v7224 = vsel %vm7094, %v7223, %v7219
    %v7225 = vlaneseq
    %v7226 = vshrl.u32 %v7225, 7
    %v7227 = vsub.s32 %v7096, %v7226
    %v7228 = vrot.slane %v6975, %v7227
    %v7229 = vsel %vm7101, %v7228, %v7224
    %v7230 = vlaneseq
    %v7231 = vshrl.u32 %v7230, 7
    %v7232 = vsub.s32 %v7103, %v7231
    %v7233 = vrot.slane %v6990, %v7232
    %v7234 = vsel %vm7108, %v7233, %v7229
    %v7235 = vlaneseq
    %v7236 = vshrl.u32 %v7235, 7
    %v7237 = vsub.s32 %v7110, %v7236
    %v7238 = vrot.slane %v7005, %v7237
    %v7239 = vsel %vm7115, %v7238, %v7234
    %v7240 = vlaneseq
    %v7241 = vshrl.u32 %v7240, 7
    %v7242 = vsub.s32 %v7117, %v7241
    %v7243 = vrot.slane %v7020, %v7242
    %v7244 = vsel %vm7122, %v7243, %v7239
    %v7245 = vlaneseq
    %v7246 = vshrl.u32 %v7245, 7
    %v7247 = vsub.s32 %v7124, %v7246
    %v7248 = vrot.slane %v7035, %v7247
    %v7249 = vsel %vm7129, %v7248, %v7244
    %v7250 = vlaneseq
    %v7251 = vshrl.u32 %v7250, 7
    %v7252 = vsub.s32 %v7131, %v7251
    %v7253 = vrot.slane %v7050, %v7252
    %v7254 = vsel %vm7136, %v7253, %v7249
    %vm7255 = vcmask 1041409
    %v7256 = vsel %vm7255, %v7176, %v7137
    %vm7257 = vcmask 1042434
    %v7258 = vsel %vm7257, %v7215, %v7256
    %vm7259 = vcmask 1043459
    %v7260 = vsel %vm7259, %v7254, %v7258
    %vm7262 = vcmask 519168
    %v7263 = vsel %vm7262, %v7260, 0.0
    %7264 = vadd.xlane.f32.xlu0 %v7263
    %v7265 = vpop.xlane.xlu0 %7264
    %v7266 = vld [vmem:[%s7] sm:$0x1]
    %v7268 = vlaneseq
    %v7269 = vshrl.u32 %v7268, 7
    %v7270 = vsub.s32 0, %v7269
    %v7271 = vrot.slane %v7266, %v7270
    %7273 = vbcast.lane.b32.xlu0 %v7271, 256
    %v7274 = vpop.permute.xlu0 %7273
    %v7276 = vadd.f32 %v7265, %v7274
    %7278 = vset.pattern.permute.xlu0 0
    %7279 = vperm.xlu0 %7278, %v7276
    %v7280 = vpop.permute.xlu0 %7279
    %v7281 = vlaneseq
    %v7282 = vshrl.u32 %v7281, 7
    %v7283 = vsub.s32 %v7084, %v7282
    %v7284 = vrot.slane %v7280, %v7283
    %vm7286 = vcmask 24576
    %7287 = vst.msk [vmem:[#allocation2] sm:$0x1] %vm7286, %v7284
    // Predicated region
    $region34: #{dqn_forward.1} parent=1 // pred_check
      _
    $region35: #{dqn_forward.1} parent=1 // pred_check_branch
      %7289 = sbr.rel (0) target = $region37
    $region36: #{dqn_forward.1} parent=1 // pred_region
      %s7291 = ssub.s32 16, 16
      %7292 = vsyncadd [#allocation3], %s7291
      %s7294 = sshll.u32 [#allocation2], 4
      %s7295 = int_to_ptr.vmem [resolvable:$true] %s7294
      %7297 = dma.vmem_to_hbm [thread:$0]  %s7295, 16, %s8, [#allocation3]
    $region37: #{dqn_forward.1} parent=1 // pred_fallthru
      _
    // Predicated region
    $region38: #{dqn_forward.1} parent=1 // pred_check
      _
    $region39: #{dqn_forward.1} parent=1 // pred_check_branch
      %7299 = sbr.rel (0) target = $region41
    $region40: #{dqn_forward.1} parent=1 // pred_region
      %7300 = dma.done [#allocation3], 16
    $region41: #{dqn_forward.1} parent=1 // pred_fallthru
      _
    %7301 = vsyncpa [#allocation3], 1

</llo_original>
